<compile_context>
chip_gen: v7x
topology: tpu7x:2x2x1
jax: 0.10.0
libtpu: 0.0.40
codegen_flags: <defaults>
</compile_context>

<pallas_src>
import functools

import jax
import jax.numpy as jnp
from jax.experimental import pallas as pl
from jax.experimental.pallas import tpu as pltpu

C = 64  # channel width of every conv in the live chain


# --------------------------------------------------------------------------
# Fused kernel: the whole live conv chain for one image.
# All activations are (rows, C) matrices, rows = row-major spatial positions.
# --------------------------------------------------------------------------
def _fused_chain_kernel(p_ref, w1_ref, b1_ref, w56_ref, b56_ref, w8_ref, b8_ref,
                        w9_ref, b9_ref, w1011_ref, b1011_ref, w12_ref, b12_ref,
                        o_ref, padA_ref, padB_ref, *, h, w):
    f32 = jnp.float32
    hA, wA = h - 2, w - 2        # spatial after conv1 (3x3, valid)
    hB, wB = h, w                # spatial after conv8 (1x1, pad=1)
    hC, wC = h + 2, w + 2        # spatial after conv9 (1x1, pad=1)
    nB = hB * wB
    nC = hC * wC

    def mm(x, w_r, b_r):
        return jnp.dot(x, w_r[...], preferred_element_type=f32) + b_r[...]

    def relu(t):
        return jnp.maximum(t, 0.0)

    # conv1 (3x3 valid, patches pre-built by the wrapper) + relu -> (hA*wA, C)
    a = relu(mm(p_ref[...], w1_ref, b1_ref))

    # folded conv5 @ conv6 (1x1, no relu between them) + relu    -> (hA*wA, C)
    a = relu(mm(a, w56_ref, b56_ref))

    # conv8 (1x1, pad=1) + relu: build the zero-padded input in flat layout,
    # then a single (nB, C) x (C, C) matmul.
    padA_ref[...] = jnp.zeros(padA_ref.shape, f32)
    for i in range(hA):
        d = (i + 1) * wB + 1
        padA_ref[d:d + wA, :] = a[i * wA:(i + 1) * wA, :]
    a = relu(mm(padA_ref[...], w8_ref, b8_ref))                  # (nB, C)

    # conv9 (1x1, pad=1) + relu
    padB_ref[...] = jnp.zeros(padB_ref.shape, f32)
    for i in range(hB):
        d = (i + 1) * wC + 1
        padB_ref[d:d + wB, :] = a[i * wB:(i + 1) * wB, :]
    a = relu(mm(padB_ref[0:nC, :], w9_ref, b9_ref))              # (nC, C)

    # folded conv10 @ conv11 (3x3 valid) + relu: nine shifted-slice matmuls on
    # the flat activation.  padB has >= 2*wC + 2 zero slack rows past nC, so
    # the shifted reads never go out of bounds.  Rows p = i*wC + j with
    # i < h, j < w hold the valid conv outputs; the rest is junk the wrapper
    # discards.
    padB_ref[0:nC, :] = a
    acc = jnp.zeros((nC, C), f32) + b1011_ref[...]
    for ki in range(3):
        for kj in range(3):
            s = ki * wC + kj
            acc = acc + jnp.dot(padB_ref[s:s + nC, :],
                                w1011_ref[ki * 3 + kj],
                                preferred_element_type=f32)
    a = relu(acc)                                                # (nC, C)

    # conv12 (1x1) + relu
    a = relu(mm(a, w12_ref, b12_ref))                            # (nC, C)

    o_ref[...] = a.astype(o_ref.dtype)


def fused_forward(patches, fp, *, h, w):
    n, npatch, kdim = patches.shape
    hC, wC = h + 2, w + 2
    nB = h * w
    nC = hC * wC
    rows_pad = ((nC + 2 * wC + 2) + 7) // 8 * 8  # slack for shifted 3x3 reads

    kernel = functools.partial(_fused_chain_kernel, h=h, w=w)
    c2 = lambda i: (0, 0)
    c3 = lambda i: (0, 0, 0)

    return pl.pallas_call(
        kernel,
        out_shape=jax.ShapeDtypeStruct((n, nC, C), patches.dtype),
        grid_spec=pltpu.PrefetchScalarGridSpec(
            num_scalar_prefetch=0,
            grid=(n,),
            in_specs=[
                pl.BlockSpec((None, npatch, kdim), lambda i: (i, 0, 0)),
                pl.BlockSpec((kdim, C), c2),    # conv1 weight (27, 64)
                pl.BlockSpec((1, C), c2),       # conv1 bias
                pl.BlockSpec((C, C), c2),       # folded conv5@conv6 weight
                pl.BlockSpec((1, C), c2),
                pl.BlockSpec((C, C), c2),       # conv8 weight
                pl.BlockSpec((1, C), c2),
                pl.BlockSpec((C, C), c2),       # conv9 weight
                pl.BlockSpec((1, C), c2),
                pl.BlockSpec((9, C, C), c3),    # folded conv10@conv11 taps
                pl.BlockSpec((1, C), c2),
                pl.BlockSpec((C, C), c2),       # conv12 weight
                pl.BlockSpec((1, C), c2),
            ],
            out_specs=pl.BlockSpec((None, nC, C), lambda i: (i, 0, 0)),
            scratch_shapes=[
                pltpu.VMEM((nB, C), jnp.float32),        # padded conv8 input
                pltpu.VMEM((rows_pad, C), jnp.float32),  # conv9 input / conv10 taps
            ],
        ),
        compiler_params=pltpu.CompilerParams(
            dimension_semantics=("parallel",)),
    )(patches, fp['w1'], fp['b1'], fp['w56'], fp['b56'], fp['w8'], fp['b8'],
      fp['w9'], fp['b9'], fp['w1011'], fp['b1011'], fp['w12'], fp['b12'])


# --------------------------------------------------------------------------
# Parameters
# --------------------------------------------------------------------------
def init_params(key):
    """Deterministic PyTorch-like uniform(-1/sqrt(fan_in), ..) init, HWIO."""
    specs = {
        'conv1': (3, 3, 3, 64),  'conv2': (1, 1, 64, 64), 'conv3': (1, 1, 64, 64),
        'conv4': (3, 3, 64, 64), 'conv5': (1, 1, 64, 64), 'conv6': (1, 1, 64, 64),
        'conv7': (3, 3, 64, 64), 'conv8': (1, 1, 64, 64), 'conv9': (1, 1, 64, 64),
        'conv10': (3, 3, 64, 64), 'conv11': (1, 1, 64, 64), 'conv12': (1, 1, 64, 64),
    }
    params = {}
    for name, (kh, kw, cin, cout) in specs.items():
        key, kwk, kbk = jax.random.split(key, 3)
        bound = 1.0 / (kh * kw * cin) ** 0.5
        wgt = jax.random.uniform(kwk, (kh, kw, cin, cout), jnp.float32, -bound, bound)
        bias = jax.random.uniform(kbk, (cout,), jnp.float32, -bound, bound)
        params[name] = (wgt, bias)
    return params


def fold_params(params):
    """One-time algebraic fold of the ReLU-free conv pairs (done outside jit).
    conv2/3/4/7 never feed the returned tensor, so they are not needed here."""
    w1, b1 = params['conv1']
    w5, b5 = params['conv5']
    w6, b6 = params['conv6']
    w8, b8 = params['conv8']
    w9, b9 = params['conv9']
    w10, b10 = params['conv10']
    w11, b11 = params['conv11']
    w12, b12 = params['conv12']
    W5, W6 = w5.reshape(C, C), w6.reshape(C, C)
    W11 = w11.reshape(C, C)
    return {
        'w1': w1.reshape(-1, C),                 # (27, 64), (kh,kw,cin) row order
        'b1': b1.reshape(1, C),
        'w56': W5 @ W6,                          # conv6(conv5(x)) == x @ (W5@W6) + ..
        'b56': (b5 @ W6 + b6).reshape(1, C),
        'w8': w8.reshape(C, C), 'b8': b8.reshape(1, C),
        'w9': w9.reshape(C, C), 'b9': b9.reshape(1, C),
        'w1011': jnp.einsum('hwik,kj->hwij', w10, W11).reshape(9, C, C),
        'b1011': (b10 @ W11 + b11).reshape(1, C),
        'w12': w12.reshape(C, C), 'b12': b12.reshape(1, C),
    }


# --------------------------------------------------------------------------
# Forward
# --------------------------------------------------------------------------
def model_forward(x_nchw, fp):
    # NCHW in/out to match PyTorch; channel-last internally (lane-dense K).
    x = jnp.transpose(x_nchw, (0, 2, 3, 1)).astype(jnp.float32)
    n, h, w, cin = x.shape
    hA, wA = h - 2, w - 2
    # im2col for conv1 only (3 input channels -> tiny patch matrix).
    cols = [x[:, i:i + hA, j:j + wA, :] for i in range(3) for j in range(3)]
    patches = jnp.concatenate(cols, axis=-1).reshape(n, hA * wA, 9 * cin)
    out_flat = fused_forward(patches, fp, h=h, w=w)              # (n, (h+2)*(w+2), C)
    y = out_flat.reshape(n, h + 2, w + 2, C)[:, :h, :w, :]       # drop junk rows
    return jnp.transpose(y, (0, 3, 1, 2))


def _reference_forward(x_nchw, params):
    """Pure-XLA reference of the original module's live dataflow."""
    x = jnp.transpose(x_nchw, (0, 2, 3, 1)).astype(jnp.float32)

    def conv(inp, wgt, bias, pad):
        y = jax.lax.conv_general_dilated(
            inp, wgt, window_strides=(1, 1),
            padding=[(pad, pad), (pad, pad)],
            dimension_numbers=('NHWC', 'HWIO', 'NHWC'))
        return y + bias

    relu = lambda t: jnp.maximum(t, 0.0)
    v4 = relu(conv(x, *params['conv1'], 0))      # relu(relu(conv1)) == relu(conv1)
    v9 = conv(v4, *params['conv5'], 0)
    v12 = relu(conv(v9, *params['conv6'], 0))
    v16 = relu(conv(v12, *params['conv8'], 1))
    v18 = relu(conv(v16, *params['conv9'], 1))
    v19 = conv(v18, *params['conv10'], 0)
    v22 = relu(conv(v19, *params['conv11'], 0))
    v24 = relu(conv(v22, *params['conv12'], 0))
    return jnp.transpose(v24, (0, 3, 1, 2))


if __name__ == "__main__":
    key = jax.random.PRNGKey(0)
    pkey, xkey = jax.random.split(key)
    params = init_params(pkey)
    fparams = fold_params(params)                      # fold once, outside jit
    x1 = jax.random.normal(xkey, (2, 3, 16, 16), jnp.float32)

    fwd = jax.jit(lambda xx: model_forward(xx, fparams))
    out = fwd(x1)
    jax.block_until_ready(out)

    # conv1 (-2), conv8 (+2), conv9 (+2), conv10 (-2) -> output spatial == input.
    assert out.shape == (2, 64, 16, 16), out.shape
    assert out.dtype == jnp.float32

    ref = _reference_forward(x1, params)
    max_err = float(jnp.max(jnp.abs(out - ref)))
    assert max_err < 5e-2, max_err                     # loose: folding + MXU precision

    print("KERNEL_OK")
</pallas_src>

<mosaic_0001>
module attributes {stable_mosaic.version = 11 : i64} {
  func.func @_fused_chain_kernel(%arg0: i32, %arg1: memref<1x196x27xf32, #tpu.memory_space<vmem>>, %arg2: memref<27x64xf32, #tpu.memory_space<vmem>>, %arg3: memref<1x64xf32, #tpu.memory_space<vmem>>, %arg4: memref<64x64xf32, #tpu.memory_space<vmem>>, %arg5: memref<1x64xf32, #tpu.memory_space<vmem>>, %arg6: memref<64x64xf32, #tpu.memory_space<vmem>>, %arg7: memref<1x64xf32, #tpu.memory_space<vmem>>, %arg8: memref<64x64xf32, #tpu.memory_space<vmem>>, %arg9: memref<1x64xf32, #tpu.memory_space<vmem>>, %arg10: memref<9x64x64xf32, #tpu.memory_space<vmem>>, %arg11: memref<1x64xf32, #tpu.memory_space<vmem>>, %arg12: memref<64x64xf32, #tpu.memory_space<vmem>>, %arg13: memref<1x64xf32, #tpu.memory_space<vmem>>, %arg14: memref<1x324x64xf32, #tpu.memory_space<vmem>>, %arg15: memref<256x64xf32, #tpu.memory_space<vmem>>, %arg16: memref<368x64xf32, #tpu.memory_space<vmem>>) attributes {dimension_semantics = [#tpu.dimension_semantics<parallel>], iteration_bounds = array<i64: 2>, scalar_prefetch = 0 : i64, scratch_operands = 2 : i64, tpu.core_type = #tpu.core_type<tc>, window_params = [{transform_indices = @transform_0, window_bounds = array<i64: 1, 196, 27>}, {pipeline_mode = #tpu.pipeline_mode<synchronous>, transform_indices = @transform_1, window_bounds = array<i64: 27, 64>}, {pipeline_mode = #tpu.pipeline_mode<synchronous>, transform_indices = @transform_2, window_bounds = array<i64: 1, 64>}, {pipeline_mode = #tpu.pipeline_mode<synchronous>, transform_indices = @transform_3, window_bounds = array<i64: 64, 64>}, {pipeline_mode = #tpu.pipeline_mode<synchronous>, transform_indices = @transform_4, window_bounds = array<i64: 1, 64>}, {pipeline_mode = #tpu.pipeline_mode<synchronous>, transform_indices = @transform_5, window_bounds = array<i64: 64, 64>}, {pipeline_mode = #tpu.pipeline_mode<synchronous>, transform_indices = @transform_6, window_bounds = array<i64: 1, 64>}, {pipeline_mode = #tpu.pipeline_mode<synchronous>, transform_indices = @transform_7, window_bounds = array<i64: 64, 64>}, {pipeline_mode = #tpu.pipeline_mode<synchronous>, transform_indices = @transform_8, window_bounds = array<i64: 1, 64>}, {pipeline_mode = #tpu.pipeline_mode<synchronous>, transform_indices = @transform_9, window_bounds = array<i64: 9, 64, 64>}, {pipeline_mode = #tpu.pipeline_mode<synchronous>, transform_indices = @transform_10, window_bounds = array<i64: 1, 64>}, {pipeline_mode = #tpu.pipeline_mode<synchronous>, transform_indices = @transform_11, window_bounds = array<i64: 64, 64>}, {pipeline_mode = #tpu.pipeline_mode<synchronous>, transform_indices = @transform_12, window_bounds = array<i64: 1, 64>}, {transform_indices = @transform_13, window_bounds = array<i64: 1, 324, 64>}]} {
    %c0 = arith.constant 0 : index
    %c0_0 = arith.constant 0 : index
    %c0_1 = arith.constant 0 : index
    %0 = vector.load %arg1[%c0, %c0_0, %c0_1] : memref<1x196x27xf32, #tpu.memory_space<vmem>>, vector<1x196x27xf32>
    %1 = vector.shape_cast %0 : vector<1x196x27xf32> to vector<196x27xf32>
    %c0_2 = arith.constant 0 : index
    %c0_3 = arith.constant 0 : index
    %2 = vector.load %arg2[%c0_2, %c0_3] : memref<27x64xf32, #tpu.memory_space<vmem>>, vector<27x64xf32>
    %cst = arith.constant dense<0.000000e+00> : vector<196x64xf32>
    %3 = tpu.matmul %1, %2, %cst {dimension_numbers = #tpu.dot_dimension_numbers<[1], [0], [0], [1], [0, 0, 1, 1], [], []>} : vector<196x27xf32>, vector<27x64xf32>, vector<196x64xf32> -> vector<196x64xf32>
    %c0_4 = arith.constant 0 : index
    %c0_5 = arith.constant 0 : index
    %4 = vector.load %arg3[%c0_4, %c0_5] : memref<1x64xf32, #tpu.memory_space<vmem>>, vector<1x64xf32>
    %5 = vector.broadcast %4 : vector<1x64xf32> to vector<196x64xf32>
    %6 = arith.addf %3, %5 : vector<196x64xf32>
    %cst_6 = arith.constant 0.000000e+00 : f32
    %7 = vector.broadcast %cst_6 : f32 to vector<196x64xf32>
    %8 = arith.maximumf %6, %7 : vector<196x64xf32>
    %c0_7 = arith.constant 0 : index
    %c0_8 = arith.constant 0 : index
    %9 = vector.load %arg4[%c0_7, %c0_8] : memref<64x64xf32, #tpu.memory_space<vmem>>, vector<64x64xf32>
    %cst_9 = arith.constant dense<0.000000e+00> : vector<196x64xf32>
    %10 = tpu.matmul %8, %9, %cst_9 {dimension_numbers = #tpu.dot_dimension_numbers<[1], [0], [0], [1], [0, 0, 1, 1], [], []>} : vector<196x64xf32>, vector<64x64xf32>, vector<196x64xf32> -> vector<196x64xf32>
    %c0_10 = arith.constant 0 : index
    %c0_11 = arith.constant 0 : index
    %11 = vector.load %arg5[%c0_10, %c0_11] : memref<1x64xf32, #tpu.memory_space<vmem>>, vector<1x64xf32>
    %12 = vector.broadcast %11 : vector<1x64xf32> to vector<196x64xf32>
    %13 = arith.addf %10, %12 : vector<196x64xf32>
    %cst_12 = arith.constant 0.000000e+00 : f32
    %14 = vector.broadcast %cst_12 : f32 to vector<196x64xf32>
    %15 = arith.maximumf %13, %14 : vector<196x64xf32>
    %cst_13 = arith.constant 0.000000e+00 : f32
    %16 = vector.broadcast %cst_13 : f32 to vector<256x64xf32>
    %c0_14 = arith.constant 0 : index
    %c0_15 = arith.constant 0 : index
    %17 = vector.load %arg15[%c0_14, %c0_15] : memref<256x64xf32, #tpu.memory_space<vmem>>, vector<256x64xf32>
    tpu.vector_store %arg15[%c0_14, %c0_15], %16 {strides = array<i32>} : memref<256x64xf32, #tpu.memory_space<vmem>>, vector<256x64xf32>,
    %18 = vector.extract_strided_slice %15 {offsets = [0, 0], sizes = [14, 64], strides = [1, 1]} : vector<196x64xf32> to vector<14x64xf32>
    %c17 = arith.constant 17 : index
    %c0_16 = arith.constant 0 : index
    %19 = vector.load %arg15[%c17, %c0_16] : memref<256x64xf32, #tpu.memory_space<vmem>>, vector<14x64xf32>
    tpu.vector_store %arg15[%c17, %c0_16], %18 {strides = array<i32>} : memref<256x64xf32, #tpu.memory_space<vmem>>, vector<14x64xf32>,
    %20 = vector.extract_strided_slice %15 {offsets = [14, 0], sizes = [14, 64], strides = [1, 1]} : vector<196x64xf32> to vector<14x64xf32>
    %c33 = arith.constant 33 : index
    %c0_17 = arith.constant 0 : index
    %21 = vector.load %arg15[%c33, %c0_17] : memref<256x64xf32, #tpu.memory_space<vmem>>, vector<14x64xf32>
    tpu.vector_store %arg15[%c33, %c0_17], %20 {strides = array<i32>} : memref<256x64xf32, #tpu.memory_space<vmem>>, vector<14x64xf32>,
    %22 = vector.extract_strided_slice %15 {offsets = [28, 0], sizes = [14, 64], strides = [1, 1]} : vector<196x64xf32> to vector<14x64xf32>
    %c49 = arith.constant 49 : index
    %c0_18 = arith.constant 0 : index
    %23 = vector.load %arg15[%c49, %c0_18] : memref<256x64xf32, #tpu.memory_space<vmem>>, vector<14x64xf32>
    tpu.vector_store %arg15[%c49, %c0_18], %22 {strides = array<i32>} : memref<256x64xf32, #tpu.memory_space<vmem>>, vector<14x64xf32>,
    %24 = vector.extract_strided_slice %15 {offsets = [42, 0], sizes = [14, 64], strides = [1, 1]} : vector<196x64xf32> to vector<14x64xf32>
    %c65 = arith.constant 65 : index
    %c0_19 = arith.constant 0 : index
    %25 = vector.load %arg15[%c65, %c0_19] : memref<256x64xf32, #tpu.memory_space<vmem>>, vector<14x64xf32>
    tpu.vector_store %arg15[%c65, %c0_19], %24 {strides = array<i32>} : memref<256x64xf32, #tpu.memory_space<vmem>>, vector<14x64xf32>,
    %26 = vector.extract_strided_slice %15 {offsets = [56, 0], sizes = [14, 64], strides = [1, 1]} : vector<196x64xf32> to vector<14x64xf32>
    %c81 = arith.constant 81 : index
    %c0_20 = arith.constant 0 : index
    %27 = vector.load %arg15[%c81, %c0_20] : memref<256x64xf32, #tpu.memory_space<vmem>>, vector<14x64xf32>
    tpu.vector_store %arg15[%c81, %c0_20], %26 {strides = array<i32>} : memref<256x64xf32, #tpu.memory_space<vmem>>, vector<14x64xf32>,
    %28 = vector.extract_strided_slice %15 {offsets = [70, 0], sizes = [14, 64], strides = [1, 1]} : vector<196x64xf32> to vector<14x64xf32>
    %c97 = arith.constant 97 : index
    %c0_21 = arith.constant 0 : index
    %29 = vector.load %arg15[%c97, %c0_21] : memref<256x64xf32, #tpu.memory_space<vmem>>, vector<14x64xf32>
    tpu.vector_store %arg15[%c97, %c0_21], %28 {strides = array<i32>} : memref<256x64xf32, #tpu.memory_space<vmem>>, vector<14x64xf32>,
    %30 = vector.extract_strided_slice %15 {offsets = [84, 0], sizes = [14, 64], strides = [1, 1]} : vector<196x64xf32> to vector<14x64xf32>
    %c113 = arith.constant 113 : index
    %c0_22 = arith.constant 0 : index
    %31 = vector.load %arg15[%c113, %c0_22] : memref<256x64xf32, #tpu.memory_space<vmem>>, vector<14x64xf32>
    tpu.vector_store %arg15[%c113, %c0_22], %30 {strides = array<i32>} : memref<256x64xf32, #tpu.memory_space<vmem>>, vector<14x64xf32>,
    %32 = vector.extract_strided_slice %15 {offsets = [98, 0], sizes = [14, 64], strides = [1, 1]} : vector<196x64xf32> to vector<14x64xf32>
    %c129 = arith.constant 129 : index
    %c0_23 = arith.constant 0 : index
    %33 = vector.load %arg15[%c129, %c0_23] : memref<256x64xf32, #tpu.memory_space<vmem>>, vector<14x64xf32>
    tpu.vector_store %arg15[%c129, %c0_23], %32 {strides = array<i32>} : memref<256x64xf32, #tpu.memory_space<vmem>>, vector<14x64xf32>,
    %34 = vector.extract_strided_slice %15 {offsets = [112, 0], sizes = [14, 64], strides = [1, 1]} : vector<196x64xf32> to vector<14x64xf32>
    %c145 = arith.constant 145 : index
    %c0_24 = arith.constant 0 : index
    %35 = vector.load %arg15[%c145, %c0_24] : memref<256x64xf32, #tpu.memory_space<vmem>>, vector<14x64xf32>
    tpu.vector_store %arg15[%c145, %c0_24], %34 {strides = array<i32>} : memref<256x64xf32, #tpu.memory_space<vmem>>, vector<14x64xf32>,
    %36 = vector.extract_strided_slice %15 {offsets = [126, 0], sizes = [14, 64], strides = [1, 1]} : vector<196x64xf32> to vector<14x64xf32>
    %c161 = arith.constant 161 : index
    %c0_25 = arith.constant 0 : index
    %37 = vector.load %arg15[%c161, %c0_25] : memref<256x64xf32, #tpu.memory_space<vmem>>, vector<14x64xf32>
    tpu.vector_store %arg15[%c161, %c0_25], %36 {strides = array<i32>} : memref<256x64xf32, #tpu.memory_space<vmem>>, vector<14x64xf32>,
    %38 = vector.extract_strided_slice %15 {offsets = [140, 0], sizes = [14, 64], strides = [1, 1]} : vector<196x64xf32> to vector<14x64xf32>
    %c177 = arith.constant 177 : index
    %c0_26 = arith.constant 0 : index
    %39 = vector.load %arg15[%c177, %c0_26] : memref<256x64xf32, #tpu.memory_space<vmem>>, vector<14x64xf32>
    tpu.vector_store %arg15[%c177, %c0_26], %38 {strides = array<i32>} : memref<256x64xf32, #tpu.memory_space<vmem>>, vector<14x64xf32>,
    %40 = vector.extract_strided_slice %15 {offsets = [154, 0], sizes = [14, 64], strides = [1, 1]} : vector<196x64xf32> to vector<14x64xf32>
    %c193 = arith.constant 193 : index
    %c0_27 = arith.constant 0 : index
    %41 = vector.load %arg15[%c193, %c0_27] : memref<256x64xf32, #tpu.memory_space<vmem>>, vector<14x64xf32>
    tpu.vector_store %arg15[%c193, %c0_27], %40 {strides = array<i32>} : memref<256x64xf32, #tpu.memory_space<vmem>>, vector<14x64xf32>,
    %42 = vector.extract_strided_slice %15 {offsets = [168, 0], sizes = [14, 64], strides = [1, 1]} : vector<196x64xf32> to vector<14x64xf32>
    %c209 = arith.constant 209 : index
    %c0_28 = arith.constant 0 : index
    %43 = vector.load %arg15[%c209, %c0_28] : memref<256x64xf32, #tpu.memory_space<vmem>>, vector<14x64xf32>
    tpu.vector_store %arg15[%c209, %c0_28], %42 {strides = array<i32>} : memref<256x64xf32, #tpu.memory_space<vmem>>, vector<14x64xf32>,
    %44 = vector.extract_strided_slice %15 {offsets = [182, 0], sizes = [14, 64], strides = [1, 1]} : vector<196x64xf32> to vector<14x64xf32>
    %c225 = arith.constant 225 : index
    %c0_29 = arith.constant 0 : index
    %45 = vector.load %arg15[%c225, %c0_29] : memref<256x64xf32, #tpu.memory_space<vmem>>, vector<14x64xf32>
    tpu.vector_store %arg15[%c225, %c0_29], %44 {strides = array<i32>} : memref<256x64xf32, #tpu.memory_space<vmem>>, vector<14x64xf32>,
    %c0_30 = arith.constant 0 : index
    %c0_31 = arith.constant 0 : index
    %46 = vector.load %arg15[%c0_30, %c0_31] : memref<256x64xf32, #tpu.memory_space<vmem>>, vector<256x64xf32>
    %c0_32 = arith.constant 0 : index
    %c0_33 = arith.constant 0 : index
    %47 = vector.load %arg6[%c0_32, %c0_33] : memref<64x64xf32, #tpu.memory_space<vmem>>, vector<64x64xf32>
    %cst_34 = arith.constant dense<0.000000e+00> : vector<256x64xf32>
    %48 = tpu.matmul %46, %47, %cst_34 {dimension_numbers = #tpu.dot_dimension_numbers<[1], [0], [0], [1], [0, 0, 1, 1], [], []>} : vector<256x64xf32>, vector<64x64xf32>, vector<256x64xf32> -> vector<256x64xf32>
    %c0_35 = arith.constant 0 : index
    %c0_36 = arith.constant 0 : index
    %49 = vector.load %arg7[%c0_35, %c0_36] : memref<1x64xf32, #tpu.memory_space<vmem>>, vector<1x64xf32>
    %50 = vector.broadcast %49 : vector<1x64xf32> to vector<256x64xf32>
    %51 = arith.addf %48, %50 : vector<256x64xf32>
    %cst_37 = arith.constant 0.000000e+00 : f32
    %52 = vector.broadcast %cst_37 : f32 to vector<256x64xf32>
    %53 = arith.maximumf %51, %52 : vector<256x64xf32>
    %cst_38 = arith.constant 0.000000e+00 : f32
    %54 = vector.broadcast %cst_38 : f32 to vector<368x64xf32>
    %c0_39 = arith.constant 0 : index
    %c0_40 = arith.constant 0 : index
    %55 = vector.load %arg16[%c0_39, %c0_40] : memref<368x64xf32, #tpu.memory_space<vmem>>, vector<368x64xf32>
    tpu.vector_store %arg16[%c0_39, %c0_40], %54 {strides = array<i32>} : memref<368x64xf32, #tpu.memory_space<vmem>>, vector<368x64xf32>,
    %56 = vector.extract_strided_slice %53 {offsets = [0, 0], sizes = [16, 64], strides = [1, 1]} : vector<256x64xf32> to vector<16x64xf32>
    %c19 = arith.constant 19 : index
    %c0_41 = arith.constant 0 : index
    %57 = vector.load %arg16[%c19, %c0_41] : memref<368x64xf32, #tpu.memory_space<vmem>>, vector<16x64xf32>
    tpu.vector_store %arg16[%c19, %c0_41], %56 {strides = array<i32>} : memref<368x64xf32, #tpu.memory_space<vmem>>, vector<16x64xf32>,
    %58 = vector.extract_strided_slice %53 {offsets = [16, 0], sizes = [16, 64], strides = [1, 1]} : vector<256x64xf32> to vector<16x64xf32>
    %c37 = arith.constant 37 : index
    %c0_42 = arith.constant 0 : index
    %59 = vector.load %arg16[%c37, %c0_42] : memref<368x64xf32, #tpu.memory_space<vmem>>, vector<16x64xf32>
    tpu.vector_store %arg16[%c37, %c0_42], %58 {strides = array<i32>} : memref<368x64xf32, #tpu.memory_space<vmem>>, vector<16x64xf32>,
    %60 = vector.extract_strided_slice %53 {offsets = [32, 0], sizes = [16, 64], strides = [1, 1]} : vector<256x64xf32> to vector<16x64xf32>
    %c55 = arith.constant 55 : index
    %c0_43 = arith.constant 0 : index
    %61 = vector.load %arg16[%c55, %c0_43] : memref<368x64xf32, #tpu.memory_space<vmem>>, vector<16x64xf32>
    tpu.vector_store %arg16[%c55, %c0_43], %60 {strides = array<i32>} : memref<368x64xf32, #tpu.memory_space<vmem>>, vector<16x64xf32>,
    %62 = vector.extract_strided_slice %53 {offsets = [48, 0], sizes = [16, 64], strides = [1, 1]} : vector<256x64xf32> to vector<16x64xf32>
    %c73 = arith.constant 73 : index
    %c0_44 = arith.constant 0 : index
    %63 = vector.load %arg16[%c73, %c0_44] : memref<368x64xf32, #tpu.memory_space<vmem>>, vector<16x64xf32>
    tpu.vector_store %arg16[%c73, %c0_44], %62 {strides = array<i32>} : memref<368x64xf32, #tpu.memory_space<vmem>>, vector<16x64xf32>,
    %64 = vector.extract_strided_slice %53 {offsets = [64, 0], sizes = [16, 64], strides = [1, 1]} : vector<256x64xf32> to vector<16x64xf32>
    %c91 = arith.constant 91 : index
    %c0_45 = arith.constant 0 : index
    %65 = vector.load %arg16[%c91, %c0_45] : memref<368x64xf32, #tpu.memory_space<vmem>>, vector<16x64xf32>
    tpu.vector_store %arg16[%c91, %c0_45], %64 {strides = array<i32>} : memref<368x64xf32, #tpu.memory_space<vmem>>, vector<16x64xf32>,
    %66 = vector.extract_strided_slice %53 {offsets = [80, 0], sizes = [16, 64], strides = [1, 1]} : vector<256x64xf32> to vector<16x64xf32>
    %c109 = arith.constant 109 : index
    %c0_46 = arith.constant 0 : index
    %67 = vector.load %arg16[%c109, %c0_46] : memref<368x64xf32, #tpu.memory_space<vmem>>, vector<16x64xf32>
    tpu.vector_store %arg16[%c109, %c0_46], %66 {strides = array<i32>} : memref<368x64xf32, #tpu.memory_space<vmem>>, vector<16x64xf32>,
    %68 = vector.extract_strided_slice %53 {offsets = [96, 0], sizes = [16, 64], strides = [1, 1]} : vector<256x64xf32> to vector<16x64xf32>
    %c127 = arith.constant 127 : index
    %c0_47 = arith.constant 0 : index
    %69 = vector.load %arg16[%c127, %c0_47] : memref<368x64xf32, #tpu.memory_space<vmem>>, vector<16x64xf32>
    tpu.vector_store %arg16[%c127, %c0_47], %68 {strides = array<i32>} : memref<368x64xf32, #tpu.memory_space<vmem>>, vector<16x64xf32>,
    %70 = vector.extract_strided_slice %53 {offsets = [112, 0], sizes = [16, 64], strides = [1, 1]} : vector<256x64xf32> to vector<16x64xf32>
    %c145_48 = arith.constant 145 : index
    %c0_49 = arith.constant 0 : index
    %71 = vector.load %arg16[%c145_48, %c0_49] : memref<368x64xf32, #tpu.memory_space<vmem>>, vector<16x64xf32>
    tpu.vector_store %arg16[%c145_48, %c0_49], %70 {strides = array<i32>} : memref<368x64xf32, #tpu.memory_space<vmem>>, vector<16x64xf32>,
    %72 = vector.extract_strided_slice %53 {offsets = [128, 0], sizes = [16, 64], strides = [1, 1]} : vector<256x64xf32> to vector<16x64xf32>
    %c163 = arith.constant 163 : index
    %c0_50 = arith.constant 0 : index
    %73 = vector.load %arg16[%c163, %c0_50] : memref<368x64xf32, #tpu.memory_space<vmem>>, vector<16x64xf32>
    tpu.vector_store %arg16[%c163, %c0_50], %72 {strides = array<i32>} : memref<368x64xf32, #tpu.memory_space<vmem>>, vector<16x64xf32>,
    %74 = vector.extract_strided_slice %53 {offsets = [144, 0], sizes = [16, 64], strides = [1, 1]} : vector<256x64xf32> to vector<16x64xf32>
    %c181 = arith.constant 181 : index
    %c0_51 = arith.constant 0 : index
    %75 = vector.load %arg16[%c181, %c0_51] : memref<368x64xf32, #tpu.memory_space<vmem>>, vector<16x64xf32>
    tpu.vector_store %arg16[%c181, %c0_51], %74 {strides = array<i32>} : memref<368x64xf32, #tpu.memory_space<vmem>>, vector<16x64xf32>,
    %76 = vector.extract_strided_slice %53 {offsets = [160, 0], sizes = [16, 64], strides = [1, 1]} : vector<256x64xf32> to vector<16x64xf32>
    %c199 = arith.constant 199 : index
    %c0_52 = arith.constant 0 : index
    %77 = vector.load %arg16[%c199, %c0_52] : memref<368x64xf32, #tpu.memory_space<vmem>>, vector<16x64xf32>
    tpu.vector_store %arg16[%c199, %c0_52], %76 {strides = array<i32>} : memref<368x64xf32, #tpu.memory_space<vmem>>, vector<16x64xf32>,
    %78 = vector.extract_strided_slice %53 {offsets = [176, 0], sizes = [16, 64], strides = [1, 1]} : vector<256x64xf32> to vector<16x64xf32>
    %c217 = arith.constant 217 : index
    %c0_53 = arith.constant 0 : index
    %79 = vector.load %arg16[%c217, %c0_53] : memref<368x64xf32, #tpu.memory_space<vmem>>, vector<16x64xf32>
    tpu.vector_store %arg16[%c217, %c0_53], %78 {strides = array<i32>} : memref<368x64xf32, #tpu.memory_space<vmem>>, vector<16x64xf32>,
    %80 = vector.extract_strided_slice %53 {offsets = [192, 0], sizes = [16, 64], strides = [1, 1]} : vector<256x64xf32> to vector<16x64xf32>
    %c235 = arith.constant 235 : index
    %c0_54 = arith.constant 0 : index
    %81 = vector.load %arg16[%c235, %c0_54] : memref<368x64xf32, #tpu.memory_space<vmem>>, vector<16x64xf32>
    tpu.vector_store %arg16[%c235, %c0_54], %80 {strides = array<i32>} : memref<368x64xf32, #tpu.memory_space<vmem>>, vector<16x64xf32>,
    %82 = vector.extract_strided_slice %53 {offsets = [208, 0], sizes = [16, 64], strides = [1, 1]} : vector<256x64xf32> to vector<16x64xf32>
    %c253 = arith.constant 253 : index
    %c0_55 = arith.constant 0 : index
    %83 = vector.load %arg16[%c253, %c0_55] : memref<368x64xf32, #tpu.memory_space<vmem>>, vector<16x64xf32>
    tpu.vector_store %arg16[%c253, %c0_55], %82 {strides = array<i32>} : memref<368x64xf32, #tpu.memory_space<vmem>>, vector<16x64xf32>,
    %84 = vector.extract_strided_slice %53 {offsets = [224, 0], sizes = [16, 64], strides = [1, 1]} : vector<256x64xf32> to vector<16x64xf32>
    %c271 = arith.constant 271 : index
    %c0_56 = arith.constant 0 : index
    %85 = vector.load %arg16[%c271, %c0_56] : memref<368x64xf32, #tpu.memory_space<vmem>>, vector<16x64xf32>
    tpu.vector_store %arg16[%c271, %c0_56], %84 {strides = array<i32>} : memref<368x64xf32, #tpu.memory_space<vmem>>, vector<16x64xf32>,
    %86 = vector.extract_strided_slice %53 {offsets = [240, 0], sizes = [16, 64], strides = [1, 1]} : vector<256x64xf32> to vector<16x64xf32>
    %c289 = arith.constant 289 : index
    %c0_57 = arith.constant 0 : index
    %87 = vector.load %arg16[%c289, %c0_57] : memref<368x64xf32, #tpu.memory_space<vmem>>, vector<16x64xf32>
    tpu.vector_store %arg16[%c289, %c0_57], %86 {strides = array<i32>} : memref<368x64xf32, #tpu.memory_space<vmem>>, vector<16x64xf32>,
    %c0_58 = arith.constant 0 : index
    %c0_59 = arith.constant 0 : index
    %88 = vector.load %arg16[%c0_58, %c0_59] : memref<368x64xf32, #tpu.memory_space<vmem>>, vector<324x64xf32>
    %c0_60 = arith.constant 0 : index
    %c0_61 = arith.constant 0 : index
    %89 = vector.load %arg8[%c0_60, %c0_61] : memref<64x64xf32, #tpu.memory_space<vmem>>, vector<64x64xf32>
    %cst_62 = arith.constant dense<0.000000e+00> : vector<324x64xf32>
    %90 = tpu.matmul %88, %89, %cst_62 {dimension_numbers = #tpu.dot_dimension_numbers<[1], [0], [0], [1], [0, 0, 1, 1], [], []>} : vector<324x64xf32>, vector<64x64xf32>, vector<324x64xf32> -> vector<324x64xf32>
    %c0_63 = arith.constant 0 : index
    %c0_64 = arith.constant 0 : index
    %91 = vector.load %arg9[%c0_63, %c0_64] : memref<1x64xf32, #tpu.memory_space<vmem>>, vector<1x64xf32>
    %92 = vector.broadcast %91 : vector<1x64xf32> to vector<324x64xf32>
    %93 = arith.addf %90, %92 : vector<324x64xf32>
    %cst_65 = arith.constant 0.000000e+00 : f32
    %94 = vector.broadcast %cst_65 : f32 to vector<324x64xf32>
    %95 = arith.maximumf %93, %94 : vector<324x64xf32>
    %c0_66 = arith.constant 0 : index
    %c0_67 = arith.constant 0 : index
    %96 = vector.load %arg16[%c0_66, %c0_67] : memref<368x64xf32, #tpu.memory_space<vmem>>, vector<324x64xf32>
    tpu.vector_store %arg16[%c0_66, %c0_67], %95 {strides = array<i32>} : memref<368x64xf32, #tpu.memory_space<vmem>>, vector<324x64xf32>,
    %cst_68 = arith.constant 0.000000e+00 : f32
    %97 = vector.broadcast %cst_68 : f32 to vector<324x64xf32>
    %c0_69 = arith.constant 0 : index
    %c0_70 = arith.constant 0 : index
    %98 = vector.load %arg11[%c0_69, %c0_70] : memref<1x64xf32, #tpu.memory_space<vmem>>, vector<1x64xf32>
    %99 = vector.broadcast %98 : vector<1x64xf32> to vector<324x64xf32>
    %100 = arith.addf %97, %99 : vector<324x64xf32>
    %c0_71 = arith.constant 0 : index
    %c0_72 = arith.constant 0 : index
    %101 = vector.load %arg16[%c0_71, %c0_72] : memref<368x64xf32, #tpu.memory_space<vmem>>, vector<324x64xf32>
    %c0_73 = arith.constant 0 : index
    %c0_74 = arith.constant 0 : index
    %c0_75 = arith.constant 0 : index
    %102 = vector.load %arg10[%c0_73, %c0_74, %c0_75] : memref<9x64x64xf32, #tpu.memory_space<vmem>>, vector<1x64x64xf32>
    %103 = vector.shape_cast %102 : vector<1x64x64xf32> to vector<64x64xf32>
    %cst_76 = arith.constant dense<0.000000e+00> : vector<324x64xf32>
    %104 = tpu.matmul %101, %103, %cst_76 {dimension_numbers = #tpu.dot_dimension_numbers<[1], [0], [0], [1], [0, 0, 1, 1], [], []>} : vector<324x64xf32>, vector<64x64xf32>, vector<324x64xf32> -> vector<324x64xf32>
    %105 = arith.addf %100, %104 : vector<324x64xf32>
    %c1 = arith.constant 1 : index
    %c0_77 = arith.constant 0 : index
    %106 = vector.load %arg16[%c1, %c0_77] : memref<368x64xf32, #tpu.memory_space<vmem>>, vector<324x64xf32>
    %c1_78 = arith.constant 1 : index
    %c0_79 = arith.constant 0 : index
    %c0_80 = arith.constant 0 : index
    %107 = vector.load %arg10[%c1_78, %c0_79, %c0_80] : memref<9x64x64xf32, #tpu.memory_space<vmem>>, vector<1x64x64xf32>
    %108 = vector.shape_cast %107 : vector<1x64x64xf32> to vector<64x64xf32>
    %cst_81 = arith.constant dense<0.000000e+00> : vector<324x64xf32>
    %109 = tpu.matmul %106, %108, %cst_81 {dimension_numbers = #tpu.dot_dimension_numbers<[1], [0], [0], [1], [0, 0, 1, 1], [], []>} : vector<324x64xf32>, vector<64x64xf32>, vector<324x64xf32> -> vector<324x64xf32>
    %110 = arith.addf %105, %109 : vector<324x64xf32>
    %c2 = arith.constant 2 : index
    %c0_82 = arith.constant 0 : index
    %111 = vector.load %arg16[%c2, %c0_82] : memref<368x64xf32, #tpu.memory_space<vmem>>, vector<324x64xf32>
    %c2_83 = arith.constant 2 : index
    %c0_84 = arith.constant 0 : index
    %c0_85 = arith.constant 0 : index
    %112 = vector.load %arg10[%c2_83, %c0_84, %c0_85] : memref<9x64x64xf32, #tpu.memory_space<vmem>>, vector<1x64x64xf32>
    %113 = vector.shape_cast %112 : vector<1x64x64xf32> to vector<64x64xf32>
    %cst_86 = arith.constant dense<0.000000e+00> : vector<324x64xf32>
    %114 = tpu.matmul %111, %113, %cst_86 {dimension_numbers = #tpu.dot_dimension_numbers<[1], [0], [0], [1], [0, 0, 1, 1], [], []>} : vector<324x64xf32>, vector<64x64xf32>, vector<324x64xf32> -> vector<324x64xf32>
    %115 = arith.addf %110, %114 : vector<324x64xf32>
    %c18 = arith.constant 18 : index
    %c0_87 = arith.constant 0 : index
    %116 = vector.load %arg16[%c18, %c0_87] : memref<368x64xf32, #tpu.memory_space<vmem>>, vector<324x64xf32>
    %c3 = arith.constant 3 : index
    %c0_88 = arith.constant 0 : index
    %c0_89 = arith.constant 0 : index
    %117 = vector.load %arg10[%c3, %c0_88, %c0_89] : memref<9x64x64xf32, #tpu.memory_space<vmem>>, vector<1x64x64xf32>
    %118 = vector.shape_cast %117 : vector<1x64x64xf32> to vector<64x64xf32>
    %cst_90 = arith.constant dense<0.000000e+00> : vector<324x64xf32>
    %119 = tpu.matmul %116, %118, %cst_90 {dimension_numbers = #tpu.dot_dimension_numbers<[1], [0], [0], [1], [0, 0, 1, 1], [], []>} : vector<324x64xf32>, vector<64x64xf32>, vector<324x64xf32> -> vector<324x64xf32>
    %120 = arith.addf %115, %119 : vector<324x64xf32>
    %c19_91 = arith.constant 19 : index
    %c0_92 = arith.constant 0 : index
    %121 = vector.load %arg16[%c19_91, %c0_92] : memref<368x64xf32, #tpu.memory_space<vmem>>, vector<324x64xf32>
    %c4 = arith.constant 4 : index
    %c0_93 = arith.constant 0 : index
    %c0_94 = arith.constant 0 : index
    %122 = vector.load %arg10[%c4, %c0_93, %c0_94] : memref<9x64x64xf32, #tpu.memory_space<vmem>>, vector<1x64x64xf32>
    %123 = vector.shape_cast %122 : vector<1x64x64xf32> to vector<64x64xf32>
    %cst_95 = arith.constant dense<0.000000e+00> : vector<324x64xf32>
    %124 = tpu.matmul %121, %123, %cst_95 {dimension_numbers = #tpu.dot_dimension_numbers<[1], [0], [0], [1], [0, 0, 1, 1], [], []>} : vector<324x64xf32>, vector<64x64xf32>, vector<324x64xf32> -> vector<324x64xf32>
    %125 = arith.addf %120, %124 : vector<324x64xf32>
    %c20 = arith.constant 20 : index
    %c0_96 = arith.constant 0 : index
    %126 = vector.load %arg16[%c20, %c0_96] : memref<368x64xf32, #tpu.memory_space<vmem>>, vector<324x64xf32>
    %c5 = arith.constant 5 : index
    %c0_97 = arith.constant 0 : index
    %c0_98 = arith.constant 0 : index
    %127 = vector.load %arg10[%c5, %c0_97, %c0_98] : memref<9x64x64xf32, #tpu.memory_space<vmem>>, vector<1x64x64xf32>
    %128 = vector.shape_cast %127 : vector<1x64x64xf32> to vector<64x64xf32>
    %cst_99 = arith.constant dense<0.000000e+00> : vector<324x64xf32>
    %129 = tpu.matmul %126, %128, %cst_99 {dimension_numbers = #tpu.dot_dimension_numbers<[1], [0], [0], [1], [0, 0, 1, 1], [], []>} : vector<324x64xf32>, vector<64x64xf32>, vector<324x64xf32> -> vector<324x64xf32>
    %130 = arith.addf %125, %129 : vector<324x64xf32>
    %c36 = arith.constant 36 : index
    %c0_100 = arith.constant 0 : index
    %131 = vector.load %arg16[%c36, %c0_100] : memref<368x64xf32, #tpu.memory_space<vmem>>, vector<324x64xf32>
    %c6 = arith.constant 6 : index
    %c0_101 = arith.constant 0 : index
    %c0_102 = arith.constant 0 : index
    %132 = vector.load %arg10[%c6, %c0_101, %c0_102] : memref<9x64x64xf32, #tpu.memory_space<vmem>>, vector<1x64x64xf32>
    %133 = vector.shape_cast %132 : vector<1x64x64xf32> to vector<64x64xf32>
    %cst_103 = arith.constant dense<0.000000e+00> : vector<324x64xf32>
    %134 = tpu.matmul %131, %133, %cst_103 {dimension_numbers = #tpu.dot_dimension_numbers<[1], [0], [0], [1], [0, 0, 1, 1], [], []>} : vector<324x64xf32>, vector<64x64xf32>, vector<324x64xf32> -> vector<324x64xf32>
    %135 = arith.addf %130, %134 : vector<324x64xf32>
    %c37_104 = arith.constant 37 : index
    %c0_105 = arith.constant 0 : index
    %136 = vector.load %arg16[%c37_104, %c0_105] : memref<368x64xf32, #tpu.memory_space<vmem>>, vector<324x64xf32>
    %c7 = arith.constant 7 : index
    %c0_106 = arith.constant 0 : index
    %c0_107 = arith.constant 0 : index
    %137 = vector.load %arg10[%c7, %c0_106, %c0_107] : memref<9x64x64xf32, #tpu.memory_space<vmem>>, vector<1x64x64xf32>
    %138 = vector.shape_cast %137 : vector<1x64x64xf32> to vector<64x64xf32>
    %cst_108 = arith.constant dense<0.000000e+00> : vector<324x64xf32>
    %139 = tpu.matmul %136, %138, %cst_108 {dimension_numbers = #tpu.dot_dimension_numbers<[1], [0], [0], [1], [0, 0, 1, 1], [], []>} : vector<324x64xf32>, vector<64x64xf32>, vector<324x64xf32> -> vector<324x64xf32>
    %140 = arith.addf %135, %139 : vector<324x64xf32>
    %c38 = arith.constant 38 : index
    %c0_109 = arith.constant 0 : index
    %141 = vector.load %arg16[%c38, %c0_109] : memref<368x64xf32, #tpu.memory_space<vmem>>, vector<324x64xf32>
    %c8 = arith.constant 8 : index
    %c0_110 = arith.constant 0 : index
    %c0_111 = arith.constant 0 : index
    %142 = vector.load %arg10[%c8, %c0_110, %c0_111] : memref<9x64x64xf32, #tpu.memory_space<vmem>>, vector<1x64x64xf32>
    %143 = vector.shape_cast %142 : vector<1x64x64xf32> to vector<64x64xf32>
    %cst_112 = arith.constant dense<0.000000e+00> : vector<324x64xf32>
    %144 = tpu.matmul %141, %143, %cst_112 {dimension_numbers = #tpu.dot_dimension_numbers<[1], [0], [0], [1], [0, 0, 1, 1], [], []>} : vector<324x64xf32>, vector<64x64xf32>, vector<324x64xf32> -> vector<324x64xf32>
    %145 = arith.addf %140, %144 : vector<324x64xf32>
    %cst_113 = arith.constant 0.000000e+00 : f32
    %146 = vector.broadcast %cst_113 : f32 to vector<324x64xf32>
    %147 = arith.maximumf %145, %146 : vector<324x64xf32>
    %c0_114 = arith.constant 0 : index
    %c0_115 = arith.constant 0 : index
    %148 = vector.load %arg12[%c0_114, %c0_115] : memref<64x64xf32, #tpu.memory_space<vmem>>, vector<64x64xf32>
    %cst_116 = arith.constant dense<0.000000e+00> : vector<324x64xf32>
    %149 = tpu.matmul %147, %148, %cst_116 {dimension_numbers = #tpu.dot_dimension_numbers<[1], [0], [0], [1], [0, 0, 1, 1], [], []>} : vector<324x64xf32>, vector<64x64xf32>, vector<324x64xf32> -> vector<324x64xf32>
    %c0_117 = arith.constant 0 : index
    %c0_118 = arith.constant 0 : index
    %150 = vector.load %arg13[%c0_117, %c0_118] : memref<1x64xf32, #tpu.memory_space<vmem>>, vector<1x64xf32>
    %151 = vector.broadcast %150 : vector<1x64xf32> to vector<324x64xf32>
    %152 = arith.addf %149, %151 : vector<324x64xf32>
    %cst_119 = arith.constant 0.000000e+00 : f32
    %153 = vector.broadcast %cst_119 : f32 to vector<324x64xf32>
    %154 = arith.maximumf %152, %153 : vector<324x64xf32>
    %c0_120 = arith.constant 0 : index
    %c0_121 = arith.constant 0 : index
    %c0_122 = arith.constant 0 : index
    %155 = vector.load %arg14[%c0_120, %c0_121, %c0_122] : memref<1x324x64xf32, #tpu.memory_space<vmem>>, vector<1x324x64xf32>
    %156 = vector.shape_cast %155 : vector<1x324x64xf32> to vector<324x64xf32>
    %157 = vector.shape_cast %154 : vector<324x64xf32> to vector<1x324x64xf32>
    tpu.vector_store %arg14[%c0_120, %c0_121, %c0_122], %157 {strides = array<i32>} : memref<1x324x64xf32, #tpu.memory_space<vmem>>, vector<1x324x64xf32>,
    return
  }
  func.func @transform_0(%arg0: i32) -> (i32, i32, i32) {
    %c0_i32 = arith.constant 0 : i32
    %c0_i32_0 = arith.constant 0 : i32
    %c0_i32_1 = arith.constant 0 : i32
    return %arg0, %c0_i32, %c0_i32_0 : i32, i32, i32
  }
  func.func @transform_1(%arg0: i32) -> (i32, i32) {
    %c0_i32 = arith.constant 0 : i32
    %c0_i32_0 = arith.constant 0 : i32
    %c0_i32_1 = arith.constant 0 : i32
    return %c0_i32, %c0_i32_0 : i32, i32
  }
  func.func @transform_2(%arg0: i32) -> (i32, i32) {
    %c0_i32 = arith.constant 0 : i32
    %c0_i32_0 = arith.constant 0 : i32
    %c0_i32_1 = arith.constant 0 : i32
    return %c0_i32, %c0_i32_0 : i32, i32
  }
  func.func @transform_3(%arg0: i32) -> (i32, i32) {
    %c0_i32 = arith.constant 0 : i32
    %c0_i32_0 = arith.constant 0 : i32
    %c0_i32_1 = arith.constant 0 : i32
    return %c0_i32, %c0_i32_0 : i32, i32
  }
  func.func @transform_4(%arg0: i32) -> (i32, i32) {
    %c0_i32 = arith.constant 0 : i32
    %c0_i32_0 = arith.constant 0 : i32
    %c0_i32_1 = arith.constant 0 : i32
    return %c0_i32, %c0_i32_0 : i32, i32
  }
  func.func @transform_5(%arg0: i32) -> (i32, i32) {
    %c0_i32 = arith.constant 0 : i32
    %c0_i32_0 = arith.constant 0 : i32
    %c0_i32_1 = arith.constant 0 : i32
    return %c0_i32, %c0_i32_0 : i32, i32
  }
  func.func @transform_6(%arg0: i32) -> (i32, i32) {
    %c0_i32 = arith.constant 0 : i32
    %c0_i32_0 = arith.constant 0 : i32
    %c0_i32_1 = arith.constant 0 : i32
    return %c0_i32, %c0_i32_0 : i32, i32
  }
  func.func @transform_7(%arg0: i32) -> (i32, i32) {
    %c0_i32 = arith.constant 0 : i32
    %c0_i32_0 = arith.constant 0 : i32
    %c0_i32_1 = arith.constant 0 : i32
    return %c0_i32, %c0_i32_0 : i32, i32
  }
  func.func @transform_8(%arg0: i32) -> (i32, i32) {
    %c0_i32 = arith.constant 0 : i32
    %c0_i32_0 = arith.constant 0 : i32
    %c0_i32_1 = arith.constant 0 : i32
    return %c0_i32, %c0_i32_0 : i32, i32
  }
  func.func @transform_9(%arg0: i32) -> (i32, i32, i32) {
    %c0_i32 = arith.constant 0 : i32
    %c0_i32_0 = arith.constant 0 : i32
    %c0_i32_1 = arith.constant 0 : i32
    %c0_i32_2 = arith.constant 0 : i32
    return %c0_i32, %c0_i32_0, %c0_i32_1 : i32, i32, i32
  }
  func.func @transform_10(%arg0: i32) -> (i32, i32) {
    %c0_i32 = arith.constant 0 : i32
    %c0_i32_0 = arith.constant 0 : i32
    %c0_i32_1 = arith.constant 0 : i32
    return %c0_i32, %c0_i32_0 : i32, i32
  }
  func.func @transform_11(%arg0: i32) -> (i32, i32) {
    %c0_i32 = arith.constant 0 : i32
    %c0_i32_0 = arith.constant 0 : i32
    %c0_i32_1 = arith.constant 0 : i32
    return %c0_i32, %c0_i32_0 : i32, i32
  }
  func.func @transform_12(%arg0: i32) -> (i32, i32) {
    %c0_i32 = arith.constant 0 : i32
    %c0_i32_0 = arith.constant 0 : i32
    %c0_i32_1 = arith.constant 0 : i32
    return %c0_i32, %c0_i32_0 : i32, i32
  }
  func.func @transform_13(%arg0: i32) -> (i32, i32, i32) {
    %c0_i32 = arith.constant 0 : i32
    %c0_i32_0 = arith.constant 0 : i32
    %c0_i32_1 = arith.constant 0 : i32
    return %arg0, %c0_i32, %c0_i32_0 : i32, i32, i32
  }
}

</mosaic_0001>

<llo_original>
// kernel: _lambda_.1
$region0: #{_lambda_.1}
  #allocation0 [shape = 'u32[]', space=smem, size = 0x4, offset = 0x4, fixed_abs, tag = 'smem constant byte address 0x4 - core index']
  #allocation1 [shape = 'u32[144,128]{1,0:T(1,128)}', space=vmem, size = 0x12000, scoped, tag = 'internal scratch']
  #allocation2 [shape = 'f32[256,64]{1,0:T(8,128)}', space=vmem, size = 0x20000, scoped, tag = 'scratch operand']
  #allocation3 [shape = 'f32[368,64]{1,0:T(8,128)}', space=vmem, size = 0x2e000, scoped, tag = 'scratch operand']
  %s0 = inlined_call_operand.vmem [shape: f32[2,196,27], index: 0, kind: input, shape index: {}]
  %s1 = inlined_call_operand.vmem [shape: f32[27,64], index: 1, kind: input, shape index: {}]
  %s2 = inlined_call_operand.vmem [shape: f32[1,64], index: 2, kind: input, shape index: {}]
  %s3 = inlined_call_operand.vmem [shape: f32[64,64], index: 3, kind: input, shape index: {}]
  %s4 = inlined_call_operand.vmem [shape: f32[1,64], index: 4, kind: input, shape index: {}]
  %s5 = inlined_call_operand.vmem [shape: f32[64,64], index: 5, kind: input, shape index: {}]
  %s6 = inlined_call_operand.vmem [shape: f32[1,64], index: 6, kind: input, shape index: {}]
  %s7 = inlined_call_operand.vmem [shape: f32[64,64], index: 7, kind: input, shape index: {}]
  %s8 = inlined_call_operand.vmem [shape: f32[1,64], index: 8, kind: input, shape index: {}]
  %s9 = inlined_call_operand.vmem [shape: f32[9,64,64], index: 9, kind: input, shape index: {}]
  %s10 = inlined_call_operand.vmem [shape: f32[1,64], index: 10, kind: input, shape index: {}]
  %s11 = inlined_call_operand.vmem [shape: f32[64,64], index: 11, kind: input, shape index: {}]
  %s12 = inlined_call_operand.vmem [shape: f32[1,64], index: 12, kind: input, shape index: {}]
  %s13 = inlined_call_operand.vmem [shape: f32[2,324,64], index: 13, kind: output, shape index: {}]
  %s14 = sld [smem:[#allocation0]]
  $region85: #{_lambda_.1} parent=0
    _
  %s16 = ssub.s32 1, %s14
  %s17 = scalar_select 0, %s16, %s14
  loop: start=0, step=1, limit=4
  $region2: #{_lambda_.1} parent=0 // loop_pre_header
    _
  $region3: #{_lambda_.1} parent=0 // loop_header
    %s19 = sphi 0, %s23
    %p20 = scmp.ge.s32.totalorder %s19, 4
    %s29 = sphi 0, %s31
    %s32 = sphi 0, %s29
    %s33 = sphi 0, %s32
    %s49 = sphi 0, %s33
    %s53 = sphi 0, %s53
    %s55 = sphi 0, %s53
    %s56 = sphi 0, %s55
    %s70 = sphi 0, %s56
    %s74 = sphi 0, %s74
    %s76 = sphi 0, %s74
    %s77 = sphi 0, %s76
    %s91 = sphi 0, %s77
    %s95 = sphi 0, %s95
    %s97 = sphi 0, %s95
    %s98 = sphi 0, %s97
    %s112 = sphi 0, %s98
    %s116 = sphi 0, %s116
    %s118 = sphi 0, %s116
    %s119 = sphi 0, %s118
    %s133 = sphi 0, %s119
    %s137 = sphi 0, %s137
    %s139 = sphi 0, %s137
    %s140 = sphi 0, %s139
    %s154 = sphi 0, %s140
    %s158 = sphi 0, %s158
    %s160 = sphi 0, %s158
    %s161 = sphi 0, %s160
    %s175 = sphi 0, %s161
    %s179 = sphi 0, %s179
    %s181 = sphi 0, %s179
    %s182 = sphi 0, %s181
    %s196 = sphi 0, %s182
    %s200 = sphi 0, %s200
    %s202 = sphi 0, %s200
    %s203 = sphi 0, %s202
    %s217 = sphi 0, %s203
    %s221 = sphi 0, %s221
    %s223 = sphi 0, %s221
    %s224 = sphi 0, %s223
    %s238 = sphi 0, %s224
    %s242 = sphi 0, %s242
    %s244 = sphi 0, %s242
    %s245 = sphi 0, %s244
    %s259 = sphi 0, %s245
    %s263 = sphi 0, %s263
    %s265 = sphi 0, %s263
    %s266 = sphi 0, %s265
    %s280 = sphi 0, %s266
    %s284 = sphi 0, %s284
    %s286 = sphi 0, %s284
    %s287 = sphi 0, %s286
    %s301 = sphi 0, %s287
    %s307 = sphi 0, %s309
    %s310 = sphi 0, %s307
    %s311 = sphi 0, %s310
    %s327 = sphi 0, %s311
  $region4: #{_lambda_.1} parent=0 // loop_header_branch
    %22 = sbr.rel (%p20) target = $region8
  $region5: #{_lambda_.1} parent=0 // loop_body
    %s24 = ssub.s32 %s19, 1
    %s25 = ssub.s32 %s19, 2
    %s26 = sadd.s32 %s19, 1
    %s27 = ssub.s32 %s19, %s26
    %p28 = scmp.eq.s32.totalorder %s27, 0
    %s30 = sadd.s32 %s29, 1
    %s31 = scalar_select %p28, %s29, %s30
    %p34 = pneg %p28
    %p35 = scmp.eq.s32.totalorder %s19, 1
    %p36 = por %p34, %p35
    %p37 = scmp.ne.s32.totalorder %s29, %s32
    %p38 = scmp.eq.s32.totalorder %s19, 0
    %p39 = por %p37, %p38
    %p40 = scmp.ne.s32.totalorder %s29, %s32
    %p41 = scmp.eq.s32.totalorder %s24, 1
    %p42 = por %p40, %p41
    %p43 = scmp.ne.s32.totalorder %s32, %s33
    %p44 = scmp.eq.s32.totalorder %s24, 0
    %p45 = por %p43, %p44
    %p46 = scmp.ne.s32.totalorder %s32, %s33
    %p47 = scmp.eq.s32.totalorder %s25, 1
    %p48 = por %p46, %p47
    %p50 = scmp.ne.s32.totalorder %s33, %s49
    %p51 = scmp.eq.s32.totalorder %s25, 0
    %p52 = por %p50, %p51
    %s54 = sadd.s32 %s53, 1
    %p57 = scmp.eq.s32.totalorder %s19, 1
    %p58 = scmp.ne.s32.totalorder %s53, %s55
    %p59 = scmp.eq.s32.totalorder %s19, 0
    %p60 = por %p58, %p59
    %p61 = scmp.ne.s32.totalorder %s53, %s55
    %p62 = scmp.eq.s32.totalorder %s24, 1
    %p63 = por %p61, %p62
    %p64 = scmp.ne.s32.totalorder %s55, %s56
    %p65 = scmp.eq.s32.totalorder %s24, 0
    %p66 = por %p64, %p65
    %p67 = scmp.ne.s32.totalorder %s55, %s56
    %p68 = scmp.eq.s32.totalorder %s25, 1
    %p69 = por %p67, %p68
    %p71 = scmp.ne.s32.totalorder %s56, %s70
    %p72 = scmp.eq.s32.totalorder %s25, 0
    %p73 = por %p71, %p72
    %s75 = sadd.s32 %s74, 1
    %p78 = scmp.eq.s32.totalorder %s19, 1
    %p79 = scmp.ne.s32.totalorder %s74, %s76
    %p80 = scmp.eq.s32.totalorder %s19, 0
    %p81 = por %p79, %p80
    %p82 = scmp.ne.s32.totalorder %s74, %s76
    %p83 = scmp.eq.s32.totalorder %s24, 1
    %p84 = por %p82, %p83
    %p85 = scmp.ne.s32.totalorder %s76, %s77
    %p86 = scmp.eq.s32.totalorder %s24, 0
    %p87 = por %p85, %p86
    %p88 = scmp.ne.s32.totalorder %s76, %s77
    %p89 = scmp.eq.s32.totalorder %s25, 1
    %p90 = por %p88, %p89
    %p92 = scmp.ne.s32.totalorder %s77, %s91
    %p93 = scmp.eq.s32.totalorder %s25, 0
    %p94 = por %p92, %p93
    %s96 = sadd.s32 %s95, 1
    %p99 = scmp.eq.s32.totalorder %s19, 1
    %p100 = scmp.ne.s32.totalorder %s95, %s97
    %p101 = scmp.eq.s32.totalorder %s19, 0
    %p102 = por %p100, %p101
    %p103 = scmp.ne.s32.totalorder %s95, %s97
    %p104 = scmp.eq.s32.totalorder %s24, 1
    %p105 = por %p103, %p104
    %p106 = scmp.ne.s32.totalorder %s97, %s98
    %p107 = scmp.eq.s32.totalorder %s24, 0
    %p108 = por %p106, %p107
    %p109 = scmp.ne.s32.totalorder %s97, %s98
    %p110 = scmp.eq.s32.totalorder %s25, 1
    %p111 = por %p109, %p110
    %p113 = scmp.ne.s32.totalorder %s98, %s112
    %p114 = scmp.eq.s32.totalorder %s25, 0
    %p115 = por %p113, %p114
    %s117 = sadd.s32 %s116, 1
    %p120 = scmp.eq.s32.totalorder %s19, 1
    %p121 = scmp.ne.s32.totalorder %s116, %s118
    %p122 = scmp.eq.s32.totalorder %s19, 0
    %p123 = por %p121, %p122
    %p124 = scmp.ne.s32.totalorder %s116, %s118
    %p125 = scmp.eq.s32.totalorder %s24, 1
    %p126 = por %p124, %p125
    %p127 = scmp.ne.s32.totalorder %s118, %s119
    %p128 = scmp.eq.s32.totalorder %s24, 0
    %p129 = por %p127, %p128
    %p130 = scmp.ne.s32.totalorder %s118, %s119
    %p131 = scmp.eq.s32.totalorder %s25, 1
    %p132 = por %p130, %p131
    %p134 = scmp.ne.s32.totalorder %s119, %s133
    %p135 = scmp.eq.s32.totalorder %s25, 0
    %p136 = por %p134, %p135
    %s138 = sadd.s32 %s137, 1
    %p141 = scmp.eq.s32.totalorder %s19, 1
    %p142 = scmp.ne.s32.totalorder %s137, %s139
    %p143 = scmp.eq.s32.totalorder %s19, 0
    %p144 = por %p142, %p143
    %p145 = scmp.ne.s32.totalorder %s137, %s139
    %p146 = scmp.eq.s32.totalorder %s24, 1
    %p147 = por %p145, %p146
    %p148 = scmp.ne.s32.totalorder %s139, %s140
    %p149 = scmp.eq.s32.totalorder %s24, 0
    %p150 = por %p148, %p149
    %p151 = scmp.ne.s32.totalorder %s139, %s140
    %p152 = scmp.eq.s32.totalorder %s25, 1
    %p153 = por %p151, %p152
    %p155 = scmp.ne.s32.totalorder %s140, %s154
    %p156 = scmp.eq.s32.totalorder %s25, 0
    %p157 = por %p155, %p156
    %s159 = sadd.s32 %s158, 1
    %p162 = scmp.eq.s32.totalorder %s19, 1
    %p163 = scmp.ne.s32.totalorder %s158, %s160
    %p164 = scmp.eq.s32.totalorder %s19, 0
    %p165 = por %p163, %p164
    %p166 = scmp.ne.s32.totalorder %s158, %s160
    %p167 = scmp.eq.s32.totalorder %s24, 1
    %p168 = por %p166, %p167
    %p169 = scmp.ne.s32.totalorder %s160, %s161
    %p170 = scmp.eq.s32.totalorder %s24, 0
    %p171 = por %p169, %p170
    %p172 = scmp.ne.s32.totalorder %s160, %s161
    %p173 = scmp.eq.s32.totalorder %s25, 1
    %p174 = por %p172, %p173
    %p176 = scmp.ne.s32.totalorder %s161, %s175
    %p177 = scmp.eq.s32.totalorder %s25, 0
    %p178 = por %p176, %p177
    %s180 = sadd.s32 %s179, 1
    %p183 = scmp.eq.s32.totalorder %s19, 1
    %p184 = scmp.ne.s32.totalorder %s179, %s181
    %p185 = scmp.eq.s32.totalorder %s19, 0
    %p186 = por %p184, %p185
    %p187 = scmp.ne.s32.totalorder %s179, %s181
    %p188 = scmp.eq.s32.totalorder %s24, 1
    %p189 = por %p187, %p188
    %p190 = scmp.ne.s32.totalorder %s181, %s182
    %p191 = scmp.eq.s32.totalorder %s24, 0
    %p192 = por %p190, %p191
    %p193 = scmp.ne.s32.totalorder %s181, %s182
    %p194 = scmp.eq.s32.totalorder %s25, 1
    %p195 = por %p193, %p194
    %p197 = scmp.ne.s32.totalorder %s182, %s196
    %p198 = scmp.eq.s32.totalorder %s25, 0
    %p199 = por %p197, %p198
    %s201 = sadd.s32 %s200, 1
    %p204 = scmp.eq.s32.totalorder %s19, 1
    %p205 = scmp.ne.s32.totalorder %s200, %s202
    %p206 = scmp.eq.s32.totalorder %s19, 0
    %p207 = por %p205, %p206
    %p208 = scmp.ne.s32.totalorder %s200, %s202
    %p209 = scmp.eq.s32.totalorder %s24, 1
    %p210 = por %p208, %p209
    %p211 = scmp.ne.s32.totalorder %s202, %s203
    %p212 = scmp.eq.s32.totalorder %s24, 0
    %p213 = por %p211, %p212
    %p214 = scmp.ne.s32.totalorder %s202, %s203
    %p215 = scmp.eq.s32.totalorder %s25, 1
    %p216 = por %p214, %p215
    %p218 = scmp.ne.s32.totalorder %s203, %s217
    %p219 = scmp.eq.s32.totalorder %s25, 0
    %p220 = por %p218, %p219
    %s222 = sadd.s32 %s221, 1
    %p225 = scmp.eq.s32.totalorder %s19, 1
    %p226 = scmp.ne.s32.totalorder %s221, %s223
    %p227 = scmp.eq.s32.totalorder %s19, 0
    %p228 = por %p226, %p227
    %p229 = scmp.ne.s32.totalorder %s221, %s223
    %p230 = scmp.eq.s32.totalorder %s24, 1
    %p231 = por %p229, %p230
    %p232 = scmp.ne.s32.totalorder %s223, %s224
    %p233 = scmp.eq.s32.totalorder %s24, 0
    %p234 = por %p232, %p233
    %p235 = scmp.ne.s32.totalorder %s223, %s224
    %p236 = scmp.eq.s32.totalorder %s25, 1
    %p237 = por %p235, %p236
    %p239 = scmp.ne.s32.totalorder %s224, %s238
    %p240 = scmp.eq.s32.totalorder %s25, 0
    %p241 = por %p239, %p240
    %s243 = sadd.s32 %s242, 1
    %p246 = scmp.eq.s32.totalorder %s19, 1
    %p247 = scmp.ne.s32.totalorder %s242, %s244
    %p248 = scmp.eq.s32.totalorder %s19, 0
    %p249 = por %p247, %p248
    %p250 = scmp.ne.s32.totalorder %s242, %s244
    %p251 = scmp.eq.s32.totalorder %s24, 1
    %p252 = por %p250, %p251
    %p253 = scmp.ne.s32.totalorder %s244, %s245
    %p254 = scmp.eq.s32.totalorder %s24, 0
    %p255 = por %p253, %p254
    %p256 = scmp.ne.s32.totalorder %s244, %s245
    %p257 = scmp.eq.s32.totalorder %s25, 1
    %p258 = por %p256, %p257
    %p260 = scmp.ne.s32.totalorder %s245, %s259
    %p261 = scmp.eq.s32.totalorder %s25, 0
    %p262 = por %p260, %p261
    %s264 = sadd.s32 %s263, 1
    %p267 = scmp.eq.s32.totalorder %s19, 1
    %p268 = scmp.ne.s32.totalorder %s263, %s265
    %p269 = scmp.eq.s32.totalorder %s19, 0
    %p270 = por %p268, %p269
    %p271 = scmp.ne.s32.totalorder %s263, %s265
    %p272 = scmp.eq.s32.totalorder %s24, 1
    %p273 = por %p271, %p272
    %p274 = scmp.ne.s32.totalorder %s265, %s266
    %p275 = scmp.eq.s32.totalorder %s24, 0
    %p276 = por %p274, %p275
    %p277 = scmp.ne.s32.totalorder %s265, %s266
    %p278 = scmp.eq.s32.totalorder %s25, 1
    %p279 = por %p277, %p278
    %p281 = scmp.ne.s32.totalorder %s266, %s280
    %p282 = scmp.eq.s32.totalorder %s25, 0
    %p283 = por %p281, %p282
    %s285 = sadd.s32 %s284, 1
    %p288 = scmp.eq.s32.totalorder %s19, 1
    %p289 = scmp.ne.s32.totalorder %s284, %s286
    %p290 = scmp.eq.s32.totalorder %s19, 0
    %p291 = por %p289, %p290
    %p292 = scmp.ne.s32.totalorder %s284, %s286
    %p293 = scmp.eq.s32.totalorder %s24, 1
    %p294 = por %p292, %p293
    %p295 = scmp.ne.s32.totalorder %s286, %s287
    %p296 = scmp.eq.s32.totalorder %s24, 0
    %p297 = por %p295, %p296
    %p298 = scmp.ne.s32.totalorder %s286, %s287
    %p299 = scmp.eq.s32.totalorder %s25, 1
    %p300 = por %p298, %p299
    %p302 = scmp.ne.s32.totalorder %s287, %s301
    %p303 = scmp.eq.s32.totalorder %s25, 0
    %p304 = por %p302, %p303
    %s305 = ssub.s32 %s19, %s26
    %p306 = scmp.eq.s32.totalorder %s305, 0
    %s308 = sadd.s32 %s307, 1
    %s309 = scalar_select %p306, %s307, %s308
    %p312 = pneg %p306
    %p313 = scmp.eq.s32.totalorder %s19, 1
    %p314 = por %p312, %p313
    %p315 = scmp.ne.s32.totalorder %s307, %s310
    %p316 = scmp.eq.s32.totalorder %s19, 0
    %p317 = por %p315, %p316
    %p318 = scmp.ne.s32.totalorder %s307, %s310
    %p319 = scmp.eq.s32.totalorder %s24, 1
    %p320 = por %p318, %p319
    %p321 = scmp.ne.s32.totalorder %s310, %s311
    %p322 = scmp.eq.s32.totalorder %s24, 0
    %p323 = por %p321, %p322
    %p324 = scmp.ne.s32.totalorder %s310, %s311
    %p325 = scmp.eq.s32.totalorder %s25, 1
    %p326 = por %p324, %p325
    %p328 = scmp.ne.s32.totalorder %s311, %s327
    %p329 = scmp.eq.s32.totalorder %s25, 0
    %p330 = por %p328, %p329
    %p331 = scmp.le.s32.totalorder 1, %s19
    %p332 = scmp.lt.s32.totalorder %s19, 3
    %p333 = pnand %p331, %p332
    %p334 = pneg %p333
    // Predicated region
    $region9: #{_lambda_.1} parent=5 // pred_check
      _
    $region10: #{_lambda_.1} parent=5 // pred_check_branch
      %336 = sbr.rel (%p333) target = $region12
    $region11: #{_lambda_.1} parent=5 // pred_region
      %s337 = ssub.s32 %s19, 1
      // Predicated region
      $region13: #{_lambda_.1} parent=11 // pred_check
        %p338 = pneg %p66
      $region14: #{_lambda_.1} parent=11 // pred_check_branch
        %340 = sbr.rel (%p338) target = $region16
      $region15: #{_lambda_.1} parent=11 // pred_region
        _
      $region16: #{_lambda_.1} parent=11 // pred_fallthru
        _
      // Predicated region
      $region17: #{_lambda_.1} parent=11 // pred_check
        %p341 = pneg %p87
      $region18: #{_lambda_.1} parent=11 // pred_check_branch
        %343 = sbr.rel (%p341) target = $region20
      $region19: #{_lambda_.1} parent=11 // pred_region
        _
      $region20: #{_lambda_.1} parent=11 // pred_fallthru
        _
      // Predicated region
      $region21: #{_lambda_.1} parent=11 // pred_check
        %p344 = pneg %p108
      $region22: #{_lambda_.1} parent=11 // pred_check_branch
        %346 = sbr.rel (%p344) target = $region24
      $region23: #{_lambda_.1} parent=11 // pred_region
        _
      $region24: #{_lambda_.1} parent=11 // pred_fallthru
        _
      // Predicated region
      $region25: #{_lambda_.1} parent=11 // pred_check
        %p347 = pneg %p129
      $region26: #{_lambda_.1} parent=11 // pred_check_branch
        %349 = sbr.rel (%p347) target = $region28
      $region27: #{_lambda_.1} parent=11 // pred_region
        _
      $region28: #{_lambda_.1} parent=11 // pred_fallthru
        _
      // Predicated region
      $region29: #{_lambda_.1} parent=11 // pred_check
        %p350 = pneg %p150
      $region30: #{_lambda_.1} parent=11 // pred_check_branch
        %352 = sbr.rel (%p350) target = $region32
      $region31: #{_lambda_.1} parent=11 // pred_region
        _
      $region32: #{_lambda_.1} parent=11 // pred_fallthru
        _
      // Predicated region
      $region33: #{_lambda_.1} parent=11 // pred_check
        %p353 = pneg %p171
      $region34: #{_lambda_.1} parent=11 // pred_check_branch
        %355 = sbr.rel (%p353) target = $region36
      $region35: #{_lambda_.1} parent=11 // pred_region
        _
      $region36: #{_lambda_.1} parent=11 // pred_fallthru
        _
      // Predicated region
      $region37: #{_lambda_.1} parent=11 // pred_check
        %p356 = pneg %p192
      $region38: #{_lambda_.1} parent=11 // pred_check_branch
        %358 = sbr.rel (%p356) target = $region40
      $region39: #{_lambda_.1} parent=11 // pred_region
        _
      $region40: #{_lambda_.1} parent=11 // pred_fallthru
        _
      // Predicated region
      $region41: #{_lambda_.1} parent=11 // pred_check
        %p359 = pneg %p213
      $region42: #{_lambda_.1} parent=11 // pred_check_branch
        %361 = sbr.rel (%p359) target = $region44
      $region43: #{_lambda_.1} parent=11 // pred_region
        _
      $region44: #{_lambda_.1} parent=11 // pred_fallthru
        _
      // Predicated region
      $region45: #{_lambda_.1} parent=11 // pred_check
        %p362 = pneg %p234
      $region46: #{_lambda_.1} parent=11 // pred_check_branch
        %364 = sbr.rel (%p362) target = $region48
      $region47: #{_lambda_.1} parent=11 // pred_region
        _
      $region48: #{_lambda_.1} parent=11 // pred_fallthru
        _
      // Predicated region
      $region49: #{_lambda_.1} parent=11 // pred_check
        %p365 = pneg %p255
      $region50: #{_lambda_.1} parent=11 // pred_check_branch
        %367 = sbr.rel (%p365) target = $region52
      $region51: #{_lambda_.1} parent=11 // pred_region
        _
      $region52: #{_lambda_.1} parent=11 // pred_fallthru
        _
      // Predicated region
      $region53: #{_lambda_.1} parent=11 // pred_check
        %p368 = pneg %p276
      $region54: #{_lambda_.1} parent=11 // pred_check_branch
        %370 = sbr.rel (%p368) target = $region56
      $region55: #{_lambda_.1} parent=11 // pred_region
        _
      $region56: #{_lambda_.1} parent=11 // pred_fallthru
        _
      // Predicated region
      $region57: #{_lambda_.1} parent=11 // pred_check
        %p371 = pneg %p297
      $region58: #{_lambda_.1} parent=11 // pred_check_branch
        %373 = sbr.rel (%p371) target = $region60
      $region59: #{_lambda_.1} parent=11 // pred_region
        _
      $region60: #{_lambda_.1} parent=11 // pred_fallthru
        _
    $region12: #{_lambda_.1} parent=5 // pred_fallthru
      _
    %p374 = scmp.lt.s32.totalorder %s19, 2
    // Predicated region
    $region61: #{_lambda_.1} parent=5 // pred_check
      %p375 = pneg %p374
    $region62: #{_lambda_.1} parent=5 // pred_check_branch
      %377 = sbr.rel (%p375) target = $region64
    $region63: #{_lambda_.1} parent=5 // pred_region
      // Predicated region
      $region65: #{_lambda_.1} parent=63 // pred_check
        %p378 = pneg %p39
      $region66: #{_lambda_.1} parent=63 // pred_check_branch
        %380 = sbr.rel (%p378) target = $region68
      $region67: #{_lambda_.1} parent=63 // pred_region
        %p381 = scmp.lt.s32.totalorder %s19, 1
        %s382 = scalar_select %p381, %s19, 1
        %s383 = smul.addr %s382, 25
        %s384 = smul.addr %s383, 8
        %s385 = scalar_lea.vmem %s0, %s384
      $region68: #{_lambda_.1} parent=63 // pred_fallthru
        _
    $region64: #{_lambda_.1} parent=5 // pred_fallthru
      _
    %p386 = scmp.le.s32.totalorder 1, %s19
    %p387 = scmp.lt.s32.totalorder %s19, 3
    %p388 = pnand %p386, %p387
    %p389 = pneg %p388
    // Predicated region
    $region69: #{_lambda_.1} parent=5 // pred_check
      _
    $region70: #{_lambda_.1} parent=5 // pred_check_branch
      %391 = sbr.rel (%p388) target = $region72
    $region71: #{_lambda_.1} parent=5 // pred_region
      %s392 = ssub.s32 %s19, 1
      %p393 = scmp.lt.s32.totalorder %s24, 1
      %s394 = scalar_select %p393, %s24, 1
      %s395 = smul.addr %s394, 25
      %s396 = smul.addr %s395, 8
      %s397 = scalar_lea.vmem %s0, %s396
      %p398 = pneg %p45
      %p399 = pneg %p42
      %p400 = pneg %p66
      %p401 = pneg %p63
      %p402 = pneg %p87
      %p403 = pneg %p84
      %p404 = pneg %p108
      %p405 = pneg %p105
      %p406 = pneg %p129
      %p407 = pneg %p126
      %p408 = pneg %p150
      %p409 = pneg %p147
      %p410 = pneg %p171
      %p411 = pneg %p168
      %p412 = pneg %p192
      %p413 = pneg %p189
      %p414 = pneg %p213
      %p415 = pneg %p210
      %p416 = pneg %p234
      %p417 = pneg %p231
      %p418 = pneg %p255
      %p419 = pneg %p252
      %p420 = pneg %p276
      %p421 = pneg %p273
      %p422 = pneg %p297
      %p423 = pneg %p294
      %p424 = pneg %p323
      %p425 = pneg %p320
      %p426 = scmp.lt.s32.totalorder %s24, 1
      %s427 = scalar_select %p426, %s24, 1
      %s428 = smul.addr %s427, 41
      %s429 = smul.addr %s428, 8
      %s430 = scalar_lea.vmem %s13, %s429
      %p431 = scmp.lt.s32.totalorder %s24, 1
      %s432 = scalar_select %p431, %s24, 1
      %s433 = smul.addr %s432, 25
      %s434 = smul.addr %s433, 8
      %s435 = scalar_lea.vmem %s0, %s434
      %p436 = scmp.lt.s32.totalorder %s24, 1
      %s437 = scalar_select %p436, %s24, 1
      %s438 = smul.addr %s437, 41
      %s439 = smul.addr %s438, 8
      %s440 = scalar_lea.vmem %s13, %s439
      %v441 = vld [vmem:[%s435] sm:$0xff]
      %v442 = vld [vmem:[%s435 + $0x8] sm:$0xff]
      %v443 = vld [vmem:[%s435 + $0x10] sm:$0xff]
      %v444 = vld [vmem:[%s435 + $0x18] sm:$0xff]
      %v445 = vld [vmem:[%s435 + $0x20] sm:$0xff]
      %v446 = vld [vmem:[%s435 + $0x28] sm:$0xff]
      %v447 = vld [vmem:[%s435 + $0x30] sm:$0xff]
      %v448 = vld [vmem:[%s435 + $0x38] sm:$0xff]
      %v449 = vld [vmem:[%s435 + $0x40] sm:$0xff]
      %v450 = vld [vmem:[%s435 + $0x48] sm:$0xff]
      %v451 = vld [vmem:[%s435 + $0x50] sm:$0xff]
      %v452 = vld [vmem:[%s435 + $0x58] sm:$0xff]
      %v453 = vld [vmem:[%s435 + $0x60] sm:$0xff]
      %v454 = vld [vmem:[%s435 + $0x68] sm:$0xff]
      %v455 = vld [vmem:[%s435 + $0x70] sm:$0xff]
      %v456 = vld [vmem:[%s435 + $0x78] sm:$0xff]
      %v457 = vld [vmem:[%s435 + $0x80] sm:$0xff]
      %v458 = vld [vmem:[%s435 + $0x88] sm:$0xff]
      %v459 = vld [vmem:[%s435 + $0x90] sm:$0xff]
      %v460 = vld [vmem:[%s435 + $0x98] sm:$0xff]
      %v461 = vld [vmem:[%s435 + $0xa0] sm:$0xff]
      %v462 = vld [vmem:[%s435 + $0xa8] sm:$0xff]
      %v463 = vld [vmem:[%s435 + $0xb0] sm:$0xff]
      %v464 = vld [vmem:[%s435 + $0xb8] sm:$0xff]
      %v465 = vld [vmem:[%s435 + $0xc0] sm:$0xf]
      %v466 = vld [vmem:[%s1] sm:$0xff]
      %v467 = vld [vmem:[%s1 + $0x8] sm:$0xff]
      %v468 = vld [vmem:[%s1 + $0x10] sm:$0xff]
      %v469 = vld [vmem:[%s1 + $0x18] sm:$0x7]
      %v470 = vld [vmem:[%s2] sm:$0x1]
      %v472 = vlaneseq
      %v473 = vshrl.u32 %v472, 7
      %v474 = vsub.s32 0, %v473
      %v475 = vrot.slane %v470, %v474
      %vm477 = vcmask 220160
      %v479 = vsel %vm477, %v441, 0
      %v482 = vsel %vm477, %v442, 0
      %v485 = vsel %vm477, %v443, 0
      %v488 = vsel %vm477, %v444, 0
      %v491 = vsel %vm477, %v445, 0
      %v494 = vsel %vm477, %v446, 0
      %v497 = vsel %vm477, %v447, 0
      %v500 = vsel %vm477, %v448, 0
      %v503 = vsel %vm477, %v449, 0
      %v506 = vsel %vm477, %v450, 0
      %v509 = vsel %vm477, %v451, 0
      %v512 = vsel %vm477, %v452, 0
      %v515 = vsel %vm477, %v453, 0
      %v518 = vsel %vm477, %v454, 0
      %v521 = vsel %vm477, %v455, 0
      %v524 = vsel %vm477, %v456, 0
      %v527 = vsel %vm477, %v457, 0
      %v530 = vsel %vm477, %v458, 0
      %v533 = vsel %vm477, %v459, 0
      %v536 = vsel %vm477, %v460, 0
      %v539 = vsel %vm477, %v461, 0
      %v542 = vsel %vm477, %v462, 0
      %v545 = vsel %vm477, %v463, 0
      %v548 = vsel %vm477, %v464, 0
      %v551 = vsel %vm477, %v465, 0
      %vm553 = vcmask 1042432
      %v555 = vsel %vm553, %v469, 0
      %557 = vmatprep.subr.mxu0 0.0
      %558 = vmatpush1.msra.mxu0 %v466
      %559 = vmatprep.subr.mxu0 0.0
      %560 = vmatpush1.msra.mxu0 %v467
      %561 = vmatprep.subr.mxu0 0.0
      %562 = vmatpush1.msra.mxu0 %v468
      %563 = vmatprep.subr.mxu0 0.0
      %564 = vmatpush1.msra.mxu0 %v555
      %565 = vmatprep.subr.mxu0 0.0
      %566 = vmatpush1.msra.mxu0 0.0
      %567 = vmatprep.subr.mxu0 0.0
      %568 = vmatpush1.msra.mxu0 0.0
      %569 = vmatprep.subr.mxu0 0.0
      %570 = vmatpush1.msra.mxu0 0.0
      %571 = vmatprep.subr.mxu0 0.0
      %572 = vmatpush1.msra.mxu0 0.0
      %573 = vmatprep.subr.mxu0 0.0
      %574 = vmatpush1.msra.mxu0 0.0
      %575 = vmatprep.subr.mxu0 0.0
      %576 = vmatpush1.msra.mxu0 0.0
      %577 = vmatprep.subr.mxu0 0.0
      %578 = vmatpush1.msra.mxu0 0.0
      %579 = vmatprep.subr.mxu0 0.0
      %580 = vmatpush1.msra.mxu0 0.0
      %581 = vmatprep.subr.mxu0 0.0
      %582 = vmatpush1.msra.mxu0 0.0
      %583 = vmatprep.subr.mxu0 0.0
      %584 = vmatpush1.msra.mxu0 0.0
      %585 = vmatprep.subr.mxu0 0.0
      %586 = vmatpush1.msra.mxu0 0.0
      %587 = vmatprep.subr.mxu0 0.0
      %588 = vmatpush1.msra.mxu0 0.0
      %589 = vmatprep.subr.mxu0 0.0
      %590 = vmatpush1.msra.mxu0 0.0
      %591 = vmatprep.subr.mxu0 0.0
      %592 = vmatpush1.msra.mxu0 0.0
      %593 = vmatprep.subr.mxu0 0.0
      %594 = vmatpush1.msra.mxu0 0.0
      %595 = vmatprep.subr.mxu0 0.0
      %596 = vmatpush1.msra.mxu0 0.0
      %597 = vmatprep.subr.mxu0 0.0
      %598 = vmatpush1.msra.mxu0 0.0
      %599 = vmatprep.subr.mxu0 0.0
      %600 = vmatpush1.msra.mxu0 0.0
      %601 = vmatprep.subr.mxu0 0.0
      %602 = vmatpush1.msra.mxu0 0.0
      %603 = vmatprep.subr.mxu0 0.0
      %604 = vmatpush1.msra.mxu0 0.0
      %605 = vmatprep.subr.mxu0 0.0
      %606 = vmatpush1.msra.mxu0 0.0
      %607 = vmatprep.subr.mxu0 0.0
      %608 = vmatpush1.msra.mxu0 0.0
      %609 = vmatprep.subr.mxu0 0.0
      %610 = vmatpush1.msra.mxu0 0.0
      %611 = vmatprep.subr.mxu0 0.0
      %612 = vmatpush1.msra.mxu0 0.0
      %613 = vmatprep.subr.mxu0 0.0
      %614 = vmatpush1.msra.mxu0 0.0
      %615 = vmatprep.subr.mxu0 0.0
      %616 = vmatpush1.msra.mxu0 0.0
      %617 = vmatprep.subr.mxu0 0.0
      %618 = vmatpush1.msra.mxu0 0.0
      %619 = vmatprep.subr.mxu0 0.0
      %620 = vmatpush1.msra.mxu0 0.0
      %621 = vmatprep.mubr.f32.mxu0 0.0
      %622 = vmatmul.mubr.f32.gmra.mrb[0].mxu0 %v479
      %v623 = vpop.f32.mrb[0].mxu0
      %v624 = vadd.f32 %v475, %v623
      %v625 = vpop.f32.mrb[0].mxu0
      %626 = vmatprep.mubr.f32.mxu0 0.0
      %627 = vmatmul.mubr.f32.gmra.mrb[0].mxu0 %v482
      %v628 = vpop.f32.mrb[0].mxu0
      %v629 = vadd.f32 %v475, %v628
      %v630 = vpop.f32.mrb[0].mxu0
      %631 = vmatprep.mubr.f32.mxu0 0.0
      %632 = vmatmul.mubr.f32.gmra.mrb[0].mxu0 %v485
      %v633 = vpop.f32.mrb[0].mxu0
      %v634 = vadd.f32 %v475, %v633
      %v635 = vpop.f32.mrb[0].mxu0
      %636 = vmatprep.mubr.f32.mxu0 0.0
      %637 = vmatmul.mubr.f32.gmra.mrb[0].mxu0 %v488
      %v638 = vpop.f32.mrb[0].mxu0
      %v639 = vadd.f32 %v475, %v638
      %v640 = vpop.f32.mrb[0].mxu0
      %641 = vmatprep.mubr.f32.mxu0 0.0
      %642 = vmatmul.mubr.f32.gmra.mrb[0].mxu0 %v491
      %v643 = vpop.f32.mrb[0].mxu0
      %v644 = vadd.f32 %v475, %v643
      %v645 = vpop.f32.mrb[0].mxu0
      %646 = vmatprep.mubr.f32.mxu0 0.0
      %647 = vmatmul.mubr.f32.gmra.mrb[0].mxu0 %v494
      %v648 = vpop.f32.mrb[0].mxu0
      %v649 = vadd.f32 %v475, %v648
      %v650 = vpop.f32.mrb[0].mxu0
      %651 = vmatprep.mubr.f32.mxu0 0.0
      %652 = vmatmul.mubr.f32.gmra.mrb[0].mxu0 %v497
      %v653 = vpop.f32.mrb[0].mxu0
      %v654 = vadd.f32 %v475, %v653
      %v655 = vpop.f32.mrb[0].mxu0
      %656 = vmatprep.mubr.f32.mxu0 0.0
      %657 = vmatmul.mubr.f32.gmra.mrb[0].mxu0 %v500
      %v658 = vpop.f32.mrb[0].mxu0
      %v659 = vadd.f32 %v475, %v658
      %v660 = vpop.f32.mrb[0].mxu0
      %661 = vmatprep.mubr.f32.mxu0 0.0
      %662 = vmatmul.mubr.f32.gmra.mrb[0].mxu0 %v503
      %v663 = vpop.f32.mrb[0].mxu0
      %v664 = vadd.f32 %v475, %v663
      %v665 = vpop.f32.mrb[0].mxu0
      %666 = vmatprep.mubr.f32.mxu0 0.0
      %667 = vmatmul.mubr.f32.gmra.mrb[0].mxu0 %v506
      %v668 = vpop.f32.mrb[0].mxu0
      %v669 = vadd.f32 %v475, %v668
      %v670 = vpop.f32.mrb[0].mxu0
      %671 = vmatprep.mubr.f32.mxu0 0.0
      %672 = vmatmul.mubr.f32.gmra.mrb[0].mxu0 %v509
      %v673 = vpop.f32.mrb[0].mxu0
      %v674 = vadd.f32 %v475, %v673
      %v675 = vpop.f32.mrb[0].mxu0
      %676 = vmatprep.mubr.f32.mxu0 0.0
      %677 = vmatmul.mubr.f32.gmra.mrb[0].mxu0 %v512
      %v678 = vpop.f32.mrb[0].mxu0
      %v679 = vadd.f32 %v475, %v678
      %v680 = vpop.f32.mrb[0].mxu0
      %681 = vmatprep.mubr.f32.mxu0 0.0
      %682 = vmatmul.mubr.f32.gmra.mrb[0].mxu0 %v515
      %v683 = vpop.f32.mrb[0].mxu0
      %v684 = vadd.f32 %v475, %v683
      %v685 = vpop.f32.mrb[0].mxu0
      %686 = vmatprep.mubr.f32.mxu0 0.0
      %687 = vmatmul.mubr.f32.gmra.mrb[0].mxu0 %v518
      %v688 = vpop.f32.mrb[0].mxu0
      %v689 = vadd.f32 %v475, %v688
      %v690 = vpop.f32.mrb[0].mxu0
      %691 = vmatprep.mubr.f32.mxu0 0.0
      %692 = vmatmul.mubr.f32.gmra.mrb[0].mxu0 %v521
      %v693 = vpop.f32.mrb[0].mxu0
      %v694 = vadd.f32 %v475, %v693
      %v695 = vpop.f32.mrb[0].mxu0
      %696 = vmatprep.mubr.f32.mxu0 0.0
      %697 = vmatmul.mubr.f32.gmra.mrb[0].mxu0 %v524
      %v698 = vpop.f32.mrb[0].mxu0
      %v699 = vadd.f32 %v475, %v698
      %v700 = vpop.f32.mrb[0].mxu0
      %701 = vmatprep.mubr.f32.mxu0 0.0
      %702 = vmatmul.mubr.f32.gmra.mrb[0].mxu0 %v527
      %v703 = vpop.f32.mrb[0].mxu0
      %v704 = vadd.f32 %v475, %v703
      %v705 = vpop.f32.mrb[0].mxu0
      %706 = vmatprep.mubr.f32.mxu0 0.0
      %707 = vmatmul.mubr.f32.gmra.mrb[0].mxu0 %v530
      %v708 = vpop.f32.mrb[0].mxu0
      %v709 = vadd.f32 %v475, %v708
      %v710 = vpop.f32.mrb[0].mxu0
      %711 = vmatprep.mubr.f32.mxu0 0.0
      %712 = vmatmul.mubr.f32.gmra.mrb[0].mxu0 %v533
      %v713 = vpop.f32.mrb[0].mxu0
      %v714 = vadd.f32 %v475, %v713
      %v715 = vpop.f32.mrb[0].mxu0
      %716 = vmatprep.mubr.f32.mxu0 0.0
      %717 = vmatmul.mubr.f32.gmra.mrb[0].mxu0 %v536
      %v718 = vpop.f32.mrb[0].mxu0
      %v719 = vadd.f32 %v475, %v718
      %v720 = vpop.f32.mrb[0].mxu0
      %721 = vmatprep.mubr.f32.mxu0 0.0
      %722 = vmatmul.mubr.f32.gmra.mrb[0].mxu0 %v539
      %v723 = vpop.f32.mrb[0].mxu0
      %v724 = vadd.f32 %v475, %v723
      %v725 = vpop.f32.mrb[0].mxu0
      %726 = vmatprep.mubr.f32.mxu0 0.0
      %727 = vmatmul.mubr.f32.gmra.mrb[0].mxu0 %v542
      %v728 = vpop.f32.mrb[0].mxu0
      %v729 = vadd.f32 %v475, %v728
      %v730 = vpop.f32.mrb[0].mxu0
      %731 = vmatprep.mubr.f32.mxu0 0.0
      %732 = vmatmul.mubr.f32.gmra.mrb[0].mxu0 %v545
      %v733 = vpop.f32.mrb[0].mxu0
      %v734 = vadd.f32 %v475, %v733
      %v735 = vpop.f32.mrb[0].mxu0
      %736 = vmatprep.mubr.f32.mxu0 0.0
      %737 = vmatmul.mubr.f32.gmra.mrb[0].mxu0 %v548
      %v738 = vpop.f32.mrb[0].mxu0
      %v739 = vadd.f32 %v475, %v738
      %v740 = vpop.f32.mrb[0].mxu0
      %741 = vmatprep.mubr.f32.mxu0 0.0
      %742 = vmatmul.mubr.f32.gmra.mrb[0].mxu0 %v551
      %v743 = vpop.f32.mrb[0].mxu0
      %v744 = vadd.f32 %v475, %v743
      %v745 = vpop.f32.mrb[0].mxu0
      %746 = vdwg.mxu0
      %v747 = vmax.f32 %v624, 0.0
      %v748 = vmax.f32 %v629, 0.0
      %v749 = vmax.f32 %v634, 0.0
      %v750 = vmax.f32 %v639, 0.0
      %v751 = vmax.f32 %v644, 0.0
      %v752 = vmax.f32 %v649, 0.0
      %v753 = vmax.f32 %v654, 0.0
      %v754 = vmax.f32 %v659, 0.0
      %v755 = vmax.f32 %v664, 0.0
      %v756 = vmax.f32 %v669, 0.0
      %v757 = vmax.f32 %v674, 0.0
      %v758 = vmax.f32 %v679, 0.0
      %v759 = vmax.f32 %v684, 0.0
      %v760 = vmax.f32 %v689, 0.0
      %v761 = vmax.f32 %v694, 0.0
      %v762 = vmax.f32 %v699, 0.0
      %v763 = vmax.f32 %v704, 0.0
      %v764 = vmax.f32 %v709, 0.0
      %v765 = vmax.f32 %v714, 0.0
      %v766 = vmax.f32 %v719, 0.0
      %v767 = vmax.f32 %v724, 0.0
      %v768 = vmax.f32 %v729, 0.0
      %v769 = vmax.f32 %v734, 0.0
      %v770 = vmax.f32 %v739, 0.0
      %v771 = vmax.f32 %v744, 0.0
      %v772 = vld [vmem:[%s3] sm:$0xff]
      %v773 = vld [vmem:[%s3 + $0x8] sm:$0xff]
      %v774 = vld [vmem:[%s3 + $0x10] sm:$0xff]
      %v775 = vld [vmem:[%s3 + $0x18] sm:$0xff]
      %v776 = vld [vmem:[%s3 + $0x20] sm:$0xff]
      %v777 = vld [vmem:[%s3 + $0x28] sm:$0xff]
      %v778 = vld [vmem:[%s3 + $0x30] sm:$0xff]
      %v779 = vld [vmem:[%s3 + $0x38] sm:$0xff]
      %v780 = vld [vmem:[%s4] sm:$0x1]
      %v782 = vlaneseq
      %v783 = vshrl.u32 %v782, 7
      %v784 = vsub.s32 0, %v783
      %v785 = vrot.slane %v780, %v784
      %vm787 = vcmask 523264
      %v789 = vsel %vm787, %v747, 0
      %v792 = vsel %vm787, %v748, 0
      %v795 = vsel %vm787, %v749, 0
      %v798 = vsel %vm787, %v750, 0
      %v801 = vsel %vm787, %v751, 0
      %v804 = vsel %vm787, %v752, 0
      %v807 = vsel %vm787, %v753, 0
      %v810 = vsel %vm787, %v754, 0
      %v813 = vsel %vm787, %v755, 0
      %v816 = vsel %vm787, %v756, 0
      %v819 = vsel %vm787, %v757, 0
      %v822 = vsel %vm787, %v758, 0
      %v825 = vsel %vm787, %v759, 0
      %v828 = vsel %vm787, %v760, 0
      %v831 = vsel %vm787, %v761, 0
      %v834 = vsel %vm787, %v762, 0
      %v837 = vsel %vm787, %v763, 0
      %v840 = vsel %vm787, %v764, 0
      %v843 = vsel %vm787, %v765, 0
      %v846 = vsel %vm787, %v766, 0
      %v849 = vsel %vm787, %v767, 0
      %v852 = vsel %vm787, %v768, 0
      %v855 = vsel %vm787, %v769, 0
      %v858 = vsel %vm787, %v770, 0
      %v861 = vsel %vm787, %v771, 0
      %863 = vmatprep.subr.mxu0 0.0
      %864 = vmatpush1.msra.mxu0 %v772
      %865 = vmatprep.subr.mxu0 0.0
      %866 = vmatpush1.msra.mxu0 %v773
      %867 = vmatprep.subr.mxu0 0.0
      %868 = vmatpush1.msra.mxu0 %v774
      %869 = vmatprep.subr.mxu0 0.0
      %870 = vmatpush1.msra.mxu0 %v775
      %871 = vmatprep.subr.mxu0 0.0
      %872 = vmatpush1.msra.mxu0 %v776
      %873 = vmatprep.subr.mxu0 0.0
      %874 = vmatpush1.msra.mxu0 %v777
      %875 = vmatprep.subr.mxu0 0.0
      %876 = vmatpush1.msra.mxu0 %v778
      %877 = vmatprep.subr.mxu0 0.0
      %878 = vmatpush1.msra.mxu0 %v779
      %879 = vmatprep.subr.mxu0 0.0
      %880 = vmatpush1.msra.mxu0 0.0
      %881 = vmatprep.subr.mxu0 0.0
      %882 = vmatpush1.msra.mxu0 0.0
      %883 = vmatprep.subr.mxu0 0.0
      %884 = vmatpush1.msra.mxu0 0.0
      %885 = vmatprep.subr.mxu0 0.0
      %886 = vmatpush1.msra.mxu0 0.0
      %887 = vmatprep.subr.mxu0 0.0
      %888 = vmatpush1.msra.mxu0 0.0
      %889 = vmatprep.subr.mxu0 0.0
      %890 = vmatpush1.msra.mxu0 0.0
      %891 = vmatprep.subr.mxu0 0.0
      %892 = vmatpush1.msra.mxu0 0.0
      %893 = vmatprep.subr.mxu0 0.0
      %894 = vmatpush1.msra.mxu0 0.0
      %895 = vmatprep.subr.mxu0 0.0
      %896 = vmatpush1.msra.mxu0 0.0
      %897 = vmatprep.subr.mxu0 0.0
      %898 = vmatpush1.msra.mxu0 0.0
      %899 = vmatprep.subr.mxu0 0.0
      %900 = vmatpush1.msra.mxu0 0.0
      %901 = vmatprep.subr.mxu0 0.0
      %902 = vmatpush1.msra.mxu0 0.0
      %903 = vmatprep.subr.mxu0 0.0
      %904 = vmatpush1.msra.mxu0 0.0
      %905 = vmatprep.subr.mxu0 0.0
      %906 = vmatpush1.msra.mxu0 0.0
      %907 = vmatprep.subr.mxu0 0.0
      %908 = vmatpush1.msra.mxu0 0.0
      %909 = vmatprep.subr.mxu0 0.0
      %910 = vmatpush1.msra.mxu0 0.0
      %911 = vmatprep.subr.mxu0 0.0
      %912 = vmatpush1.msra.mxu0 0.0
      %913 = vmatprep.subr.mxu0 0.0
      %914 = vmatpush1.msra.mxu0 0.0
      %915 = vmatprep.subr.mxu0 0.0
      %916 = vmatpush1.msra.mxu0 0.0
      %917 = vmatprep.subr.mxu0 0.0
      %918 = vmatpush1.msra.mxu0 0.0
      %919 = vmatprep.subr.mxu0 0.0
      %920 = vmatpush1.msra.mxu0 0.0
      %921 = vmatprep.subr.mxu0 0.0
      %922 = vmatpush1.msra.mxu0 0.0
      %923 = vmatprep.subr.mxu0 0.0
      %924 = vmatpush1.msra.mxu0 0.0
      %925 = vmatprep.subr.mxu0 0.0
      %926 = vmatpush1.msra.mxu0 0.0
      %927 = vmatprep.mubr.f32.mxu0 0.0
      %928 = vmatmul.mubr.f32.gmra.mrb[0].mxu0 %v789
      %v929 = vpop.f32.mrb[0].mxu0
      %v930 = vadd.f32 %v785, %v929
      %v931 = vpop.f32.mrb[0].mxu0
      %932 = vmatprep.mubr.f32.mxu0 0.0
      %933 = vmatmul.mubr.f32.gmra.mrb[0].mxu0 %v792
      %v934 = vpop.f32.mrb[0].mxu0
      %v935 = vadd.f32 %v785, %v934
      %v936 = vpop.f32.mrb[0].mxu0
      %937 = vmatprep.mubr.f32.mxu0 0.0
      %938 = vmatmul.mubr.f32.gmra.mrb[0].mxu0 %v795
      %v939 = vpop.f32.mrb[0].mxu0
      %v940 = vadd.f32 %v785, %v939
      %v941 = vpop.f32.mrb[0].mxu0
      %942 = vmatprep.mubr.f32.mxu0 0.0
      %943 = vmatmul.mubr.f32.gmra.mrb[0].mxu0 %v798
      %v944 = vpop.f32.mrb[0].mxu0
      %v945 = vadd.f32 %v785, %v944
      %v946 = vpop.f32.mrb[0].mxu0
      %947 = vmatprep.mubr.f32.mxu0 0.0
      %948 = vmatmul.mubr.f32.gmra.mrb[0].mxu0 %v801
      %v949 = vpop.f32.mrb[0].mxu0
      %v950 = vadd.f32 %v785, %v949
      %v951 = vpop.f32.mrb[0].mxu0
      %952 = vmatprep.mubr.f32.mxu0 0.0
      %953 = vmatmul.mubr.f32.gmra.mrb[0].mxu0 %v804
      %v954 = vpop.f32.mrb[0].mxu0
      %v955 = vadd.f32 %v785, %v954
      %v956 = vpop.f32.mrb[0].mxu0
      %957 = vmatprep.mubr.f32.mxu0 0.0
      %958 = vmatmul.mubr.f32.gmra.mrb[0].mxu0 %v807
      %v959 = vpop.f32.mrb[0].mxu0
      %v960 = vadd.f32 %v785, %v959
      %v961 = vpop.f32.mrb[0].mxu0
      %962 = vmatprep.mubr.f32.mxu0 0.0
      %963 = vmatmul.mubr.f32.gmra.mrb[0].mxu0 %v810
      %v964 = vpop.f32.mrb[0].mxu0
      %v965 = vadd.f32 %v785, %v964
      %v966 = vpop.f32.mrb[0].mxu0
      %967 = vmatprep.mubr.f32.mxu0 0.0
      %968 = vmatmul.mubr.f32.gmra.mrb[0].mxu0 %v813
      %v969 = vpop.f32.mrb[0].mxu0
      %v970 = vadd.f32 %v785, %v969
      %v971 = vpop.f32.mrb[0].mxu0
      %972 = vmatprep.mubr.f32.mxu0 0.0
      %973 = vmatmul.mubr.f32.gmra.mrb[0].mxu0 %v816
      %v974 = vpop.f32.mrb[0].mxu0
      %v975 = vadd.f32 %v785, %v974
      %v976 = vpop.f32.mrb[0].mxu0
      %977 = vmatprep.mubr.f32.mxu0 0.0
      %978 = vmatmul.mubr.f32.gmra.mrb[0].mxu0 %v819
      %v979 = vpop.f32.mrb[0].mxu0
      %v980 = vadd.f32 %v785, %v979
      %v981 = vpop.f32.mrb[0].mxu0
      %982 = vmatprep.mubr.f32.mxu0 0.0
      %983 = vmatmul.mubr.f32.gmra.mrb[0].mxu0 %v822
      %v984 = vpop.f32.mrb[0].mxu0
      %v985 = vadd.f32 %v785, %v984
      %v986 = vpop.f32.mrb[0].mxu0
      %987 = vmatprep.mubr.f32.mxu0 0.0
      %988 = vmatmul.mubr.f32.gmra.mrb[0].mxu0 %v825
      %v989 = vpop.f32.mrb[0].mxu0
      %v990 = vadd.f32 %v785, %v989
      %v991 = vpop.f32.mrb[0].mxu0
      %992 = vmatprep.mubr.f32.mxu0 0.0
      %993 = vmatmul.mubr.f32.gmra.mrb[0].mxu0 %v828
      %v994 = vpop.f32.mrb[0].mxu0
      %v995 = vadd.f32 %v785, %v994
      %v996 = vpop.f32.mrb[0].mxu0
      %997 = vmatprep.mubr.f32.mxu0 0.0
      %998 = vmatmul.mubr.f32.gmra.mrb[0].mxu0 %v831
      %v999 = vpop.f32.mrb[0].mxu0
      %v1000 = vadd.f32 %v785, %v999
      %v1001 = vpop.f32.mrb[0].mxu0
      %1002 = vmatprep.mubr.f32.mxu0 0.0
      %1003 = vmatmul.mubr.f32.gmra.mrb[0].mxu0 %v834
      %v1004 = vpop.f32.mrb[0].mxu0
      %v1005 = vadd.f32 %v785, %v1004
      %v1006 = vpop.f32.mrb[0].mxu0
      %1007 = vmatprep.mubr.f32.mxu0 0.0
      %1008 = vmatmul.mubr.f32.gmra.mrb[0].mxu0 %v837
      %v1009 = vpop.f32.mrb[0].mxu0
      %v1010 = vadd.f32 %v785, %v1009
      %v1011 = vpop.f32.mrb[0].mxu0
      %1012 = vmatprep.mubr.f32.mxu0 0.0
      %1013 = vmatmul.mubr.f32.gmra.mrb[0].mxu0 %v840
      %v1014 = vpop.f32.mrb[0].mxu0
      %v1015 = vadd.f32 %v785, %v1014
      %v1016 = vpop.f32.mrb[0].mxu0
      %1017 = vmatprep.mubr.f32.mxu0 0.0
      %1018 = vmatmul.mubr.f32.gmra.mrb[0].mxu0 %v843
      %v1019 = vpop.f32.mrb[0].mxu0
      %v1020 = vadd.f32 %v785, %v1019
      %v1021 = vpop.f32.mrb[0].mxu0
      %1022 = vmatprep.mubr.f32.mxu0 0.0
      %1023 = vmatmul.mubr.f32.gmra.mrb[0].mxu0 %v846
      %v1024 = vpop.f32.mrb[0].mxu0
      %v1025 = vadd.f32 %v785, %v1024
      %v1026 = vpop.f32.mrb[0].mxu0
      %1027 = vmatprep.mubr.f32.mxu0 0.0
      %1028 = vmatmul.mubr.f32.gmra.mrb[0].mxu0 %v849
      %v1029 = vpop.f32.mrb[0].mxu0
      %v1030 = vadd.f32 %v785, %v1029
      %v1031 = vpop.f32.mrb[0].mxu0
      %1032 = vmatprep.mubr.f32.mxu0 0.0
      %1033 = vmatmul.mubr.f32.gmra.mrb[0].mxu0 %v852
      %v1034 = vpop.f32.mrb[0].mxu0
      %v1035 = vadd.f32 %v785, %v1034
      %v1036 = vpop.f32.mrb[0].mxu0
      %1037 = vmatprep.mubr.f32.mxu0 0.0
      %1038 = vmatmul.mubr.f32.gmra.mrb[0].mxu0 %v855
      %v1039 = vpop.f32.mrb[0].mxu0
      %v1040 = vadd.f32 %v785, %v1039
      %v1041 = vpop.f32.mrb[0].mxu0
      %1042 = vmatprep.mubr.f32.mxu0 0.0
      %1043 = vmatmul.mubr.f32.gmra.mrb[0].mxu0 %v858
      %v1044 = vpop.f32.mrb[0].mxu0
      %v1045 = vadd.f32 %v785, %v1044
      %v1046 = vpop.f32.mrb[0].mxu0
      %1047 = vmatprep.mubr.f32.mxu0 0.0
      %1048 = vmatmul.mubr.f32.gmra.mrb[0].mxu0 %v861
      %v1049 = vpop.f32.mrb[0].mxu0
      %v1050 = vadd.f32 %v785, %v1049
      %v1051 = vpop.f32.mrb[0].mxu0
      %1052 = vdwg.mxu0
      %v1053 = vmax.f32 %v930, 0.0
      %v1054 = vmax.f32 %v935, 0.0
      %v1055 = vmax.f32 %v940, 0.0
      %v1056 = vmax.f32 %v945, 0.0
      %v1057 = vmax.f32 %v950, 0.0
      %v1058 = vmax.f32 %v955, 0.0
      %v1059 = vmax.f32 %v960, 0.0
      %v1060 = vmax.f32 %v965, 0.0
      %v1061 = vmax.f32 %v970, 0.0
      %v1062 = vmax.f32 %v975, 0.0
      %v1063 = vmax.f32 %v980, 0.0
      %v1064 = vmax.f32 %v985, 0.0
      %v1065 = vmax.f32 %v990, 0.0
      %v1066 = vmax.f32 %v995, 0.0
      %v1067 = vmax.f32 %v1000, 0.0
      %v1068 = vmax.f32 %v1005, 0.0
      %v1069 = vmax.f32 %v1010, 0.0
      %v1070 = vmax.f32 %v1015, 0.0
      %v1071 = vmax.f32 %v1020, 0.0
      %v1072 = vmax.f32 %v1025, 0.0
      %v1073 = vmax.f32 %v1030, 0.0
      %v1074 = vmax.f32 %v1035, 0.0
      %v1075 = vmax.f32 %v1040, 0.0
      %v1076 = vmax.f32 %v1045, 0.0
      %v1077 = vmax.f32 %v1050, 0.0
      %1078 = vst.msk [vmem:[#allocation2] sm:$0xff] %vm787, 0.0
      %1079 = vst.msk [vmem:[#allocation2 + $0x8] sm:$0xff] %vm787, 0.0
      %1080 = vst.msk [vmem:[#allocation2 + $0x10] sm:$0xff] %vm787, 0.0
      %1081 = vst.msk [vmem:[#allocation2 + $0x18] sm:$0xff] %vm787, 0.0
      %1082 = vst.msk [vmem:[#allocation2 + $0x20] sm:$0xff] %vm787, 0.0
      %1083 = vst.msk [vmem:[#allocation2 + $0x28] sm:$0xff] %vm787, 0.0
      %1084 = vst.msk [vmem:[#allocation2 + $0x30] sm:$0xff] %vm787, 0.0
      %1085 = vst.msk [vmem:[#allocation2 + $0x38] sm:$0xff] %vm787, 0.0
      %1086 = vst.msk [vmem:[#allocation2 + $0x40] sm:$0xff] %vm787, 0.0
      %1087 = vst.msk [vmem:[#allocation2 + $0x48] sm:$0xff] %vm787, 0.0
      %1088 = vst.msk [vmem:[#allocation2 + $0x50] sm:$0xff] %vm787, 0.0
      %1089 = vst.msk [vmem:[#allocation2 + $0x58] sm:$0xff] %vm787, 0.0
      %1090 = vst.msk [vmem:[#allocation2 + $0x60] sm:$0xff] %vm787, 0.0
      %1091 = vst.msk [vmem:[#allocation2 + $0x68] sm:$0xff] %vm787, 0.0
      %1092 = vst.msk [vmem:[#allocation2 + $0x70] sm:$0xff] %vm787, 0.0
      %1093 = vst.msk [vmem:[#allocation2 + $0x78] sm:$0xff] %vm787, 0.0
      %1094 = vst.msk [vmem:[#allocation2 + $0x80] sm:$0xff] %vm787, 0.0
      %1095 = vst.msk [vmem:[#allocation2 + $0x88] sm:$0xff] %vm787, 0.0
      %1096 = vst.msk [vmem:[#allocation2 + $0x90] sm:$0xff] %vm787, 0.0
      %1097 = vst.msk [vmem:[#allocation2 + $0x98] sm:$0xff] %vm787, 0.0
      %1098 = vst.msk [vmem:[#allocation2 + $0xa0] sm:$0xff] %vm787, 0.0
      %1099 = vst.msk [vmem:[#allocation2 + $0xa8] sm:$0xff] %vm787, 0.0
      %1100 = vst.msk [vmem:[#allocation2 + $0xb0] sm:$0xff] %vm787, 0.0
      %1101 = vst.msk [vmem:[#allocation2 + $0xb8] sm:$0xff] %vm787, 0.0
      %1102 = vst.msk [vmem:[#allocation2 + $0xc0] sm:$0xff] %vm787, 0.0
      %1103 = vst.msk [vmem:[#allocation2 + $0xc8] sm:$0xff] %vm787, 0.0
      %1104 = vst.msk [vmem:[#allocation2 + $0xd0] sm:$0xff] %vm787, 0.0
      %1105 = vst.msk [vmem:[#allocation2 + $0xd8] sm:$0xff] %vm787, 0.0
      %1106 = vst.msk [vmem:[#allocation2 + $0xe0] sm:$0xff] %vm787, 0.0
      %1107 = vst.msk [vmem:[#allocation2 + $0xe8] sm:$0xff] %vm787, 0.0
      %1108 = vst.msk [vmem:[#allocation2 + $0xf0] sm:$0xff] %vm787, 0.0
      %1109 = vst.msk [vmem:[#allocation2 + $0xf8] sm:$0xff] %vm787, 0.0
      %1110 = vst.msk [vmem:[#allocation2 + $0x11] sm:$0xff] %vm787, %v1053
      %vm1111 = vcmask 521216
      %1112 = vst.msk [vmem:[#allocation2 + $0x19] sm:$0x3f] %vm1111, %v1054
      %vm1113 = vcmask 523270
      %1114 = vst.msk [vmem:[#allocation2 + $0x1b] sm:$0xc0] %vm1113, %v1054
      %1115 = vst.msk [vmem:[#allocation2 + $0x23] sm:$0xff] %vm787, %v1055
      %vm1116 = vcmask 519168
      %1117 = vst.msk [vmem:[#allocation2 + $0x2b] sm:$0xf] %vm1116, %v1056
      %vm1118 = vcmask 523268
      %1119 = vst.msk [vmem:[#allocation2 + $0x2d] sm:$0xf0] %vm1118, %v1056
      %1120 = vst.msk [vmem:[#allocation2 + $0x35] sm:$0xff] %vm787, %v1057
      %vm1121 = vcmask 517120
      %1122 = vst.msk [vmem:[#allocation2 + $0x3d] sm:$0x3] %vm1121, %v1058
      %vm1123 = vcmask 523266
      %1124 = vst.msk [vmem:[#allocation2 + $0x3f] sm:$0xfc] %vm1123, %v1058
      %1125 = vst.msk [vmem:[#allocation2 + $0x47] sm:$0xff] %vm787, %v1059
      %1126 = vst.msk [vmem:[#allocation2 + $0x51] sm:$0xff] %vm787, %v1060
      %1127 = vst.msk [vmem:[#allocation2 + $0x59] sm:$0x3f] %vm1111, %v1061
      %1128 = vst.msk [vmem:[#allocation2 + $0x5b] sm:$0xc0] %vm1113, %v1061
      %1129 = vst.msk [vmem:[#allocation2 + $0x63] sm:$0xff] %vm787, %v1062
      %1130 = vst.msk [vmem:[#allocation2 + $0x6b] sm:$0xf] %vm1116, %v1063
      %1131 = vst.msk [vmem:[#allocation2 + $0x6d] sm:$0xf0] %vm1118, %v1063
      %1132 = vst.msk [vmem:[#allocation2 + $0x75] sm:$0xff] %vm787, %v1064
      %1133 = vst.msk [vmem:[#allocation2 + $0x7d] sm:$0x3] %vm1121, %v1065
      %1134 = vst.msk [vmem:[#allocation2 + $0x7f] sm:$0xfc] %vm1123, %v1065
      %1135 = vst.msk [vmem:[#allocation2 + $0x87] sm:$0xff] %vm787, %v1066
      %1136 = vst.msk [vmem:[#allocation2 + $0x91] sm:$0xff] %vm787, %v1067
      %1137 = vst.msk [vmem:[#allocation2 + $0x99] sm:$0x3f] %vm1111, %v1068
      %1138 = vst.msk [vmem:[#allocation2 + $0x9b] sm:$0xc0] %vm1113, %v1068
      %1139 = vst.msk [vmem:[#allocation2 + $0xa3] sm:$0xff] %vm787, %v1069
      %1140 = vst.msk [vmem:[#allocation2 + $0xab] sm:$0xf] %vm1116, %v1070
      %1141 = vst.msk [vmem:[#allocation2 + $0xad] sm:$0xf0] %vm1118, %v1070
      %1142 = vst.msk [vmem:[#allocation2 + $0xb5] sm:$0xff] %vm787, %v1071
      %1143 = vst.msk [vmem:[#allocation2 + $0xbd] sm:$0x3] %vm1121, %v1072
      %1144 = vst.msk [vmem:[#allocation2 + $0xbf] sm:$0xfc] %vm1123, %v1072
      %1145 = vst.msk [vmem:[#allocation2 + $0xc7] sm:$0xff] %vm787, %v1073
      %1146 = vst.msk [vmem:[#allocation2 + $0xd1] sm:$0xff] %vm787, %v1074
      %1147 = vst.msk [vmem:[#allocation2 + $0xd9] sm:$0x3f] %vm1111, %v1075
      %1148 = vst.msk [vmem:[#allocation2 + $0xdb] sm:$0xc0] %vm1113, %v1075
      %1149 = vst.msk [vmem:[#allocation2 + $0xe3] sm:$0xff] %vm787, %v1076
      %1150 = vst.msk [vmem:[#allocation2 + $0xeb] sm:$0xf] %vm1116, %v1077
      %v1151 = vld [vmem:[#allocation2] sm:$0xff]
      %v1152 = vld [vmem:[#allocation2 + $0x8] sm:$0xff]
      %v1153 = vld [vmem:[#allocation2 + $0x10] sm:$0xff]
      %v1154 = vld [vmem:[#allocation2 + $0x18] sm:$0xff]
      %v1155 = vld [vmem:[#allocation2 + $0x20] sm:$0xff]
      %v1156 = vld [vmem:[#allocation2 + $0x28] sm:$0xff]
      %v1157 = vld [vmem:[#allocation2 + $0x30] sm:$0xff]
      %v1158 = vld [vmem:[#allocation2 + $0x38] sm:$0xff]
      %v1159 = vld [vmem:[#allocation2 + $0x40] sm:$0xff]
      %v1160 = vld [vmem:[#allocation2 + $0x48] sm:$0xff]
      %v1161 = vld [vmem:[#allocation2 + $0x50] sm:$0xff]
      %v1162 = vld [vmem:[#allocation2 + $0x58] sm:$0xff]
      %v1163 = vld [vmem:[#allocation2 + $0x60] sm:$0xff]
      %v1164 = vld [vmem:[#allocation2 + $0x68] sm:$0xff]
      %v1165 = vld [vmem:[#allocation2 + $0x70] sm:$0xff]
      %v1166 = vld [vmem:[#allocation2 + $0x78] sm:$0xff]
      %v1167 = vld [vmem:[#allocation2 + $0x80] sm:$0xff]
      %v1168 = vld [vmem:[#allocation2 + $0x88] sm:$0xff]
      %v1169 = vld [vmem:[#allocation2 + $0x90] sm:$0xff]
      %v1170 = vld [vmem:[#allocation2 + $0x98] sm:$0xff]
      %v1171 = vld [vmem:[#allocation2 + $0xa0] sm:$0xff]
      %v1172 = vld [vmem:[#allocation2 + $0xa8] sm:$0xff]
      %v1173 = vld [vmem:[#allocation2 + $0xb0] sm:$0xff]
      %v1174 = vld [vmem:[#allocation2 + $0xb8] sm:$0xff]
      %v1175 = vld [vmem:[#allocation2 + $0xc0] sm:$0xff]
      %v1176 = vld [vmem:[#allocation2 + $0xc8] sm:$0xff]
      %v1177 = vld [vmem:[#allocation2 + $0xd0] sm:$0xff]
      %v1178 = vld [vmem:[#allocation2 + $0xd8] sm:$0xff]
      %v1179 = vld [vmem:[#allocation2 + $0xe0] sm:$0xff]
      %v1180 = vld [vmem:[#allocation2 + $0xe8] sm:$0xff]
      %v1181 = vld [vmem:[#allocation2 + $0xf0] sm:$0xff]
      %v1182 = vld [vmem:[#allocation2 + $0xf8] sm:$0xff]
      %v1183 = vld [vmem:[%s5] sm:$0xff]
      %v1184 = vld [vmem:[%s5 + $0x8] sm:$0xff]
      %v1185 = vld [vmem:[%s5 + $0x10] sm:$0xff]
      %v1186 = vld [vmem:[%s5 + $0x18] sm:$0xff]
      %v1187 = vld [vmem:[%s5 + $0x20] sm:$0xff]
      %v1188 = vld [vmem:[%s5 + $0x28] sm:$0xff]
      %v1189 = vld [vmem:[%s5 + $0x30] sm:$0xff]
      %v1190 = vld [vmem:[%s5 + $0x38] sm:$0xff]
      %v1191 = vld [vmem:[%s6] sm:$0x1]
      %v1193 = vlaneseq
      %v1194 = vshrl.u32 %v1193, 7
      %v1195 = vsub.s32 0, %v1194
      %v1196 = vrot.slane %v1191, %v1195
      %v1199 = vsel %vm787, %v1151, 0
      %v1202 = vsel %vm787, %v1152, 0
      %v1205 = vsel %vm787, %v1153, 0
      %v1208 = vsel %vm787, %v1154, 0
      %v1211 = vsel %vm787, %v1155, 0
      %v1214 = vsel %vm787, %v1156, 0
      %v1217 = vsel %vm787, %v1157, 0
      %v1220 = vsel %vm787, %v1158, 0
      %v1223 = vsel %vm787, %v1159, 0
      %v1226 = vsel %vm787, %v1160, 0
      %v1229 = vsel %vm787, %v1161, 0
      %v1232 = vsel %vm787, %v1162, 0
      %v1235 = vsel %vm787, %v1163, 0
      %v1238 = vsel %vm787, %v1164, 0
      %v1241 = vsel %vm787, %v1165, 0
      %v1244 = vsel %vm787, %v1166, 0
      %v1247 = vsel %vm787, %v1167, 0
      %v1250 = vsel %vm787, %v1168, 0
      %v1253 = vsel %vm787, %v1169, 0
      %v1256 = vsel %vm787, %v1170, 0
      %v1259 = vsel %vm787, %v1171, 0
      %v1262 = vsel %vm787, %v1172, 0
      %v1265 = vsel %vm787, %v1173, 0
      %v1268 = vsel %vm787, %v1174, 0
      %v1271 = vsel %vm787, %v1175, 0
      %v1274 = vsel %vm787, %v1176, 0
      %v1277 = vsel %vm787, %v1177, 0
      %v1280 = vsel %vm787, %v1178, 0
      %v1283 = vsel %vm787, %v1179, 0
      %v1286 = vsel %vm787, %v1180, 0
      %v1289 = vsel %vm787, %v1181, 0
      %v1292 = vsel %vm787, %v1182, 0
      %1294 = vmatprep.subr.mxu0 0.0
      %1295 = vmatpush1.msra.mxu0 %v1183
      %1296 = vmatprep.subr.mxu0 0.0
      %1297 = vmatpush1.msra.mxu0 %v1184
      %1298 = vmatprep.subr.mxu0 0.0
      %1299 = vmatpush1.msra.mxu0 %v1185
      %1300 = vmatprep.subr.mxu0 0.0
      %1301 = vmatpush1.msra.mxu0 %v1186
      %1302 = vmatprep.subr.mxu0 0.0
      %1303 = vmatpush1.msra.mxu0 %v1187
      %1304 = vmatprep.subr.mxu0 0.0
      %1305 = vmatpush1.msra.mxu0 %v1188
      %1306 = vmatprep.subr.mxu0 0.0
      %1307 = vmatpush1.msra.mxu0 %v1189
      %1308 = vmatprep.subr.mxu0 0.0
      %1309 = vmatpush1.msra.mxu0 %v1190
      %1310 = vmatprep.subr.mxu0 0.0
      %1311 = vmatpush1.msra.mxu0 0.0
      %1312 = vmatprep.subr.mxu0 0.0
      %1313 = vmatpush1.msra.mxu0 0.0
      %1314 = vmatprep.subr.mxu0 0.0
      %1315 = vmatpush1.msra.mxu0 0.0
      %1316 = vmatprep.subr.mxu0 0.0
      %1317 = vmatpush1.msra.mxu0 0.0
      %1318 = vmatprep.subr.mxu0 0.0
      %1319 = vmatpush1.msra.mxu0 0.0
      %1320 = vmatprep.subr.mxu0 0.0
      %1321 = vmatpush1.msra.mxu0 0.0
      %1322 = vmatprep.subr.mxu0 0.0
      %1323 = vmatpush1.msra.mxu0 0.0
      %1324 = vmatprep.subr.mxu0 0.0
      %1325 = vmatpush1.msra.mxu0 0.0
      %1326 = vmatprep.subr.mxu0 0.0
      %1327 = vmatpush1.msra.mxu0 0.0
      %1328 = vmatprep.subr.mxu0 0.0
      %1329 = vmatpush1.msra.mxu0 0.0
      %1330 = vmatprep.subr.mxu0 0.0
      %1331 = vmatpush1.msra.mxu0 0.0
      %1332 = vmatprep.subr.mxu0 0.0
      %1333 = vmatpush1.msra.mxu0 0.0
      %1334 = vmatprep.subr.mxu0 0.0
      %1335 = vmatpush1.msra.mxu0 0.0
      %1336 = vmatprep.subr.mxu0 0.0
      %1337 = vmatpush1.msra.mxu0 0.0
      %1338 = vmatprep.subr.mxu0 0.0
      %1339 = vmatpush1.msra.mxu0 0.0
      %1340 = vmatprep.subr.mxu0 0.0
      %1341 = vmatpush1.msra.mxu0 0.0
      %1342 = vmatprep.subr.mxu0 0.0
      %1343 = vmatpush1.msra.mxu0 0.0
      %1344 = vmatprep.subr.mxu0 0.0
      %1345 = vmatpush1.msra.mxu0 0.0
      %1346 = vmatprep.subr.mxu0 0.0
      %1347 = vmatpush1.msra.mxu0 0.0
      %1348 = vmatprep.subr.mxu0 0.0
      %1349 = vmatpush1.msra.mxu0 0.0
      %1350 = vmatprep.subr.mxu0 0.0
      %1351 = vmatpush1.msra.mxu0 0.0
      %1352 = vmatprep.subr.mxu0 0.0
      %1353 = vmatpush1.msra.mxu0 0.0
      %1354 = vmatprep.subr.mxu0 0.0
      %1355 = vmatpush1.msra.mxu0 0.0
      %1356 = vmatprep.subr.mxu0 0.0
      %1357 = vmatpush1.msra.mxu0 0.0
      %1358 = vmatprep.mubr.f32.mxu0 0.0
      %1359 = vmatmul.mubr.f32.gmra.mrb[0].mxu0 %v1199
      %v1360 = vpop.f32.mrb[0].mxu0
      %v1361 = vadd.f32 %v1196, %v1360
      %v1362 = vpop.f32.mrb[0].mxu0
      %1363 = vmatprep.mubr.f32.mxu0 0.0
      %1364 = vmatmul.mubr.f32.gmra.mrb[0].mxu0 %v1202
      %v1365 = vpop.f32.mrb[0].mxu0
      %v1366 = vadd.f32 %v1196, %v1365
      %v1367 = vpop.f32.mrb[0].mxu0
      %1368 = vmatprep.mubr.f32.mxu0 0.0
      %1369 = vmatmul.mubr.f32.gmra.mrb[0].mxu0 %v1205
      %v1370 = vpop.f32.mrb[0].mxu0
      %v1371 = vadd.f32 %v1196, %v1370
      %v1372 = vpop.f32.mrb[0].mxu0
      %1373 = vmatprep.mubr.f32.mxu0 0.0
      %1374 = vmatmul.mubr.f32.gmra.mrb[0].mxu0 %v1208
      %v1375 = vpop.f32.mrb[0].mxu0
      %v1376 = vadd.f32 %v1196, %v1375
      %v1377 = vpop.f32.mrb[0].mxu0
      %1378 = vmatprep.mubr.f32.mxu0 0.0
      %1379 = vmatmul.mubr.f32.gmra.mrb[0].mxu0 %v1211
      %v1380 = vpop.f32.mrb[0].mxu0
      %v1381 = vadd.f32 %v1196, %v1380
      %v1382 = vpop.f32.mrb[0].mxu0
      %1383 = vmatprep.mubr.f32.mxu0 0.0
      %1384 = vmatmul.mubr.f32.gmra.mrb[0].mxu0 %v1214
      %v1385 = vpop.f32.mrb[0].mxu0
      %v1386 = vadd.f32 %v1196, %v1385
      %v1387 = vpop.f32.mrb[0].mxu0
      %1388 = vmatprep.mubr.f32.mxu0 0.0
      %1389 = vmatmul.mubr.f32.gmra.mrb[0].mxu0 %v1217
      %v1390 = vpop.f32.mrb[0].mxu0
      %v1391 = vadd.f32 %v1196, %v1390
      %v1392 = vpop.f32.mrb[0].mxu0
      %1393 = vmatprep.mubr.f32.mxu0 0.0
      %1394 = vmatmul.mubr.f32.gmra.mrb[0].mxu0 %v1220
      %v1395 = vpop.f32.mrb[0].mxu0
      %v1396 = vadd.f32 %v1196, %v1395
      %v1397 = vpop.f32.mrb[0].mxu0
      %1398 = vmatprep.mubr.f32.mxu0 0.0
      %1399 = vmatmul.mubr.f32.gmra.mrb[0].mxu0 %v1223
      %v1400 = vpop.f32.mrb[0].mxu0
      %v1401 = vadd.f32 %v1196, %v1400
      %v1402 = vpop.f32.mrb[0].mxu0
      %1403 = vmatprep.mubr.f32.mxu0 0.0
      %1404 = vmatmul.mubr.f32.gmra.mrb[0].mxu0 %v1226
      %v1405 = vpop.f32.mrb[0].mxu0
      %v1406 = vadd.f32 %v1196, %v1405
      %v1407 = vpop.f32.mrb[0].mxu0
      %1408 = vmatprep.mubr.f32.mxu0 0.0
      %1409 = vmatmul.mubr.f32.gmra.mrb[0].mxu0 %v1229
      %v1410 = vpop.f32.mrb[0].mxu0
      %v1411 = vadd.f32 %v1196, %v1410
      %v1412 = vpop.f32.mrb[0].mxu0
      %1413 = vmatprep.mubr.f32.mxu0 0.0
      %1414 = vmatmul.mubr.f32.gmra.mrb[0].mxu0 %v1232
      %v1415 = vpop.f32.mrb[0].mxu0
      %v1416 = vadd.f32 %v1196, %v1415
      %v1417 = vpop.f32.mrb[0].mxu0
      %1418 = vmatprep.mubr.f32.mxu0 0.0
      %1419 = vmatmul.mubr.f32.gmra.mrb[0].mxu0 %v1235
      %v1420 = vpop.f32.mrb[0].mxu0
      %v1421 = vadd.f32 %v1196, %v1420
      %v1422 = vpop.f32.mrb[0].mxu0
      %1423 = vmatprep.mubr.f32.mxu0 0.0
      %1424 = vmatmul.mubr.f32.gmra.mrb[0].mxu0 %v1238
      %v1425 = vpop.f32.mrb[0].mxu0
      %v1426 = vadd.f32 %v1196, %v1425
      %v1427 = vpop.f32.mrb[0].mxu0
      %1428 = vmatprep.mubr.f32.mxu0 0.0
      %1429 = vmatmul.mubr.f32.gmra.mrb[0].mxu0 %v1241
      %v1430 = vpop.f32.mrb[0].mxu0
      %v1431 = vadd.f32 %v1196, %v1430
      %v1432 = vpop.f32.mrb[0].mxu0
      %1433 = vmatprep.mubr.f32.mxu0 0.0
      %1434 = vmatmul.mubr.f32.gmra.mrb[0].mxu0 %v1244
      %v1435 = vpop.f32.mrb[0].mxu0
      %v1436 = vadd.f32 %v1196, %v1435
      %v1437 = vpop.f32.mrb[0].mxu0
      %1438 = vmatprep.mubr.f32.mxu0 0.0
      %1439 = vmatmul.mubr.f32.gmra.mrb[0].mxu0 %v1247
      %v1440 = vpop.f32.mrb[0].mxu0
      %v1441 = vadd.f32 %v1196, %v1440
      %v1442 = vpop.f32.mrb[0].mxu0
      %1443 = vmatprep.mubr.f32.mxu0 0.0
      %1444 = vmatmul.mubr.f32.gmra.mrb[0].mxu0 %v1250
      %v1445 = vpop.f32.mrb[0].mxu0
      %v1446 = vadd.f32 %v1196, %v1445
      %v1447 = vpop.f32.mrb[0].mxu0
      %1448 = vmatprep.mubr.f32.mxu0 0.0
      %1449 = vmatmul.mubr.f32.gmra.mrb[0].mxu0 %v1253
      %v1450 = vpop.f32.mrb[0].mxu0
      %v1451 = vadd.f32 %v1196, %v1450
      %v1452 = vpop.f32.mrb[0].mxu0
      %1453 = vmatprep.mubr.f32.mxu0 0.0
      %1454 = vmatmul.mubr.f32.gmra.mrb[0].mxu0 %v1256
      %v1455 = vpop.f32.mrb[0].mxu0
      %v1456 = vadd.f32 %v1196, %v1455
      %v1457 = vpop.f32.mrb[0].mxu0
      %1458 = vmatprep.mubr.f32.mxu0 0.0
      %1459 = vmatmul.mubr.f32.gmra.mrb[0].mxu0 %v1259
      %v1460 = vpop.f32.mrb[0].mxu0
      %v1461 = vadd.f32 %v1196, %v1460
      %v1462 = vpop.f32.mrb[0].mxu0
      %1463 = vmatprep.mubr.f32.mxu0 0.0
      %1464 = vmatmul.mubr.f32.gmra.mrb[0].mxu0 %v1262
      %v1465 = vpop.f32.mrb[0].mxu0
      %v1466 = vadd.f32 %v1196, %v1465
      %v1467 = vpop.f32.mrb[0].mxu0
      %1468 = vmatprep.mubr.f32.mxu0 0.0
      %1469 = vmatmul.mubr.f32.gmra.mrb[0].mxu0 %v1265
      %v1470 = vpop.f32.mrb[0].mxu0
      %v1471 = vadd.f32 %v1196, %v1470
      %v1472 = vpop.f32.mrb[0].mxu0
      %1473 = vmatprep.mubr.f32.mxu0 0.0
      %1474 = vmatmul.mubr.f32.gmra.mrb[0].mxu0 %v1268
      %v1475 = vpop.f32.mrb[0].mxu0
      %v1476 = vadd.f32 %v1196, %v1475
      %v1477 = vpop.f32.mrb[0].mxu0
      %1478 = vmatprep.mubr.f32.mxu0 0.0
      %1479 = vmatmul.mubr.f32.gmra.mrb[0].mxu0 %v1271
      %v1480 = vpop.f32.mrb[0].mxu0
      %v1481 = vadd.f32 %v1196, %v1480
      %v1482 = vpop.f32.mrb[0].mxu0
      %1483 = vmatprep.mubr.f32.mxu0 0.0
      %1484 = vmatmul.mubr.f32.gmra.mrb[0].mxu0 %v1274
      %v1485 = vpop.f32.mrb[0].mxu0
      %v1486 = vadd.f32 %v1196, %v1485
      %v1487 = vpop.f32.mrb[0].mxu0
      %1488 = vmatprep.mubr.f32.mxu0 0.0
      %1489 = vmatmul.mubr.f32.gmra.mrb[0].mxu0 %v1277
      %v1490 = vpop.f32.mrb[0].mxu0
      %v1491 = vadd.f32 %v1196, %v1490
      %v1492 = vpop.f32.mrb[0].mxu0
      %1493 = vmatprep.mubr.f32.mxu0 0.0
      %1494 = vmatmul.mubr.f32.gmra.mrb[0].mxu0 %v1280
      %v1495 = vpop.f32.mrb[0].mxu0
      %v1496 = vadd.f32 %v1196, %v1495
      %v1497 = vpop.f32.mrb[0].mxu0
      %1498 = vmatprep.mubr.f32.mxu0 0.0
      %1499 = vmatmul.mubr.f32.gmra.mrb[0].mxu0 %v1283
      %v1500 = vpop.f32.mrb[0].mxu0
      %v1501 = vadd.f32 %v1196, %v1500
      %v1502 = vpop.f32.mrb[0].mxu0
      %1503 = vmatprep.mubr.f32.mxu0 0.0
      %1504 = vmatmul.mubr.f32.gmra.mrb[0].mxu0 %v1286
      %v1505 = vpop.f32.mrb[0].mxu0
      %v1506 = vadd.f32 %v1196, %v1505
      %v1507 = vpop.f32.mrb[0].mxu0
      %1508 = vmatprep.mubr.f32.mxu0 0.0
      %1509 = vmatmul.mubr.f32.gmra.mrb[0].mxu0 %v1289
      %v1510 = vpop.f32.mrb[0].mxu0
      %v1511 = vadd.f32 %v1196, %v1510
      %v1512 = vpop.f32.mrb[0].mxu0
      %1513 = vmatprep.mubr.f32.mxu0 0.0
      %1514 = vmatmul.mubr.f32.gmra.mrb[0].mxu0 %v1292
      %v1515 = vpop.f32.mrb[0].mxu0
      %v1516 = vadd.f32 %v1196, %v1515
      %v1517 = vpop.f32.mrb[0].mxu0
      %1518 = vdwg.mxu0
      %v1519 = vmax.f32 %v1361, 0.0
      %v1520 = vmax.f32 %v1366, 0.0
      %v1521 = vmax.f32 %v1371, 0.0
      %v1522 = vmax.f32 %v1376, 0.0
      %v1523 = vmax.f32 %v1381, 0.0
      %v1524 = vmax.f32 %v1386, 0.0
      %v1525 = vmax.f32 %v1391, 0.0
      %v1526 = vmax.f32 %v1396, 0.0
      %v1527 = vmax.f32 %v1401, 0.0
      %v1528 = vmax.f32 %v1406, 0.0
      %v1529 = vmax.f32 %v1411, 0.0
      %v1530 = vmax.f32 %v1416, 0.0
      %v1531 = vmax.f32 %v1421, 0.0
      %v1532 = vmax.f32 %v1426, 0.0
      %v1533 = vmax.f32 %v1431, 0.0
      %v1534 = vmax.f32 %v1436, 0.0
      %v1535 = vmax.f32 %v1441, 0.0
      %v1536 = vmax.f32 %v1446, 0.0
      %v1537 = vmax.f32 %v1451, 0.0
      %v1538 = vmax.f32 %v1456, 0.0
      %v1539 = vmax.f32 %v1461, 0.0
      %v1540 = vmax.f32 %v1466, 0.0
      %v1541 = vmax.f32 %v1471, 0.0
      %v1542 = vmax.f32 %v1476, 0.0
      %v1543 = vmax.f32 %v1481, 0.0
      %v1544 = vmax.f32 %v1486, 0.0
      %v1545 = vmax.f32 %v1491, 0.0
      %v1546 = vmax.f32 %v1496, 0.0
      %v1547 = vmax.f32 %v1501, 0.0
      %v1548 = vmax.f32 %v1506, 0.0
      %v1549 = vmax.f32 %v1511, 0.0
      %v1550 = vmax.f32 %v1516, 0.0
      %1551 = vst.msk [vmem:[#allocation3] sm:$0xff] %vm787, 0.0
      %1552 = vst.msk [vmem:[#allocation3 + $0x8] sm:$0xff] %vm787, 0.0
      %1553 = vst.msk [vmem:[#allocation3 + $0x10] sm:$0xff] %vm787, 0.0
      %1554 = vst.msk [vmem:[#allocation3 + $0x18] sm:$0xff] %vm787, 0.0
      %1555 = vst.msk [vmem:[#allocation3 + $0x20] sm:$0xff] %vm787, 0.0
      %1556 = vst.msk [vmem:[#allocation3 + $0x28] sm:$0xff] %vm787, 0.0
      %1557 = vst.msk [vmem:[#allocation3 + $0x30] sm:$0xff] %vm787, 0.0
      %1558 = vst.msk [vmem:[#allocation3 + $0x38] sm:$0xff] %vm787, 0.0
      %1559 = vst.msk [vmem:[#allocation3 + $0x40] sm:$0xff] %vm787, 0.0
      %1560 = vst.msk [vmem:[#allocation3 + $0x48] sm:$0xff] %vm787, 0.0
      %1561 = vst.msk [vmem:[#allocation3 + $0x50] sm:$0xff] %vm787, 0.0
      %1562 = vst.msk [vmem:[#allocation3 + $0x58] sm:$0xff] %vm787, 0.0
      %1563 = vst.msk [vmem:[#allocation3 + $0x60] sm:$0xff] %vm787, 0.0
      %1564 = vst.msk [vmem:[#allocation3 + $0x68] sm:$0xff] %vm787, 0.0
      %1565 = vst.msk [vmem:[#allocation3 + $0x70] sm:$0xff] %vm787, 0.0
      %1566 = vst.msk [vmem:[#allocation3 + $0x78] sm:$0xff] %vm787, 0.0
      %1567 = vst.msk [vmem:[#allocation3 + $0x80] sm:$0xff] %vm787, 0.0
      %1568 = vst.msk [vmem:[#allocation3 + $0x88] sm:$0xff] %vm787, 0.0
      %1569 = vst.msk [vmem:[#allocation3 + $0x90] sm:$0xff] %vm787, 0.0
      %1570 = vst.msk [vmem:[#allocation3 + $0x98] sm:$0xff] %vm787, 0.0
      %1571 = vst.msk [vmem:[#allocation3 + $0xa0] sm:$0xff] %vm787, 0.0
      %1572 = vst.msk [vmem:[#allocation3 + $0xa8] sm:$0xff] %vm787, 0.0
      %1573 = vst.msk [vmem:[#allocation3 + $0xb0] sm:$0xff] %vm787, 0.0
      %1574 = vst.msk [vmem:[#allocation3 + $0xb8] sm:$0xff] %vm787, 0.0
      %1575 = vst.msk [vmem:[#allocation3 + $0xc0] sm:$0xff] %vm787, 0.0
      %1576 = vst.msk [vmem:[#allocation3 + $0xc8] sm:$0xff] %vm787, 0.0
      %1577 = vst.msk [vmem:[#allocation3 + $0xd0] sm:$0xff] %vm787, 0.0
      %1578 = vst.msk [vmem:[#allocation3 + $0xd8] sm:$0xff] %vm787, 0.0
      %1579 = vst.msk [vmem:[#allocation3 + $0xe0] sm:$0xff] %vm787, 0.0
      %1580 = vst.msk [vmem:[#allocation3 + $0xe8] sm:$0xff] %vm787, 0.0
      %1581 = vst.msk [vmem:[#allocation3 + $0xf0] sm:$0xff] %vm787, 0.0
      %1582 = vst.msk [vmem:[#allocation3 + $0xf8] sm:$0xff] %vm787, 0.0
      %1583 = vst.msk [vmem:[#allocation3 + $0x100] sm:$0xff] %vm787, 0.0
      %1584 = vst.msk [vmem:[#allocation3 + $0x108] sm:$0xff] %vm787, 0.0
      %1585 = vst.msk [vmem:[#allocation3 + $0x110] sm:$0xff] %vm787, 0.0
      %1586 = vst.msk [vmem:[#allocation3 + $0x118] sm:$0xff] %vm787, 0.0
      %1587 = vst.msk [vmem:[#allocation3 + $0x120] sm:$0xff] %vm787, 0.0
      %1588 = vst.msk [vmem:[#allocation3 + $0x128] sm:$0xff] %vm787, 0.0
      %1589 = vst.msk [vmem:[#allocation3 + $0x130] sm:$0xff] %vm787, 0.0
      %1590 = vst.msk [vmem:[#allocation3 + $0x138] sm:$0xff] %vm787, 0.0
      %1591 = vst.msk [vmem:[#allocation3 + $0x140] sm:$0xff] %vm787, 0.0
      %1592 = vst.msk [vmem:[#allocation3 + $0x148] sm:$0xff] %vm787, 0.0
      %1593 = vst.msk [vmem:[#allocation3 + $0x150] sm:$0xff] %vm787, 0.0
      %1594 = vst.msk [vmem:[#allocation3 + $0x158] sm:$0xff] %vm787, 0.0
      %1595 = vst.msk [vmem:[#allocation3 + $0x160] sm:$0xff] %vm787, 0.0
      %1596 = vst.msk [vmem:[#allocation3 + $0x168] sm:$0xff] %vm787, 0.0
      %1597 = vst.msk [vmem:[#allocation3 + $0x13] sm:$0xff] %vm787, %v1519
      %1598 = vst.msk [vmem:[#allocation3 + $0x1b] sm:$0xff] %vm787, %v1520
      %1599 = vst.msk [vmem:[#allocation3 + $0x25] sm:$0xff] %vm787, %v1521
      %1600 = vst.msk [vmem:[#allocation3 + $0x2d] sm:$0xff] %vm787, %v1522
      %1601 = vst.msk [vmem:[#allocation3 + $0x37] sm:$0xff] %vm787, %v1523
      %1602 = vst.msk [vmem:[#allocation3 + $0x3f] sm:$0xff] %vm787, %v1524
      %1603 = vst.msk [vmem:[#allocation3 + $0x49] sm:$0xff] %vm787, %v1525
      %1604 = vst.msk [vmem:[#allocation3 + $0x51] sm:$0xff] %vm787, %v1526
      %1605 = vst.msk [vmem:[#allocation3 + $0x5b] sm:$0xff] %vm787, %v1527
      %1606 = vst.msk [vmem:[#allocation3 + $0x63] sm:$0xff] %vm787, %v1528
      %1607 = vst.msk [vmem:[#allocation3 + $0x6d] sm:$0xff] %vm787, %v1529
      %1608 = vst.msk [vmem:[#allocation3 + $0x75] sm:$0xff] %vm787, %v1530
      %1609 = vst.msk [vmem:[#allocation3 + $0x7f] sm:$0xff] %vm787, %v1531
      %1610 = vst.msk [vmem:[#allocation3 + $0x87] sm:$0xff] %vm787, %v1532
      %1611 = vst.msk [vmem:[#allocation3 + $0x91] sm:$0xff] %vm787, %v1533
      %1612 = vst.msk [vmem:[#allocation3 + $0x99] sm:$0xff] %vm787, %v1534
      %1613 = vst.msk [vmem:[#allocation3 + $0xa3] sm:$0xff] %vm787, %v1535
      %1614 = vst.msk [vmem:[#allocation3 + $0xab] sm:$0xff] %vm787, %v1536
      %1615 = vst.msk [vmem:[#allocation3 + $0xb5] sm:$0xff] %vm787, %v1537
      %1616 = vst.msk [vmem:[#allocation3 + $0xbd] sm:$0xff] %vm787, %v1538
      %1617 = vst.msk [vmem:[#allocation3 + $0xc7] sm:$0xff] %vm787, %v1539
      %1618 = vst.msk [vmem:[#allocation3 + $0xcf] sm:$0xff] %vm787, %v1540
      %1619 = vst.msk [vmem:[#allocation3 + $0xd9] sm:$0xff] %vm787, %v1541
      %1620 = vst.msk [vmem:[#allocation3 + $0xe1] sm:$0xff] %vm787, %v1542
      %1621 = vst.msk [vmem:[#allocation3 + $0xeb] sm:$0xff] %vm787, %v1543
      %1622 = vst.msk [vmem:[#allocation3 + $0xf3] sm:$0xff] %vm787, %v1544
      %1623 = vst.msk [vmem:[#allocation3 + $0xfd] sm:$0xff] %vm787, %v1545
      %1624 = vst.msk [vmem:[#allocation3 + $0x105] sm:$0xff] %vm787, %v1546
      %1625 = vst.msk [vmem:[#allocation3 + $0x10f] sm:$0xff] %vm787, %v1547
      %1626 = vst.msk [vmem:[#allocation3 + $0x117] sm:$0xff] %vm787, %v1548
      %1627 = vst.msk [vmem:[#allocation3 + $0x121] sm:$0xff] %vm787, %v1549
      %1628 = vst.msk [vmem:[#allocation3 + $0x129] sm:$0xff] %vm787, %v1550
      %v1629 = vld [vmem:[#allocation3] sm:$0xff]
      %v1630 = vld [vmem:[#allocation3 + $0x8] sm:$0xff]
      %v1631 = vld [vmem:[#allocation3 + $0x10] sm:$0xff]
      %v1632 = vld [vmem:[#allocation3 + $0x18] sm:$0xff]
      %v1633 = vld [vmem:[#allocation3 + $0x20] sm:$0xff]
      %v1634 = vld [vmem:[#allocation3 + $0x28] sm:$0xff]
      %v1635 = vld [vmem:[#allocation3 + $0x30] sm:$0xff]
      %v1636 = vld [vmem:[#allocation3 + $0x38] sm:$0xff]
      %v1637 = vld [vmem:[#allocation3 + $0x40] sm:$0xff]
      %v1638 = vld [vmem:[#allocation3 + $0x48] sm:$0xff]
      %v1639 = vld [vmem:[#allocation3 + $0x50] sm:$0xff]
      %v1640 = vld [vmem:[#allocation3 + $0x58] sm:$0xff]
      %v1641 = vld [vmem:[#allocation3 + $0x60] sm:$0xff]
      %v1642 = vld [vmem:[#allocation3 + $0x68] sm:$0xff]
      %v1643 = vld [vmem:[#allocation3 + $0x70] sm:$0xff]
      %v1644 = vld [vmem:[#allocation3 + $0x78] sm:$0xff]
      %v1645 = vld [vmem:[#allocation3 + $0x80] sm:$0xff]
      %v1646 = vld [vmem:[#allocation3 + $0x88] sm:$0xff]
      %v1647 = vld [vmem:[#allocation3 + $0x90] sm:$0xff]
      %v1648 = vld [vmem:[#allocation3 + $0x98] sm:$0xff]
      %v1649 = vld [vmem:[#allocation3 + $0xa0] sm:$0xff]
      %v1650 = vld [vmem:[#allocation3 + $0xa8] sm:$0xff]
      %v1651 = vld [vmem:[#allocation3 + $0xb0] sm:$0xff]
      %v1652 = vld [vmem:[#allocation3 + $0xb8] sm:$0xff]
      %v1653 = vld [vmem:[#allocation3 + $0xc0] sm:$0xff]
      %v1654 = vld [vmem:[#allocation3 + $0xc8] sm:$0xff]
      %v1655 = vld [vmem:[#allocation3 + $0xd0] sm:$0xff]
      %v1656 = vld [vmem:[#allocation3 + $0xd8] sm:$0xff]
      %v1657 = vld [vmem:[#allocation3 + $0xe0] sm:$0xff]
      %v1658 = vld [vmem:[#allocation3 + $0xe8] sm:$0xff]
      %v1659 = vld [vmem:[#allocation3 + $0xf0] sm:$0xff]
      %v1660 = vld [vmem:[#allocation3 + $0xf8] sm:$0xff]
      %v1661 = vld [vmem:[#allocation3 + $0x100] sm:$0xff]
      %v1662 = vld [vmem:[#allocation3 + $0x108] sm:$0xff]
      %v1663 = vld [vmem:[#allocation3 + $0x110] sm:$0xff]
      %v1664 = vld [vmem:[#allocation3 + $0x118] sm:$0xff]
      %v1665 = vld [vmem:[#allocation3 + $0x120] sm:$0xff]
      %v1666 = vld [vmem:[#allocation3 + $0x128] sm:$0xff]
      %v1667 = vld [vmem:[#allocation3 + $0x130] sm:$0xff]
      %v1668 = vld [vmem:[#allocation3 + $0x138] sm:$0xff]
      %v1669 = vld [vmem:[#allocation3 + $0x140] sm:$0xf]
      %v1670 = vld [vmem:[%s7] sm:$0xff]
      %v1671 = vld [vmem:[%s7 + $0x8] sm:$0xff]
      %v1672 = vld [vmem:[%s7 + $0x10] sm:$0xff]
      %v1673 = vld [vmem:[%s7 + $0x18] sm:$0xff]
      %v1674 = vld [vmem:[%s7 + $0x20] sm:$0xff]
      %v1675 = vld [vmem:[%s7 + $0x28] sm:$0xff]
      %v1676 = vld [vmem:[%s7 + $0x30] sm:$0xff]
      %v1677 = vld [vmem:[%s7 + $0x38] sm:$0xff]
      %v1678 = vld [vmem:[%s8] sm:$0x1]
      %v1680 = vlaneseq
      %v1681 = vshrl.u32 %v1680, 7
      %v1682 = vsub.s32 0, %v1681
      %v1683 = vrot.slane %v1678, %v1682
      %v1686 = vsel %vm787, %v1629, 0
      %v1689 = vsel %vm787, %v1630, 0
      %v1692 = vsel %vm787, %v1631, 0
      %v1695 = vsel %vm787, %v1632, 0
      %v1698 = vsel %vm787, %v1633, 0
      %v1701 = vsel %vm787, %v1634, 0
      %v1704 = vsel %vm787, %v1635, 0
      %v1707 = vsel %vm787, %v1636, 0
      %v1710 = vsel %vm787, %v1637, 0
      %v1713 = vsel %vm787, %v1638, 0
      %v1716 = vsel %vm787, %v1639, 0
      %v1719 = vsel %vm787, %v1640, 0
      %v1722 = vsel %vm787, %v1641, 0
      %v1725 = vsel %vm787, %v1642, 0
      %v1728 = vsel %vm787, %v1643, 0
      %v1731 = vsel %vm787, %v1644, 0
      %v1734 = vsel %vm787, %v1645, 0
      %v1737 = vsel %vm787, %v1646, 0
      %v1740 = vsel %vm787, %v1647, 0
      %v1743 = vsel %vm787, %v1648, 0
      %v1746 = vsel %vm787, %v1649, 0
      %v1749 = vsel %vm787, %v1650, 0
      %v1752 = vsel %vm787, %v1651, 0
      %v1755 = vsel %vm787, %v1652, 0
      %v1758 = vsel %vm787, %v1653, 0
      %v1761 = vsel %vm787, %v1654, 0
      %v1764 = vsel %vm787, %v1655, 0
      %v1767 = vsel %vm787, %v1656, 0
      %v1770 = vsel %vm787, %v1657, 0
      %v1773 = vsel %vm787, %v1658, 0
      %v1776 = vsel %vm787, %v1659, 0
      %v1779 = vsel %vm787, %v1660, 0
      %v1782 = vsel %vm787, %v1661, 0
      %v1785 = vsel %vm787, %v1662, 0
      %v1788 = vsel %vm787, %v1663, 0
      %v1791 = vsel %vm787, %v1664, 0
      %v1794 = vsel %vm787, %v1665, 0
      %v1797 = vsel %vm787, %v1666, 0
      %v1800 = vsel %vm787, %v1667, 0
      %v1803 = vsel %vm787, %v1668, 0
      %v1806 = vsel %vm787, %v1669, 0
      %1808 = vmatprep.subr.mxu0 0.0
      %1809 = vmatpush1.msra.mxu0 %v1670
      %1810 = vmatprep.subr.mxu0 0.0
      %1811 = vmatpush1.msra.mxu0 %v1671
      %1812 = vmatprep.subr.mxu0 0.0
      %1813 = vmatpush1.msra.mxu0 %v1672
      %1814 = vmatprep.subr.mxu0 0.0
      %1815 = vmatpush1.msra.mxu0 %v1673
      %1816 = vmatprep.subr.mxu0 0.0
      %1817 = vmatpush1.msra.mxu0 %v1674
      %1818 = vmatprep.subr.mxu0 0.0
      %1819 = vmatpush1.msra.mxu0 %v1675
      %1820 = vmatprep.subr.mxu0 0.0
      %1821 = vmatpush1.msra.mxu0 %v1676
      %1822 = vmatprep.subr.mxu0 0.0
      %1823 = vmatpush1.msra.mxu0 %v1677
      %1824 = vmatprep.subr.mxu0 0.0
      %1825 = vmatpush1.msra.mxu0 0.0
      %1826 = vmatprep.subr.mxu0 0.0
      %1827 = vmatpush1.msra.mxu0 0.0
      %1828 = vmatprep.subr.mxu0 0.0
      %1829 = vmatpush1.msra.mxu0 0.0
      %1830 = vmatprep.subr.mxu0 0.0
      %1831 = vmatpush1.msra.mxu0 0.0
      %1832 = vmatprep.subr.mxu0 0.0
      %1833 = vmatpush1.msra.mxu0 0.0
      %1834 = vmatprep.subr.mxu0 0.0
      %1835 = vmatpush1.msra.mxu0 0.0
      %1836 = vmatprep.subr.mxu0 0.0
      %1837 = vmatpush1.msra.mxu0 0.0
      %1838 = vmatprep.subr.mxu0 0.0
      %1839 = vmatpush1.msra.mxu0 0.0
      %1840 = vmatprep.subr.mxu0 0.0
      %1841 = vmatpush1.msra.mxu0 0.0
      %1842 = vmatprep.subr.mxu0 0.0
      %1843 = vmatpush1.msra.mxu0 0.0
      %1844 = vmatprep.subr.mxu0 0.0
      %1845 = vmatpush1.msra.mxu0 0.0
      %1846 = vmatprep.subr.mxu0 0.0
      %1847 = vmatpush1.msra.mxu0 0.0
      %1848 = vmatprep.subr.mxu0 0.0
      %1849 = vmatpush1.msra.mxu0 0.0
      %1850 = vmatprep.subr.mxu0 0.0
      %1851 = vmatpush1.msra.mxu0 0.0
      %1852 = vmatprep.subr.mxu0 0.0
      %1853 = vmatpush1.msra.mxu0 0.0
      %1854 = vmatprep.subr.mxu0 0.0
      %1855 = vmatpush1.msra.mxu0 0.0
      %1856 = vmatprep.subr.mxu0 0.0
      %1857 = vmatpush1.msra.mxu0 0.0
      %1858 = vmatprep.subr.mxu0 0.0
      %1859 = vmatpush1.msra.mxu0 0.0
      %1860 = vmatprep.subr.mxu0 0.0
      %1861 = vmatpush1.msra.mxu0 0.0
      %1862 = vmatprep.subr.mxu0 0.0
      %1863 = vmatpush1.msra.mxu0 0.0
      %1864 = vmatprep.subr.mxu0 0.0
      %1865 = vmatpush1.msra.mxu0 0.0
      %1866 = vmatprep.subr.mxu0 0.0
      %1867 = vmatpush1.msra.mxu0 0.0
      %1868 = vmatprep.subr.mxu0 0.0
      %1869 = vmatpush1.msra.mxu0 0.0
      %1870 = vmatprep.subr.mxu0 0.0
      %1871 = vmatpush1.msra.mxu0 0.0
      %1872 = vmatprep.mubr.f32.mxu0 0.0
      %1873 = vmatmul.mubr.f32.gmra.mrb[0].mxu0 %v1686
      %v1874 = vpop.f32.mrb[0].mxu0
      %v1875 = vadd.f32 %v1683, %v1874
      %v1876 = vpop.f32.mrb[0].mxu0
      %1877 = vmatprep.mubr.f32.mxu0 0.0
      %1878 = vmatmul.mubr.f32.gmra.mrb[0].mxu0 %v1689
      %v1879 = vpop.f32.mrb[0].mxu0
      %v1880 = vadd.f32 %v1683, %v1879
      %v1881 = vpop.f32.mrb[0].mxu0
      %1882 = vmatprep.mubr.f32.mxu0 0.0
      %1883 = vmatmul.mubr.f32.gmra.mrb[0].mxu0 %v1692
      %v1884 = vpop.f32.mrb[0].mxu0
      %v1885 = vadd.f32 %v1683, %v1884
      %v1886 = vpop.f32.mrb[0].mxu0
      %1887 = vmatprep.mubr.f32.mxu0 0.0
      %1888 = vmatmul.mubr.f32.gmra.mrb[0].mxu0 %v1695
      %v1889 = vpop.f32.mrb[0].mxu0
      %v1890 = vadd.f32 %v1683, %v1889
      %v1891 = vpop.f32.mrb[0].mxu0
      %1892 = vmatprep.mubr.f32.mxu0 0.0
      %1893 = vmatmul.mubr.f32.gmra.mrb[0].mxu0 %v1698
      %v1894 = vpop.f32.mrb[0].mxu0
      %v1895 = vadd.f32 %v1683, %v1894
      %v1896 = vpop.f32.mrb[0].mxu0
      %1897 = vmatprep.mubr.f32.mxu0 0.0
      %1898 = vmatmul.mubr.f32.gmra.mrb[0].mxu0 %v1701
      %v1899 = vpop.f32.mrb[0].mxu0
      %v1900 = vadd.f32 %v1683, %v1899
      %v1901 = vpop.f32.mrb[0].mxu0
      %1902 = vmatprep.mubr.f32.mxu0 0.0
      %1903 = vmatmul.mubr.f32.gmra.mrb[0].mxu0 %v1704
      %v1904 = vpop.f32.mrb[0].mxu0
      %v1905 = vadd.f32 %v1683, %v1904
      %v1906 = vpop.f32.mrb[0].mxu0
      %1907 = vmatprep.mubr.f32.mxu0 0.0
      %1908 = vmatmul.mubr.f32.gmra.mrb[0].mxu0 %v1707
      %v1909 = vpop.f32.mrb[0].mxu0
      %v1910 = vadd.f32 %v1683, %v1909
      %v1911 = vpop.f32.mrb[0].mxu0
      %1912 = vmatprep.mubr.f32.mxu0 0.0
      %1913 = vmatmul.mubr.f32.gmra.mrb[0].mxu0 %v1710
      %v1914 = vpop.f32.mrb[0].mxu0
      %v1915 = vadd.f32 %v1683, %v1914
      %v1916 = vpop.f32.mrb[0].mxu0
      %1917 = vmatprep.mubr.f32.mxu0 0.0
      %1918 = vmatmul.mubr.f32.gmra.mrb[0].mxu0 %v1713
      %v1919 = vpop.f32.mrb[0].mxu0
      %v1920 = vadd.f32 %v1683, %v1919
      %v1921 = vpop.f32.mrb[0].mxu0
      %1922 = vmatprep.mubr.f32.mxu0 0.0
      %1923 = vmatmul.mubr.f32.gmra.mrb[0].mxu0 %v1716
      %v1924 = vpop.f32.mrb[0].mxu0
      %v1925 = vadd.f32 %v1683, %v1924
      %v1926 = vpop.f32.mrb[0].mxu0
      %1927 = vmatprep.mubr.f32.mxu0 0.0
      %1928 = vmatmul.mubr.f32.gmra.mrb[0].mxu0 %v1719
      %v1929 = vpop.f32.mrb[0].mxu0
      %v1930 = vadd.f32 %v1683, %v1929
      %v1931 = vpop.f32.mrb[0].mxu0
      %1932 = vmatprep.mubr.f32.mxu0 0.0
      %1933 = vmatmul.mubr.f32.gmra.mrb[0].mxu0 %v1722
      %v1934 = vpop.f32.mrb[0].mxu0
      %v1935 = vadd.f32 %v1683, %v1934
      %v1936 = vpop.f32.mrb[0].mxu0
      %1937 = vmatprep.mubr.f32.mxu0 0.0
      %1938 = vmatmul.mubr.f32.gmra.mrb[0].mxu0 %v1725
      %v1939 = vpop.f32.mrb[0].mxu0
      %v1940 = vadd.f32 %v1683, %v1939
      %v1941 = vpop.f32.mrb[0].mxu0
      %1942 = vmatprep.mubr.f32.mxu0 0.0
      %1943 = vmatmul.mubr.f32.gmra.mrb[0].mxu0 %v1728
      %v1944 = vpop.f32.mrb[0].mxu0
      %v1945 = vadd.f32 %v1683, %v1944
      %v1946 = vpop.f32.mrb[0].mxu0
      %1947 = vmatprep.mubr.f32.mxu0 0.0
      %1948 = vmatmul.mubr.f32.gmra.mrb[0].mxu0 %v1731
      %v1949 = vpop.f32.mrb[0].mxu0
      %v1950 = vadd.f32 %v1683, %v1949
      %v1951 = vpop.f32.mrb[0].mxu0
      %1952 = vmatprep.mubr.f32.mxu0 0.0
      %1953 = vmatmul.mubr.f32.gmra.mrb[0].mxu0 %v1734
      %v1954 = vpop.f32.mrb[0].mxu0
      %v1955 = vadd.f32 %v1683, %v1954
      %v1956 = vpop.f32.mrb[0].mxu0
      %1957 = vmatprep.mubr.f32.mxu0 0.0
      %1958 = vmatmul.mubr.f32.gmra.mrb[0].mxu0 %v1737
      %v1959 = vpop.f32.mrb[0].mxu0
      %v1960 = vadd.f32 %v1683, %v1959
      %v1961 = vpop.f32.mrb[0].mxu0
      %1962 = vmatprep.mubr.f32.mxu0 0.0
      %1963 = vmatmul.mubr.f32.gmra.mrb[0].mxu0 %v1740
      %v1964 = vpop.f32.mrb[0].mxu0
      %v1965 = vadd.f32 %v1683, %v1964
      %v1966 = vpop.f32.mrb[0].mxu0
      %1967 = vmatprep.mubr.f32.mxu0 0.0
      %1968 = vmatmul.mubr.f32.gmra.mrb[0].mxu0 %v1743
      %v1969 = vpop.f32.mrb[0].mxu0
      %v1970 = vadd.f32 %v1683, %v1969
      %v1971 = vpop.f32.mrb[0].mxu0
      %1972 = vmatprep.mubr.f32.mxu0 0.0
      %1973 = vmatmul.mubr.f32.gmra.mrb[0].mxu0 %v1746
      %v1974 = vpop.f32.mrb[0].mxu0
      %v1975 = vadd.f32 %v1683, %v1974
      %v1976 = vpop.f32.mrb[0].mxu0
      %1977 = vmatprep.mubr.f32.mxu0 0.0
      %1978 = vmatmul.mubr.f32.gmra.mrb[0].mxu0 %v1749
      %v1979 = vpop.f32.mrb[0].mxu0
      %v1980 = vadd.f32 %v1683, %v1979
      %v1981 = vpop.f32.mrb[0].mxu0
      %1982 = vmatprep.mubr.f32.mxu0 0.0
      %1983 = vmatmul.mubr.f32.gmra.mrb[0].mxu0 %v1752
      %v1984 = vpop.f32.mrb[0].mxu0
      %v1985 = vadd.f32 %v1683, %v1984
      %v1986 = vpop.f32.mrb[0].mxu0
      %1987 = vmatprep.mubr.f32.mxu0 0.0
      %1988 = vmatmul.mubr.f32.gmra.mrb[0].mxu0 %v1755
      %v1989 = vpop.f32.mrb[0].mxu0
      %v1990 = vadd.f32 %v1683, %v1989
      %v1991 = vpop.f32.mrb[0].mxu0
      %1992 = vmatprep.mubr.f32.mxu0 0.0
      %1993 = vmatmul.mubr.f32.gmra.mrb[0].mxu0 %v1758
      %v1994 = vpop.f32.mrb[0].mxu0
      %v1995 = vadd.f32 %v1683, %v1994
      %v1996 = vpop.f32.mrb[0].mxu0
      %1997 = vmatprep.mubr.f32.mxu0 0.0
      %1998 = vmatmul.mubr.f32.gmra.mrb[0].mxu0 %v1761
      %v1999 = vpop.f32.mrb[0].mxu0
      %v2000 = vadd.f32 %v1683, %v1999
      %v2001 = vpop.f32.mrb[0].mxu0
      %2002 = vmatprep.mubr.f32.mxu0 0.0
      %2003 = vmatmul.mubr.f32.gmra.mrb[0].mxu0 %v1764
      %v2004 = vpop.f32.mrb[0].mxu0
      %v2005 = vadd.f32 %v1683, %v2004
      %v2006 = vpop.f32.mrb[0].mxu0
      %2007 = vmatprep.mubr.f32.mxu0 0.0
      %2008 = vmatmul.mubr.f32.gmra.mrb[0].mxu0 %v1767
      %v2009 = vpop.f32.mrb[0].mxu0
      %v2010 = vadd.f32 %v1683, %v2009
      %v2011 = vpop.f32.mrb[0].mxu0
      %2012 = vmatprep.mubr.f32.mxu0 0.0
      %2013 = vmatmul.mubr.f32.gmra.mrb[0].mxu0 %v1770
      %v2014 = vpop.f32.mrb[0].mxu0
      %v2015 = vadd.f32 %v1683, %v2014
      %v2016 = vpop.f32.mrb[0].mxu0
      %2017 = vmatprep.mubr.f32.mxu0 0.0
      %2018 = vmatmul.mubr.f32.gmra.mrb[0].mxu0 %v1773
      %v2019 = vpop.f32.mrb[0].mxu0
      %v2020 = vadd.f32 %v1683, %v2019
      %v2021 = vpop.f32.mrb[0].mxu0
      %2022 = vmatprep.mubr.f32.mxu0 0.0
      %2023 = vmatmul.mubr.f32.gmra.mrb[0].mxu0 %v1776
      %v2024 = vpop.f32.mrb[0].mxu0
      %v2025 = vadd.f32 %v1683, %v2024
      %v2026 = vpop.f32.mrb[0].mxu0
      %2027 = vmatprep.mubr.f32.mxu0 0.0
      %2028 = vmatmul.mubr.f32.gmra.mrb[0].mxu0 %v1779
      %v2029 = vpop.f32.mrb[0].mxu0
      %v2030 = vadd.f32 %v1683, %v2029
      %v2031 = vpop.f32.mrb[0].mxu0
      %2032 = vmatprep.mubr.f32.mxu0 0.0
      %2033 = vmatmul.mubr.f32.gmra.mrb[0].mxu0 %v1782
      %v2034 = vpop.f32.mrb[0].mxu0
      %v2035 = vadd.f32 %v1683, %v2034
      %v2036 = vpop.f32.mrb[0].mxu0
      %2037 = vmatprep.mubr.f32.mxu0 0.0
      %2038 = vmatmul.mubr.f32.gmra.mrb[0].mxu0 %v1785
      %v2039 = vpop.f32.mrb[0].mxu0
      %v2040 = vadd.f32 %v1683, %v2039
      %v2041 = vpop.f32.mrb[0].mxu0
      %2042 = vmatprep.mubr.f32.mxu0 0.0
      %2043 = vmatmul.mubr.f32.gmra.mrb[0].mxu0 %v1788
      %v2044 = vpop.f32.mrb[0].mxu0
      %v2045 = vadd.f32 %v1683, %v2044
      %v2046 = vpop.f32.mrb[0].mxu0
      %2047 = vmatprep.mubr.f32.mxu0 0.0
      %2048 = vmatmul.mubr.f32.gmra.mrb[0].mxu0 %v1791
      %v2049 = vpop.f32.mrb[0].mxu0
      %v2050 = vadd.f32 %v1683, %v2049
      %v2051 = vpop.f32.mrb[0].mxu0
      %2052 = vmatprep.mubr.f32.mxu0 0.0
      %2053 = vmatmul.mubr.f32.gmra.mrb[0].mxu0 %v1794
      %v2054 = vpop.f32.mrb[0].mxu0
      %v2055 = vadd.f32 %v1683, %v2054
      %v2056 = vpop.f32.mrb[0].mxu0
      %2057 = vmatprep.mubr.f32.mxu0 0.0
      %2058 = vmatmul.mubr.f32.gmra.mrb[0].mxu0 %v1797
      %v2059 = vpop.f32.mrb[0].mxu0
      %v2060 = vadd.f32 %v1683, %v2059
      %v2061 = vpop.f32.mrb[0].mxu0
      %2062 = vmatprep.mubr.f32.mxu0 0.0
      %2063 = vmatmul.mubr.f32.gmra.mrb[0].mxu0 %v1800
      %v2064 = vpop.f32.mrb[0].mxu0
      %v2065 = vadd.f32 %v1683, %v2064
      %v2066 = vpop.f32.mrb[0].mxu0
      %2067 = vmatprep.mubr.f32.mxu0 0.0
      %2068 = vmatmul.mubr.f32.gmra.mrb[0].mxu0 %v1803
      %v2069 = vpop.f32.mrb[0].mxu0
      %v2070 = vadd.f32 %v1683, %v2069
      %v2071 = vpop.f32.mrb[0].mxu0
      %2072 = vmatprep.mubr.f32.mxu0 0.0
      %2073 = vmatmul.mubr.f32.gmra.mrb[0].mxu0 %v1806
      %v2074 = vpop.f32.mrb[0].mxu0
      %v2075 = vadd.f32 %v1683, %v2074
      %v2076 = vpop.f32.mrb[0].mxu0
      %2077 = vdwg.mxu0
      %v2078 = vmax.f32 %v1875, 0.0
      %v2079 = vmax.f32 %v1880, 0.0
      %v2080 = vmax.f32 %v1885, 0.0
      %v2081 = vmax.f32 %v1890, 0.0
      %v2082 = vmax.f32 %v1895, 0.0
      %v2083 = vmax.f32 %v1900, 0.0
      %v2084 = vmax.f32 %v1905, 0.0
      %v2085 = vmax.f32 %v1910, 0.0
      %v2086 = vmax.f32 %v1915, 0.0
      %v2087 = vmax.f32 %v1920, 0.0
      %v2088 = vmax.f32 %v1925, 0.0
      %v2089 = vmax.f32 %v1930, 0.0
      %v2090 = vmax.f32 %v1935, 0.0
      %v2091 = vmax.f32 %v1940, 0.0
      %v2092 = vmax.f32 %v1945, 0.0
      %v2093 = vmax.f32 %v1950, 0.0
      %v2094 = vmax.f32 %v1955, 0.0
      %v2095 = vmax.f32 %v1960, 0.0
      %v2096 = vmax.f32 %v1965, 0.0
      %v2097 = vmax.f32 %v1970, 0.0
      %v2098 = vmax.f32 %v1975, 0.0
      %v2099 = vmax.f32 %v1980, 0.0
      %v2100 = vmax.f32 %v1985, 0.0
      %v2101 = vmax.f32 %v1990, 0.0
      %v2102 = vmax.f32 %v1995, 0.0
      %v2103 = vmax.f32 %v2000, 0.0
      %v2104 = vmax.f32 %v2005, 0.0
      %v2105 = vmax.f32 %v2010, 0.0
      %v2106 = vmax.f32 %v2015, 0.0
      %v2107 = vmax.f32 %v2020, 0.0
      %v2108 = vmax.f32 %v2025, 0.0
      %v2109 = vmax.f32 %v2030, 0.0
      %v2110 = vmax.f32 %v2035, 0.0
      %v2111 = vmax.f32 %v2040, 0.0
      %v2112 = vmax.f32 %v2045, 0.0
      %v2113 = vmax.f32 %v2050, 0.0
      %v2114 = vmax.f32 %v2055, 0.0
      %v2115 = vmax.f32 %v2060, 0.0
      %v2116 = vmax.f32 %v2065, 0.0
      %v2117 = vmax.f32 %v2070, 0.0
      %v2118 = vmax.f32 %v2075, 0.0
      %2119 = vst.msk [vmem:[#allocation3] sm:$0xff] %vm787, %v2078
      %2120 = vst.msk [vmem:[#allocation3 + $0x8] sm:$0xff] %vm787, %v2079
      %2121 = vst.msk [vmem:[#allocation3 + $0x10] sm:$0xff] %vm787, %v2080
      %2122 = vst.msk [vmem:[#allocation3 + $0x18] sm:$0xff] %vm787, %v2081
      %2123 = vst.msk [vmem:[#allocation3 + $0x20] sm:$0xff] %vm787, %v2082
      %2124 = vst.msk [vmem:[#allocation3 + $0x28] sm:$0xff] %vm787, %v2083
      %2125 = vst.msk [vmem:[#allocation3 + $0x30] sm:$0xff] %vm787, %v2084
      %2126 = vst.msk [vmem:[#allocation3 + $0x38] sm:$0xff] %vm787, %v2085
      %2127 = vst.msk [vmem:[#allocation3 + $0x40] sm:$0xff] %vm787, %v2086
      %2128 = vst.msk [vmem:[#allocation3 + $0x48] sm:$0xff] %vm787, %v2087
      %2129 = vst.msk [vmem:[#allocation3 + $0x50] sm:$0xff] %vm787, %v2088
      %2130 = vst.msk [vmem:[#allocation3 + $0x58] sm:$0xff] %vm787, %v2089
      %2131 = vst.msk [vmem:[#allocation3 + $0x60] sm:$0xff] %vm787, %v2090
      %2132 = vst.msk [vmem:[#allocation3 + $0x68] sm:$0xff] %vm787, %v2091
      %2133 = vst.msk [vmem:[#allocation3 + $0x70] sm:$0xff] %vm787, %v2092
      %2134 = vst.msk [vmem:[#allocation3 + $0x78] sm:$0xff] %vm787, %v2093
      %2135 = vst.msk [vmem:[#allocation3 + $0x80] sm:$0xff] %vm787, %v2094
      %2136 = vst.msk [vmem:[#allocation3 + $0x88] sm:$0xff] %vm787, %v2095
      %2137 = vst.msk [vmem:[#allocation3 + $0x90] sm:$0xff] %vm787, %v2096
      %2138 = vst.msk [vmem:[#allocation3 + $0x98] sm:$0xff] %vm787, %v2097
      %2139 = vst.msk [vmem:[#allocation3 + $0xa0] sm:$0xff] %vm787, %v2098
      %2140 = vst.msk [vmem:[#allocation3 + $0xa8] sm:$0xff] %vm787, %v2099
      %2141 = vst.msk [vmem:[#allocation3 + $0xb0] sm:$0xff] %vm787, %v2100
      %2142 = vst.msk [vmem:[#allocation3 + $0xb8] sm:$0xff] %vm787, %v2101
      %2143 = vst.msk [vmem:[#allocation3 + $0xc0] sm:$0xff] %vm787, %v2102
      %2144 = vst.msk [vmem:[#allocation3 + $0xc8] sm:$0xff] %vm787, %v2103
      %2145 = vst.msk [vmem:[#allocation3 + $0xd0] sm:$0xff] %vm787, %v2104
      %2146 = vst.msk [vmem:[#allocation3 + $0xd8] sm:$0xff] %vm787, %v2105
      %2147 = vst.msk [vmem:[#allocation3 + $0xe0] sm:$0xff] %vm787, %v2106
      %2148 = vst.msk [vmem:[#allocation3 + $0xe8] sm:$0xff] %vm787, %v2107
      %2149 = vst.msk [vmem:[#allocation3 + $0xf0] sm:$0xff] %vm787, %v2108
      %2150 = vst.msk [vmem:[#allocation3 + $0xf8] sm:$0xff] %vm787, %v2109
      %2151 = vst.msk [vmem:[#allocation3 + $0x100] sm:$0xff] %vm787, %v2110
      %2152 = vst.msk [vmem:[#allocation3 + $0x108] sm:$0xff] %vm787, %v2111
      %2153 = vst.msk [vmem:[#allocation3 + $0x110] sm:$0xff] %vm787, %v2112
      %2154 = vst.msk [vmem:[#allocation3 + $0x118] sm:$0xff] %vm787, %v2113
      %2155 = vst.msk [vmem:[#allocation3 + $0x120] sm:$0xff] %vm787, %v2114
      %2156 = vst.msk [vmem:[#allocation3 + $0x128] sm:$0xff] %vm787, %v2115
      %2157 = vst.msk [vmem:[#allocation3 + $0x130] sm:$0xff] %vm787, %v2116
      %2158 = vst.msk [vmem:[#allocation3 + $0x138] sm:$0xff] %vm787, %v2117
      %2159 = vst.msk [vmem:[#allocation3 + $0x140] sm:$0xf] %vm1116, %v2118
      %v2160 = vld [vmem:[%s10] sm:$0x1]
      %v2162 = vlaneseq
      %v2163 = vshrl.u32 %v2162, 7
      %v2164 = vsub.s32 0, %v2163
      %v2165 = vrot.slane %v2160, %v2164
      %v2167 = vadd.f32 %v2165, 0.0
      %v2168 = vld [vmem:[#allocation3] sm:$0xff]
      %v2169 = vld [vmem:[#allocation3 + $0x8] sm:$0xff]
      %v2170 = vld [vmem:[#allocation3 + $0x10] sm:$0xff]
      %v2171 = vld [vmem:[#allocation3 + $0x18] sm:$0xff]
      %v2172 = vld [vmem:[#allocation3 + $0x20] sm:$0xff]
      %v2173 = vld [vmem:[#allocation3 + $0x28] sm:$0xff]
      %v2174 = vld [vmem:[#allocation3 + $0x30] sm:$0xff]
      %v2175 = vld [vmem:[#allocation3 + $0x38] sm:$0xff]
      %v2176 = vld [vmem:[#allocation3 + $0x40] sm:$0xff]
      %v2177 = vld [vmem:[#allocation3 + $0x48] sm:$0xff]
      %v2178 = vld [vmem:[#allocation3 + $0x50] sm:$0xff]
      %v2179 = vld [vmem:[#allocation3 + $0x58] sm:$0xff]
      %v2180 = vld [vmem:[#allocation3 + $0x60] sm:$0xff]
      %v2181 = vld [vmem:[#allocation3 + $0x68] sm:$0xff]
      %v2182 = vld [vmem:[#allocation3 + $0x70] sm:$0xff]
      %v2183 = vld [vmem:[#allocation3 + $0x78] sm:$0xff]
      %v2184 = vld [vmem:[#allocation3 + $0x80] sm:$0xff]
      %v2185 = vld [vmem:[#allocation3 + $0x88] sm:$0xff]
      %v2186 = vld [vmem:[#allocation3 + $0x90] sm:$0xff]
      %v2187 = vld [vmem:[#allocation3 + $0x98] sm:$0xff]
      %v2188 = vld [vmem:[#allocation3 + $0xa0] sm:$0xff]
      %v2189 = vld [vmem:[#allocation3 + $0xa8] sm:$0xff]
      %v2190 = vld [vmem:[#allocation3 + $0xb0] sm:$0xff]
      %v2191 = vld [vmem:[#allocation3 + $0xb8] sm:$0xff]
      %v2192 = vld [vmem:[#allocation3 + $0xc0] sm:$0xff]
      %v2193 = vld [vmem:[#allocation3 + $0xc8] sm:$0xff]
      %v2194 = vld [vmem:[#allocation3 + $0xd0] sm:$0xff]
      %v2195 = vld [vmem:[#allocation3 + $0xd8] sm:$0xff]
      %v2196 = vld [vmem:[#allocation3 + $0xe0] sm:$0xff]
      %v2197 = vld [vmem:[#allocation3 + $0xe8] sm:$0xff]
      %v2198 = vld [vmem:[#allocation3 + $0xf0] sm:$0xff]
      %v2199 = vld [vmem:[#allocation3 + $0xf8] sm:$0xff]
      %v2200 = vld [vmem:[#allocation3 + $0x100] sm:$0xff]
      %v2201 = vld [vmem:[#allocation3 + $0x108] sm:$0xff]
      %v2202 = vld [vmem:[#allocation3 + $0x110] sm:$0xff]
      %v2203 = vld [vmem:[#allocation3 + $0x118] sm:$0xff]
      %v2204 = vld [vmem:[#allocation3 + $0x120] sm:$0xff]
      %v2205 = vld [vmem:[#allocation3 + $0x128] sm:$0xff]
      %v2206 = vld [vmem:[#allocation3 + $0x130] sm:$0xff]
      %v2207 = vld [vmem:[#allocation3 + $0x138] sm:$0xff]
      %v2208 = vld [vmem:[#allocation3 + $0x140] sm:$0xf]
      %v2209 = vld [vmem:[%s9] sm:$0xff]
      %v2210 = vld [vmem:[%s9 + $0x8] sm:$0xff]
      %v2211 = vld [vmem:[%s9 + $0x10] sm:$0xff]
      %v2212 = vld [vmem:[%s9 + $0x18] sm:$0xff]
      %v2213 = vld [vmem:[%s9 + $0x20] sm:$0xff]
      %v2214 = vld [vmem:[%s9 + $0x28] sm:$0xff]
      %v2215 = vld [vmem:[%s9 + $0x30] sm:$0xff]
      %v2216 = vld [vmem:[%s9 + $0x38] sm:$0xff]
      %v2218 = vsel %vm787, %v2168, 0
      %v2221 = vsel %vm787, %v2169, 0
      %v2224 = vsel %vm787, %v2170, 0
      %v2227 = vsel %vm787, %v2171, 0
      %v2230 = vsel %vm787, %v2172, 0
      %v2233 = vsel %vm787, %v2173, 0
      %v2236 = vsel %vm787, %v2174, 0
      %v2239 = vsel %vm787, %v2175, 0
      %v2242 = vsel %vm787, %v2176, 0
      %v2245 = vsel %vm787, %v2177, 0
      %v2248 = vsel %vm787, %v2178, 0
      %v2251 = vsel %vm787, %v2179, 0
      %v2254 = vsel %vm787, %v2180, 0
      %v2257 = vsel %vm787, %v2181, 0
      %v2260 = vsel %vm787, %v2182, 0
      %v2263 = vsel %vm787, %v2183, 0
      %v2266 = vsel %vm787, %v2184, 0
      %v2269 = vsel %vm787, %v2185, 0
      %v2272 = vsel %vm787, %v2186, 0
      %v2275 = vsel %vm787, %v2187, 0
      %v2278 = vsel %vm787, %v2188, 0
      %v2281 = vsel %vm787, %v2189, 0
      %v2284 = vsel %vm787, %v2190, 0
      %v2287 = vsel %vm787, %v2191, 0
      %v2290 = vsel %vm787, %v2192, 0
      %v2293 = vsel %vm787, %v2193, 0
      %v2296 = vsel %vm787, %v2194, 0
      %v2299 = vsel %vm787, %v2195, 0
      %v2302 = vsel %vm787, %v2196, 0
      %v2305 = vsel %vm787, %v2197, 0
      %v2308 = vsel %vm787, %v2198, 0
      %v2311 = vsel %vm787, %v2199, 0
      %v2314 = vsel %vm787, %v2200, 0
      %v2317 = vsel %vm787, %v2201, 0
      %v2320 = vsel %vm787, %v2202, 0
      %v2323 = vsel %vm787, %v2203, 0
      %v2326 = vsel %vm787, %v2204, 0
      %v2329 = vsel %vm787, %v2205, 0
      %v2332 = vsel %vm787, %v2206, 0
      %v2335 = vsel %vm787, %v2207, 0
      %v2338 = vsel %vm787, %v2208, 0
      %2340 = vmatprep.subr.mxu0 0.0
      %2341 = vmatpush1.msra.mxu0 %v2209
      %2342 = vmatprep.subr.mxu0 0.0
      %2343 = vmatpush1.msra.mxu0 %v2210
      %2344 = vmatprep.subr.mxu0 0.0
      %2345 = vmatpush1.msra.mxu0 %v2211
      %2346 = vmatprep.subr.mxu0 0.0
      %2347 = vmatpush1.msra.mxu0 %v2212
      %2348 = vmatprep.subr.mxu0 0.0
      %2349 = vmatpush1.msra.mxu0 %v2213
      %2350 = vmatprep.subr.mxu0 0.0
      %2351 = vmatpush1.msra.mxu0 %v2214
      %2352 = vmatprep.subr.mxu0 0.0
      %2353 = vmatpush1.msra.mxu0 %v2215
      %2354 = vmatprep.subr.mxu0 0.0
      %2355 = vmatpush1.msra.mxu0 %v2216
      %2356 = vmatprep.subr.mxu0 0.0
      %2357 = vmatpush1.msra.mxu0 0.0
      %2358 = vmatprep.subr.mxu0 0.0
      %2359 = vmatpush1.msra.mxu0 0.0
      %2360 = vmatprep.subr.mxu0 0.0
      %2361 = vmatpush1.msra.mxu0 0.0
      %2362 = vmatprep.subr.mxu0 0.0
      %2363 = vmatpush1.msra.mxu0 0.0
      %2364 = vmatprep.subr.mxu0 0.0
      %2365 = vmatpush1.msra.mxu0 0.0
      %2366 = vmatprep.subr.mxu0 0.0
      %2367 = vmatpush1.msra.mxu0 0.0
      %2368 = vmatprep.subr.mxu0 0.0
      %2369 = vmatpush1.msra.mxu0 0.0
      %2370 = vmatprep.subr.mxu0 0.0
      %2371 = vmatpush1.msra.mxu0 0.0
      %2372 = vmatprep.subr.mxu0 0.0
      %2373 = vmatpush1.msra.mxu0 0.0
      %2374 = vmatprep.subr.mxu0 0.0
      %2375 = vmatpush1.msra.mxu0 0.0
      %2376 = vmatprep.subr.mxu0 0.0
      %2377 = vmatpush1.msra.mxu0 0.0
      %2378 = vmatprep.subr.mxu0 0.0
      %2379 = vmatpush1.msra.mxu0 0.0
      %2380 = vmatprep.subr.mxu0 0.0
      %2381 = vmatpush1.msra.mxu0 0.0
      %2382 = vmatprep.subr.mxu0 0.0
      %2383 = vmatpush1.msra.mxu0 0.0
      %2384 = vmatprep.subr.mxu0 0.0
      %2385 = vmatpush1.msra.mxu0 0.0
      %2386 = vmatprep.subr.mxu0 0.0
      %2387 = vmatpush1.msra.mxu0 0.0
      %2388 = vmatprep.subr.mxu0 0.0
      %2389 = vmatpush1.msra.mxu0 0.0
      %2390 = vmatprep.subr.mxu0 0.0
      %2391 = vmatpush1.msra.mxu0 0.0
      %2392 = vmatprep.subr.mxu0 0.0
      %2393 = vmatpush1.msra.mxu0 0.0
      %2394 = vmatprep.subr.mxu0 0.0
      %2395 = vmatpush1.msra.mxu0 0.0
      %2396 = vmatprep.subr.mxu0 0.0
      %2397 = vmatpush1.msra.mxu0 0.0
      %2398 = vmatprep.subr.mxu0 0.0
      %2399 = vmatpush1.msra.mxu0 0.0
      %2400 = vmatprep.subr.mxu0 0.0
      %2401 = vmatpush1.msra.mxu0 0.0
      %2402 = vmatprep.subr.mxu0 0.0
      %2403 = vmatpush1.msra.mxu0 0.0
      %2404 = vmatprep.mubr.f32.mxu0 0.0
      %2405 = vmatmul.mubr.f32.gmra.mrb[0].mxu0 %v2218
      %v2406 = vpop.f32.mrb[0].mxu0
      %v2407 = vadd.f32 0.0, %v2406
      %v2408 = vpop.f32.mrb[0].mxu0
      %2409 = vmatprep.mubr.f32.mxu0 0.0
      %2410 = vmatmul.mubr.f32.gmra.mrb[0].mxu0 %v2221
      %v2411 = vpop.f32.mrb[0].mxu0
      %v2412 = vadd.f32 0.0, %v2411
      %v2413 = vpop.f32.mrb[0].mxu0
      %2414 = vmatprep.mubr.f32.mxu0 0.0
      %2415 = vmatmul.mubr.f32.gmra.mrb[0].mxu0 %v2224
      %v2416 = vpop.f32.mrb[0].mxu0
      %v2417 = vadd.f32 0.0, %v2416
      %v2418 = vpop.f32.mrb[0].mxu0
      %2419 = vmatprep.mubr.f32.mxu0 0.0
      %2420 = vmatmul.mubr.f32.gmra.mrb[0].mxu0 %v2227
      %v2421 = vpop.f32.mrb[0].mxu0
      %v2422 = vadd.f32 0.0, %v2421
      %v2423 = vpop.f32.mrb[0].mxu0
      %2424 = vmatprep.mubr.f32.mxu0 0.0
      %2425 = vmatmul.mubr.f32.gmra.mrb[0].mxu0 %v2230
      %v2426 = vpop.f32.mrb[0].mxu0
      %v2427 = vadd.f32 0.0, %v2426
      %v2428 = vpop.f32.mrb[0].mxu0
      %2429 = vmatprep.mubr.f32.mxu0 0.0
      %2430 = vmatmul.mubr.f32.gmra.mrb[0].mxu0 %v2233
      %v2431 = vpop.f32.mrb[0].mxu0
      %v2432 = vadd.f32 0.0, %v2431
      %v2433 = vpop.f32.mrb[0].mxu0
      %2434 = vmatprep.mubr.f32.mxu0 0.0
      %2435 = vmatmul.mubr.f32.gmra.mrb[0].mxu0 %v2236
      %v2436 = vpop.f32.mrb[0].mxu0
      %v2437 = vadd.f32 0.0, %v2436
      %v2438 = vpop.f32.mrb[0].mxu0
      %2439 = vmatprep.mubr.f32.mxu0 0.0
      %2440 = vmatmul.mubr.f32.gmra.mrb[0].mxu0 %v2239
      %v2441 = vpop.f32.mrb[0].mxu0
      %v2442 = vadd.f32 0.0, %v2441
      %v2443 = vpop.f32.mrb[0].mxu0
      %2444 = vmatprep.mubr.f32.mxu0 0.0
      %2445 = vmatmul.mubr.f32.gmra.mrb[0].mxu0 %v2242
      %v2446 = vpop.f32.mrb[0].mxu0
      %v2447 = vadd.f32 0.0, %v2446
      %v2448 = vpop.f32.mrb[0].mxu0
      %2449 = vmatprep.mubr.f32.mxu0 0.0
      %2450 = vmatmul.mubr.f32.gmra.mrb[0].mxu0 %v2245
      %v2451 = vpop.f32.mrb[0].mxu0
      %v2452 = vadd.f32 0.0, %v2451
      %v2453 = vpop.f32.mrb[0].mxu0
      %2454 = vmatprep.mubr.f32.mxu0 0.0
      %2455 = vmatmul.mubr.f32.gmra.mrb[0].mxu0 %v2248
      %v2456 = vpop.f32.mrb[0].mxu0
      %v2457 = vadd.f32 0.0, %v2456
      %v2458 = vpop.f32.mrb[0].mxu0
      %2459 = vmatprep.mubr.f32.mxu0 0.0
      %2460 = vmatmul.mubr.f32.gmra.mrb[0].mxu0 %v2251
      %v2461 = vpop.f32.mrb[0].mxu0
      %v2462 = vadd.f32 0.0, %v2461
      %v2463 = vpop.f32.mrb[0].mxu0
      %2464 = vmatprep.mubr.f32.mxu0 0.0
      %2465 = vmatmul.mubr.f32.gmra.mrb[0].mxu0 %v2254
      %v2466 = vpop.f32.mrb[0].mxu0
      %v2467 = vadd.f32 0.0, %v2466
      %v2468 = vpop.f32.mrb[0].mxu0
      %2469 = vmatprep.mubr.f32.mxu0 0.0
      %2470 = vmatmul.mubr.f32.gmra.mrb[0].mxu0 %v2257
      %v2471 = vpop.f32.mrb[0].mxu0
      %v2472 = vadd.f32 0.0, %v2471
      %v2473 = vpop.f32.mrb[0].mxu0
      %2474 = vmatprep.mubr.f32.mxu0 0.0
      %2475 = vmatmul.mubr.f32.gmra.mrb[0].mxu0 %v2260
      %v2476 = vpop.f32.mrb[0].mxu0
      %v2477 = vadd.f32 0.0, %v2476
      %v2478 = vpop.f32.mrb[0].mxu0
      %2479 = vmatprep.mubr.f32.mxu0 0.0
      %2480 = vmatmul.mubr.f32.gmra.mrb[0].mxu0 %v2263
      %v2481 = vpop.f32.mrb[0].mxu0
      %v2482 = vadd.f32 0.0, %v2481
      %v2483 = vpop.f32.mrb[0].mxu0
      %2484 = vmatprep.mubr.f32.mxu0 0.0
      %2485 = vmatmul.mubr.f32.gmra.mrb[0].mxu0 %v2266
      %v2486 = vpop.f32.mrb[0].mxu0
      %v2487 = vadd.f32 0.0, %v2486
      %v2488 = vpop.f32.mrb[0].mxu0
      %2489 = vmatprep.mubr.f32.mxu0 0.0
      %2490 = vmatmul.mubr.f32.gmra.mrb[0].mxu0 %v2269
      %v2491 = vpop.f32.mrb[0].mxu0
      %v2492 = vadd.f32 0.0, %v2491
      %v2493 = vpop.f32.mrb[0].mxu0
      %2494 = vmatprep.mubr.f32.mxu0 0.0
      %2495 = vmatmul.mubr.f32.gmra.mrb[0].mxu0 %v2272
      %v2496 = vpop.f32.mrb[0].mxu0
      %v2497 = vadd.f32 0.0, %v2496
      %v2498 = vpop.f32.mrb[0].mxu0
      %2499 = vmatprep.mubr.f32.mxu0 0.0
      %2500 = vmatmul.mubr.f32.gmra.mrb[0].mxu0 %v2275
      %v2501 = vpop.f32.mrb[0].mxu0
      %v2502 = vadd.f32 0.0, %v2501
      %v2503 = vpop.f32.mrb[0].mxu0
      %2504 = vmatprep.mubr.f32.mxu0 0.0
      %2505 = vmatmul.mubr.f32.gmra.mrb[0].mxu0 %v2278
      %v2506 = vpop.f32.mrb[0].mxu0
      %v2507 = vadd.f32 0.0, %v2506
      %v2508 = vpop.f32.mrb[0].mxu0
      %2509 = vmatprep.mubr.f32.mxu0 0.0
      %2510 = vmatmul.mubr.f32.gmra.mrb[0].mxu0 %v2281
      %v2511 = vpop.f32.mrb[0].mxu0
      %v2512 = vadd.f32 0.0, %v2511
      %v2513 = vpop.f32.mrb[0].mxu0
      %2514 = vmatprep.mubr.f32.mxu0 0.0
      %2515 = vmatmul.mubr.f32.gmra.mrb[0].mxu0 %v2284
      %v2516 = vpop.f32.mrb[0].mxu0
      %v2517 = vadd.f32 0.0, %v2516
      %v2518 = vpop.f32.mrb[0].mxu0
      %2519 = vmatprep.mubr.f32.mxu0 0.0
      %2520 = vmatmul.mubr.f32.gmra.mrb[0].mxu0 %v2287
      %v2521 = vpop.f32.mrb[0].mxu0
      %v2522 = vadd.f32 0.0, %v2521
      %v2523 = vpop.f32.mrb[0].mxu0
      %2524 = vmatprep.mubr.f32.mxu0 0.0
      %2525 = vmatmul.mubr.f32.gmra.mrb[0].mxu0 %v2290
      %v2526 = vpop.f32.mrb[0].mxu0
      %v2527 = vadd.f32 0.0, %v2526
      %v2528 = vpop.f32.mrb[0].mxu0
      %2529 = vmatprep.mubr.f32.mxu0 0.0
      %2530 = vmatmul.mubr.f32.gmra.mrb[0].mxu0 %v2293
      %v2531 = vpop.f32.mrb[0].mxu0
      %v2532 = vadd.f32 0.0, %v2531
      %v2533 = vpop.f32.mrb[0].mxu0
      %2534 = vmatprep.mubr.f32.mxu0 0.0
      %2535 = vmatmul.mubr.f32.gmra.mrb[0].mxu0 %v2296
      %v2536 = vpop.f32.mrb[0].mxu0
      %v2537 = vadd.f32 0.0, %v2536
      %v2538 = vpop.f32.mrb[0].mxu0
      %2539 = vmatprep.mubr.f32.mxu0 0.0
      %2540 = vmatmul.mubr.f32.gmra.mrb[0].mxu0 %v2299
      %v2541 = vpop.f32.mrb[0].mxu0
      %v2542 = vadd.f32 0.0, %v2541
      %v2543 = vpop.f32.mrb[0].mxu0
      %2544 = vmatprep.mubr.f32.mxu0 0.0
      %2545 = vmatmul.mubr.f32.gmra.mrb[0].mxu0 %v2302
      %v2546 = vpop.f32.mrb[0].mxu0
      %v2547 = vadd.f32 0.0, %v2546
      %v2548 = vpop.f32.mrb[0].mxu0
      %2549 = vmatprep.mubr.f32.mxu0 0.0
      %2550 = vmatmul.mubr.f32.gmra.mrb[0].mxu0 %v2305
      %v2551 = vpop.f32.mrb[0].mxu0
      %v2552 = vadd.f32 0.0, %v2551
      %v2553 = vpop.f32.mrb[0].mxu0
      %2554 = vmatprep.mubr.f32.mxu0 0.0
      %2555 = vmatmul.mubr.f32.gmra.mrb[0].mxu0 %v2308
      %v2556 = vpop.f32.mrb[0].mxu0
      %v2557 = vadd.f32 0.0, %v2556
      %v2558 = vpop.f32.mrb[0].mxu0
      %2559 = vmatprep.mubr.f32.mxu0 0.0
      %2560 = vmatmul.mubr.f32.gmra.mrb[0].mxu0 %v2311
      %v2561 = vpop.f32.mrb[0].mxu0
      %v2562 = vadd.f32 0.0, %v2561
      %v2563 = vpop.f32.mrb[0].mxu0
      %2564 = vmatprep.mubr.f32.mxu0 0.0
      %2565 = vmatmul.mubr.f32.gmra.mrb[0].mxu0 %v2314
      %v2566 = vpop.f32.mrb[0].mxu0
      %v2567 = vadd.f32 0.0, %v2566
      %v2568 = vpop.f32.mrb[0].mxu0
      %2569 = vmatprep.mubr.f32.mxu0 0.0
      %2570 = vmatmul.mubr.f32.gmra.mrb[0].mxu0 %v2317
      %v2571 = vpop.f32.mrb[0].mxu0
      %v2572 = vadd.f32 0.0, %v2571
      %v2573 = vpop.f32.mrb[0].mxu0
      %2574 = vmatprep.mubr.f32.mxu0 0.0
      %2575 = vmatmul.mubr.f32.gmra.mrb[0].mxu0 %v2320
      %v2576 = vpop.f32.mrb[0].mxu0
      %v2577 = vadd.f32 0.0, %v2576
      %v2578 = vpop.f32.mrb[0].mxu0
      %2579 = vmatprep.mubr.f32.mxu0 0.0
      %2580 = vmatmul.mubr.f32.gmra.mrb[0].mxu0 %v2323
      %v2581 = vpop.f32.mrb[0].mxu0
      %v2582 = vadd.f32 0.0, %v2581
      %v2583 = vpop.f32.mrb[0].mxu0
      %2584 = vmatprep.mubr.f32.mxu0 0.0
      %2585 = vmatmul.mubr.f32.gmra.mrb[0].mxu0 %v2326
      %v2586 = vpop.f32.mrb[0].mxu0
      %v2587 = vadd.f32 0.0, %v2586
      %v2588 = vpop.f32.mrb[0].mxu0
      %2589 = vmatprep.mubr.f32.mxu0 0.0
      %2590 = vmatmul.mubr.f32.gmra.mrb[0].mxu0 %v2329
      %v2591 = vpop.f32.mrb[0].mxu0
      %v2592 = vadd.f32 0.0, %v2591
      %v2593 = vpop.f32.mrb[0].mxu0
      %2594 = vmatprep.mubr.f32.mxu0 0.0
      %2595 = vmatmul.mubr.f32.gmra.mrb[0].mxu0 %v2332
      %v2596 = vpop.f32.mrb[0].mxu0
      %v2597 = vadd.f32 0.0, %v2596
      %v2598 = vpop.f32.mrb[0].mxu0
      %2599 = vmatprep.mubr.f32.mxu0 0.0
      %2600 = vmatmul.mubr.f32.gmra.mrb[0].mxu0 %v2335
      %v2601 = vpop.f32.mrb[0].mxu0
      %v2602 = vadd.f32 0.0, %v2601
      %v2603 = vpop.f32.mrb[0].mxu0
      %2604 = vmatprep.mubr.f32.mxu0 0.0
      %2605 = vmatmul.mubr.f32.gmra.mrb[0].mxu0 %v2338
      %v2606 = vpop.f32.mrb[0].mxu0
      %v2607 = vadd.f32 0.0, %v2606
      %v2608 = vpop.f32.mrb[0].mxu0
      %2609 = vdwg.mxu0
      %v2610 = vadd.f32 %v2167, %v2407
      %v2611 = vadd.f32 %v2167, %v2412
      %v2612 = vadd.f32 %v2167, %v2417
      %v2613 = vadd.f32 %v2167, %v2422
      %v2614 = vadd.f32 %v2167, %v2427
      %v2615 = vadd.f32 %v2167, %v2432
      %v2616 = vadd.f32 %v2167, %v2437
      %v2617 = vadd.f32 %v2167, %v2442
      %v2618 = vadd.f32 %v2167, %v2447
      %v2619 = vadd.f32 %v2167, %v2452
      %v2620 = vadd.f32 %v2167, %v2457
      %v2621 = vadd.f32 %v2167, %v2462
      %v2622 = vadd.f32 %v2167, %v2467
      %v2623 = vadd.f32 %v2167, %v2472
      %v2624 = vadd.f32 %v2167, %v2477
      %v2625 = vadd.f32 %v2167, %v2482
      %v2626 = vadd.f32 %v2167, %v2487
      %v2627 = vadd.f32 %v2167, %v2492
      %v2628 = vadd.f32 %v2167, %v2497
      %v2629 = vadd.f32 %v2167, %v2502
      %v2630 = vadd.f32 %v2167, %v2507
      %v2631 = vadd.f32 %v2167, %v2512
      %v2632 = vadd.f32 %v2167, %v2517
      %v2633 = vadd.f32 %v2167, %v2522
      %v2634 = vadd.f32 %v2167, %v2527
      %v2635 = vadd.f32 %v2167, %v2532
      %v2636 = vadd.f32 %v2167, %v2537
      %v2637 = vadd.f32 %v2167, %v2542
      %v2638 = vadd.f32 %v2167, %v2547
      %v2639 = vadd.f32 %v2167, %v2552
      %v2640 = vadd.f32 %v2167, %v2557
      %v2641 = vadd.f32 %v2167, %v2562
      %v2642 = vadd.f32 %v2167, %v2567
      %v2643 = vadd.f32 %v2167, %v2572
      %v2644 = vadd.f32 %v2167, %v2577
      %v2645 = vadd.f32 %v2167, %v2582
      %v2646 = vadd.f32 %v2167, %v2587
      %v2647 = vadd.f32 %v2167, %v2592
      %v2648 = vadd.f32 %v2167, %v2597
      %v2649 = vadd.f32 %v2167, %v2602
      %v2650 = vadd.f32 %v2167, %v2607
      %v2651 = vld [vmem:[#allocation3 + $0x1] sm:$0xff]
      %v2652 = vld [vmem:[#allocation3 + $0x9] sm:$0xff]
      %v2653 = vld [vmem:[#allocation3 + $0x11] sm:$0xff]
      %v2654 = vld [vmem:[#allocation3 + $0x19] sm:$0xff]
      %v2655 = vld [vmem:[#allocation3 + $0x21] sm:$0xff]
      %v2656 = vld [vmem:[#allocation3 + $0x29] sm:$0xff]
      %v2657 = vld [vmem:[#allocation3 + $0x31] sm:$0xff]
      %v2658 = vld [vmem:[#allocation3 + $0x39] sm:$0xff]
      %v2659 = vld [vmem:[#allocation3 + $0x41] sm:$0xff]
      %v2660 = vld [vmem:[#allocation3 + $0x49] sm:$0xff]
      %v2661 = vld [vmem:[#allocation3 + $0x51] sm:$0xff]
      %v2662 = vld [vmem:[#allocation3 + $0x59] sm:$0xff]
      %v2663 = vld [vmem:[#allocation3 + $0x61] sm:$0xff]
      %v2664 = vld [vmem:[#allocation3 + $0x69] sm:$0xff]
      %v2665 = vld [vmem:[#allocation3 + $0x71] sm:$0xff]
      %v2666 = vld [vmem:[#allocation3 + $0x79] sm:$0xff]
      %v2667 = vld [vmem:[#allocation3 + $0x81] sm:$0xff]
      %v2668 = vld [vmem:[#allocation3 + $0x89] sm:$0xff]
      %v2669 = vld [vmem:[#allocation3 + $0x91] sm:$0xff]
      %v2670 = vld [vmem:[#allocation3 + $0x99] sm:$0xff]
      %v2671 = vld [vmem:[#allocation3 + $0xa1] sm:$0xff]
      %v2672 = vld [vmem:[#allocation3 + $0xa9] sm:$0xff]
      %v2673 = vld [vmem:[#allocation3 + $0xb1] sm:$0xff]
      %v2674 = vld [vmem:[#allocation3 + $0xb9] sm:$0xff]
      %v2675 = vld [vmem:[#allocation3 + $0xc1] sm:$0xff]
      %v2676 = vld [vmem:[#allocation3 + $0xc9] sm:$0xff]
      %v2677 = vld [vmem:[#allocation3 + $0xd1] sm:$0xff]
      %v2678 = vld [vmem:[#allocation3 + $0xd9] sm:$0xff]
      %v2679 = vld [vmem:[#allocation3 + $0xe1] sm:$0xff]
      %v2680 = vld [vmem:[#allocation3 + $0xe9] sm:$0xff]
      %v2681 = vld [vmem:[#allocation3 + $0xf1] sm:$0xff]
      %v2682 = vld [vmem:[#allocation3 + $0xf9] sm:$0xff]
      %v2683 = vld [vmem:[#allocation3 + $0x101] sm:$0xff]
      %v2684 = vld [vmem:[#allocation3 + $0x109] sm:$0xff]
      %v2685 = vld [vmem:[#allocation3 + $0x111] sm:$0xff]
      %v2686 = vld [vmem:[#allocation3 + $0x119] sm:$0xff]
      %v2687 = vld [vmem:[#allocation3 + $0x121] sm:$0xff]
      %v2688 = vld [vmem:[#allocation3 + $0x129] sm:$0xff]
      %v2689 = vld [vmem:[#allocation3 + $0x131] sm:$0xff]
      %v2690 = vld [vmem:[#allocation3 + $0x139] sm:$0xff]
      %v2691 = vld [vmem:[#allocation3 + $0x141] sm:$0xf]
      %s2692 = scalar_lea.vmem %s9, 64
      %v2693 = vld [vmem:[%s2692] sm:$0xff]
      %v2694 = vld [vmem:[%s2692 + $0x8] sm:$0xff]
      %v2695 = vld [vmem:[%s2692 + $0x10] sm:$0xff]
      %v2696 = vld [vmem:[%s2692 + $0x18] sm:$0xff]
      %v2697 = vld [vmem:[%s2692 + $0x20] sm:$0xff]
      %v2698 = vld [vmem:[%s2692 + $0x28] sm:$0xff]
      %v2699 = vld [vmem:[%s2692 + $0x30] sm:$0xff]
      %v2700 = vld [vmem:[%s2692 + $0x38] sm:$0xff]
      %v2702 = vsel %vm787, %v2651, 0
      %v2705 = vsel %vm787, %v2652, 0
      %v2708 = vsel %vm787, %v2653, 0
      %v2711 = vsel %vm787, %v2654, 0
      %v2714 = vsel %vm787, %v2655, 0
      %v2717 = vsel %vm787, %v2656, 0
      %v2720 = vsel %vm787, %v2657, 0
      %v2723 = vsel %vm787, %v2658, 0
      %v2726 = vsel %vm787, %v2659, 0
      %v2729 = vsel %vm787, %v2660, 0
      %v2732 = vsel %vm787, %v2661, 0
      %v2735 = vsel %vm787, %v2662, 0
      %v2738 = vsel %vm787, %v2663, 0
      %v2741 = vsel %vm787, %v2664, 0
      %v2744 = vsel %vm787, %v2665, 0
      %v2747 = vsel %vm787, %v2666, 0
      %v2750 = vsel %vm787, %v2667, 0
      %v2753 = vsel %vm787, %v2668, 0
      %v2756 = vsel %vm787, %v2669, 0
      %v2759 = vsel %vm787, %v2670, 0
      %v2762 = vsel %vm787, %v2671, 0
      %v2765 = vsel %vm787, %v2672, 0
      %v2768 = vsel %vm787, %v2673, 0
      %v2771 = vsel %vm787, %v2674, 0
      %v2774 = vsel %vm787, %v2675, 0
      %v2777 = vsel %vm787, %v2676, 0
      %v2780 = vsel %vm787, %v2677, 0
      %v2783 = vsel %vm787, %v2678, 0
      %v2786 = vsel %vm787, %v2679, 0
      %v2789 = vsel %vm787, %v2680, 0
      %v2792 = vsel %vm787, %v2681, 0
      %v2795 = vsel %vm787, %v2682, 0
      %v2798 = vsel %vm787, %v2683, 0
      %v2801 = vsel %vm787, %v2684, 0
      %v2804 = vsel %vm787, %v2685, 0
      %v2807 = vsel %vm787, %v2686, 0
      %v2810 = vsel %vm787, %v2687, 0
      %v2813 = vsel %vm787, %v2688, 0
      %v2816 = vsel %vm787, %v2689, 0
      %v2819 = vsel %vm787, %v2690, 0
      %v2822 = vsel %vm787, %v2691, 0
      %2824 = vmatprep.subr.mxu0 0.0
      %2825 = vmatpush1.msra.mxu0 %v2693
      %2826 = vmatprep.subr.mxu0 0.0
      %2827 = vmatpush1.msra.mxu0 %v2694
      %2828 = vmatprep.subr.mxu0 0.0
      %2829 = vmatpush1.msra.mxu0 %v2695
      %2830 = vmatprep.subr.mxu0 0.0
      %2831 = vmatpush1.msra.mxu0 %v2696
      %2832 = vmatprep.subr.mxu0 0.0
      %2833 = vmatpush1.msra.mxu0 %v2697
      %2834 = vmatprep.subr.mxu0 0.0
      %2835 = vmatpush1.msra.mxu0 %v2698
      %2836 = vmatprep.subr.mxu0 0.0
      %2837 = vmatpush1.msra.mxu0 %v2699
      %2838 = vmatprep.subr.mxu0 0.0
      %2839 = vmatpush1.msra.mxu0 %v2700
      %2840 = vmatprep.subr.mxu0 0.0
      %2841 = vmatpush1.msra.mxu0 0.0
      %2842 = vmatprep.subr.mxu0 0.0
      %2843 = vmatpush1.msra.mxu0 0.0
      %2844 = vmatprep.subr.mxu0 0.0
      %2845 = vmatpush1.msra.mxu0 0.0
      %2846 = vmatprep.subr.mxu0 0.0
      %2847 = vmatpush1.msra.mxu0 0.0
      %2848 = vmatprep.subr.mxu0 0.0
      %2849 = vmatpush1.msra.mxu0 0.0
      %2850 = vmatprep.subr.mxu0 0.0
      %2851 = vmatpush1.msra.mxu0 0.0
      %2852 = vmatprep.subr.mxu0 0.0
      %2853 = vmatpush1.msra.mxu0 0.0
      %2854 = vmatprep.subr.mxu0 0.0
      %2855 = vmatpush1.msra.mxu0 0.0
      %2856 = vmatprep.subr.mxu0 0.0
      %2857 = vmatpush1.msra.mxu0 0.0
      %2858 = vmatprep.subr.mxu0 0.0
      %2859 = vmatpush1.msra.mxu0 0.0
      %2860 = vmatprep.subr.mxu0 0.0
      %2861 = vmatpush1.msra.mxu0 0.0
      %2862 = vmatprep.subr.mxu0 0.0
      %2863 = vmatpush1.msra.mxu0 0.0
      %2864 = vmatprep.subr.mxu0 0.0
      %2865 = vmatpush1.msra.mxu0 0.0
      %2866 = vmatprep.subr.mxu0 0.0
      %2867 = vmatpush1.msra.mxu0 0.0
      %2868 = vmatprep.subr.mxu0 0.0
      %2869 = vmatpush1.msra.mxu0 0.0
      %2870 = vmatprep.subr.mxu0 0.0
      %2871 = vmatpush1.msra.mxu0 0.0
      %2872 = vmatprep.subr.mxu0 0.0
      %2873 = vmatpush1.msra.mxu0 0.0
      %2874 = vmatprep.subr.mxu0 0.0
      %2875 = vmatpush1.msra.mxu0 0.0
      %2876 = vmatprep.subr.mxu0 0.0
      %2877 = vmatpush1.msra.mxu0 0.0
      %2878 = vmatprep.subr.mxu0 0.0
      %2879 = vmatpush1.msra.mxu0 0.0
      %2880 = vmatprep.subr.mxu0 0.0
      %2881 = vmatpush1.msra.mxu0 0.0
      %2882 = vmatprep.subr.mxu0 0.0
      %2883 = vmatpush1.msra.mxu0 0.0
      %2884 = vmatprep.subr.mxu0 0.0
      %2885 = vmatpush1.msra.mxu0 0.0
      %2886 = vmatprep.subr.mxu0 0.0
      %2887 = vmatpush1.msra.mxu0 0.0
      %2888 = vmatprep.mubr.f32.mxu0 0.0
      %2889 = vmatmul.mubr.f32.gmra.mrb[0].mxu0 %v2702
      %v2890 = vpop.f32.mrb[0].mxu0
      %v2891 = vadd.f32 0.0, %v2890
      %v2892 = vpop.f32.mrb[0].mxu0
      %2893 = vmatprep.mubr.f32.mxu0 0.0
      %2894 = vmatmul.mubr.f32.gmra.mrb[0].mxu0 %v2705
      %v2895 = vpop.f32.mrb[0].mxu0
      %v2896 = vadd.f32 0.0, %v2895
      %v2897 = vpop.f32.mrb[0].mxu0
      %2898 = vmatprep.mubr.f32.mxu0 0.0
      %2899 = vmatmul.mubr.f32.gmra.mrb[0].mxu0 %v2708
      %v2900 = vpop.f32.mrb[0].mxu0
      %v2901 = vadd.f32 0.0, %v2900
      %v2902 = vpop.f32.mrb[0].mxu0
      %2903 = vmatprep.mubr.f32.mxu0 0.0
      %2904 = vmatmul.mubr.f32.gmra.mrb[0].mxu0 %v2711
      %v2905 = vpop.f32.mrb[0].mxu0
      %v2906 = vadd.f32 0.0, %v2905
      %v2907 = vpop.f32.mrb[0].mxu0
      %2908 = vmatprep.mubr.f32.mxu0 0.0
      %2909 = vmatmul.mubr.f32.gmra.mrb[0].mxu0 %v2714
      %v2910 = vpop.f32.mrb[0].mxu0
      %v2911 = vadd.f32 0.0, %v2910
      %v2912 = vpop.f32.mrb[0].mxu0
      %2913 = vmatprep.mubr.f32.mxu0 0.0
      %2914 = vmatmul.mubr.f32.gmra.mrb[0].mxu0 %v2717
      %v2915 = vpop.f32.mrb[0].mxu0
      %v2916 = vadd.f32 0.0, %v2915
      %v2917 = vpop.f32.mrb[0].mxu0
      %2918 = vmatprep.mubr.f32.mxu0 0.0
      %2919 = vmatmul.mubr.f32.gmra.mrb[0].mxu0 %v2720
      %v2920 = vpop.f32.mrb[0].mxu0
      %v2921 = vadd.f32 0.0, %v2920
      %v2922 = vpop.f32.mrb[0].mxu0
      %2923 = vmatprep.mubr.f32.mxu0 0.0
      %2924 = vmatmul.mubr.f32.gmra.mrb[0].mxu0 %v2723
      %v2925 = vpop.f32.mrb[0].mxu0
      %v2926 = vadd.f32 0.0, %v2925
      %v2927 = vpop.f32.mrb[0].mxu0
      %2928 = vmatprep.mubr.f32.mxu0 0.0
      %2929 = vmatmul.mubr.f32.gmra.mrb[0].mxu0 %v2726
      %v2930 = vpop.f32.mrb[0].mxu0
      %v2931 = vadd.f32 0.0, %v2930
      %v2932 = vpop.f32.mrb[0].mxu0
      %2933 = vmatprep.mubr.f32.mxu0 0.0
      %2934 = vmatmul.mubr.f32.gmra.mrb[0].mxu0 %v2729
      %v2935 = vpop.f32.mrb[0].mxu0
      %v2936 = vadd.f32 0.0, %v2935
      %v2937 = vpop.f32.mrb[0].mxu0
      %2938 = vmatprep.mubr.f32.mxu0 0.0
      %2939 = vmatmul.mubr.f32.gmra.mrb[0].mxu0 %v2732
      %v2940 = vpop.f32.mrb[0].mxu0
      %v2941 = vadd.f32 0.0, %v2940
      %v2942 = vpop.f32.mrb[0].mxu0
      %2943 = vmatprep.mubr.f32.mxu0 0.0
      %2944 = vmatmul.mubr.f32.gmra.mrb[0].mxu0 %v2735
      %v2945 = vpop.f32.mrb[0].mxu0
      %v2946 = vadd.f32 0.0, %v2945
      %v2947 = vpop.f32.mrb[0].mxu0
      %2948 = vmatprep.mubr.f32.mxu0 0.0
      %2949 = vmatmul.mubr.f32.gmra.mrb[0].mxu0 %v2738
      %v2950 = vpop.f32.mrb[0].mxu0
      %v2951 = vadd.f32 0.0, %v2950
      %v2952 = vpop.f32.mrb[0].mxu0
      %2953 = vmatprep.mubr.f32.mxu0 0.0
      %2954 = vmatmul.mubr.f32.gmra.mrb[0].mxu0 %v2741
      %v2955 = vpop.f32.mrb[0].mxu0
      %v2956 = vadd.f32 0.0, %v2955
      %v2957 = vpop.f32.mrb[0].mxu0
      %2958 = vmatprep.mubr.f32.mxu0 0.0
      %2959 = vmatmul.mubr.f32.gmra.mrb[0].mxu0 %v2744
      %v2960 = vpop.f32.mrb[0].mxu0
      %v2961 = vadd.f32 0.0, %v2960
      %v2962 = vpop.f32.mrb[0].mxu0
      %2963 = vmatprep.mubr.f32.mxu0 0.0
      %2964 = vmatmul.mubr.f32.gmra.mrb[0].mxu0 %v2747
      %v2965 = vpop.f32.mrb[0].mxu0
      %v2966 = vadd.f32 0.0, %v2965
      %v2967 = vpop.f32.mrb[0].mxu0
      %2968 = vmatprep.mubr.f32.mxu0 0.0
      %2969 = vmatmul.mubr.f32.gmra.mrb[0].mxu0 %v2750
      %v2970 = vpop.f32.mrb[0].mxu0
      %v2971 = vadd.f32 0.0, %v2970
      %v2972 = vpop.f32.mrb[0].mxu0
      %2973 = vmatprep.mubr.f32.mxu0 0.0
      %2974 = vmatmul.mubr.f32.gmra.mrb[0].mxu0 %v2753
      %v2975 = vpop.f32.mrb[0].mxu0
      %v2976 = vadd.f32 0.0, %v2975
      %v2977 = vpop.f32.mrb[0].mxu0
      %2978 = vmatprep.mubr.f32.mxu0 0.0
      %2979 = vmatmul.mubr.f32.gmra.mrb[0].mxu0 %v2756
      %v2980 = vpop.f32.mrb[0].mxu0
      %v2981 = vadd.f32 0.0, %v2980
      %v2982 = vpop.f32.mrb[0].mxu0
      %2983 = vmatprep.mubr.f32.mxu0 0.0
      %2984 = vmatmul.mubr.f32.gmra.mrb[0].mxu0 %v2759
      %v2985 = vpop.f32.mrb[0].mxu0
      %v2986 = vadd.f32 0.0, %v2985
      %v2987 = vpop.f32.mrb[0].mxu0
      %2988 = vmatprep.mubr.f32.mxu0 0.0
      %2989 = vmatmul.mubr.f32.gmra.mrb[0].mxu0 %v2762
      %v2990 = vpop.f32.mrb[0].mxu0
      %v2991 = vadd.f32 0.0, %v2990
      %v2992 = vpop.f32.mrb[0].mxu0
      %2993 = vmatprep.mubr.f32.mxu0 0.0
      %2994 = vmatmul.mubr.f32.gmra.mrb[0].mxu0 %v2765
      %v2995 = vpop.f32.mrb[0].mxu0
      %v2996 = vadd.f32 0.0, %v2995
      %v2997 = vpop.f32.mrb[0].mxu0
      %2998 = vmatprep.mubr.f32.mxu0 0.0
      %2999 = vmatmul.mubr.f32.gmra.mrb[0].mxu0 %v2768
      %v3000 = vpop.f32.mrb[0].mxu0
      %v3001 = vadd.f32 0.0, %v3000
      %v3002 = vpop.f32.mrb[0].mxu0
      %3003 = vmatprep.mubr.f32.mxu0 0.0
      %3004 = vmatmul.mubr.f32.gmra.mrb[0].mxu0 %v2771
      %v3005 = vpop.f32.mrb[0].mxu0
      %v3006 = vadd.f32 0.0, %v3005
      %v3007 = vpop.f32.mrb[0].mxu0
      %3008 = vmatprep.mubr.f32.mxu0 0.0
      %3009 = vmatmul.mubr.f32.gmra.mrb[0].mxu0 %v2774
      %v3010 = vpop.f32.mrb[0].mxu0
      %v3011 = vadd.f32 0.0, %v3010
      %v3012 = vpop.f32.mrb[0].mxu0
      %3013 = vmatprep.mubr.f32.mxu0 0.0
      %3014 = vmatmul.mubr.f32.gmra.mrb[0].mxu0 %v2777
      %v3015 = vpop.f32.mrb[0].mxu0
      %v3016 = vadd.f32 0.0, %v3015
      %v3017 = vpop.f32.mrb[0].mxu0
      %3018 = vmatprep.mubr.f32.mxu0 0.0
      %3019 = vmatmul.mubr.f32.gmra.mrb[0].mxu0 %v2780
      %v3020 = vpop.f32.mrb[0].mxu0
      %v3021 = vadd.f32 0.0, %v3020
      %v3022 = vpop.f32.mrb[0].mxu0
      %3023 = vmatprep.mubr.f32.mxu0 0.0
      %3024 = vmatmul.mubr.f32.gmra.mrb[0].mxu0 %v2783
      %v3025 = vpop.f32.mrb[0].mxu0
      %v3026 = vadd.f32 0.0, %v3025
      %v3027 = vpop.f32.mrb[0].mxu0
      %3028 = vmatprep.mubr.f32.mxu0 0.0
      %3029 = vmatmul.mubr.f32.gmra.mrb[0].mxu0 %v2786
      %v3030 = vpop.f32.mrb[0].mxu0
      %v3031 = vadd.f32 0.0, %v3030
      %v3032 = vpop.f32.mrb[0].mxu0
      %3033 = vmatprep.mubr.f32.mxu0 0.0
      %3034 = vmatmul.mubr.f32.gmra.mrb[0].mxu0 %v2789
      %v3035 = vpop.f32.mrb[0].mxu0
      %v3036 = vadd.f32 0.0, %v3035
      %v3037 = vpop.f32.mrb[0].mxu0
      %3038 = vmatprep.mubr.f32.mxu0 0.0
      %3039 = vmatmul.mubr.f32.gmra.mrb[0].mxu0 %v2792
      %v3040 = vpop.f32.mrb[0].mxu0
      %v3041 = vadd.f32 0.0, %v3040
      %v3042 = vpop.f32.mrb[0].mxu0
      %3043 = vmatprep.mubr.f32.mxu0 0.0
      %3044 = vmatmul.mubr.f32.gmra.mrb[0].mxu0 %v2795
      %v3045 = vpop.f32.mrb[0].mxu0
      %v3046 = vadd.f32 0.0, %v3045
      %v3047 = vpop.f32.mrb[0].mxu0
      %3048 = vmatprep.mubr.f32.mxu0 0.0
      %3049 = vmatmul.mubr.f32.gmra.mrb[0].mxu0 %v2798
      %v3050 = vpop.f32.mrb[0].mxu0
      %v3051 = vadd.f32 0.0, %v3050
      %v3052 = vpop.f32.mrb[0].mxu0
      %3053 = vmatprep.mubr.f32.mxu0 0.0
      %3054 = vmatmul.mubr.f32.gmra.mrb[0].mxu0 %v2801
      %v3055 = vpop.f32.mrb[0].mxu0
      %v3056 = vadd.f32 0.0, %v3055
      %v3057 = vpop.f32.mrb[0].mxu0
      %3058 = vmatprep.mubr.f32.mxu0 0.0
      %3059 = vmatmul.mubr.f32.gmra.mrb[0].mxu0 %v2804
      %v3060 = vpop.f32.mrb[0].mxu0
      %v3061 = vadd.f32 0.0, %v3060
      %v3062 = vpop.f32.mrb[0].mxu0
      %3063 = vmatprep.mubr.f32.mxu0 0.0
      %3064 = vmatmul.mubr.f32.gmra.mrb[0].mxu0 %v2807
      %v3065 = vpop.f32.mrb[0].mxu0
      %v3066 = vadd.f32 0.0, %v3065
      %v3067 = vpop.f32.mrb[0].mxu0
      %3068 = vmatprep.mubr.f32.mxu0 0.0
      %3069 = vmatmul.mubr.f32.gmra.mrb[0].mxu0 %v2810
      %v3070 = vpop.f32.mrb[0].mxu0
      %v3071 = vadd.f32 0.0, %v3070
      %v3072 = vpop.f32.mrb[0].mxu0
      %3073 = vmatprep.mubr.f32.mxu0 0.0
      %3074 = vmatmul.mubr.f32.gmra.mrb[0].mxu0 %v2813
      %v3075 = vpop.f32.mrb[0].mxu0
      %v3076 = vadd.f32 0.0, %v3075
      %v3077 = vpop.f32.mrb[0].mxu0
      %3078 = vmatprep.mubr.f32.mxu0 0.0
      %3079 = vmatmul.mubr.f32.gmra.mrb[0].mxu0 %v2816
      %v3080 = vpop.f32.mrb[0].mxu0
      %v3081 = vadd.f32 0.0, %v3080
      %v3082 = vpop.f32.mrb[0].mxu0
      %3083 = vmatprep.mubr.f32.mxu0 0.0
      %3084 = vmatmul.mubr.f32.gmra.mrb[0].mxu0 %v2819
      %v3085 = vpop.f32.mrb[0].mxu0
      %v3086 = vadd.f32 0.0, %v3085
      %v3087 = vpop.f32.mrb[0].mxu0
      %3088 = vmatprep.mubr.f32.mxu0 0.0
      %3089 = vmatmul.mubr.f32.gmra.mrb[0].mxu0 %v2822
      %v3090 = vpop.f32.mrb[0].mxu0
      %v3091 = vadd.f32 0.0, %v3090
      %v3092 = vpop.f32.mrb[0].mxu0
      %3093 = vdwg.mxu0
      %v3094 = vadd.f32 %v2610, %v2891
      %v3095 = vadd.f32 %v2611, %v2896
      %v3096 = vadd.f32 %v2612, %v2901
      %v3097 = vadd.f32 %v2613, %v2906
      %v3098 = vadd.f32 %v2614, %v2911
      %v3099 = vadd.f32 %v2615, %v2916
      %v3100 = vadd.f32 %v2616, %v2921
      %v3101 = vadd.f32 %v2617, %v2926
      %v3102 = vadd.f32 %v2618, %v2931
      %v3103 = vadd.f32 %v2619, %v2936
      %v3104 = vadd.f32 %v2620, %v2941
      %v3105 = vadd.f32 %v2621, %v2946
      %v3106 = vadd.f32 %v2622, %v2951
      %v3107 = vadd.f32 %v2623, %v2956
      %v3108 = vadd.f32 %v2624, %v2961
      %v3109 = vadd.f32 %v2625, %v2966
      %v3110 = vadd.f32 %v2626, %v2971
      %v3111 = vadd.f32 %v2627, %v2976
      %v3112 = vadd.f32 %v2628, %v2981
      %v3113 = vadd.f32 %v2629, %v2986
      %v3114 = vadd.f32 %v2630, %v2991
      %v3115 = vadd.f32 %v2631, %v2996
      %v3116 = vadd.f32 %v2632, %v3001
      %v3117 = vadd.f32 %v2633, %v3006
      %v3118 = vadd.f32 %v2634, %v3011
      %v3119 = vadd.f32 %v2635, %v3016
      %v3120 = vadd.f32 %v2636, %v3021
      %v3121 = vadd.f32 %v2637, %v3026
      %v3122 = vadd.f32 %v2638, %v3031
      %v3123 = vadd.f32 %v2639, %v3036
      %v3124 = vadd.f32 %v2640, %v3041
      %v3125 = vadd.f32 %v2641, %v3046
      %v3126 = vadd.f32 %v2642, %v3051
      %v3127 = vadd.f32 %v2643, %v3056
      %v3128 = vadd.f32 %v2644, %v3061
      %v3129 = vadd.f32 %v2645, %v3066
      %v3130 = vadd.f32 %v2646, %v3071
      %v3131 = vadd.f32 %v2647, %v3076
      %v3132 = vadd.f32 %v2648, %v3081
      %v3133 = vadd.f32 %v2649, %v3086
      %v3134 = vadd.f32 %v2650, %v3091
      %v3135 = vld [vmem:[#allocation3 + $0x2] sm:$0xff]
      %v3136 = vld [vmem:[#allocation3 + $0xa] sm:$0xff]
      %v3137 = vld [vmem:[#allocation3 + $0x12] sm:$0xff]
      %v3138 = vld [vmem:[#allocation3 + $0x1a] sm:$0xff]
      %v3139 = vld [vmem:[#allocation3 + $0x22] sm:$0xff]
      %v3140 = vld [vmem:[#allocation3 + $0x2a] sm:$0xff]
      %v3141 = vld [vmem:[#allocation3 + $0x32] sm:$0xff]
      %v3142 = vld [vmem:[#allocation3 + $0x3a] sm:$0xff]
      %v3143 = vld [vmem:[#allocation3 + $0x42] sm:$0xff]
      %v3144 = vld [vmem:[#allocation3 + $0x4a] sm:$0xff]
      %v3145 = vld [vmem:[#allocation3 + $0x52] sm:$0xff]
      %v3146 = vld [vmem:[#allocation3 + $0x5a] sm:$0xff]
      %v3147 = vld [vmem:[#allocation3 + $0x62] sm:$0xff]
      %v3148 = vld [vmem:[#allocation3 + $0x6a] sm:$0xff]
      %v3149 = vld [vmem:[#allocation3 + $0x72] sm:$0xff]
      %v3150 = vld [vmem:[#allocation3 + $0x7a] sm:$0xff]
      %v3151 = vld [vmem:[#allocation3 + $0x82] sm:$0xff]
      %v3152 = vld [vmem:[#allocation3 + $0x8a] sm:$0xff]
      %v3153 = vld [vmem:[#allocation3 + $0x92] sm:$0xff]
      %v3154 = vld [vmem:[#allocation3 + $0x9a] sm:$0xff]
      %v3155 = vld [vmem:[#allocation3 + $0xa2] sm:$0xff]
      %v3156 = vld [vmem:[#allocation3 + $0xaa] sm:$0xff]
      %v3157 = vld [vmem:[#allocation3 + $0xb2] sm:$0xff]
      %v3158 = vld [vmem:[#allocation3 + $0xba] sm:$0xff]
      %v3159 = vld [vmem:[#allocation3 + $0xc2] sm:$0xff]
      %v3160 = vld [vmem:[#allocation3 + $0xca] sm:$0xff]
      %v3161 = vld [vmem:[#allocation3 + $0xd2] sm:$0xff]
      %v3162 = vld [vmem:[#allocation3 + $0xda] sm:$0xff]
      %v3163 = vld [vmem:[#allocation3 + $0xe2] sm:$0xff]
      %v3164 = vld [vmem:[#allocation3 + $0xea] sm:$0xff]
      %v3165 = vld [vmem:[#allocation3 + $0xf2] sm:$0xff]
      %v3166 = vld [vmem:[#allocation3 + $0xfa] sm:$0xff]
      %v3167 = vld [vmem:[#allocation3 + $0x102] sm:$0xff]
      %v3168 = vld [vmem:[#allocation3 + $0x10a] sm:$0xff]
      %v3169 = vld [vmem:[#allocation3 + $0x112] sm:$0xff]
      %v3170 = vld [vmem:[#allocation3 + $0x11a] sm:$0xff]
      %v3171 = vld [vmem:[#allocation3 + $0x122] sm:$0xff]
      %v3172 = vld [vmem:[#allocation3 + $0x12a] sm:$0xff]
      %v3173 = vld [vmem:[#allocation3 + $0x132] sm:$0xff]
      %v3174 = vld [vmem:[#allocation3 + $0x13a] sm:$0xff]
      %v3175 = vld [vmem:[#allocation3 + $0x142] sm:$0xf]
      %s3176 = scalar_lea.vmem %s9, 128
      %v3177 = vld [vmem:[%s3176] sm:$0xff]
      %v3178 = vld [vmem:[%s3176 + $0x8] sm:$0xff]
      %v3179 = vld [vmem:[%s3176 + $0x10] sm:$0xff]
      %v3180 = vld [vmem:[%s3176 + $0x18] sm:$0xff]
      %v3181 = vld [vmem:[%s3176 + $0x20] sm:$0xff]
      %v3182 = vld [vmem:[%s3176 + $0x28] sm:$0xff]
      %v3183 = vld [vmem:[%s3176 + $0x30] sm:$0xff]
      %v3184 = vld [vmem:[%s3176 + $0x38] sm:$0xff]
      %v3186 = vsel %vm787, %v3135, 0
      %v3189 = vsel %vm787, %v3136, 0
      %v3192 = vsel %vm787, %v3137, 0
      %v3195 = vsel %vm787, %v3138, 0
      %v3198 = vsel %vm787, %v3139, 0
      %v3201 = vsel %vm787, %v3140, 0
      %v3204 = vsel %vm787, %v3141, 0
      %v3207 = vsel %vm787, %v3142, 0
      %v3210 = vsel %vm787, %v3143, 0
      %v3213 = vsel %vm787, %v3144, 0
      %v3216 = vsel %vm787, %v3145, 0
      %v3219 = vsel %vm787, %v3146, 0
      %v3222 = vsel %vm787, %v3147, 0
      %v3225 = vsel %vm787, %v3148, 0
      %v3228 = vsel %vm787, %v3149, 0
      %v3231 = vsel %vm787, %v3150, 0
      %v3234 = vsel %vm787, %v3151, 0
      %v3237 = vsel %vm787, %v3152, 0
      %v3240 = vsel %vm787, %v3153, 0
      %v3243 = vsel %vm787, %v3154, 0
      %v3246 = vsel %vm787, %v3155, 0
      %v3249 = vsel %vm787, %v3156, 0
      %v3252 = vsel %vm787, %v3157, 0
      %v3255 = vsel %vm787, %v3158, 0
      %v3258 = vsel %vm787, %v3159, 0
      %v3261 = vsel %vm787, %v3160, 0
      %v3264 = vsel %vm787, %v3161, 0
      %v3267 = vsel %vm787, %v3162, 0
      %v3270 = vsel %vm787, %v3163, 0
      %v3273 = vsel %vm787, %v3164, 0
      %v3276 = vsel %vm787, %v3165, 0
      %v3279 = vsel %vm787, %v3166, 0
      %v3282 = vsel %vm787, %v3167, 0
      %v3285 = vsel %vm787, %v3168, 0
      %v3288 = vsel %vm787, %v3169, 0
      %v3291 = vsel %vm787, %v3170, 0
      %v3294 = vsel %vm787, %v3171, 0
      %v3297 = vsel %vm787, %v3172, 0
      %v3300 = vsel %vm787, %v3173, 0
      %v3303 = vsel %vm787, %v3174, 0
      %v3306 = vsel %vm787, %v3175, 0
      %3308 = vmatprep.subr.mxu0 0.0
      %3309 = vmatpush1.msra.mxu0 %v3177
      %3310 = vmatprep.subr.mxu0 0.0
      %3311 = vmatpush1.msra.mxu0 %v3178
      %3312 = vmatprep.subr.mxu0 0.0
      %3313 = vmatpush1.msra.mxu0 %v3179
      %3314 = vmatprep.subr.mxu0 0.0
      %3315 = vmatpush1.msra.mxu0 %v3180
      %3316 = vmatprep.subr.mxu0 0.0
      %3317 = vmatpush1.msra.mxu0 %v3181
      %3318 = vmatprep.subr.mxu0 0.0
      %3319 = vmatpush1.msra.mxu0 %v3182
      %3320 = vmatprep.subr.mxu0 0.0
      %3321 = vmatpush1.msra.mxu0 %v3183
      %3322 = vmatprep.subr.mxu0 0.0
      %3323 = vmatpush1.msra.mxu0 %v3184
      %3324 = vmatprep.subr.mxu0 0.0
      %3325 = vmatpush1.msra.mxu0 0.0
      %3326 = vmatprep.subr.mxu0 0.0
      %3327 = vmatpush1.msra.mxu0 0.0
      %3328 = vmatprep.subr.mxu0 0.0
      %3329 = vmatpush1.msra.mxu0 0.0
      %3330 = vmatprep.subr.mxu0 0.0
      %3331 = vmatpush1.msra.mxu0 0.0
      %3332 = vmatprep.subr.mxu0 0.0
      %3333 = vmatpush1.msra.mxu0 0.0
      %3334 = vmatprep.subr.mxu0 0.0
      %3335 = vmatpush1.msra.mxu0 0.0
      %3336 = vmatprep.subr.mxu0 0.0
      %3337 = vmatpush1.msra.mxu0 0.0
      %3338 = vmatprep.subr.mxu0 0.0
      %3339 = vmatpush1.msra.mxu0 0.0
      %3340 = vmatprep.subr.mxu0 0.0
      %3341 = vmatpush1.msra.mxu0 0.0
      %3342 = vmatprep.subr.mxu0 0.0
      %3343 = vmatpush1.msra.mxu0 0.0
      %3344 = vmatprep.subr.mxu0 0.0
      %3345 = vmatpush1.msra.mxu0 0.0
      %3346 = vmatprep.subr.mxu0 0.0
      %3347 = vmatpush1.msra.mxu0 0.0
      %3348 = vmatprep.subr.mxu0 0.0
      %3349 = vmatpush1.msra.mxu0 0.0
      %3350 = vmatprep.subr.mxu0 0.0
      %3351 = vmatpush1.msra.mxu0 0.0
      %3352 = vmatprep.subr.mxu0 0.0
      %3353 = vmatpush1.msra.mxu0 0.0
      %3354 = vmatprep.subr.mxu0 0.0
      %3355 = vmatpush1.msra.mxu0 0.0
      %3356 = vmatprep.subr.mxu0 0.0
      %3357 = vmatpush1.msra.mxu0 0.0
      %3358 = vmatprep.subr.mxu0 0.0
      %3359 = vmatpush1.msra.mxu0 0.0
      %3360 = vmatprep.subr.mxu0 0.0
      %3361 = vmatpush1.msra.mxu0 0.0
      %3362 = vmatprep.subr.mxu0 0.0
      %3363 = vmatpush1.msra.mxu0 0.0
      %3364 = vmatprep.subr.mxu0 0.0
      %3365 = vmatpush1.msra.mxu0 0.0
      %3366 = vmatprep.subr.mxu0 0.0
      %3367 = vmatpush1.msra.mxu0 0.0
      %3368 = vmatprep.subr.mxu0 0.0
      %3369 = vmatpush1.msra.mxu0 0.0
      %3370 = vmatprep.subr.mxu0 0.0
      %3371 = vmatpush1.msra.mxu0 0.0
      %3372 = vmatprep.mubr.f32.mxu0 0.0
      %3373 = vmatmul.mubr.f32.gmra.mrb[0].mxu0 %v3186
      %v3374 = vpop.f32.mrb[0].mxu0
      %v3375 = vadd.f32 0.0, %v3374
      %v3376 = vpop.f32.mrb[0].mxu0
      %3377 = vmatprep.mubr.f32.mxu0 0.0
      %3378 = vmatmul.mubr.f32.gmra.mrb[0].mxu0 %v3189
      %v3379 = vpop.f32.mrb[0].mxu0
      %v3380 = vadd.f32 0.0, %v3379
      %v3381 = vpop.f32.mrb[0].mxu0
      %3382 = vmatprep.mubr.f32.mxu0 0.0
      %3383 = vmatmul.mubr.f32.gmra.mrb[0].mxu0 %v3192
      %v3384 = vpop.f32.mrb[0].mxu0
      %v3385 = vadd.f32 0.0, %v3384
      %v3386 = vpop.f32.mrb[0].mxu0
      %3387 = vmatprep.mubr.f32.mxu0 0.0
      %3388 = vmatmul.mubr.f32.gmra.mrb[0].mxu0 %v3195
      %v3389 = vpop.f32.mrb[0].mxu0
      %v3390 = vadd.f32 0.0, %v3389
      %v3391 = vpop.f32.mrb[0].mxu0
      %3392 = vmatprep.mubr.f32.mxu0 0.0
      %3393 = vmatmul.mubr.f32.gmra.mrb[0].mxu0 %v3198
      %v3394 = vpop.f32.mrb[0].mxu0
      %v3395 = vadd.f32 0.0, %v3394
      %v3396 = vpop.f32.mrb[0].mxu0
      %3397 = vmatprep.mubr.f32.mxu0 0.0
      %3398 = vmatmul.mubr.f32.gmra.mrb[0].mxu0 %v3201
      %v3399 = vpop.f32.mrb[0].mxu0
      %v3400 = vadd.f32 0.0, %v3399
      %v3401 = vpop.f32.mrb[0].mxu0
      %3402 = vmatprep.mubr.f32.mxu0 0.0
      %3403 = vmatmul.mubr.f32.gmra.mrb[0].mxu0 %v3204
      %v3404 = vpop.f32.mrb[0].mxu0
      %v3405 = vadd.f32 0.0, %v3404
      %v3406 = vpop.f32.mrb[0].mxu0
      %3407 = vmatprep.mubr.f32.mxu0 0.0
      %3408 = vmatmul.mubr.f32.gmra.mrb[0].mxu0 %v3207
      %v3409 = vpop.f32.mrb[0].mxu0
      %v3410 = vadd.f32 0.0, %v3409
      %v3411 = vpop.f32.mrb[0].mxu0
      %3412 = vmatprep.mubr.f32.mxu0 0.0
      %3413 = vmatmul.mubr.f32.gmra.mrb[0].mxu0 %v3210
      %v3414 = vpop.f32.mrb[0].mxu0
      %v3415 = vadd.f32 0.0, %v3414
      %v3416 = vpop.f32.mrb[0].mxu0
      %3417 = vmatprep.mubr.f32.mxu0 0.0
      %3418 = vmatmul.mubr.f32.gmra.mrb[0].mxu0 %v3213
      %v3419 = vpop.f32.mrb[0].mxu0
      %v3420 = vadd.f32 0.0, %v3419
      %v3421 = vpop.f32.mrb[0].mxu0
      %3422 = vmatprep.mubr.f32.mxu0 0.0
      %3423 = vmatmul.mubr.f32.gmra.mrb[0].mxu0 %v3216
      %v3424 = vpop.f32.mrb[0].mxu0
      %v3425 = vadd.f32 0.0, %v3424
      %v3426 = vpop.f32.mrb[0].mxu0
      %3427 = vmatprep.mubr.f32.mxu0 0.0
      %3428 = vmatmul.mubr.f32.gmra.mrb[0].mxu0 %v3219
      %v3429 = vpop.f32.mrb[0].mxu0
      %v3430 = vadd.f32 0.0, %v3429
      %v3431 = vpop.f32.mrb[0].mxu0
      %3432 = vmatprep.mubr.f32.mxu0 0.0
      %3433 = vmatmul.mubr.f32.gmra.mrb[0].mxu0 %v3222
      %v3434 = vpop.f32.mrb[0].mxu0
      %v3435 = vadd.f32 0.0, %v3434
      %v3436 = vpop.f32.mrb[0].mxu0
      %3437 = vmatprep.mubr.f32.mxu0 0.0
      %3438 = vmatmul.mubr.f32.gmra.mrb[0].mxu0 %v3225
      %v3439 = vpop.f32.mrb[0].mxu0
      %v3440 = vadd.f32 0.0, %v3439
      %v3441 = vpop.f32.mrb[0].mxu0
      %3442 = vmatprep.mubr.f32.mxu0 0.0
      %3443 = vmatmul.mubr.f32.gmra.mrb[0].mxu0 %v3228
      %v3444 = vpop.f32.mrb[0].mxu0
      %v3445 = vadd.f32 0.0, %v3444
      %v3446 = vpop.f32.mrb[0].mxu0
      %3447 = vmatprep.mubr.f32.mxu0 0.0
      %3448 = vmatmul.mubr.f32.gmra.mrb[0].mxu0 %v3231
      %v3449 = vpop.f32.mrb[0].mxu0
      %v3450 = vadd.f32 0.0, %v3449
      %v3451 = vpop.f32.mrb[0].mxu0
      %3452 = vmatprep.mubr.f32.mxu0 0.0
      %3453 = vmatmul.mubr.f32.gmra.mrb[0].mxu0 %v3234
      %v3454 = vpop.f32.mrb[0].mxu0
      %v3455 = vadd.f32 0.0, %v3454
      %v3456 = vpop.f32.mrb[0].mxu0
      %3457 = vmatprep.mubr.f32.mxu0 0.0
      %3458 = vmatmul.mubr.f32.gmra.mrb[0].mxu0 %v3237
      %v3459 = vpop.f32.mrb[0].mxu0
      %v3460 = vadd.f32 0.0, %v3459
      %v3461 = vpop.f32.mrb[0].mxu0
      %3462 = vmatprep.mubr.f32.mxu0 0.0
      %3463 = vmatmul.mubr.f32.gmra.mrb[0].mxu0 %v3240
      %v3464 = vpop.f32.mrb[0].mxu0
      %v3465 = vadd.f32 0.0, %v3464
      %v3466 = vpop.f32.mrb[0].mxu0
      %3467 = vmatprep.mubr.f32.mxu0 0.0
      %3468 = vmatmul.mubr.f32.gmra.mrb[0].mxu0 %v3243
      %v3469 = vpop.f32.mrb[0].mxu0
      %v3470 = vadd.f32 0.0, %v3469
      %v3471 = vpop.f32.mrb[0].mxu0
      %3472 = vmatprep.mubr.f32.mxu0 0.0
      %3473 = vmatmul.mubr.f32.gmra.mrb[0].mxu0 %v3246
      %v3474 = vpop.f32.mrb[0].mxu0
      %v3475 = vadd.f32 0.0, %v3474
      %v3476 = vpop.f32.mrb[0].mxu0
      %3477 = vmatprep.mubr.f32.mxu0 0.0
      %3478 = vmatmul.mubr.f32.gmra.mrb[0].mxu0 %v3249
      %v3479 = vpop.f32.mrb[0].mxu0
      %v3480 = vadd.f32 0.0, %v3479
      %v3481 = vpop.f32.mrb[0].mxu0
      %3482 = vmatprep.mubr.f32.mxu0 0.0
      %3483 = vmatmul.mubr.f32.gmra.mrb[0].mxu0 %v3252
      %v3484 = vpop.f32.mrb[0].mxu0
      %v3485 = vadd.f32 0.0, %v3484
      %v3486 = vpop.f32.mrb[0].mxu0
      %3487 = vmatprep.mubr.f32.mxu0 0.0
      %3488 = vmatmul.mubr.f32.gmra.mrb[0].mxu0 %v3255
      %v3489 = vpop.f32.mrb[0].mxu0
      %v3490 = vadd.f32 0.0, %v3489
      %v3491 = vpop.f32.mrb[0].mxu0
      %3492 = vmatprep.mubr.f32.mxu0 0.0
      %3493 = vmatmul.mubr.f32.gmra.mrb[0].mxu0 %v3258
      %v3494 = vpop.f32.mrb[0].mxu0
      %v3495 = vadd.f32 0.0, %v3494
      %v3496 = vpop.f32.mrb[0].mxu0
      %3497 = vmatprep.mubr.f32.mxu0 0.0
      %3498 = vmatmul.mubr.f32.gmra.mrb[0].mxu0 %v3261
      %v3499 = vpop.f32.mrb[0].mxu0
      %v3500 = vadd.f32 0.0, %v3499
      %v3501 = vpop.f32.mrb[0].mxu0
      %3502 = vmatprep.mubr.f32.mxu0 0.0
      %3503 = vmatmul.mubr.f32.gmra.mrb[0].mxu0 %v3264
      %v3504 = vpop.f32.mrb[0].mxu0
      %v3505 = vadd.f32 0.0, %v3504
      %v3506 = vpop.f32.mrb[0].mxu0
      %3507 = vmatprep.mubr.f32.mxu0 0.0
      %3508 = vmatmul.mubr.f32.gmra.mrb[0].mxu0 %v3267
      %v3509 = vpop.f32.mrb[0].mxu0
      %v3510 = vadd.f32 0.0, %v3509
      %v3511 = vpop.f32.mrb[0].mxu0
      %3512 = vmatprep.mubr.f32.mxu0 0.0
      %3513 = vmatmul.mubr.f32.gmra.mrb[0].mxu0 %v3270
      %v3514 = vpop.f32.mrb[0].mxu0
      %v3515 = vadd.f32 0.0, %v3514
      %v3516 = vpop.f32.mrb[0].mxu0
      %3517 = vmatprep.mubr.f32.mxu0 0.0
      %3518 = vmatmul.mubr.f32.gmra.mrb[0].mxu0 %v3273
      %v3519 = vpop.f32.mrb[0].mxu0
      %v3520 = vadd.f32 0.0, %v3519
      %v3521 = vpop.f32.mrb[0].mxu0
      %3522 = vmatprep.mubr.f32.mxu0 0.0
      %3523 = vmatmul.mubr.f32.gmra.mrb[0].mxu0 %v3276
      %v3524 = vpop.f32.mrb[0].mxu0
      %v3525 = vadd.f32 0.0, %v3524
      %v3526 = vpop.f32.mrb[0].mxu0
      %3527 = vmatprep.mubr.f32.mxu0 0.0
      %3528 = vmatmul.mubr.f32.gmra.mrb[0].mxu0 %v3279
      %v3529 = vpop.f32.mrb[0].mxu0
      %v3530 = vadd.f32 0.0, %v3529
      %v3531 = vpop.f32.mrb[0].mxu0
      %3532 = vmatprep.mubr.f32.mxu0 0.0
      %3533 = vmatmul.mubr.f32.gmra.mrb[0].mxu0 %v3282
      %v3534 = vpop.f32.mrb[0].mxu0
      %v3535 = vadd.f32 0.0, %v3534
      %v3536 = vpop.f32.mrb[0].mxu0
      %3537 = vmatprep.mubr.f32.mxu0 0.0
      %3538 = vmatmul.mubr.f32.gmra.mrb[0].mxu0 %v3285
      %v3539 = vpop.f32.mrb[0].mxu0
      %v3540 = vadd.f32 0.0, %v3539
      %v3541 = vpop.f32.mrb[0].mxu0
      %3542 = vmatprep.mubr.f32.mxu0 0.0
      %3543 = vmatmul.mubr.f32.gmra.mrb[0].mxu0 %v3288
      %v3544 = vpop.f32.mrb[0].mxu0
      %v3545 = vadd.f32 0.0, %v3544
      %v3546 = vpop.f32.mrb[0].mxu0
      %3547 = vmatprep.mubr.f32.mxu0 0.0
      %3548 = vmatmul.mubr.f32.gmra.mrb[0].mxu0 %v3291
      %v3549 = vpop.f32.mrb[0].mxu0
      %v3550 = vadd.f32 0.0, %v3549
      %v3551 = vpop.f32.mrb[0].mxu0
      %3552 = vmatprep.mubr.f32.mxu0 0.0
      %3553 = vmatmul.mubr.f32.gmra.mrb[0].mxu0 %v3294
      %v3554 = vpop.f32.mrb[0].mxu0
      %v3555 = vadd.f32 0.0, %v3554
      %v3556 = vpop.f32.mrb[0].mxu0
      %3557 = vmatprep.mubr.f32.mxu0 0.0
      %3558 = vmatmul.mubr.f32.gmra.mrb[0].mxu0 %v3297
      %v3559 = vpop.f32.mrb[0].mxu0
      %v3560 = vadd.f32 0.0, %v3559
      %v3561 = vpop.f32.mrb[0].mxu0
      %3562 = vmatprep.mubr.f32.mxu0 0.0
      %3563 = vmatmul.mubr.f32.gmra.mrb[0].mxu0 %v3300
      %v3564 = vpop.f32.mrb[0].mxu0
      %v3565 = vadd.f32 0.0, %v3564
      %v3566 = vpop.f32.mrb[0].mxu0
      %3567 = vmatprep.mubr.f32.mxu0 0.0
      %3568 = vmatmul.mubr.f32.gmra.mrb[0].mxu0 %v3303
      %v3569 = vpop.f32.mrb[0].mxu0
      %v3570 = vadd.f32 0.0, %v3569
      %v3571 = vpop.f32.mrb[0].mxu0
      %3572 = vmatprep.mubr.f32.mxu0 0.0
      %3573 = vmatmul.mubr.f32.gmra.mrb[0].mxu0 %v3306
      %v3574 = vpop.f32.mrb[0].mxu0
      %v3575 = vadd.f32 0.0, %v3574
      %v3576 = vpop.f32.mrb[0].mxu0
      %3577 = vdwg.mxu0
      %v3578 = vadd.f32 %v3094, %v3375
      %v3579 = vadd.f32 %v3095, %v3380
      %v3580 = vadd.f32 %v3096, %v3385
      %v3581 = vadd.f32 %v3097, %v3390
      %v3582 = vadd.f32 %v3098, %v3395
      %v3583 = vadd.f32 %v3099, %v3400
      %v3584 = vadd.f32 %v3100, %v3405
      %v3585 = vadd.f32 %v3101, %v3410
      %v3586 = vadd.f32 %v3102, %v3415
      %v3587 = vadd.f32 %v3103, %v3420
      %v3588 = vadd.f32 %v3104, %v3425
      %v3589 = vadd.f32 %v3105, %v3430
      %v3590 = vadd.f32 %v3106, %v3435
      %v3591 = vadd.f32 %v3107, %v3440
      %v3592 = vadd.f32 %v3108, %v3445
      %v3593 = vadd.f32 %v3109, %v3450
      %v3594 = vadd.f32 %v3110, %v3455
      %v3595 = vadd.f32 %v3111, %v3460
      %v3596 = vadd.f32 %v3112, %v3465
      %v3597 = vadd.f32 %v3113, %v3470
      %v3598 = vadd.f32 %v3114, %v3475
      %v3599 = vadd.f32 %v3115, %v3480
      %v3600 = vadd.f32 %v3116, %v3485
      %v3601 = vadd.f32 %v3117, %v3490
      %v3602 = vadd.f32 %v3118, %v3495
      %v3603 = vadd.f32 %v3119, %v3500
      %v3604 = vadd.f32 %v3120, %v3505
      %v3605 = vadd.f32 %v3121, %v3510
      %v3606 = vadd.f32 %v3122, %v3515
      %v3607 = vadd.f32 %v3123, %v3520
      %v3608 = vadd.f32 %v3124, %v3525
      %v3609 = vadd.f32 %v3125, %v3530
      %v3610 = vadd.f32 %v3126, %v3535
      %v3611 = vadd.f32 %v3127, %v3540
      %v3612 = vadd.f32 %v3128, %v3545
      %v3613 = vadd.f32 %v3129, %v3550
      %v3614 = vadd.f32 %v3130, %v3555
      %v3615 = vadd.f32 %v3131, %v3560
      %v3616 = vadd.f32 %v3132, %v3565
      %v3617 = vadd.f32 %v3133, %v3570
      %v3618 = vadd.f32 %v3134, %v3575
      %v3619 = vld [vmem:[#allocation3 + $0x12] sm:$0xff]
      %v3620 = vld [vmem:[#allocation3 + $0x1a] sm:$0xff]
      %v3621 = vld [vmem:[#allocation3 + $0x22] sm:$0xff]
      %v3622 = vld [vmem:[#allocation3 + $0x2a] sm:$0xff]
      %v3623 = vld [vmem:[#allocation3 + $0x32] sm:$0xff]
      %v3624 = vld [vmem:[#allocation3 + $0x3a] sm:$0xff]
      %v3625 = vld [vmem:[#allocation3 + $0x42] sm:$0xff]
      %v3626 = vld [vmem:[#allocation3 + $0x4a] sm:$0xff]
      %v3627 = vld [vmem:[#allocation3 + $0x52] sm:$0xff]
      %v3628 = vld [vmem:[#allocation3 + $0x5a] sm:$0xff]
      %v3629 = vld [vmem:[#allocation3 + $0x62] sm:$0xff]
      %v3630 = vld [vmem:[#allocation3 + $0x6a] sm:$0xff]
      %v3631 = vld [vmem:[#allocation3 + $0x72] sm:$0xff]
      %v3632 = vld [vmem:[#allocation3 + $0x7a] sm:$0xff]
      %v3633 = vld [vmem:[#allocation3 + $0x82] sm:$0xff]
      %v3634 = vld [vmem:[#allocation3 + $0x8a] sm:$0xff]
      %v3635 = vld [vmem:[#allocation3 + $0x92] sm:$0xff]
      %v3636 = vld [vmem:[#allocation3 + $0x9a] sm:$0xff]
      %v3637 = vld [vmem:[#allocation3 + $0xa2] sm:$0xff]
      %v3638 = vld [vmem:[#allocation3 + $0xaa] sm:$0xff]
      %v3639 = vld [vmem:[#allocation3 + $0xb2] sm:$0xff]
      %v3640 = vld [vmem:[#allocation3 + $0xba] sm:$0xff]
      %v3641 = vld [vmem:[#allocation3 + $0xc2] sm:$0xff]
      %v3642 = vld [vmem:[#allocation3 + $0xca] sm:$0xff]
      %v3643 = vld [vmem:[#allocation3 + $0xd2] sm:$0xff]
      %v3644 = vld [vmem:[#allocation3 + $0xda] sm:$0xff]
      %v3645 = vld [vmem:[#allocation3 + $0xe2] sm:$0xff]
      %v3646 = vld [vmem:[#allocation3 + $0xea] sm:$0xff]
      %v3647 = vld [vmem:[#allocation3 + $0xf2] sm:$0xff]
      %v3648 = vld [vmem:[#allocation3 + $0xfa] sm:$0xff]
      %v3649 = vld [vmem:[#allocation3 + $0x102] sm:$0xff]
      %v3650 = vld [vmem:[#allocation3 + $0x10a] sm:$0xff]
      %v3651 = vld [vmem:[#allocation3 + $0x112] sm:$0xff]
      %v3652 = vld [vmem:[#allocation3 + $0x11a] sm:$0xff]
      %v3653 = vld [vmem:[#allocation3 + $0x122] sm:$0xff]
      %v3654 = vld [vmem:[#allocation3 + $0x12a] sm:$0xff]
      %v3655 = vld [vmem:[#allocation3 + $0x132] sm:$0xff]
      %v3656 = vld [vmem:[#allocation3 + $0x13a] sm:$0xff]
      %v3657 = vld [vmem:[#allocation3 + $0x142] sm:$0xff]
      %v3658 = vld [vmem:[#allocation3 + $0x14a] sm:$0xff]
      %v3659 = vld [vmem:[#allocation3 + $0x152] sm:$0xf]
      %s3660 = scalar_lea.vmem %s9, 192
      %v3661 = vld [vmem:[%s3660] sm:$0xff]
      %v3662 = vld [vmem:[%s3660 + $0x8] sm:$0xff]
      %v3663 = vld [vmem:[%s3660 + $0x10] sm:$0xff]
      %v3664 = vld [vmem:[%s3660 + $0x18] sm:$0xff]
      %v3665 = vld [vmem:[%s3660 + $0x20] sm:$0xff]
      %v3666 = vld [vmem:[%s3660 + $0x28] sm:$0xff]
      %v3667 = vld [vmem:[%s3660 + $0x30] sm:$0xff]
      %v3668 = vld [vmem:[%s3660 + $0x38] sm:$0xff]
      %v3670 = vsel %vm787, %v3619, 0
      %v3673 = vsel %vm787, %v3620, 0
      %v3676 = vsel %vm787, %v3621, 0
      %v3679 = vsel %vm787, %v3622, 0
      %v3682 = vsel %vm787, %v3623, 0
      %v3685 = vsel %vm787, %v3624, 0
      %v3688 = vsel %vm787, %v3625, 0
      %v3691 = vsel %vm787, %v3626, 0
      %v3694 = vsel %vm787, %v3627, 0
      %v3697 = vsel %vm787, %v3628, 0
      %v3700 = vsel %vm787, %v3629, 0
      %v3703 = vsel %vm787, %v3630, 0
      %v3706 = vsel %vm787, %v3631, 0
      %v3709 = vsel %vm787, %v3632, 0
      %v3712 = vsel %vm787, %v3633, 0
      %v3715 = vsel %vm787, %v3634, 0
      %v3718 = vsel %vm787, %v3635, 0
      %v3721 = vsel %vm787, %v3636, 0
      %v3724 = vsel %vm787, %v3637, 0
      %v3727 = vsel %vm787, %v3638, 0
      %v3730 = vsel %vm787, %v3639, 0
      %v3733 = vsel %vm787, %v3640, 0
      %v3736 = vsel %vm787, %v3641, 0
      %v3739 = vsel %vm787, %v3642, 0
      %v3742 = vsel %vm787, %v3643, 0
      %v3745 = vsel %vm787, %v3644, 0
      %v3748 = vsel %vm787, %v3645, 0
      %v3751 = vsel %vm787, %v3646, 0
      %v3754 = vsel %vm787, %v3647, 0
      %v3757 = vsel %vm787, %v3648, 0
      %v3760 = vsel %vm787, %v3649, 0
      %v3763 = vsel %vm787, %v3650, 0
      %v3766 = vsel %vm787, %v3651, 0
      %v3769 = vsel %vm787, %v3652, 0
      %v3772 = vsel %vm787, %v3653, 0
      %v3775 = vsel %vm787, %v3654, 0
      %v3778 = vsel %vm787, %v3655, 0
      %v3781 = vsel %vm787, %v3656, 0
      %v3784 = vsel %vm787, %v3657, 0
      %v3787 = vsel %vm787, %v3658, 0
      %v3790 = vsel %vm787, %v3659, 0
      %3792 = vmatprep.subr.mxu0 0.0
      %3793 = vmatpush1.msra.mxu0 %v3661
      %3794 = vmatprep.subr.mxu0 0.0
      %3795 = vmatpush1.msra.mxu0 %v3662
      %3796 = vmatprep.subr.mxu0 0.0
      %3797 = vmatpush1.msra.mxu0 %v3663
      %3798 = vmatprep.subr.mxu0 0.0
      %3799 = vmatpush1.msra.mxu0 %v3664
      %3800 = vmatprep.subr.mxu0 0.0
      %3801 = vmatpush1.msra.mxu0 %v3665
      %3802 = vmatprep.subr.mxu0 0.0
      %3803 = vmatpush1.msra.mxu0 %v3666
      %3804 = vmatprep.subr.mxu0 0.0
      %3805 = vmatpush1.msra.mxu0 %v3667
      %3806 = vmatprep.subr.mxu0 0.0
      %3807 = vmatpush1.msra.mxu0 %v3668
      %3808 = vmatprep.subr.mxu0 0.0
      %3809 = vmatpush1.msra.mxu0 0.0
      %3810 = vmatprep.subr.mxu0 0.0
      %3811 = vmatpush1.msra.mxu0 0.0
      %3812 = vmatprep.subr.mxu0 0.0
      %3813 = vmatpush1.msra.mxu0 0.0
      %3814 = vmatprep.subr.mxu0 0.0
      %3815 = vmatpush1.msra.mxu0 0.0
      %3816 = vmatprep.subr.mxu0 0.0
      %3817 = vmatpush1.msra.mxu0 0.0
      %3818 = vmatprep.subr.mxu0 0.0
      %3819 = vmatpush1.msra.mxu0 0.0
      %3820 = vmatprep.subr.mxu0 0.0
      %3821 = vmatpush1.msra.mxu0 0.0
      %3822 = vmatprep.subr.mxu0 0.0
      %3823 = vmatpush1.msra.mxu0 0.0
      %3824 = vmatprep.subr.mxu0 0.0
      %3825 = vmatpush1.msra.mxu0 0.0
      %3826 = vmatprep.subr.mxu0 0.0
      %3827 = vmatpush1.msra.mxu0 0.0
      %3828 = vmatprep.subr.mxu0 0.0
      %3829 = vmatpush1.msra.mxu0 0.0
      %3830 = vmatprep.subr.mxu0 0.0
      %3831 = vmatpush1.msra.mxu0 0.0
      %3832 = vmatprep.subr.mxu0 0.0
      %3833 = vmatpush1.msra.mxu0 0.0
      %3834 = vmatprep.subr.mxu0 0.0
      %3835 = vmatpush1.msra.mxu0 0.0
      %3836 = vmatprep.subr.mxu0 0.0
      %3837 = vmatpush1.msra.mxu0 0.0
      %3838 = vmatprep.subr.mxu0 0.0
      %3839 = vmatpush1.msra.mxu0 0.0
      %3840 = vmatprep.subr.mxu0 0.0
      %3841 = vmatpush1.msra.mxu0 0.0
      %3842 = vmatprep.subr.mxu0 0.0
      %3843 = vmatpush1.msra.mxu0 0.0
      %3844 = vmatprep.subr.mxu0 0.0
      %3845 = vmatpush1.msra.mxu0 0.0
      %3846 = vmatprep.subr.mxu0 0.0
      %3847 = vmatpush1.msra.mxu0 0.0
      %3848 = vmatprep.subr.mxu0 0.0
      %3849 = vmatpush1.msra.mxu0 0.0
      %3850 = vmatprep.subr.mxu0 0.0
      %3851 = vmatpush1.msra.mxu0 0.0
      %3852 = vmatprep.subr.mxu0 0.0
      %3853 = vmatpush1.msra.mxu0 0.0
      %3854 = vmatprep.subr.mxu0 0.0
      %3855 = vmatpush1.msra.mxu0 0.0
      %3856 = vmatprep.mubr.f32.mxu0 0.0
      %3857 = vmatmul.mubr.f32.gmra.mrb[0].mxu0 %v3670
      %v3858 = vpop.f32.mrb[0].mxu0
      %v3859 = vadd.f32 0.0, %v3858
      %v3860 = vpop.f32.mrb[0].mxu0
      %3861 = vmatprep.mubr.f32.mxu0 0.0
      %3862 = vmatmul.mubr.f32.gmra.mrb[0].mxu0 %v3673
      %v3863 = vpop.f32.mrb[0].mxu0
      %v3864 = vadd.f32 0.0, %v3863
      %v3865 = vpop.f32.mrb[0].mxu0
      %3866 = vmatprep.mubr.f32.mxu0 0.0
      %3867 = vmatmul.mubr.f32.gmra.mrb[0].mxu0 %v3676
      %v3868 = vpop.f32.mrb[0].mxu0
      %v3869 = vadd.f32 0.0, %v3868
      %v3870 = vpop.f32.mrb[0].mxu0
      %3871 = vmatprep.mubr.f32.mxu0 0.0
      %3872 = vmatmul.mubr.f32.gmra.mrb[0].mxu0 %v3679
      %v3873 = vpop.f32.mrb[0].mxu0
      %v3874 = vadd.f32 0.0, %v3873
      %v3875 = vpop.f32.mrb[0].mxu0
      %3876 = vmatprep.mubr.f32.mxu0 0.0
      %3877 = vmatmul.mubr.f32.gmra.mrb[0].mxu0 %v3682
      %v3878 = vpop.f32.mrb[0].mxu0
      %v3879 = vadd.f32 0.0, %v3878
      %v3880 = vpop.f32.mrb[0].mxu0
      %3881 = vmatprep.mubr.f32.mxu0 0.0
      %3882 = vmatmul.mubr.f32.gmra.mrb[0].mxu0 %v3685
      %v3883 = vpop.f32.mrb[0].mxu0
      %v3884 = vadd.f32 0.0, %v3883
      %v3885 = vpop.f32.mrb[0].mxu0
      %3886 = vmatprep.mubr.f32.mxu0 0.0
      %3887 = vmatmul.mubr.f32.gmra.mrb[0].mxu0 %v3688
      %v3888 = vpop.f32.mrb[0].mxu0
      %v3889 = vadd.f32 0.0, %v3888
      %v3890 = vpop.f32.mrb[0].mxu0
      %3891 = vmatprep.mubr.f32.mxu0 0.0
      %3892 = vmatmul.mubr.f32.gmra.mrb[0].mxu0 %v3691
      %v3893 = vpop.f32.mrb[0].mxu0
      %v3894 = vadd.f32 0.0, %v3893
      %v3895 = vpop.f32.mrb[0].mxu0
      %3896 = vmatprep.mubr.f32.mxu0 0.0
      %3897 = vmatmul.mubr.f32.gmra.mrb[0].mxu0 %v3694
      %v3898 = vpop.f32.mrb[0].mxu0
      %v3899 = vadd.f32 0.0, %v3898
      %v3900 = vpop.f32.mrb[0].mxu0
      %3901 = vmatprep.mubr.f32.mxu0 0.0
      %3902 = vmatmul.mubr.f32.gmra.mrb[0].mxu0 %v3697
      %v3903 = vpop.f32.mrb[0].mxu0
      %v3904 = vadd.f32 0.0, %v3903
      %v3905 = vpop.f32.mrb[0].mxu0
      %3906 = vmatprep.mubr.f32.mxu0 0.0
      %3907 = vmatmul.mubr.f32.gmra.mrb[0].mxu0 %v3700
      %v3908 = vpop.f32.mrb[0].mxu0
      %v3909 = vadd.f32 0.0, %v3908
      %v3910 = vpop.f32.mrb[0].mxu0
      %3911 = vmatprep.mubr.f32.mxu0 0.0
      %3912 = vmatmul.mubr.f32.gmra.mrb[0].mxu0 %v3703
      %v3913 = vpop.f32.mrb[0].mxu0
      %v3914 = vadd.f32 0.0, %v3913
      %v3915 = vpop.f32.mrb[0].mxu0
      %3916 = vmatprep.mubr.f32.mxu0 0.0
      %3917 = vmatmul.mubr.f32.gmra.mrb[0].mxu0 %v3706
      %v3918 = vpop.f32.mrb[0].mxu0
      %v3919 = vadd.f32 0.0, %v3918
      %v3920 = vpop.f32.mrb[0].mxu0
      %3921 = vmatprep.mubr.f32.mxu0 0.0
      %3922 = vmatmul.mubr.f32.gmra.mrb[0].mxu0 %v3709
      %v3923 = vpop.f32.mrb[0].mxu0
      %v3924 = vadd.f32 0.0, %v3923
      %v3925 = vpop.f32.mrb[0].mxu0
      %3926 = vmatprep.mubr.f32.mxu0 0.0
      %3927 = vmatmul.mubr.f32.gmra.mrb[0].mxu0 %v3712
      %v3928 = vpop.f32.mrb[0].mxu0
      %v3929 = vadd.f32 0.0, %v3928
      %v3930 = vpop.f32.mrb[0].mxu0
      %3931 = vmatprep.mubr.f32.mxu0 0.0
      %3932 = vmatmul.mubr.f32.gmra.mrb[0].mxu0 %v3715
      %v3933 = vpop.f32.mrb[0].mxu0
      %v3934 = vadd.f32 0.0, %v3933
      %v3935 = vpop.f32.mrb[0].mxu0
      %3936 = vmatprep.mubr.f32.mxu0 0.0
      %3937 = vmatmul.mubr.f32.gmra.mrb[0].mxu0 %v3718
      %v3938 = vpop.f32.mrb[0].mxu0
      %v3939 = vadd.f32 0.0, %v3938
      %v3940 = vpop.f32.mrb[0].mxu0
      %3941 = vmatprep.mubr.f32.mxu0 0.0
      %3942 = vmatmul.mubr.f32.gmra.mrb[0].mxu0 %v3721
      %v3943 = vpop.f32.mrb[0].mxu0
      %v3944 = vadd.f32 0.0, %v3943
      %v3945 = vpop.f32.mrb[0].mxu0
      %3946 = vmatprep.mubr.f32.mxu0 0.0
      %3947 = vmatmul.mubr.f32.gmra.mrb[0].mxu0 %v3724
      %v3948 = vpop.f32.mrb[0].mxu0
      %v3949 = vadd.f32 0.0, %v3948
      %v3950 = vpop.f32.mrb[0].mxu0
      %3951 = vmatprep.mubr.f32.mxu0 0.0
      %3952 = vmatmul.mubr.f32.gmra.mrb[0].mxu0 %v3727
      %v3953 = vpop.f32.mrb[0].mxu0
      %v3954 = vadd.f32 0.0, %v3953
      %v3955 = vpop.f32.mrb[0].mxu0
      %3956 = vmatprep.mubr.f32.mxu0 0.0
      %3957 = vmatmul.mubr.f32.gmra.mrb[0].mxu0 %v3730
      %v3958 = vpop.f32.mrb[0].mxu0
      %v3959 = vadd.f32 0.0, %v3958
      %v3960 = vpop.f32.mrb[0].mxu0
      %3961 = vmatprep.mubr.f32.mxu0 0.0
      %3962 = vmatmul.mubr.f32.gmra.mrb[0].mxu0 %v3733
      %v3963 = vpop.f32.mrb[0].mxu0
      %v3964 = vadd.f32 0.0, %v3963
      %v3965 = vpop.f32.mrb[0].mxu0
      %3966 = vmatprep.mubr.f32.mxu0 0.0
      %3967 = vmatmul.mubr.f32.gmra.mrb[0].mxu0 %v3736
      %v3968 = vpop.f32.mrb[0].mxu0
      %v3969 = vadd.f32 0.0, %v3968
      %v3970 = vpop.f32.mrb[0].mxu0
      %3971 = vmatprep.mubr.f32.mxu0 0.0
      %3972 = vmatmul.mubr.f32.gmra.mrb[0].mxu0 %v3739
      %v3973 = vpop.f32.mrb[0].mxu0
      %v3974 = vadd.f32 0.0, %v3973
      %v3975 = vpop.f32.mrb[0].mxu0
      %3976 = vmatprep.mubr.f32.mxu0 0.0
      %3977 = vmatmul.mubr.f32.gmra.mrb[0].mxu0 %v3742
      %v3978 = vpop.f32.mrb[0].mxu0
      %v3979 = vadd.f32 0.0, %v3978
      %v3980 = vpop.f32.mrb[0].mxu0
      %3981 = vmatprep.mubr.f32.mxu0 0.0
      %3982 = vmatmul.mubr.f32.gmra.mrb[0].mxu0 %v3745
      %v3983 = vpop.f32.mrb[0].mxu0
      %v3984 = vadd.f32 0.0, %v3983
      %v3985 = vpop.f32.mrb[0].mxu0
      %3986 = vmatprep.mubr.f32.mxu0 0.0
      %3987 = vmatmul.mubr.f32.gmra.mrb[0].mxu0 %v3748
      %v3988 = vpop.f32.mrb[0].mxu0
      %v3989 = vadd.f32 0.0, %v3988
      %v3990 = vpop.f32.mrb[0].mxu0
      %3991 = vmatprep.mubr.f32.mxu0 0.0
      %3992 = vmatmul.mubr.f32.gmra.mrb[0].mxu0 %v3751
      %v3993 = vpop.f32.mrb[0].mxu0
      %v3994 = vadd.f32 0.0, %v3993
      %v3995 = vpop.f32.mrb[0].mxu0
      %3996 = vmatprep.mubr.f32.mxu0 0.0
      %3997 = vmatmul.mubr.f32.gmra.mrb[0].mxu0 %v3754
      %v3998 = vpop.f32.mrb[0].mxu0
      %v3999 = vadd.f32 0.0, %v3998
      %v4000 = vpop.f32.mrb[0].mxu0
      %4001 = vmatprep.mubr.f32.mxu0 0.0
      %4002 = vmatmul.mubr.f32.gmra.mrb[0].mxu0 %v3757
      %v4003 = vpop.f32.mrb[0].mxu0
      %v4004 = vadd.f32 0.0, %v4003
      %v4005 = vpop.f32.mrb[0].mxu0
      %4006 = vmatprep.mubr.f32.mxu0 0.0
      %4007 = vmatmul.mubr.f32.gmra.mrb[0].mxu0 %v3760
      %v4008 = vpop.f32.mrb[0].mxu0
      %v4009 = vadd.f32 0.0, %v4008
      %v4010 = vpop.f32.mrb[0].mxu0
      %4011 = vmatprep.mubr.f32.mxu0 0.0
      %4012 = vmatmul.mubr.f32.gmra.mrb[0].mxu0 %v3763
      %v4013 = vpop.f32.mrb[0].mxu0
      %v4014 = vadd.f32 0.0, %v4013
      %v4015 = vpop.f32.mrb[0].mxu0
      %4016 = vmatprep.mubr.f32.mxu0 0.0
      %4017 = vmatmul.mubr.f32.gmra.mrb[0].mxu0 %v3766
      %v4018 = vpop.f32.mrb[0].mxu0
      %v4019 = vadd.f32 0.0, %v4018
      %v4020 = vpop.f32.mrb[0].mxu0
      %4021 = vmatprep.mubr.f32.mxu0 0.0
      %4022 = vmatmul.mubr.f32.gmra.mrb[0].mxu0 %v3769
      %v4023 = vpop.f32.mrb[0].mxu0
      %v4024 = vadd.f32 0.0, %v4023
      %v4025 = vpop.f32.mrb[0].mxu0
      %4026 = vmatprep.mubr.f32.mxu0 0.0
      %4027 = vmatmul.mubr.f32.gmra.mrb[0].mxu0 %v3772
      %v4028 = vpop.f32.mrb[0].mxu0
      %v4029 = vadd.f32 0.0, %v4028
      %v4030 = vpop.f32.mrb[0].mxu0
      %4031 = vmatprep.mubr.f32.mxu0 0.0
      %4032 = vmatmul.mubr.f32.gmra.mrb[0].mxu0 %v3775
      %v4033 = vpop.f32.mrb[0].mxu0
      %v4034 = vadd.f32 0.0, %v4033
      %v4035 = vpop.f32.mrb[0].mxu0
      %4036 = vmatprep.mubr.f32.mxu0 0.0
      %4037 = vmatmul.mubr.f32.gmra.mrb[0].mxu0 %v3778
      %v4038 = vpop.f32.mrb[0].mxu0
      %v4039 = vadd.f32 0.0, %v4038
      %v4040 = vpop.f32.mrb[0].mxu0
      %4041 = vmatprep.mubr.f32.mxu0 0.0
      %4042 = vmatmul.mubr.f32.gmra.mrb[0].mxu0 %v3781
      %v4043 = vpop.f32.mrb[0].mxu0
      %v4044 = vadd.f32 0.0, %v4043
      %v4045 = vpop.f32.mrb[0].mxu0
      %4046 = vmatprep.mubr.f32.mxu0 0.0
      %4047 = vmatmul.mubr.f32.gmra.mrb[0].mxu0 %v3784
      %v4048 = vpop.f32.mrb[0].mxu0
      %v4049 = vadd.f32 0.0, %v4048
      %v4050 = vpop.f32.mrb[0].mxu0
      %4051 = vmatprep.mubr.f32.mxu0 0.0
      %4052 = vmatmul.mubr.f32.gmra.mrb[0].mxu0 %v3787
      %v4053 = vpop.f32.mrb[0].mxu0
      %v4054 = vadd.f32 0.0, %v4053
      %v4055 = vpop.f32.mrb[0].mxu0
      %4056 = vmatprep.mubr.f32.mxu0 0.0
      %4057 = vmatmul.mubr.f32.gmra.mrb[0].mxu0 %v3790
      %v4058 = vpop.f32.mrb[0].mxu0
      %v4059 = vadd.f32 0.0, %v4058
      %v4060 = vpop.f32.mrb[0].mxu0
      %4061 = vdwg.mxu0
      %v4062 = vadd.f32 %v3578, %v3859
      %v4063 = vadd.f32 %v3579, %v3864
      %v4064 = vadd.f32 %v3580, %v3869
      %v4065 = vadd.f32 %v3581, %v3874
      %v4066 = vadd.f32 %v3582, %v3879
      %v4067 = vadd.f32 %v3583, %v3884
      %v4068 = vadd.f32 %v3584, %v3889
      %v4069 = vadd.f32 %v3585, %v3894
      %v4070 = vadd.f32 %v3586, %v3899
      %v4071 = vadd.f32 %v3587, %v3904
      %v4072 = vadd.f32 %v3588, %v3909
      %v4073 = vadd.f32 %v3589, %v3914
      %v4074 = vadd.f32 %v3590, %v3919
      %v4075 = vadd.f32 %v3591, %v3924
      %v4076 = vadd.f32 %v3592, %v3929
      %v4077 = vadd.f32 %v3593, %v3934
      %v4078 = vadd.f32 %v3594, %v3939
      %v4079 = vadd.f32 %v3595, %v3944
      %v4080 = vadd.f32 %v3596, %v3949
      %v4081 = vadd.f32 %v3597, %v3954
      %v4082 = vadd.f32 %v3598, %v3959
      %v4083 = vadd.f32 %v3599, %v3964
      %v4084 = vadd.f32 %v3600, %v3969
      %v4085 = vadd.f32 %v3601, %v3974
      %v4086 = vadd.f32 %v3602, %v3979
      %v4087 = vadd.f32 %v3603, %v3984
      %v4088 = vadd.f32 %v3604, %v3989
      %v4089 = vadd.f32 %v3605, %v3994
      %v4090 = vadd.f32 %v3606, %v3999
      %v4091 = vadd.f32 %v3607, %v4004
      %v4092 = vadd.f32 %v3608, %v4009
      %v4093 = vadd.f32 %v3609, %v4014
      %v4094 = vadd.f32 %v3610, %v4019
      %v4095 = vadd.f32 %v3611, %v4024
      %v4096 = vadd.f32 %v3612, %v4029
      %v4097 = vadd.f32 %v3613, %v4034
      %v4098 = vadd.f32 %v3614, %v4039
      %v4099 = vadd.f32 %v3615, %v4044
      %v4100 = vadd.f32 %v3616, %v4049
      %v4101 = vadd.f32 %v3617, %v4054
      %v4102 = vadd.f32 %v3618, %v4059
      %v4103 = vld [vmem:[#allocation3 + $0x13] sm:$0xff]
      %v4104 = vld [vmem:[#allocation3 + $0x1b] sm:$0xff]
      %v4105 = vld [vmem:[#allocation3 + $0x23] sm:$0xff]
      %v4106 = vld [vmem:[#allocation3 + $0x2b] sm:$0xff]
      %v4107 = vld [vmem:[#allocation3 + $0x33] sm:$0xff]
      %v4108 = vld [vmem:[#allocation3 + $0x3b] sm:$0xff]
      %v4109 = vld [vmem:[#allocation3 + $0x43] sm:$0xff]
      %v4110 = vld [vmem:[#allocation3 + $0x4b] sm:$0xff]
      %v4111 = vld [vmem:[#allocation3 + $0x53] sm:$0xff]
      %v4112 = vld [vmem:[#allocation3 + $0x5b] sm:$0xff]
      %v4113 = vld [vmem:[#allocation3 + $0x63] sm:$0xff]
      %v4114 = vld [vmem:[#allocation3 + $0x6b] sm:$0xff]
      %v4115 = vld [vmem:[#allocation3 + $0x73] sm:$0xff]
      %v4116 = vld [vmem:[#allocation3 + $0x7b] sm:$0xff]
      %v4117 = vld [vmem:[#allocation3 + $0x83] sm:$0xff]
      %v4118 = vld [vmem:[#allocation3 + $0x8b] sm:$0xff]
      %v4119 = vld [vmem:[#allocation3 + $0x93] sm:$0xff]
      %v4120 = vld [vmem:[#allocation3 + $0x9b] sm:$0xff]
      %v4121 = vld [vmem:[#allocation3 + $0xa3] sm:$0xff]
      %v4122 = vld [vmem:[#allocation3 + $0xab] sm:$0xff]
      %v4123 = vld [vmem:[#allocation3 + $0xb3] sm:$0xff]
      %v4124 = vld [vmem:[#allocation3 + $0xbb] sm:$0xff]
      %v4125 = vld [vmem:[#allocation3 + $0xc3] sm:$0xff]
      %v4126 = vld [vmem:[#allocation3 + $0xcb] sm:$0xff]
      %v4127 = vld [vmem:[#allocation3 + $0xd3] sm:$0xff]
      %v4128 = vld [vmem:[#allocation3 + $0xdb] sm:$0xff]
      %v4129 = vld [vmem:[#allocation3 + $0xe3] sm:$0xff]
      %v4130 = vld [vmem:[#allocation3 + $0xeb] sm:$0xff]
      %v4131 = vld [vmem:[#allocation3 + $0xf3] sm:$0xff]
      %v4132 = vld [vmem:[#allocation3 + $0xfb] sm:$0xff]
      %v4133 = vld [vmem:[#allocation3 + $0x103] sm:$0xff]
      %v4134 = vld [vmem:[#allocation3 + $0x10b] sm:$0xff]
      %v4135 = vld [vmem:[#allocation3 + $0x113] sm:$0xff]
      %v4136 = vld [vmem:[#allocation3 + $0x11b] sm:$0xff]
      %v4137 = vld [vmem:[#allocation3 + $0x123] sm:$0xff]
      %v4138 = vld [vmem:[#allocation3 + $0x12b] sm:$0xff]
      %v4139 = vld [vmem:[#allocation3 + $0x133] sm:$0xff]
      %v4140 = vld [vmem:[#allocation3 + $0x13b] sm:$0xff]
      %v4141 = vld [vmem:[#allocation3 + $0x143] sm:$0xff]
      %v4142 = vld [vmem:[#allocation3 + $0x14b] sm:$0xff]
      %v4143 = vld [vmem:[#allocation3 + $0x153] sm:$0xf]
      %s4144 = scalar_lea.vmem %s9, 256
      %v4145 = vld [vmem:[%s4144] sm:$0xff]
      %v4146 = vld [vmem:[%s4144 + $0x8] sm:$0xff]
      %v4147 = vld [vmem:[%s4144 + $0x10] sm:$0xff]
      %v4148 = vld [vmem:[%s4144 + $0x18] sm:$0xff]
      %v4149 = vld [vmem:[%s4144 + $0x20] sm:$0xff]
      %v4150 = vld [vmem:[%s4144 + $0x28] sm:$0xff]
      %v4151 = vld [vmem:[%s4144 + $0x30] sm:$0xff]
      %v4152 = vld [vmem:[%s4144 + $0x38] sm:$0xff]
      %v4154 = vsel %vm787, %v4103, 0
      %v4157 = vsel %vm787, %v4104, 0
      %v4160 = vsel %vm787, %v4105, 0
      %v4163 = vsel %vm787, %v4106, 0
      %v4166 = vsel %vm787, %v4107, 0
      %v4169 = vsel %vm787, %v4108, 0
      %v4172 = vsel %vm787, %v4109, 0
      %v4175 = vsel %vm787, %v4110, 0
      %v4178 = vsel %vm787, %v4111, 0
      %v4181 = vsel %vm787, %v4112, 0
      %v4184 = vsel %vm787, %v4113, 0
      %v4187 = vsel %vm787, %v4114, 0
      %v4190 = vsel %vm787, %v4115, 0
      %v4193 = vsel %vm787, %v4116, 0
      %v4196 = vsel %vm787, %v4117, 0
      %v4199 = vsel %vm787, %v4118, 0
      %v4202 = vsel %vm787, %v4119, 0
      %v4205 = vsel %vm787, %v4120, 0
      %v4208 = vsel %vm787, %v4121, 0
      %v4211 = vsel %vm787, %v4122, 0
      %v4214 = vsel %vm787, %v4123, 0
      %v4217 = vsel %vm787, %v4124, 0
      %v4220 = vsel %vm787, %v4125, 0
      %v4223 = vsel %vm787, %v4126, 0
      %v4226 = vsel %vm787, %v4127, 0
      %v4229 = vsel %vm787, %v4128, 0
      %v4232 = vsel %vm787, %v4129, 0
      %v4235 = vsel %vm787, %v4130, 0
      %v4238 = vsel %vm787, %v4131, 0
      %v4241 = vsel %vm787, %v4132, 0
      %v4244 = vsel %vm787, %v4133, 0
      %v4247 = vsel %vm787, %v4134, 0
      %v4250 = vsel %vm787, %v4135, 0
      %v4253 = vsel %vm787, %v4136, 0
      %v4256 = vsel %vm787, %v4137, 0
      %v4259 = vsel %vm787, %v4138, 0
      %v4262 = vsel %vm787, %v4139, 0
      %v4265 = vsel %vm787, %v4140, 0
      %v4268 = vsel %vm787, %v4141, 0
      %v4271 = vsel %vm787, %v4142, 0
      %v4274 = vsel %vm787, %v4143, 0
      %4276 = vmatprep.subr.mxu0 0.0
      %4277 = vmatpush1.msra.mxu0 %v4145
      %4278 = vmatprep.subr.mxu0 0.0
      %4279 = vmatpush1.msra.mxu0 %v4146
      %4280 = vmatprep.subr.mxu0 0.0
      %4281 = vmatpush1.msra.mxu0 %v4147
      %4282 = vmatprep.subr.mxu0 0.0
      %4283 = vmatpush1.msra.mxu0 %v4148
      %4284 = vmatprep.subr.mxu0 0.0
      %4285 = vmatpush1.msra.mxu0 %v4149
      %4286 = vmatprep.subr.mxu0 0.0
      %4287 = vmatpush1.msra.mxu0 %v4150
      %4288 = vmatprep.subr.mxu0 0.0
      %4289 = vmatpush1.msra.mxu0 %v4151
      %4290 = vmatprep.subr.mxu0 0.0
      %4291 = vmatpush1.msra.mxu0 %v4152
      %4292 = vmatprep.subr.mxu0 0.0
      %4293 = vmatpush1.msra.mxu0 0.0
      %4294 = vmatprep.subr.mxu0 0.0
      %4295 = vmatpush1.msra.mxu0 0.0
      %4296 = vmatprep.subr.mxu0 0.0
      %4297 = vmatpush1.msra.mxu0 0.0
      %4298 = vmatprep.subr.mxu0 0.0
      %4299 = vmatpush1.msra.mxu0 0.0
      %4300 = vmatprep.subr.mxu0 0.0
      %4301 = vmatpush1.msra.mxu0 0.0
      %4302 = vmatprep.subr.mxu0 0.0
      %4303 = vmatpush1.msra.mxu0 0.0
      %4304 = vmatprep.subr.mxu0 0.0
      %4305 = vmatpush1.msra.mxu0 0.0
      %4306 = vmatprep.subr.mxu0 0.0
      %4307 = vmatpush1.msra.mxu0 0.0
      %4308 = vmatprep.subr.mxu0 0.0
      %4309 = vmatpush1.msra.mxu0 0.0
      %4310 = vmatprep.subr.mxu0 0.0
      %4311 = vmatpush1.msra.mxu0 0.0
      %4312 = vmatprep.subr.mxu0 0.0
      %4313 = vmatpush1.msra.mxu0 0.0
      %4314 = vmatprep.subr.mxu0 0.0
      %4315 = vmatpush1.msra.mxu0 0.0
      %4316 = vmatprep.subr.mxu0 0.0
      %4317 = vmatpush1.msra.mxu0 0.0
      %4318 = vmatprep.subr.mxu0 0.0
      %4319 = vmatpush1.msra.mxu0 0.0
      %4320 = vmatprep.subr.mxu0 0.0
      %4321 = vmatpush1.msra.mxu0 0.0
      %4322 = vmatprep.subr.mxu0 0.0
      %4323 = vmatpush1.msra.mxu0 0.0
      %4324 = vmatprep.subr.mxu0 0.0
      %4325 = vmatpush1.msra.mxu0 0.0
      %4326 = vmatprep.subr.mxu0 0.0
      %4327 = vmatpush1.msra.mxu0 0.0
      %4328 = vmatprep.subr.mxu0 0.0
      %4329 = vmatpush1.msra.mxu0 0.0
      %4330 = vmatprep.subr.mxu0 0.0
      %4331 = vmatpush1.msra.mxu0 0.0
      %4332 = vmatprep.subr.mxu0 0.0
      %4333 = vmatpush1.msra.mxu0 0.0
      %4334 = vmatprep.subr.mxu0 0.0
      %4335 = vmatpush1.msra.mxu0 0.0
      %4336 = vmatprep.subr.mxu0 0.0
      %4337 = vmatpush1.msra.mxu0 0.0
      %4338 = vmatprep.subr.mxu0 0.0
      %4339 = vmatpush1.msra.mxu0 0.0
      %4340 = vmatprep.mubr.f32.mxu0 0.0
      %4341 = vmatmul.mubr.f32.gmra.mrb[0].mxu0 %v4154
      %v4342 = vpop.f32.mrb[0].mxu0
      %v4343 = vadd.f32 0.0, %v4342
      %v4344 = vpop.f32.mrb[0].mxu0
      %4345 = vmatprep.mubr.f32.mxu0 0.0
      %4346 = vmatmul.mubr.f32.gmra.mrb[0].mxu0 %v4157
      %v4347 = vpop.f32.mrb[0].mxu0
      %v4348 = vadd.f32 0.0, %v4347
      %v4349 = vpop.f32.mrb[0].mxu0
      %4350 = vmatprep.mubr.f32.mxu0 0.0
      %4351 = vmatmul.mubr.f32.gmra.mrb[0].mxu0 %v4160
      %v4352 = vpop.f32.mrb[0].mxu0
      %v4353 = vadd.f32 0.0, %v4352
      %v4354 = vpop.f32.mrb[0].mxu0
      %4355 = vmatprep.mubr.f32.mxu0 0.0
      %4356 = vmatmul.mubr.f32.gmra.mrb[0].mxu0 %v4163
      %v4357 = vpop.f32.mrb[0].mxu0
      %v4358 = vadd.f32 0.0, %v4357
      %v4359 = vpop.f32.mrb[0].mxu0
      %4360 = vmatprep.mubr.f32.mxu0 0.0
      %4361 = vmatmul.mubr.f32.gmra.mrb[0].mxu0 %v4166
      %v4362 = vpop.f32.mrb[0].mxu0
      %v4363 = vadd.f32 0.0, %v4362
      %v4364 = vpop.f32.mrb[0].mxu0
      %4365 = vmatprep.mubr.f32.mxu0 0.0
      %4366 = vmatmul.mubr.f32.gmra.mrb[0].mxu0 %v4169
      %v4367 = vpop.f32.mrb[0].mxu0
      %v4368 = vadd.f32 0.0, %v4367
      %v4369 = vpop.f32.mrb[0].mxu0
      %4370 = vmatprep.mubr.f32.mxu0 0.0
      %4371 = vmatmul.mubr.f32.gmra.mrb[0].mxu0 %v4172
      %v4372 = vpop.f32.mrb[0].mxu0
      %v4373 = vadd.f32 0.0, %v4372
      %v4374 = vpop.f32.mrb[0].mxu0
      %4375 = vmatprep.mubr.f32.mxu0 0.0
      %4376 = vmatmul.mubr.f32.gmra.mrb[0].mxu0 %v4175
      %v4377 = vpop.f32.mrb[0].mxu0
      %v4378 = vadd.f32 0.0, %v4377
      %v4379 = vpop.f32.mrb[0].mxu0
      %4380 = vmatprep.mubr.f32.mxu0 0.0
      %4381 = vmatmul.mubr.f32.gmra.mrb[0].mxu0 %v4178
      %v4382 = vpop.f32.mrb[0].mxu0
      %v4383 = vadd.f32 0.0, %v4382
      %v4384 = vpop.f32.mrb[0].mxu0
      %4385 = vmatprep.mubr.f32.mxu0 0.0
      %4386 = vmatmul.mubr.f32.gmra.mrb[0].mxu0 %v4181
      %v4387 = vpop.f32.mrb[0].mxu0
      %v4388 = vadd.f32 0.0, %v4387
      %v4389 = vpop.f32.mrb[0].mxu0
      %4390 = vmatprep.mubr.f32.mxu0 0.0
      %4391 = vmatmul.mubr.f32.gmra.mrb[0].mxu0 %v4184
      %v4392 = vpop.f32.mrb[0].mxu0
      %v4393 = vadd.f32 0.0, %v4392
      %v4394 = vpop.f32.mrb[0].mxu0
      %4395 = vmatprep.mubr.f32.mxu0 0.0
      %4396 = vmatmul.mubr.f32.gmra.mrb[0].mxu0 %v4187
      %v4397 = vpop.f32.mrb[0].mxu0
      %v4398 = vadd.f32 0.0, %v4397
      %v4399 = vpop.f32.mrb[0].mxu0
      %4400 = vmatprep.mubr.f32.mxu0 0.0
      %4401 = vmatmul.mubr.f32.gmra.mrb[0].mxu0 %v4190
      %v4402 = vpop.f32.mrb[0].mxu0
      %v4403 = vadd.f32 0.0, %v4402
      %v4404 = vpop.f32.mrb[0].mxu0
      %4405 = vmatprep.mubr.f32.mxu0 0.0
      %4406 = vmatmul.mubr.f32.gmra.mrb[0].mxu0 %v4193
      %v4407 = vpop.f32.mrb[0].mxu0
      %v4408 = vadd.f32 0.0, %v4407
      %v4409 = vpop.f32.mrb[0].mxu0
      %4410 = vmatprep.mubr.f32.mxu0 0.0
      %4411 = vmatmul.mubr.f32.gmra.mrb[0].mxu0 %v4196
      %v4412 = vpop.f32.mrb[0].mxu0
      %v4413 = vadd.f32 0.0, %v4412
      %v4414 = vpop.f32.mrb[0].mxu0
      %4415 = vmatprep.mubr.f32.mxu0 0.0
      %4416 = vmatmul.mubr.f32.gmra.mrb[0].mxu0 %v4199
      %v4417 = vpop.f32.mrb[0].mxu0
      %v4418 = vadd.f32 0.0, %v4417
      %v4419 = vpop.f32.mrb[0].mxu0
      %4420 = vmatprep.mubr.f32.mxu0 0.0
      %4421 = vmatmul.mubr.f32.gmra.mrb[0].mxu0 %v4202
      %v4422 = vpop.f32.mrb[0].mxu0
      %v4423 = vadd.f32 0.0, %v4422
      %v4424 = vpop.f32.mrb[0].mxu0
      %4425 = vmatprep.mubr.f32.mxu0 0.0
      %4426 = vmatmul.mubr.f32.gmra.mrb[0].mxu0 %v4205
      %v4427 = vpop.f32.mrb[0].mxu0
      %v4428 = vadd.f32 0.0, %v4427
      %v4429 = vpop.f32.mrb[0].mxu0
      %4430 = vmatprep.mubr.f32.mxu0 0.0
      %4431 = vmatmul.mubr.f32.gmra.mrb[0].mxu0 %v4208
      %v4432 = vpop.f32.mrb[0].mxu0
      %v4433 = vadd.f32 0.0, %v4432
      %v4434 = vpop.f32.mrb[0].mxu0
      %4435 = vmatprep.mubr.f32.mxu0 0.0
      %4436 = vmatmul.mubr.f32.gmra.mrb[0].mxu0 %v4211
      %v4437 = vpop.f32.mrb[0].mxu0
      %v4438 = vadd.f32 0.0, %v4437
      %v4439 = vpop.f32.mrb[0].mxu0
      %4440 = vmatprep.mubr.f32.mxu0 0.0
      %4441 = vmatmul.mubr.f32.gmra.mrb[0].mxu0 %v4214
      %v4442 = vpop.f32.mrb[0].mxu0
      %v4443 = vadd.f32 0.0, %v4442
      %v4444 = vpop.f32.mrb[0].mxu0
      %4445 = vmatprep.mubr.f32.mxu0 0.0
      %4446 = vmatmul.mubr.f32.gmra.mrb[0].mxu0 %v4217
      %v4447 = vpop.f32.mrb[0].mxu0
      %v4448 = vadd.f32 0.0, %v4447
      %v4449 = vpop.f32.mrb[0].mxu0
      %4450 = vmatprep.mubr.f32.mxu0 0.0
      %4451 = vmatmul.mubr.f32.gmra.mrb[0].mxu0 %v4220
      %v4452 = vpop.f32.mrb[0].mxu0
      %v4453 = vadd.f32 0.0, %v4452
      %v4454 = vpop.f32.mrb[0].mxu0
      %4455 = vmatprep.mubr.f32.mxu0 0.0
      %4456 = vmatmul.mubr.f32.gmra.mrb[0].mxu0 %v4223
      %v4457 = vpop.f32.mrb[0].mxu0
      %v4458 = vadd.f32 0.0, %v4457
      %v4459 = vpop.f32.mrb[0].mxu0
      %4460 = vmatprep.mubr.f32.mxu0 0.0
      %4461 = vmatmul.mubr.f32.gmra.mrb[0].mxu0 %v4226
      %v4462 = vpop.f32.mrb[0].mxu0
      %v4463 = vadd.f32 0.0, %v4462
      %v4464 = vpop.f32.mrb[0].mxu0
      %4465 = vmatprep.mubr.f32.mxu0 0.0
      %4466 = vmatmul.mubr.f32.gmra.mrb[0].mxu0 %v4229
      %v4467 = vpop.f32.mrb[0].mxu0
      %v4468 = vadd.f32 0.0, %v4467
      %v4469 = vpop.f32.mrb[0].mxu0
      %4470 = vmatprep.mubr.f32.mxu0 0.0
      %4471 = vmatmul.mubr.f32.gmra.mrb[0].mxu0 %v4232
      %v4472 = vpop.f32.mrb[0].mxu0
      %v4473 = vadd.f32 0.0, %v4472
      %v4474 = vpop.f32.mrb[0].mxu0
      %4475 = vmatprep.mubr.f32.mxu0 0.0
      %4476 = vmatmul.mubr.f32.gmra.mrb[0].mxu0 %v4235
      %v4477 = vpop.f32.mrb[0].mxu0
      %v4478 = vadd.f32 0.0, %v4477
      %v4479 = vpop.f32.mrb[0].mxu0
      %4480 = vmatprep.mubr.f32.mxu0 0.0
      %4481 = vmatmul.mubr.f32.gmra.mrb[0].mxu0 %v4238
      %v4482 = vpop.f32.mrb[0].mxu0
      %v4483 = vadd.f32 0.0, %v4482
      %v4484 = vpop.f32.mrb[0].mxu0
      %4485 = vmatprep.mubr.f32.mxu0 0.0
      %4486 = vmatmul.mubr.f32.gmra.mrb[0].mxu0 %v4241
      %v4487 = vpop.f32.mrb[0].mxu0
      %v4488 = vadd.f32 0.0, %v4487
      %v4489 = vpop.f32.mrb[0].mxu0
      %4490 = vmatprep.mubr.f32.mxu0 0.0
      %4491 = vmatmul.mubr.f32.gmra.mrb[0].mxu0 %v4244
      %v4492 = vpop.f32.mrb[0].mxu0
      %v4493 = vadd.f32 0.0, %v4492
      %v4494 = vpop.f32.mrb[0].mxu0
      %4495 = vmatprep.mubr.f32.mxu0 0.0
      %4496 = vmatmul.mubr.f32.gmra.mrb[0].mxu0 %v4247
      %v4497 = vpop.f32.mrb[0].mxu0
      %v4498 = vadd.f32 0.0, %v4497
      %v4499 = vpop.f32.mrb[0].mxu0
      %4500 = vmatprep.mubr.f32.mxu0 0.0
      %4501 = vmatmul.mubr.f32.gmra.mrb[0].mxu0 %v4250
      %v4502 = vpop.f32.mrb[0].mxu0
      %v4503 = vadd.f32 0.0, %v4502
      %v4504 = vpop.f32.mrb[0].mxu0
      %4505 = vmatprep.mubr.f32.mxu0 0.0
      %4506 = vmatmul.mubr.f32.gmra.mrb[0].mxu0 %v4253
      %v4507 = vpop.f32.mrb[0].mxu0
      %v4508 = vadd.f32 0.0, %v4507
      %v4509 = vpop.f32.mrb[0].mxu0
      %4510 = vmatprep.mubr.f32.mxu0 0.0
      %4511 = vmatmul.mubr.f32.gmra.mrb[0].mxu0 %v4256
      %v4512 = vpop.f32.mrb[0].mxu0
      %v4513 = vadd.f32 0.0, %v4512
      %v4514 = vpop.f32.mrb[0].mxu0
      %4515 = vmatprep.mubr.f32.mxu0 0.0
      %4516 = vmatmul.mubr.f32.gmra.mrb[0].mxu0 %v4259
      %v4517 = vpop.f32.mrb[0].mxu0
      %v4518 = vadd.f32 0.0, %v4517
      %v4519 = vpop.f32.mrb[0].mxu0
      %4520 = vmatprep.mubr.f32.mxu0 0.0
      %4521 = vmatmul.mubr.f32.gmra.mrb[0].mxu0 %v4262
      %v4522 = vpop.f32.mrb[0].mxu0
      %v4523 = vadd.f32 0.0, %v4522
      %v4524 = vpop.f32.mrb[0].mxu0
      %4525 = vmatprep.mubr.f32.mxu0 0.0
      %4526 = vmatmul.mubr.f32.gmra.mrb[0].mxu0 %v4265
      %v4527 = vpop.f32.mrb[0].mxu0
      %v4528 = vadd.f32 0.0, %v4527
      %v4529 = vpop.f32.mrb[0].mxu0
      %4530 = vmatprep.mubr.f32.mxu0 0.0
      %4531 = vmatmul.mubr.f32.gmra.mrb[0].mxu0 %v4268
      %v4532 = vpop.f32.mrb[0].mxu0
      %v4533 = vadd.f32 0.0, %v4532
      %v4534 = vpop.f32.mrb[0].mxu0
      %4535 = vmatprep.mubr.f32.mxu0 0.0
      %4536 = vmatmul.mubr.f32.gmra.mrb[0].mxu0 %v4271
      %v4537 = vpop.f32.mrb[0].mxu0
      %v4538 = vadd.f32 0.0, %v4537
      %v4539 = vpop.f32.mrb[0].mxu0
      %4540 = vmatprep.mubr.f32.mxu0 0.0
      %4541 = vmatmul.mubr.f32.gmra.mrb[0].mxu0 %v4274
      %v4542 = vpop.f32.mrb[0].mxu0
      %v4543 = vadd.f32 0.0, %v4542
      %v4544 = vpop.f32.mrb[0].mxu0
      %4545 = vdwg.mxu0
      %v4546 = vadd.f32 %v4062, %v4343
      %v4547 = vadd.f32 %v4063, %v4348
      %v4548 = vadd.f32 %v4064, %v4353
      %v4549 = vadd.f32 %v4065, %v4358
      %v4550 = vadd.f32 %v4066, %v4363
      %v4551 = vadd.f32 %v4067, %v4368
      %v4552 = vadd.f32 %v4068, %v4373
      %v4553 = vadd.f32 %v4069, %v4378
      %v4554 = vadd.f32 %v4070, %v4383
      %v4555 = vadd.f32 %v4071, %v4388
      %v4556 = vadd.f32 %v4072, %v4393
      %v4557 = vadd.f32 %v4073, %v4398
      %v4558 = vadd.f32 %v4074, %v4403
      %v4559 = vadd.f32 %v4075, %v4408
      %v4560 = vadd.f32 %v4076, %v4413
      %v4561 = vadd.f32 %v4077, %v4418
      %v4562 = vadd.f32 %v4078, %v4423
      %v4563 = vadd.f32 %v4079, %v4428
      %v4564 = vadd.f32 %v4080, %v4433
      %v4565 = vadd.f32 %v4081, %v4438
      %v4566 = vadd.f32 %v4082, %v4443
      %v4567 = vadd.f32 %v4083, %v4448
      %v4568 = vadd.f32 %v4084, %v4453
      %v4569 = vadd.f32 %v4085, %v4458
      %v4570 = vadd.f32 %v4086, %v4463
      %v4571 = vadd.f32 %v4087, %v4468
      %v4572 = vadd.f32 %v4088, %v4473
      %v4573 = vadd.f32 %v4089, %v4478
      %v4574 = vadd.f32 %v4090, %v4483
      %v4575 = vadd.f32 %v4091, %v4488
      %v4576 = vadd.f32 %v4092, %v4493
      %v4577 = vadd.f32 %v4093, %v4498
      %v4578 = vadd.f32 %v4094, %v4503
      %v4579 = vadd.f32 %v4095, %v4508
      %v4580 = vadd.f32 %v4096, %v4513
      %v4581 = vadd.f32 %v4097, %v4518
      %v4582 = vadd.f32 %v4098, %v4523
      %v4583 = vadd.f32 %v4099, %v4528
      %v4584 = vadd.f32 %v4100, %v4533
      %v4585 = vadd.f32 %v4101, %v4538
      %v4586 = vadd.f32 %v4102, %v4543
      %v4587 = vld [vmem:[#allocation3 + $0x14] sm:$0xff]
      %v4588 = vld [vmem:[#allocation3 + $0x1c] sm:$0xff]
      %v4589 = vld [vmem:[#allocation3 + $0x24] sm:$0xff]
      %v4590 = vld [vmem:[#allocation3 + $0x2c] sm:$0xff]
      %v4591 = vld [vmem:[#allocation3 + $0x34] sm:$0xff]
      %v4592 = vld [vmem:[#allocation3 + $0x3c] sm:$0xff]
      %v4593 = vld [vmem:[#allocation3 + $0x44] sm:$0xff]
      %v4594 = vld [vmem:[#allocation3 + $0x4c] sm:$0xff]
      %v4595 = vld [vmem:[#allocation3 + $0x54] sm:$0xff]
      %v4596 = vld [vmem:[#allocation3 + $0x5c] sm:$0xff]
      %v4597 = vld [vmem:[#allocation3 + $0x64] sm:$0xff]
      %v4598 = vld [vmem:[#allocation3 + $0x6c] sm:$0xff]
      %v4599 = vld [vmem:[#allocation3 + $0x74] sm:$0xff]
      %v4600 = vld [vmem:[#allocation3 + $0x7c] sm:$0xff]
      %v4601 = vld [vmem:[#allocation3 + $0x84] sm:$0xff]
      %v4602 = vld [vmem:[#allocation3 + $0x8c] sm:$0xff]
      %v4603 = vld [vmem:[#allocation3 + $0x94] sm:$0xff]
      %v4604 = vld [vmem:[#allocation3 + $0x9c] sm:$0xff]
      %v4605 = vld [vmem:[#allocation3 + $0xa4] sm:$0xff]
      %v4606 = vld [vmem:[#allocation3 + $0xac] sm:$0xff]
      %v4607 = vld [vmem:[#allocation3 + $0xb4] sm:$0xff]
      %v4608 = vld [vmem:[#allocation3 + $0xbc] sm:$0xff]
      %v4609 = vld [vmem:[#allocation3 + $0xc4] sm:$0xff]
      %v4610 = vld [vmem:[#allocation3 + $0xcc] sm:$0xff]
      %v4611 = vld [vmem:[#allocation3 + $0xd4] sm:$0xff]
      %v4612 = vld [vmem:[#allocation3 + $0xdc] sm:$0xff]
      %v4613 = vld [vmem:[#allocation3 + $0xe4] sm:$0xff]
      %v4614 = vld [vmem:[#allocation3 + $0xec] sm:$0xff]
      %v4615 = vld [vmem:[#allocation3 + $0xf4] sm:$0xff]
      %v4616 = vld [vmem:[#allocation3 + $0xfc] sm:$0xff]
      %v4617 = vld [vmem:[#allocation3 + $0x104] sm:$0xff]
      %v4618 = vld [vmem:[#allocation3 + $0x10c] sm:$0xff]
      %v4619 = vld [vmem:[#allocation3 + $0x114] sm:$0xff]
      %v4620 = vld [vmem:[#allocation3 + $0x11c] sm:$0xff]
      %v4621 = vld [vmem:[#allocation3 + $0x124] sm:$0xff]
      %v4622 = vld [vmem:[#allocation3 + $0x12c] sm:$0xff]
      %v4623 = vld [vmem:[#allocation3 + $0x134] sm:$0xff]
      %v4624 = vld [vmem:[#allocation3 + $0x13c] sm:$0xff]
      %v4625 = vld [vmem:[#allocation3 + $0x144] sm:$0xff]
      %v4626 = vld [vmem:[#allocation3 + $0x14c] sm:$0xff]
      %v4627 = vld [vmem:[#allocation3 + $0x154] sm:$0xf]
      %s4628 = scalar_lea.vmem %s9, 320
      %v4629 = vld [vmem:[%s4628] sm:$0xff]
      %v4630 = vld [vmem:[%s4628 + $0x8] sm:$0xff]
      %v4631 = vld [vmem:[%s4628 + $0x10] sm:$0xff]
      %v4632 = vld [vmem:[%s4628 + $0x18] sm:$0xff]
      %v4633 = vld [vmem:[%s4628 + $0x20] sm:$0xff]
      %v4634 = vld [vmem:[%s4628 + $0x28] sm:$0xff]
      %v4635 = vld [vmem:[%s4628 + $0x30] sm:$0xff]
      %v4636 = vld [vmem:[%s4628 + $0x38] sm:$0xff]
      %v4638 = vsel %vm787, %v4587, 0
      %v4641 = vsel %vm787, %v4588, 0
      %v4644 = vsel %vm787, %v4589, 0
      %v4647 = vsel %vm787, %v4590, 0
      %v4650 = vsel %vm787, %v4591, 0
      %v4653 = vsel %vm787, %v4592, 0
      %v4656 = vsel %vm787, %v4593, 0
      %v4659 = vsel %vm787, %v4594, 0
      %v4662 = vsel %vm787, %v4595, 0
      %v4665 = vsel %vm787, %v4596, 0
      %v4668 = vsel %vm787, %v4597, 0
      %v4671 = vsel %vm787, %v4598, 0
      %v4674 = vsel %vm787, %v4599, 0
      %v4677 = vsel %vm787, %v4600, 0
      %v4680 = vsel %vm787, %v4601, 0
      %v4683 = vsel %vm787, %v4602, 0
      %v4686 = vsel %vm787, %v4603, 0
      %v4689 = vsel %vm787, %v4604, 0
      %v4692 = vsel %vm787, %v4605, 0
      %v4695 = vsel %vm787, %v4606, 0
      %v4698 = vsel %vm787, %v4607, 0
      %v4701 = vsel %vm787, %v4608, 0
      %v4704 = vsel %vm787, %v4609, 0
      %v4707 = vsel %vm787, %v4610, 0
      %v4710 = vsel %vm787, %v4611, 0
      %v4713 = vsel %vm787, %v4612, 0
      %v4716 = vsel %vm787, %v4613, 0
      %v4719 = vsel %vm787, %v4614, 0
      %v4722 = vsel %vm787, %v4615, 0
      %v4725 = vsel %vm787, %v4616, 0
      %v4728 = vsel %vm787, %v4617, 0
      %v4731 = vsel %vm787, %v4618, 0
      %v4734 = vsel %vm787, %v4619, 0
      %v4737 = vsel %vm787, %v4620, 0
      %v4740 = vsel %vm787, %v4621, 0
      %v4743 = vsel %vm787, %v4622, 0
      %v4746 = vsel %vm787, %v4623, 0
      %v4749 = vsel %vm787, %v4624, 0
      %v4752 = vsel %vm787, %v4625, 0
      %v4755 = vsel %vm787, %v4626, 0
      %v4758 = vsel %vm787, %v4627, 0
      %4760 = vmatprep.subr.mxu0 0.0
      %4761 = vmatpush1.msra.mxu0 %v4629
      %4762 = vmatprep.subr.mxu0 0.0
      %4763 = vmatpush1.msra.mxu0 %v4630
      %4764 = vmatprep.subr.mxu0 0.0
      %4765 = vmatpush1.msra.mxu0 %v4631
      %4766 = vmatprep.subr.mxu0 0.0
      %4767 = vmatpush1.msra.mxu0 %v4632
      %4768 = vmatprep.subr.mxu0 0.0
      %4769 = vmatpush1.msra.mxu0 %v4633
      %4770 = vmatprep.subr.mxu0 0.0
      %4771 = vmatpush1.msra.mxu0 %v4634
      %4772 = vmatprep.subr.mxu0 0.0
      %4773 = vmatpush1.msra.mxu0 %v4635
      %4774 = vmatprep.subr.mxu0 0.0
      %4775 = vmatpush1.msra.mxu0 %v4636
      %4776 = vmatprep.subr.mxu0 0.0
      %4777 = vmatpush1.msra.mxu0 0.0
      %4778 = vmatprep.subr.mxu0 0.0
      %4779 = vmatpush1.msra.mxu0 0.0
      %4780 = vmatprep.subr.mxu0 0.0
      %4781 = vmatpush1.msra.mxu0 0.0
      %4782 = vmatprep.subr.mxu0 0.0
      %4783 = vmatpush1.msra.mxu0 0.0
      %4784 = vmatprep.subr.mxu0 0.0
      %4785 = vmatpush1.msra.mxu0 0.0
      %4786 = vmatprep.subr.mxu0 0.0
      %4787 = vmatpush1.msra.mxu0 0.0
      %4788 = vmatprep.subr.mxu0 0.0
      %4789 = vmatpush1.msra.mxu0 0.0
      %4790 = vmatprep.subr.mxu0 0.0
      %4791 = vmatpush1.msra.mxu0 0.0
      %4792 = vmatprep.subr.mxu0 0.0
      %4793 = vmatpush1.msra.mxu0 0.0
      %4794 = vmatprep.subr.mxu0 0.0
      %4795 = vmatpush1.msra.mxu0 0.0
      %4796 = vmatprep.subr.mxu0 0.0
      %4797 = vmatpush1.msra.mxu0 0.0
      %4798 = vmatprep.subr.mxu0 0.0
      %4799 = vmatpush1.msra.mxu0 0.0
      %4800 = vmatprep.subr.mxu0 0.0
      %4801 = vmatpush1.msra.mxu0 0.0
      %4802 = vmatprep.subr.mxu0 0.0
      %4803 = vmatpush1.msra.mxu0 0.0
      %4804 = vmatprep.subr.mxu0 0.0
      %4805 = vmatpush1.msra.mxu0 0.0
      %4806 = vmatprep.subr.mxu0 0.0
      %4807 = vmatpush1.msra.mxu0 0.0
      %4808 = vmatprep.subr.mxu0 0.0
      %4809 = vmatpush1.msra.mxu0 0.0
      %4810 = vmatprep.subr.mxu0 0.0
      %4811 = vmatpush1.msra.mxu0 0.0
      %4812 = vmatprep.subr.mxu0 0.0
      %4813 = vmatpush1.msra.mxu0 0.0
      %4814 = vmatprep.subr.mxu0 0.0
      %4815 = vmatpush1.msra.mxu0 0.0
      %4816 = vmatprep.subr.mxu0 0.0
      %4817 = vmatpush1.msra.mxu0 0.0
      %4818 = vmatprep.subr.mxu0 0.0
      %4819 = vmatpush1.msra.mxu0 0.0
      %4820 = vmatprep.subr.mxu0 0.0
      %4821 = vmatpush1.msra.mxu0 0.0
      %4822 = vmatprep.subr.mxu0 0.0
      %4823 = vmatpush1.msra.mxu0 0.0
      %4824 = vmatprep.mubr.f32.mxu0 0.0
      %4825 = vmatmul.mubr.f32.gmra.mrb[0].mxu0 %v4638
      %v4826 = vpop.f32.mrb[0].mxu0
      %v4827 = vadd.f32 0.0, %v4826
      %v4828 = vpop.f32.mrb[0].mxu0
      %4829 = vmatprep.mubr.f32.mxu0 0.0
      %4830 = vmatmul.mubr.f32.gmra.mrb[0].mxu0 %v4641
      %v4831 = vpop.f32.mrb[0].mxu0
      %v4832 = vadd.f32 0.0, %v4831
      %v4833 = vpop.f32.mrb[0].mxu0
      %4834 = vmatprep.mubr.f32.mxu0 0.0
      %4835 = vmatmul.mubr.f32.gmra.mrb[0].mxu0 %v4644
      %v4836 = vpop.f32.mrb[0].mxu0
      %v4837 = vadd.f32 0.0, %v4836
      %v4838 = vpop.f32.mrb[0].mxu0
      %4839 = vmatprep.mubr.f32.mxu0 0.0
      %4840 = vmatmul.mubr.f32.gmra.mrb[0].mxu0 %v4647
      %v4841 = vpop.f32.mrb[0].mxu0
      %v4842 = vadd.f32 0.0, %v4841
      %v4843 = vpop.f32.mrb[0].mxu0
      %4844 = vmatprep.mubr.f32.mxu0 0.0
      %4845 = vmatmul.mubr.f32.gmra.mrb[0].mxu0 %v4650
      %v4846 = vpop.f32.mrb[0].mxu0
      %v4847 = vadd.f32 0.0, %v4846
      %v4848 = vpop.f32.mrb[0].mxu0
      %4849 = vmatprep.mubr.f32.mxu0 0.0
      %4850 = vmatmul.mubr.f32.gmra.mrb[0].mxu0 %v4653
      %v4851 = vpop.f32.mrb[0].mxu0
      %v4852 = vadd.f32 0.0, %v4851
      %v4853 = vpop.f32.mrb[0].mxu0
      %4854 = vmatprep.mubr.f32.mxu0 0.0
      %4855 = vmatmul.mubr.f32.gmra.mrb[0].mxu0 %v4656
      %v4856 = vpop.f32.mrb[0].mxu0
      %v4857 = vadd.f32 0.0, %v4856
      %v4858 = vpop.f32.mrb[0].mxu0
      %4859 = vmatprep.mubr.f32.mxu0 0.0
      %4860 = vmatmul.mubr.f32.gmra.mrb[0].mxu0 %v4659
      %v4861 = vpop.f32.mrb[0].mxu0
      %v4862 = vadd.f32 0.0, %v4861
      %v4863 = vpop.f32.mrb[0].mxu0
      %4864 = vmatprep.mubr.f32.mxu0 0.0
      %4865 = vmatmul.mubr.f32.gmra.mrb[0].mxu0 %v4662
      %v4866 = vpop.f32.mrb[0].mxu0
      %v4867 = vadd.f32 0.0, %v4866
      %v4868 = vpop.f32.mrb[0].mxu0
      %4869 = vmatprep.mubr.f32.mxu0 0.0
      %4870 = vmatmul.mubr.f32.gmra.mrb[0].mxu0 %v4665
      %v4871 = vpop.f32.mrb[0].mxu0
      %v4872 = vadd.f32 0.0, %v4871
      %v4873 = vpop.f32.mrb[0].mxu0
      %4874 = vmatprep.mubr.f32.mxu0 0.0
      %4875 = vmatmul.mubr.f32.gmra.mrb[0].mxu0 %v4668
      %v4876 = vpop.f32.mrb[0].mxu0
      %v4877 = vadd.f32 0.0, %v4876
      %v4878 = vpop.f32.mrb[0].mxu0
      %4879 = vmatprep.mubr.f32.mxu0 0.0
      %4880 = vmatmul.mubr.f32.gmra.mrb[0].mxu0 %v4671
      %v4881 = vpop.f32.mrb[0].mxu0
      %v4882 = vadd.f32 0.0, %v4881
      %v4883 = vpop.f32.mrb[0].mxu0
      %4884 = vmatprep.mubr.f32.mxu0 0.0
      %4885 = vmatmul.mubr.f32.gmra.mrb[0].mxu0 %v4674
      %v4886 = vpop.f32.mrb[0].mxu0
      %v4887 = vadd.f32 0.0, %v4886
      %v4888 = vpop.f32.mrb[0].mxu0
      %4889 = vmatprep.mubr.f32.mxu0 0.0
      %4890 = vmatmul.mubr.f32.gmra.mrb[0].mxu0 %v4677
      %v4891 = vpop.f32.mrb[0].mxu0
      %v4892 = vadd.f32 0.0, %v4891
      %v4893 = vpop.f32.mrb[0].mxu0
      %4894 = vmatprep.mubr.f32.mxu0 0.0
      %4895 = vmatmul.mubr.f32.gmra.mrb[0].mxu0 %v4680
      %v4896 = vpop.f32.mrb[0].mxu0
      %v4897 = vadd.f32 0.0, %v4896
      %v4898 = vpop.f32.mrb[0].mxu0
      %4899 = vmatprep.mubr.f32.mxu0 0.0
      %4900 = vmatmul.mubr.f32.gmra.mrb[0].mxu0 %v4683
      %v4901 = vpop.f32.mrb[0].mxu0
      %v4902 = vadd.f32 0.0, %v4901
      %v4903 = vpop.f32.mrb[0].mxu0
      %4904 = vmatprep.mubr.f32.mxu0 0.0
      %4905 = vmatmul.mubr.f32.gmra.mrb[0].mxu0 %v4686
      %v4906 = vpop.f32.mrb[0].mxu0
      %v4907 = vadd.f32 0.0, %v4906
      %v4908 = vpop.f32.mrb[0].mxu0
      %4909 = vmatprep.mubr.f32.mxu0 0.0
      %4910 = vmatmul.mubr.f32.gmra.mrb[0].mxu0 %v4689
      %v4911 = vpop.f32.mrb[0].mxu0
      %v4912 = vadd.f32 0.0, %v4911
      %v4913 = vpop.f32.mrb[0].mxu0
      %4914 = vmatprep.mubr.f32.mxu0 0.0
      %4915 = vmatmul.mubr.f32.gmra.mrb[0].mxu0 %v4692
      %v4916 = vpop.f32.mrb[0].mxu0
      %v4917 = vadd.f32 0.0, %v4916
      %v4918 = vpop.f32.mrb[0].mxu0
      %4919 = vmatprep.mubr.f32.mxu0 0.0
      %4920 = vmatmul.mubr.f32.gmra.mrb[0].mxu0 %v4695
      %v4921 = vpop.f32.mrb[0].mxu0
      %v4922 = vadd.f32 0.0, %v4921
      %v4923 = vpop.f32.mrb[0].mxu0
      %4924 = vmatprep.mubr.f32.mxu0 0.0
      %4925 = vmatmul.mubr.f32.gmra.mrb[0].mxu0 %v4698
      %v4926 = vpop.f32.mrb[0].mxu0
      %v4927 = vadd.f32 0.0, %v4926
      %v4928 = vpop.f32.mrb[0].mxu0
      %4929 = vmatprep.mubr.f32.mxu0 0.0
      %4930 = vmatmul.mubr.f32.gmra.mrb[0].mxu0 %v4701
      %v4931 = vpop.f32.mrb[0].mxu0
      %v4932 = vadd.f32 0.0, %v4931
      %v4933 = vpop.f32.mrb[0].mxu0
      %4934 = vmatprep.mubr.f32.mxu0 0.0
      %4935 = vmatmul.mubr.f32.gmra.mrb[0].mxu0 %v4704
      %v4936 = vpop.f32.mrb[0].mxu0
      %v4937 = vadd.f32 0.0, %v4936
      %v4938 = vpop.f32.mrb[0].mxu0
      %4939 = vmatprep.mubr.f32.mxu0 0.0
      %4940 = vmatmul.mubr.f32.gmra.mrb[0].mxu0 %v4707
      %v4941 = vpop.f32.mrb[0].mxu0
      %v4942 = vadd.f32 0.0, %v4941
      %v4943 = vpop.f32.mrb[0].mxu0
      %4944 = vmatprep.mubr.f32.mxu0 0.0
      %4945 = vmatmul.mubr.f32.gmra.mrb[0].mxu0 %v4710
      %v4946 = vpop.f32.mrb[0].mxu0
      %v4947 = vadd.f32 0.0, %v4946
      %v4948 = vpop.f32.mrb[0].mxu0
      %4949 = vmatprep.mubr.f32.mxu0 0.0
      %4950 = vmatmul.mubr.f32.gmra.mrb[0].mxu0 %v4713
      %v4951 = vpop.f32.mrb[0].mxu0
      %v4952 = vadd.f32 0.0, %v4951
      %v4953 = vpop.f32.mrb[0].mxu0
      %4954 = vmatprep.mubr.f32.mxu0 0.0
      %4955 = vmatmul.mubr.f32.gmra.mrb[0].mxu0 %v4716
      %v4956 = vpop.f32.mrb[0].mxu0
      %v4957 = vadd.f32 0.0, %v4956
      %v4958 = vpop.f32.mrb[0].mxu0
      %4959 = vmatprep.mubr.f32.mxu0 0.0
      %4960 = vmatmul.mubr.f32.gmra.mrb[0].mxu0 %v4719
      %v4961 = vpop.f32.mrb[0].mxu0
      %v4962 = vadd.f32 0.0, %v4961
      %v4963 = vpop.f32.mrb[0].mxu0
      %4964 = vmatprep.mubr.f32.mxu0 0.0
      %4965 = vmatmul.mubr.f32.gmra.mrb[0].mxu0 %v4722
      %v4966 = vpop.f32.mrb[0].mxu0
      %v4967 = vadd.f32 0.0, %v4966
      %v4968 = vpop.f32.mrb[0].mxu0
      %4969 = vmatprep.mubr.f32.mxu0 0.0
      %4970 = vmatmul.mubr.f32.gmra.mrb[0].mxu0 %v4725
      %v4971 = vpop.f32.mrb[0].mxu0
      %v4972 = vadd.f32 0.0, %v4971
      %v4973 = vpop.f32.mrb[0].mxu0
      %4974 = vmatprep.mubr.f32.mxu0 0.0
      %4975 = vmatmul.mubr.f32.gmra.mrb[0].mxu0 %v4728
      %v4976 = vpop.f32.mrb[0].mxu0
      %v4977 = vadd.f32 0.0, %v4976
      %v4978 = vpop.f32.mrb[0].mxu0
      %4979 = vmatprep.mubr.f32.mxu0 0.0
      %4980 = vmatmul.mubr.f32.gmra.mrb[0].mxu0 %v4731
      %v4981 = vpop.f32.mrb[0].mxu0
      %v4982 = vadd.f32 0.0, %v4981
      %v4983 = vpop.f32.mrb[0].mxu0
      %4984 = vmatprep.mubr.f32.mxu0 0.0
      %4985 = vmatmul.mubr.f32.gmra.mrb[0].mxu0 %v4734
      %v4986 = vpop.f32.mrb[0].mxu0
      %v4987 = vadd.f32 0.0, %v4986
      %v4988 = vpop.f32.mrb[0].mxu0
      %4989 = vmatprep.mubr.f32.mxu0 0.0
      %4990 = vmatmul.mubr.f32.gmra.mrb[0].mxu0 %v4737
      %v4991 = vpop.f32.mrb[0].mxu0
      %v4992 = vadd.f32 0.0, %v4991
      %v4993 = vpop.f32.mrb[0].mxu0
      %4994 = vmatprep.mubr.f32.mxu0 0.0
      %4995 = vmatmul.mubr.f32.gmra.mrb[0].mxu0 %v4740
      %v4996 = vpop.f32.mrb[0].mxu0
      %v4997 = vadd.f32 0.0, %v4996
      %v4998 = vpop.f32.mrb[0].mxu0
      %4999 = vmatprep.mubr.f32.mxu0 0.0
      %5000 = vmatmul.mubr.f32.gmra.mrb[0].mxu0 %v4743
      %v5001 = vpop.f32.mrb[0].mxu0
      %v5002 = vadd.f32 0.0, %v5001
      %v5003 = vpop.f32.mrb[0].mxu0
      %5004 = vmatprep.mubr.f32.mxu0 0.0
      %5005 = vmatmul.mubr.f32.gmra.mrb[0].mxu0 %v4746
      %v5006 = vpop.f32.mrb[0].mxu0
      %v5007 = vadd.f32 0.0, %v5006
      %v5008 = vpop.f32.mrb[0].mxu0
      %5009 = vmatprep.mubr.f32.mxu0 0.0
      %5010 = vmatmul.mubr.f32.gmra.mrb[0].mxu0 %v4749
      %v5011 = vpop.f32.mrb[0].mxu0
      %v5012 = vadd.f32 0.0, %v5011
      %v5013 = vpop.f32.mrb[0].mxu0
      %5014 = vmatprep.mubr.f32.mxu0 0.0
      %5015 = vmatmul.mubr.f32.gmra.mrb[0].mxu0 %v4752
      %v5016 = vpop.f32.mrb[0].mxu0
      %v5017 = vadd.f32 0.0, %v5016
      %v5018 = vpop.f32.mrb[0].mxu0
      %5019 = vmatprep.mubr.f32.mxu0 0.0
      %5020 = vmatmul.mubr.f32.gmra.mrb[0].mxu0 %v4755
      %v5021 = vpop.f32.mrb[0].mxu0
      %v5022 = vadd.f32 0.0, %v5021
      %v5023 = vpop.f32.mrb[0].mxu0
      %5024 = vmatprep.mubr.f32.mxu0 0.0
      %5025 = vmatmul.mubr.f32.gmra.mrb[0].mxu0 %v4758
      %v5026 = vpop.f32.mrb[0].mxu0
      %v5027 = vadd.f32 0.0, %v5026
      %v5028 = vpop.f32.mrb[0].mxu0
      %5029 = vdwg.mxu0
      %v5030 = vadd.f32 %v4546, %v4827
      %v5031 = vadd.f32 %v4547, %v4832
      %v5032 = vadd.f32 %v4548, %v4837
      %v5033 = vadd.f32 %v4549, %v4842
      %v5034 = vadd.f32 %v4550, %v4847
      %v5035 = vadd.f32 %v4551, %v4852
      %v5036 = vadd.f32 %v4552, %v4857
      %v5037 = vadd.f32 %v4553, %v4862
      %v5038 = vadd.f32 %v4554, %v4867
      %v5039 = vadd.f32 %v4555, %v4872
      %v5040 = vadd.f32 %v4556, %v4877
      %v5041 = vadd.f32 %v4557, %v4882
      %v5042 = vadd.f32 %v4558, %v4887
      %v5043 = vadd.f32 %v4559, %v4892
      %v5044 = vadd.f32 %v4560, %v4897
      %v5045 = vadd.f32 %v4561, %v4902
      %v5046 = vadd.f32 %v4562, %v4907
      %v5047 = vadd.f32 %v4563, %v4912
      %v5048 = vadd.f32 %v4564, %v4917
      %v5049 = vadd.f32 %v4565, %v4922
      %v5050 = vadd.f32 %v4566, %v4927
      %v5051 = vadd.f32 %v4567, %v4932
      %v5052 = vadd.f32 %v4568, %v4937
      %v5053 = vadd.f32 %v4569, %v4942
      %v5054 = vadd.f32 %v4570, %v4947
      %v5055 = vadd.f32 %v4571, %v4952
      %v5056 = vadd.f32 %v4572, %v4957
      %v5057 = vadd.f32 %v4573, %v4962
      %v5058 = vadd.f32 %v4574, %v4967
      %v5059 = vadd.f32 %v4575, %v4972
      %v5060 = vadd.f32 %v4576, %v4977
      %v5061 = vadd.f32 %v4577, %v4982
      %v5062 = vadd.f32 %v4578, %v4987
      %v5063 = vadd.f32 %v4579, %v4992
      %v5064 = vadd.f32 %v4580, %v4997
      %v5065 = vadd.f32 %v4581, %v5002
      %v5066 = vadd.f32 %v4582, %v5007
      %v5067 = vadd.f32 %v4583, %v5012
      %v5068 = vadd.f32 %v4584, %v5017
      %v5069 = vadd.f32 %v4585, %v5022
      %v5070 = vadd.f32 %v4586, %v5027
      %v5071 = vld [vmem:[#allocation3 + $0x24] sm:$0xff]
      %v5072 = vld [vmem:[#allocation3 + $0x2c] sm:$0xff]
      %v5073 = vld [vmem:[#allocation3 + $0x34] sm:$0xff]
      %v5074 = vld [vmem:[#allocation3 + $0x3c] sm:$0xff]
      %v5075 = vld [vmem:[#allocation3 + $0x44] sm:$0xff]
      %v5076 = vld [vmem:[#allocation3 + $0x4c] sm:$0xff]
      %v5077 = vld [vmem:[#allocation3 + $0x54] sm:$0xff]
      %v5078 = vld [vmem:[#allocation3 + $0x5c] sm:$0xff]
      %v5079 = vld [vmem:[#allocation3 + $0x64] sm:$0xff]
      %v5080 = vld [vmem:[#allocation3 + $0x6c] sm:$0xff]
      %v5081 = vld [vmem:[#allocation3 + $0x74] sm:$0xff]
      %v5082 = vld [vmem:[#allocation3 + $0x7c] sm:$0xff]
      %v5083 = vld [vmem:[#allocation3 + $0x84] sm:$0xff]
      %v5084 = vld [vmem:[#allocation3 + $0x8c] sm:$0xff]
      %v5085 = vld [vmem:[#allocation3 + $0x94] sm:$0xff]
      %v5086 = vld [vmem:[#allocation3 + $0x9c] sm:$0xff]
      %v5087 = vld [vmem:[#allocation3 + $0xa4] sm:$0xff]
      %v5088 = vld [vmem:[#allocation3 + $0xac] sm:$0xff]
      %v5089 = vld [vmem:[#allocation3 + $0xb4] sm:$0xff]
      %v5090 = vld [vmem:[#allocation3 + $0xbc] sm:$0xff]
      %v5091 = vld [vmem:[#allocation3 + $0xc4] sm:$0xff]
      %v5092 = vld [vmem:[#allocation3 + $0xcc] sm:$0xff]
      %v5093 = vld [vmem:[#allocation3 + $0xd4] sm:$0xff]
      %v5094 = vld [vmem:[#allocation3 + $0xdc] sm:$0xff]
      %v5095 = vld [vmem:[#allocation3 + $0xe4] sm:$0xff]
      %v5096 = vld [vmem:[#allocation3 + $0xec] sm:$0xff]
      %v5097 = vld [vmem:[#allocation3 + $0xf4] sm:$0xff]
      %v5098 = vld [vmem:[#allocation3 + $0xfc] sm:$0xff]
      %v5099 = vld [vmem:[#allocation3 + $0x104] sm:$0xff]
      %v5100 = vld [vmem:[#allocation3 + $0x10c] sm:$0xff]
      %v5101 = vld [vmem:[#allocation3 + $0x114] sm:$0xff]
      %v5102 = vld [vmem:[#allocation3 + $0x11c] sm:$0xff]
      %v5103 = vld [vmem:[#allocation3 + $0x124] sm:$0xff]
      %v5104 = vld [vmem:[#allocation3 + $0x12c] sm:$0xff]
      %v5105 = vld [vmem:[#allocation3 + $0x134] sm:$0xff]
      %v5106 = vld [vmem:[#allocation3 + $0x13c] sm:$0xff]
      %v5107 = vld [vmem:[#allocation3 + $0x144] sm:$0xff]
      %v5108 = vld [vmem:[#allocation3 + $0x14c] sm:$0xff]
      %v5109 = vld [vmem:[#allocation3 + $0x154] sm:$0xff]
      %v5110 = vld [vmem:[#allocation3 + $0x15c] sm:$0xff]
      %v5111 = vld [vmem:[#allocation3 + $0x164] sm:$0xf]
      %s5112 = scalar_lea.vmem %s9, 384
      %v5113 = vld [vmem:[%s5112] sm:$0xff]
      %v5114 = vld [vmem:[%s5112 + $0x8] sm:$0xff]
      %v5115 = vld [vmem:[%s5112 + $0x10] sm:$0xff]
      %v5116 = vld [vmem:[%s5112 + $0x18] sm:$0xff]
      %v5117 = vld [vmem:[%s5112 + $0x20] sm:$0xff]
      %v5118 = vld [vmem:[%s5112 + $0x28] sm:$0xff]
      %v5119 = vld [vmem:[%s5112 + $0x30] sm:$0xff]
      %v5120 = vld [vmem:[%s5112 + $0x38] sm:$0xff]
      %v5122 = vsel %vm787, %v5071, 0
      %v5125 = vsel %vm787, %v5072, 0
      %v5128 = vsel %vm787, %v5073, 0
      %v5131 = vsel %vm787, %v5074, 0
      %v5134 = vsel %vm787, %v5075, 0
      %v5137 = vsel %vm787, %v5076, 0
      %v5140 = vsel %vm787, %v5077, 0
      %v5143 = vsel %vm787, %v5078, 0
      %v5146 = vsel %vm787, %v5079, 0
      %v5149 = vsel %vm787, %v5080, 0
      %v5152 = vsel %vm787, %v5081, 0
      %v5155 = vsel %vm787, %v5082, 0
      %v5158 = vsel %vm787, %v5083, 0
      %v5161 = vsel %vm787, %v5084, 0
      %v5164 = vsel %vm787, %v5085, 0
      %v5167 = vsel %vm787, %v5086, 0
      %v5170 = vsel %vm787, %v5087, 0
      %v5173 = vsel %vm787, %v5088, 0
      %v5176 = vsel %vm787, %v5089, 0
      %v5179 = vsel %vm787, %v5090, 0
      %v5182 = vsel %vm787, %v5091, 0
      %v5185 = vsel %vm787, %v5092, 0
      %v5188 = vsel %vm787, %v5093, 0
      %v5191 = vsel %vm787, %v5094, 0
      %v5194 = vsel %vm787, %v5095, 0
      %v5197 = vsel %vm787, %v5096, 0
      %v5200 = vsel %vm787, %v5097, 0
      %v5203 = vsel %vm787, %v5098, 0
      %v5206 = vsel %vm787, %v5099, 0
      %v5209 = vsel %vm787, %v5100, 0
      %v5212 = vsel %vm787, %v5101, 0
      %v5215 = vsel %vm787, %v5102, 0
      %v5218 = vsel %vm787, %v5103, 0
      %v5221 = vsel %vm787, %v5104, 0
      %v5224 = vsel %vm787, %v5105, 0
      %v5227 = vsel %vm787, %v5106, 0
      %v5230 = vsel %vm787, %v5107, 0
      %v5233 = vsel %vm787, %v5108, 0
      %v5236 = vsel %vm787, %v5109, 0
      %v5239 = vsel %vm787, %v5110, 0
      %v5242 = vsel %vm787, %v5111, 0
      %5244 = vmatprep.subr.mxu0 0.0
      %5245 = vmatpush1.msra.mxu0 %v5113
      %5246 = vmatprep.subr.mxu0 0.0
      %5247 = vmatpush1.msra.mxu0 %v5114
      %5248 = vmatprep.subr.mxu0 0.0
      %5249 = vmatpush1.msra.mxu0 %v5115
      %5250 = vmatprep.subr.mxu0 0.0
      %5251 = vmatpush1.msra.mxu0 %v5116
      %5252 = vmatprep.subr.mxu0 0.0
      %5253 = vmatpush1.msra.mxu0 %v5117
      %5254 = vmatprep.subr.mxu0 0.0
      %5255 = vmatpush1.msra.mxu0 %v5118
      %5256 = vmatprep.subr.mxu0 0.0
      %5257 = vmatpush1.msra.mxu0 %v5119
      %5258 = vmatprep.subr.mxu0 0.0
      %5259 = vmatpush1.msra.mxu0 %v5120
      %5260 = vmatprep.subr.mxu0 0.0
      %5261 = vmatpush1.msra.mxu0 0.0
      %5262 = vmatprep.subr.mxu0 0.0
      %5263 = vmatpush1.msra.mxu0 0.0
      %5264 = vmatprep.subr.mxu0 0.0
      %5265 = vmatpush1.msra.mxu0 0.0
      %5266 = vmatprep.subr.mxu0 0.0
      %5267 = vmatpush1.msra.mxu0 0.0
      %5268 = vmatprep.subr.mxu0 0.0
      %5269 = vmatpush1.msra.mxu0 0.0
      %5270 = vmatprep.subr.mxu0 0.0
      %5271 = vmatpush1.msra.mxu0 0.0
      %5272 = vmatprep.subr.mxu0 0.0
      %5273 = vmatpush1.msra.mxu0 0.0
      %5274 = vmatprep.subr.mxu0 0.0
      %5275 = vmatpush1.msra.mxu0 0.0
      %5276 = vmatprep.subr.mxu0 0.0
      %5277 = vmatpush1.msra.mxu0 0.0
      %5278 = vmatprep.subr.mxu0 0.0
      %5279 = vmatpush1.msra.mxu0 0.0
      %5280 = vmatprep.subr.mxu0 0.0
      %5281 = vmatpush1.msra.mxu0 0.0
      %5282 = vmatprep.subr.mxu0 0.0
      %5283 = vmatpush1.msra.mxu0 0.0
      %5284 = vmatprep.subr.mxu0 0.0
      %5285 = vmatpush1.msra.mxu0 0.0
      %5286 = vmatprep.subr.mxu0 0.0
      %5287 = vmatpush1.msra.mxu0 0.0
      %5288 = vmatprep.subr.mxu0 0.0
      %5289 = vmatpush1.msra.mxu0 0.0
      %5290 = vmatprep.subr.mxu0 0.0
      %5291 = vmatpush1.msra.mxu0 0.0
      %5292 = vmatprep.subr.mxu0 0.0
      %5293 = vmatpush1.msra.mxu0 0.0
      %5294 = vmatprep.subr.mxu0 0.0
      %5295 = vmatpush1.msra.mxu0 0.0
      %5296 = vmatprep.subr.mxu0 0.0
      %5297 = vmatpush1.msra.mxu0 0.0
      %5298 = vmatprep.subr.mxu0 0.0
      %5299 = vmatpush1.msra.mxu0 0.0
      %5300 = vmatprep.subr.mxu0 0.0
      %5301 = vmatpush1.msra.mxu0 0.0
      %5302 = vmatprep.subr.mxu0 0.0
      %5303 = vmatpush1.msra.mxu0 0.0
      %5304 = vmatprep.subr.mxu0 0.0
      %5305 = vmatpush1.msra.mxu0 0.0
      %5306 = vmatprep.subr.mxu0 0.0
      %5307 = vmatpush1.msra.mxu0 0.0
      %5308 = vmatprep.mubr.f32.mxu0 0.0
      %5309 = vmatmul.mubr.f32.gmra.mrb[0].mxu0 %v5122
      %v5310 = vpop.f32.mrb[0].mxu0
      %v5311 = vadd.f32 0.0, %v5310
      %v5312 = vpop.f32.mrb[0].mxu0
      %5313 = vmatprep.mubr.f32.mxu0 0.0
      %5314 = vmatmul.mubr.f32.gmra.mrb[0].mxu0 %v5125
      %v5315 = vpop.f32.mrb[0].mxu0
      %v5316 = vadd.f32 0.0, %v5315
      %v5317 = vpop.f32.mrb[0].mxu0
      %5318 = vmatprep.mubr.f32.mxu0 0.0
      %5319 = vmatmul.mubr.f32.gmra.mrb[0].mxu0 %v5128
      %v5320 = vpop.f32.mrb[0].mxu0
      %v5321 = vadd.f32 0.0, %v5320
      %v5322 = vpop.f32.mrb[0].mxu0
      %5323 = vmatprep.mubr.f32.mxu0 0.0
      %5324 = vmatmul.mubr.f32.gmra.mrb[0].mxu0 %v5131
      %v5325 = vpop.f32.mrb[0].mxu0
      %v5326 = vadd.f32 0.0, %v5325
      %v5327 = vpop.f32.mrb[0].mxu0
      %5328 = vmatprep.mubr.f32.mxu0 0.0
      %5329 = vmatmul.mubr.f32.gmra.mrb[0].mxu0 %v5134
      %v5330 = vpop.f32.mrb[0].mxu0
      %v5331 = vadd.f32 0.0, %v5330
      %v5332 = vpop.f32.mrb[0].mxu0
      %5333 = vmatprep.mubr.f32.mxu0 0.0
      %5334 = vmatmul.mubr.f32.gmra.mrb[0].mxu0 %v5137
      %v5335 = vpop.f32.mrb[0].mxu0
      %v5336 = vadd.f32 0.0, %v5335
      %v5337 = vpop.f32.mrb[0].mxu0
      %5338 = vmatprep.mubr.f32.mxu0 0.0
      %5339 = vmatmul.mubr.f32.gmra.mrb[0].mxu0 %v5140
      %v5340 = vpop.f32.mrb[0].mxu0
      %v5341 = vadd.f32 0.0, %v5340
      %v5342 = vpop.f32.mrb[0].mxu0
      %5343 = vmatprep.mubr.f32.mxu0 0.0
      %5344 = vmatmul.mubr.f32.gmra.mrb[0].mxu0 %v5143
      %v5345 = vpop.f32.mrb[0].mxu0
      %v5346 = vadd.f32 0.0, %v5345
      %v5347 = vpop.f32.mrb[0].mxu0
      %5348 = vmatprep.mubr.f32.mxu0 0.0
      %5349 = vmatmul.mubr.f32.gmra.mrb[0].mxu0 %v5146
      %v5350 = vpop.f32.mrb[0].mxu0
      %v5351 = vadd.f32 0.0, %v5350
      %v5352 = vpop.f32.mrb[0].mxu0
      %5353 = vmatprep.mubr.f32.mxu0 0.0
      %5354 = vmatmul.mubr.f32.gmra.mrb[0].mxu0 %v5149
      %v5355 = vpop.f32.mrb[0].mxu0
      %v5356 = vadd.f32 0.0, %v5355
      %v5357 = vpop.f32.mrb[0].mxu0
      %5358 = vmatprep.mubr.f32.mxu0 0.0
      %5359 = vmatmul.mubr.f32.gmra.mrb[0].mxu0 %v5152
      %v5360 = vpop.f32.mrb[0].mxu0
      %v5361 = vadd.f32 0.0, %v5360
      %v5362 = vpop.f32.mrb[0].mxu0
      %5363 = vmatprep.mubr.f32.mxu0 0.0
      %5364 = vmatmul.mubr.f32.gmra.mrb[0].mxu0 %v5155
      %v5365 = vpop.f32.mrb[0].mxu0
      %v5366 = vadd.f32 0.0, %v5365
      %v5367 = vpop.f32.mrb[0].mxu0
      %5368 = vmatprep.mubr.f32.mxu0 0.0
      %5369 = vmatmul.mubr.f32.gmra.mrb[0].mxu0 %v5158
      %v5370 = vpop.f32.mrb[0].mxu0
      %v5371 = vadd.f32 0.0, %v5370
      %v5372 = vpop.f32.mrb[0].mxu0
      %5373 = vmatprep.mubr.f32.mxu0 0.0
      %5374 = vmatmul.mubr.f32.gmra.mrb[0].mxu0 %v5161
      %v5375 = vpop.f32.mrb[0].mxu0
      %v5376 = vadd.f32 0.0, %v5375
      %v5377 = vpop.f32.mrb[0].mxu0
      %5378 = vmatprep.mubr.f32.mxu0 0.0
      %5379 = vmatmul.mubr.f32.gmra.mrb[0].mxu0 %v5164
      %v5380 = vpop.f32.mrb[0].mxu0
      %v5381 = vadd.f32 0.0, %v5380
      %v5382 = vpop.f32.mrb[0].mxu0
      %5383 = vmatprep.mubr.f32.mxu0 0.0
      %5384 = vmatmul.mubr.f32.gmra.mrb[0].mxu0 %v5167
      %v5385 = vpop.f32.mrb[0].mxu0
      %v5386 = vadd.f32 0.0, %v5385
      %v5387 = vpop.f32.mrb[0].mxu0
      %5388 = vmatprep.mubr.f32.mxu0 0.0
      %5389 = vmatmul.mubr.f32.gmra.mrb[0].mxu0 %v5170
      %v5390 = vpop.f32.mrb[0].mxu0
      %v5391 = vadd.f32 0.0, %v5390
      %v5392 = vpop.f32.mrb[0].mxu0
      %5393 = vmatprep.mubr.f32.mxu0 0.0
      %5394 = vmatmul.mubr.f32.gmra.mrb[0].mxu0 %v5173
      %v5395 = vpop.f32.mrb[0].mxu0
      %v5396 = vadd.f32 0.0, %v5395
      %v5397 = vpop.f32.mrb[0].mxu0
      %5398 = vmatprep.mubr.f32.mxu0 0.0
      %5399 = vmatmul.mubr.f32.gmra.mrb[0].mxu0 %v5176
      %v5400 = vpop.f32.mrb[0].mxu0
      %v5401 = vadd.f32 0.0, %v5400
      %v5402 = vpop.f32.mrb[0].mxu0
      %5403 = vmatprep.mubr.f32.mxu0 0.0
      %5404 = vmatmul.mubr.f32.gmra.mrb[0].mxu0 %v5179
      %v5405 = vpop.f32.mrb[0].mxu0
      %v5406 = vadd.f32 0.0, %v5405
      %v5407 = vpop.f32.mrb[0].mxu0
      %5408 = vmatprep.mubr.f32.mxu0 0.0
      %5409 = vmatmul.mubr.f32.gmra.mrb[0].mxu0 %v5182
      %v5410 = vpop.f32.mrb[0].mxu0
      %v5411 = vadd.f32 0.0, %v5410
      %v5412 = vpop.f32.mrb[0].mxu0
      %5413 = vmatprep.mubr.f32.mxu0 0.0
      %5414 = vmatmul.mubr.f32.gmra.mrb[0].mxu0 %v5185
      %v5415 = vpop.f32.mrb[0].mxu0
      %v5416 = vadd.f32 0.0, %v5415
      %v5417 = vpop.f32.mrb[0].mxu0
      %5418 = vmatprep.mubr.f32.mxu0 0.0
      %5419 = vmatmul.mubr.f32.gmra.mrb[0].mxu0 %v5188
      %v5420 = vpop.f32.mrb[0].mxu0
      %v5421 = vadd.f32 0.0, %v5420
      %v5422 = vpop.f32.mrb[0].mxu0
      %5423 = vmatprep.mubr.f32.mxu0 0.0
      %5424 = vmatmul.mubr.f32.gmra.mrb[0].mxu0 %v5191
      %v5425 = vpop.f32.mrb[0].mxu0
      %v5426 = vadd.f32 0.0, %v5425
      %v5427 = vpop.f32.mrb[0].mxu0
      %5428 = vmatprep.mubr.f32.mxu0 0.0
      %5429 = vmatmul.mubr.f32.gmra.mrb[0].mxu0 %v5194
      %v5430 = vpop.f32.mrb[0].mxu0
      %v5431 = vadd.f32 0.0, %v5430
      %v5432 = vpop.f32.mrb[0].mxu0
      %5433 = vmatprep.mubr.f32.mxu0 0.0
      %5434 = vmatmul.mubr.f32.gmra.mrb[0].mxu0 %v5197
      %v5435 = vpop.f32.mrb[0].mxu0
      %v5436 = vadd.f32 0.0, %v5435
      %v5437 = vpop.f32.mrb[0].mxu0
      %5438 = vmatprep.mubr.f32.mxu0 0.0
      %5439 = vmatmul.mubr.f32.gmra.mrb[0].mxu0 %v5200
      %v5440 = vpop.f32.mrb[0].mxu0
      %v5441 = vadd.f32 0.0, %v5440
      %v5442 = vpop.f32.mrb[0].mxu0
      %5443 = vmatprep.mubr.f32.mxu0 0.0
      %5444 = vmatmul.mubr.f32.gmra.mrb[0].mxu0 %v5203
      %v5445 = vpop.f32.mrb[0].mxu0
      %v5446 = vadd.f32 0.0, %v5445
      %v5447 = vpop.f32.mrb[0].mxu0
      %5448 = vmatprep.mubr.f32.mxu0 0.0
      %5449 = vmatmul.mubr.f32.gmra.mrb[0].mxu0 %v5206
      %v5450 = vpop.f32.mrb[0].mxu0
      %v5451 = vadd.f32 0.0, %v5450
      %v5452 = vpop.f32.mrb[0].mxu0
      %5453 = vmatprep.mubr.f32.mxu0 0.0
      %5454 = vmatmul.mubr.f32.gmra.mrb[0].mxu0 %v5209
      %v5455 = vpop.f32.mrb[0].mxu0
      %v5456 = vadd.f32 0.0, %v5455
      %v5457 = vpop.f32.mrb[0].mxu0
      %5458 = vmatprep.mubr.f32.mxu0 0.0
      %5459 = vmatmul.mubr.f32.gmra.mrb[0].mxu0 %v5212
      %v5460 = vpop.f32.mrb[0].mxu0
      %v5461 = vadd.f32 0.0, %v5460
      %v5462 = vpop.f32.mrb[0].mxu0
      %5463 = vmatprep.mubr.f32.mxu0 0.0
      %5464 = vmatmul.mubr.f32.gmra.mrb[0].mxu0 %v5215
      %v5465 = vpop.f32.mrb[0].mxu0
      %v5466 = vadd.f32 0.0, %v5465
      %v5467 = vpop.f32.mrb[0].mxu0
      %5468 = vmatprep.mubr.f32.mxu0 0.0
      %5469 = vmatmul.mubr.f32.gmra.mrb[0].mxu0 %v5218
      %v5470 = vpop.f32.mrb[0].mxu0
      %v5471 = vadd.f32 0.0, %v5470
      %v5472 = vpop.f32.mrb[0].mxu0
      %5473 = vmatprep.mubr.f32.mxu0 0.0
      %5474 = vmatmul.mubr.f32.gmra.mrb[0].mxu0 %v5221
      %v5475 = vpop.f32.mrb[0].mxu0
      %v5476 = vadd.f32 0.0, %v5475
      %v5477 = vpop.f32.mrb[0].mxu0
      %5478 = vmatprep.mubr.f32.mxu0 0.0
      %5479 = vmatmul.mubr.f32.gmra.mrb[0].mxu0 %v5224
      %v5480 = vpop.f32.mrb[0].mxu0
      %v5481 = vadd.f32 0.0, %v5480
      %v5482 = vpop.f32.mrb[0].mxu0
      %5483 = vmatprep.mubr.f32.mxu0 0.0
      %5484 = vmatmul.mubr.f32.gmra.mrb[0].mxu0 %v5227
      %v5485 = vpop.f32.mrb[0].mxu0
      %v5486 = vadd.f32 0.0, %v5485
      %v5487 = vpop.f32.mrb[0].mxu0
      %5488 = vmatprep.mubr.f32.mxu0 0.0
      %5489 = vmatmul.mubr.f32.gmra.mrb[0].mxu0 %v5230
      %v5490 = vpop.f32.mrb[0].mxu0
      %v5491 = vadd.f32 0.0, %v5490
      %v5492 = vpop.f32.mrb[0].mxu0
      %5493 = vmatprep.mubr.f32.mxu0 0.0
      %5494 = vmatmul.mubr.f32.gmra.mrb[0].mxu0 %v5233
      %v5495 = vpop.f32.mrb[0].mxu0
      %v5496 = vadd.f32 0.0, %v5495
      %v5497 = vpop.f32.mrb[0].mxu0
      %5498 = vmatprep.mubr.f32.mxu0 0.0
      %5499 = vmatmul.mubr.f32.gmra.mrb[0].mxu0 %v5236
      %v5500 = vpop.f32.mrb[0].mxu0
      %v5501 = vadd.f32 0.0, %v5500
      %v5502 = vpop.f32.mrb[0].mxu0
      %5503 = vmatprep.mubr.f32.mxu0 0.0
      %5504 = vmatmul.mubr.f32.gmra.mrb[0].mxu0 %v5239
      %v5505 = vpop.f32.mrb[0].mxu0
      %v5506 = vadd.f32 0.0, %v5505
      %v5507 = vpop.f32.mrb[0].mxu0
      %5508 = vmatprep.mubr.f32.mxu0 0.0
      %5509 = vmatmul.mubr.f32.gmra.mrb[0].mxu0 %v5242
      %v5510 = vpop.f32.mrb[0].mxu0
      %v5511 = vadd.f32 0.0, %v5510
      %v5512 = vpop.f32.mrb[0].mxu0
      %5513 = vdwg.mxu0
      %v5514 = vadd.f32 %v5030, %v5311
      %v5515 = vadd.f32 %v5031, %v5316
      %v5516 = vadd.f32 %v5032, %v5321
      %v5517 = vadd.f32 %v5033, %v5326
      %v5518 = vadd.f32 %v5034, %v5331
      %v5519 = vadd.f32 %v5035, %v5336
      %v5520 = vadd.f32 %v5036, %v5341
      %v5521 = vadd.f32 %v5037, %v5346
      %v5522 = vadd.f32 %v5038, %v5351
      %v5523 = vadd.f32 %v5039, %v5356
      %v5524 = vadd.f32 %v5040, %v5361
      %v5525 = vadd.f32 %v5041, %v5366
      %v5526 = vadd.f32 %v5042, %v5371
      %v5527 = vadd.f32 %v5043, %v5376
      %v5528 = vadd.f32 %v5044, %v5381
      %v5529 = vadd.f32 %v5045, %v5386
      %v5530 = vadd.f32 %v5046, %v5391
      %v5531 = vadd.f32 %v5047, %v5396
      %v5532 = vadd.f32 %v5048, %v5401
      %v5533 = vadd.f32 %v5049, %v5406
      %v5534 = vadd.f32 %v5050, %v5411
      %v5535 = vadd.f32 %v5051, %v5416
      %v5536 = vadd.f32 %v5052, %v5421
      %v5537 = vadd.f32 %v5053, %v5426
      %v5538 = vadd.f32 %v5054, %v5431
      %v5539 = vadd.f32 %v5055, %v5436
      %v5540 = vadd.f32 %v5056, %v5441
      %v5541 = vadd.f32 %v5057, %v5446
      %v5542 = vadd.f32 %v5058, %v5451
      %v5543 = vadd.f32 %v5059, %v5456
      %v5544 = vadd.f32 %v5060, %v5461
      %v5545 = vadd.f32 %v5061, %v5466
      %v5546 = vadd.f32 %v5062, %v5471
      %v5547 = vadd.f32 %v5063, %v5476
      %v5548 = vadd.f32 %v5064, %v5481
      %v5549 = vadd.f32 %v5065, %v5486
      %v5550 = vadd.f32 %v5066, %v5491
      %v5551 = vadd.f32 %v5067, %v5496
      %v5552 = vadd.f32 %v5068, %v5501
      %v5553 = vadd.f32 %v5069, %v5506
      %v5554 = vadd.f32 %v5070, %v5511
      %v5555 = vld [vmem:[#allocation3 + $0x25] sm:$0xff]
      %v5556 = vld [vmem:[#allocation3 + $0x2d] sm:$0xff]
      %v5557 = vld [vmem:[#allocation3 + $0x35] sm:$0xff]
      %v5558 = vld [vmem:[#allocation3 + $0x3d] sm:$0xff]
      %v5559 = vld [vmem:[#allocation3 + $0x45] sm:$0xff]
      %v5560 = vld [vmem:[#allocation3 + $0x4d] sm:$0xff]
      %v5561 = vld [vmem:[#allocation3 + $0x55] sm:$0xff]
      %v5562 = vld [vmem:[#allocation3 + $0x5d] sm:$0xff]
      %v5563 = vld [vmem:[#allocation3 + $0x65] sm:$0xff]
      %v5564 = vld [vmem:[#allocation3 + $0x6d] sm:$0xff]
      %v5565 = vld [vmem:[#allocation3 + $0x75] sm:$0xff]
      %v5566 = vld [vmem:[#allocation3 + $0x7d] sm:$0xff]
      %v5567 = vld [vmem:[#allocation3 + $0x85] sm:$0xff]
      %v5568 = vld [vmem:[#allocation3 + $0x8d] sm:$0xff]
      %v5569 = vld [vmem:[#allocation3 + $0x95] sm:$0xff]
      %v5570 = vld [vmem:[#allocation3 + $0x9d] sm:$0xff]
      %v5571 = vld [vmem:[#allocation3 + $0xa5] sm:$0xff]
      %v5572 = vld [vmem:[#allocation3 + $0xad] sm:$0xff]
      %v5573 = vld [vmem:[#allocation3 + $0xb5] sm:$0xff]
      %v5574 = vld [vmem:[#allocation3 + $0xbd] sm:$0xff]
      %v5575 = vld [vmem:[#allocation3 + $0xc5] sm:$0xff]
      %v5576 = vld [vmem:[#allocation3 + $0xcd] sm:$0xff]
      %v5577 = vld [vmem:[#allocation3 + $0xd5] sm:$0xff]
      %v5578 = vld [vmem:[#allocation3 + $0xdd] sm:$0xff]
      %v5579 = vld [vmem:[#allocation3 + $0xe5] sm:$0xff]
      %v5580 = vld [vmem:[#allocation3 + $0xed] sm:$0xff]
      %v5581 = vld [vmem:[#allocation3 + $0xf5] sm:$0xff]
      %v5582 = vld [vmem:[#allocation3 + $0xfd] sm:$0xff]
      %v5583 = vld [vmem:[#allocation3 + $0x105] sm:$0xff]
      %v5584 = vld [vmem:[#allocation3 + $0x10d] sm:$0xff]
      %v5585 = vld [vmem:[#allocation3 + $0x115] sm:$0xff]
      %v5586 = vld [vmem:[#allocation3 + $0x11d] sm:$0xff]
      %v5587 = vld [vmem:[#allocation3 + $0x125] sm:$0xff]
      %v5588 = vld [vmem:[#allocation3 + $0x12d] sm:$0xff]
      %v5589 = vld [vmem:[#allocation3 + $0x135] sm:$0xff]
      %v5590 = vld [vmem:[#allocation3 + $0x13d] sm:$0xff]
      %v5591 = vld [vmem:[#allocation3 + $0x145] sm:$0xff]
      %v5592 = vld [vmem:[#allocation3 + $0x14d] sm:$0xff]
      %v5593 = vld [vmem:[#allocation3 + $0x155] sm:$0xff]
      %v5594 = vld [vmem:[#allocation3 + $0x15d] sm:$0xff]
      %v5595 = vld [vmem:[#allocation3 + $0x165] sm:$0xf]
      %s5596 = scalar_lea.vmem %s9, 448
      %v5597 = vld [vmem:[%s5596] sm:$0xff]
      %v5598 = vld [vmem:[%s5596 + $0x8] sm:$0xff]
      %v5599 = vld [vmem:[%s5596 + $0x10] sm:$0xff]
      %v5600 = vld [vmem:[%s5596 + $0x18] sm:$0xff]
      %v5601 = vld [vmem:[%s5596 + $0x20] sm:$0xff]
      %v5602 = vld [vmem:[%s5596 + $0x28] sm:$0xff]
      %v5603 = vld [vmem:[%s5596 + $0x30] sm:$0xff]
      %v5604 = vld [vmem:[%s5596 + $0x38] sm:$0xff]
      %v5606 = vsel %vm787, %v5555, 0
      %v5609 = vsel %vm787, %v5556, 0
      %v5612 = vsel %vm787, %v5557, 0
      %v5615 = vsel %vm787, %v5558, 0
      %v5618 = vsel %vm787, %v5559, 0
      %v5621 = vsel %vm787, %v5560, 0
      %v5624 = vsel %vm787, %v5561, 0
      %v5627 = vsel %vm787, %v5562, 0
      %v5630 = vsel %vm787, %v5563, 0
      %v5633 = vsel %vm787, %v5564, 0
      %v5636 = vsel %vm787, %v5565, 0
      %v5639 = vsel %vm787, %v5566, 0
      %v5642 = vsel %vm787, %v5567, 0
      %v5645 = vsel %vm787, %v5568, 0
      %v5648 = vsel %vm787, %v5569, 0
      %v5651 = vsel %vm787, %v5570, 0
      %v5654 = vsel %vm787, %v5571, 0
      %v5657 = vsel %vm787, %v5572, 0
      %v5660 = vsel %vm787, %v5573, 0
      %v5663 = vsel %vm787, %v5574, 0
      %v5666 = vsel %vm787, %v5575, 0
      %v5669 = vsel %vm787, %v5576, 0
      %v5672 = vsel %vm787, %v5577, 0
      %v5675 = vsel %vm787, %v5578, 0
      %v5678 = vsel %vm787, %v5579, 0
      %v5681 = vsel %vm787, %v5580, 0
      %v5684 = vsel %vm787, %v5581, 0
      %v5687 = vsel %vm787, %v5582, 0
      %v5690 = vsel %vm787, %v5583, 0
      %v5693 = vsel %vm787, %v5584, 0
      %v5696 = vsel %vm787, %v5585, 0
      %v5699 = vsel %vm787, %v5586, 0
      %v5702 = vsel %vm787, %v5587, 0
      %v5705 = vsel %vm787, %v5588, 0
      %v5708 = vsel %vm787, %v5589, 0
      %v5711 = vsel %vm787, %v5590, 0
      %v5714 = vsel %vm787, %v5591, 0
      %v5717 = vsel %vm787, %v5592, 0
      %v5720 = vsel %vm787, %v5593, 0
      %v5723 = vsel %vm787, %v5594, 0
      %v5726 = vsel %vm787, %v5595, 0
      %5728 = vmatprep.subr.mxu0 0.0
      %5729 = vmatpush1.msra.mxu0 %v5597
      %5730 = vmatprep.subr.mxu0 0.0
      %5731 = vmatpush1.msra.mxu0 %v5598
      %5732 = vmatprep.subr.mxu0 0.0
      %5733 = vmatpush1.msra.mxu0 %v5599
      %5734 = vmatprep.subr.mxu0 0.0
      %5735 = vmatpush1.msra.mxu0 %v5600
      %5736 = vmatprep.subr.mxu0 0.0
      %5737 = vmatpush1.msra.mxu0 %v5601
      %5738 = vmatprep.subr.mxu0 0.0
      %5739 = vmatpush1.msra.mxu0 %v5602
      %5740 = vmatprep.subr.mxu0 0.0
      %5741 = vmatpush1.msra.mxu0 %v5603
      %5742 = vmatprep.subr.mxu0 0.0
      %5743 = vmatpush1.msra.mxu0 %v5604
      %5744 = vmatprep.subr.mxu0 0.0
      %5745 = vmatpush1.msra.mxu0 0.0
      %5746 = vmatprep.subr.mxu0 0.0
      %5747 = vmatpush1.msra.mxu0 0.0
      %5748 = vmatprep.subr.mxu0 0.0
      %5749 = vmatpush1.msra.mxu0 0.0
      %5750 = vmatprep.subr.mxu0 0.0
      %5751 = vmatpush1.msra.mxu0 0.0
      %5752 = vmatprep.subr.mxu0 0.0
      %5753 = vmatpush1.msra.mxu0 0.0
      %5754 = vmatprep.subr.mxu0 0.0
      %5755 = vmatpush1.msra.mxu0 0.0
      %5756 = vmatprep.subr.mxu0 0.0
      %5757 = vmatpush1.msra.mxu0 0.0
      %5758 = vmatprep.subr.mxu0 0.0
      %5759 = vmatpush1.msra.mxu0 0.0
      %5760 = vmatprep.subr.mxu0 0.0
      %5761 = vmatpush1.msra.mxu0 0.0
      %5762 = vmatprep.subr.mxu0 0.0
      %5763 = vmatpush1.msra.mxu0 0.0
      %5764 = vmatprep.subr.mxu0 0.0
      %5765 = vmatpush1.msra.mxu0 0.0
      %5766 = vmatprep.subr.mxu0 0.0
      %5767 = vmatpush1.msra.mxu0 0.0
      %5768 = vmatprep.subr.mxu0 0.0
      %5769 = vmatpush1.msra.mxu0 0.0
      %5770 = vmatprep.subr.mxu0 0.0
      %5771 = vmatpush1.msra.mxu0 0.0
      %5772 = vmatprep.subr.mxu0 0.0
      %5773 = vmatpush1.msra.mxu0 0.0
      %5774 = vmatprep.subr.mxu0 0.0
      %5775 = vmatpush1.msra.mxu0 0.0
      %5776 = vmatprep.subr.mxu0 0.0
      %5777 = vmatpush1.msra.mxu0 0.0
      %5778 = vmatprep.subr.mxu0 0.0
      %5779 = vmatpush1.msra.mxu0 0.0
      %5780 = vmatprep.subr.mxu0 0.0
      %5781 = vmatpush1.msra.mxu0 0.0
      %5782 = vmatprep.subr.mxu0 0.0
      %5783 = vmatpush1.msra.mxu0 0.0
      %5784 = vmatprep.subr.mxu0 0.0
      %5785 = vmatpush1.msra.mxu0 0.0
      %5786 = vmatprep.subr.mxu0 0.0
      %5787 = vmatpush1.msra.mxu0 0.0
      %5788 = vmatprep.subr.mxu0 0.0
      %5789 = vmatpush1.msra.mxu0 0.0
      %5790 = vmatprep.subr.mxu0 0.0
      %5791 = vmatpush1.msra.mxu0 0.0
      %5792 = vmatprep.mubr.f32.mxu0 0.0
      %5793 = vmatmul.mubr.f32.gmra.mrb[0].mxu0 %v5606
      %v5794 = vpop.f32.mrb[0].mxu0
      %v5795 = vadd.f32 0.0, %v5794
      %v5796 = vpop.f32.mrb[0].mxu0
      %5797 = vmatprep.mubr.f32.mxu0 0.0
      %5798 = vmatmul.mubr.f32.gmra.mrb[0].mxu0 %v5609
      %v5799 = vpop.f32.mrb[0].mxu0
      %v5800 = vadd.f32 0.0, %v5799
      %v5801 = vpop.f32.mrb[0].mxu0
      %5802 = vmatprep.mubr.f32.mxu0 0.0
      %5803 = vmatmul.mubr.f32.gmra.mrb[0].mxu0 %v5612
      %v5804 = vpop.f32.mrb[0].mxu0
      %v5805 = vadd.f32 0.0, %v5804
      %v5806 = vpop.f32.mrb[0].mxu0
      %5807 = vmatprep.mubr.f32.mxu0 0.0
      %5808 = vmatmul.mubr.f32.gmra.mrb[0].mxu0 %v5615
      %v5809 = vpop.f32.mrb[0].mxu0
      %v5810 = vadd.f32 0.0, %v5809
      %v5811 = vpop.f32.mrb[0].mxu0
      %5812 = vmatprep.mubr.f32.mxu0 0.0
      %5813 = vmatmul.mubr.f32.gmra.mrb[0].mxu0 %v5618
      %v5814 = vpop.f32.mrb[0].mxu0
      %v5815 = vadd.f32 0.0, %v5814
      %v5816 = vpop.f32.mrb[0].mxu0
      %5817 = vmatprep.mubr.f32.mxu0 0.0
      %5818 = vmatmul.mubr.f32.gmra.mrb[0].mxu0 %v5621
      %v5819 = vpop.f32.mrb[0].mxu0
      %v5820 = vadd.f32 0.0, %v5819
      %v5821 = vpop.f32.mrb[0].mxu0
      %5822 = vmatprep.mubr.f32.mxu0 0.0
      %5823 = vmatmul.mubr.f32.gmra.mrb[0].mxu0 %v5624
      %v5824 = vpop.f32.mrb[0].mxu0
      %v5825 = vadd.f32 0.0, %v5824
      %v5826 = vpop.f32.mrb[0].mxu0
      %5827 = vmatprep.mubr.f32.mxu0 0.0
      %5828 = vmatmul.mubr.f32.gmra.mrb[0].mxu0 %v5627
      %v5829 = vpop.f32.mrb[0].mxu0
      %v5830 = vadd.f32 0.0, %v5829
      %v5831 = vpop.f32.mrb[0].mxu0
      %5832 = vmatprep.mubr.f32.mxu0 0.0
      %5833 = vmatmul.mubr.f32.gmra.mrb[0].mxu0 %v5630
      %v5834 = vpop.f32.mrb[0].mxu0
      %v5835 = vadd.f32 0.0, %v5834
      %v5836 = vpop.f32.mrb[0].mxu0
      %5837 = vmatprep.mubr.f32.mxu0 0.0
      %5838 = vmatmul.mubr.f32.gmra.mrb[0].mxu0 %v5633
      %v5839 = vpop.f32.mrb[0].mxu0
      %v5840 = vadd.f32 0.0, %v5839
      %v5841 = vpop.f32.mrb[0].mxu0
      %5842 = vmatprep.mubr.f32.mxu0 0.0
      %5843 = vmatmul.mubr.f32.gmra.mrb[0].mxu0 %v5636
      %v5844 = vpop.f32.mrb[0].mxu0
      %v5845 = vadd.f32 0.0, %v5844
      %v5846 = vpop.f32.mrb[0].mxu0
      %5847 = vmatprep.mubr.f32.mxu0 0.0
      %5848 = vmatmul.mubr.f32.gmra.mrb[0].mxu0 %v5639
      %v5849 = vpop.f32.mrb[0].mxu0
      %v5850 = vadd.f32 0.0, %v5849
      %v5851 = vpop.f32.mrb[0].mxu0
      %5852 = vmatprep.mubr.f32.mxu0 0.0
      %5853 = vmatmul.mubr.f32.gmra.mrb[0].mxu0 %v5642
      %v5854 = vpop.f32.mrb[0].mxu0
      %v5855 = vadd.f32 0.0, %v5854
      %v5856 = vpop.f32.mrb[0].mxu0
      %5857 = vmatprep.mubr.f32.mxu0 0.0
      %5858 = vmatmul.mubr.f32.gmra.mrb[0].mxu0 %v5645
      %v5859 = vpop.f32.mrb[0].mxu0
      %v5860 = vadd.f32 0.0, %v5859
      %v5861 = vpop.f32.mrb[0].mxu0
      %5862 = vmatprep.mubr.f32.mxu0 0.0
      %5863 = vmatmul.mubr.f32.gmra.mrb[0].mxu0 %v5648
      %v5864 = vpop.f32.mrb[0].mxu0
      %v5865 = vadd.f32 0.0, %v5864
      %v5866 = vpop.f32.mrb[0].mxu0
      %5867 = vmatprep.mubr.f32.mxu0 0.0
      %5868 = vmatmul.mubr.f32.gmra.mrb[0].mxu0 %v5651
      %v5869 = vpop.f32.mrb[0].mxu0
      %v5870 = vadd.f32 0.0, %v5869
      %v5871 = vpop.f32.mrb[0].mxu0
      %5872 = vmatprep.mubr.f32.mxu0 0.0
      %5873 = vmatmul.mubr.f32.gmra.mrb[0].mxu0 %v5654
      %v5874 = vpop.f32.mrb[0].mxu0
      %v5875 = vadd.f32 0.0, %v5874
      %v5876 = vpop.f32.mrb[0].mxu0
      %5877 = vmatprep.mubr.f32.mxu0 0.0
      %5878 = vmatmul.mubr.f32.gmra.mrb[0].mxu0 %v5657
      %v5879 = vpop.f32.mrb[0].mxu0
      %v5880 = vadd.f32 0.0, %v5879
      %v5881 = vpop.f32.mrb[0].mxu0
      %5882 = vmatprep.mubr.f32.mxu0 0.0
      %5883 = vmatmul.mubr.f32.gmra.mrb[0].mxu0 %v5660
      %v5884 = vpop.f32.mrb[0].mxu0
      %v5885 = vadd.f32 0.0, %v5884
      %v5886 = vpop.f32.mrb[0].mxu0
      %5887 = vmatprep.mubr.f32.mxu0 0.0
      %5888 = vmatmul.mubr.f32.gmra.mrb[0].mxu0 %v5663
      %v5889 = vpop.f32.mrb[0].mxu0
      %v5890 = vadd.f32 0.0, %v5889
      %v5891 = vpop.f32.mrb[0].mxu0
      %5892 = vmatprep.mubr.f32.mxu0 0.0
      %5893 = vmatmul.mubr.f32.gmra.mrb[0].mxu0 %v5666
      %v5894 = vpop.f32.mrb[0].mxu0
      %v5895 = vadd.f32 0.0, %v5894
      %v5896 = vpop.f32.mrb[0].mxu0
      %5897 = vmatprep.mubr.f32.mxu0 0.0
      %5898 = vmatmul.mubr.f32.gmra.mrb[0].mxu0 %v5669
      %v5899 = vpop.f32.mrb[0].mxu0
      %v5900 = vadd.f32 0.0, %v5899
      %v5901 = vpop.f32.mrb[0].mxu0
      %5902 = vmatprep.mubr.f32.mxu0 0.0
      %5903 = vmatmul.mubr.f32.gmra.mrb[0].mxu0 %v5672
      %v5904 = vpop.f32.mrb[0].mxu0
      %v5905 = vadd.f32 0.0, %v5904
      %v5906 = vpop.f32.mrb[0].mxu0
      %5907 = vmatprep.mubr.f32.mxu0 0.0
      %5908 = vmatmul.mubr.f32.gmra.mrb[0].mxu0 %v5675
      %v5909 = vpop.f32.mrb[0].mxu0
      %v5910 = vadd.f32 0.0, %v5909
      %v5911 = vpop.f32.mrb[0].mxu0
      %5912 = vmatprep.mubr.f32.mxu0 0.0
      %5913 = vmatmul.mubr.f32.gmra.mrb[0].mxu0 %v5678
      %v5914 = vpop.f32.mrb[0].mxu0
      %v5915 = vadd.f32 0.0, %v5914
      %v5916 = vpop.f32.mrb[0].mxu0
      %5917 = vmatprep.mubr.f32.mxu0 0.0
      %5918 = vmatmul.mubr.f32.gmra.mrb[0].mxu0 %v5681
      %v5919 = vpop.f32.mrb[0].mxu0
      %v5920 = vadd.f32 0.0, %v5919
      %v5921 = vpop.f32.mrb[0].mxu0
      %5922 = vmatprep.mubr.f32.mxu0 0.0
      %5923 = vmatmul.mubr.f32.gmra.mrb[0].mxu0 %v5684
      %v5924 = vpop.f32.mrb[0].mxu0
      %v5925 = vadd.f32 0.0, %v5924
      %v5926 = vpop.f32.mrb[0].mxu0
      %5927 = vmatprep.mubr.f32.mxu0 0.0
      %5928 = vmatmul.mubr.f32.gmra.mrb[0].mxu0 %v5687
      %v5929 = vpop.f32.mrb[0].mxu0
      %v5930 = vadd.f32 0.0, %v5929
      %v5931 = vpop.f32.mrb[0].mxu0
      %5932 = vmatprep.mubr.f32.mxu0 0.0
      %5933 = vmatmul.mubr.f32.gmra.mrb[0].mxu0 %v5690
      %v5934 = vpop.f32.mrb[0].mxu0
      %v5935 = vadd.f32 0.0, %v5934
      %v5936 = vpop.f32.mrb[0].mxu0
      %5937 = vmatprep.mubr.f32.mxu0 0.0
      %5938 = vmatmul.mubr.f32.gmra.mrb[0].mxu0 %v5693
      %v5939 = vpop.f32.mrb[0].mxu0
      %v5940 = vadd.f32 0.0, %v5939
      %v5941 = vpop.f32.mrb[0].mxu0
      %5942 = vmatprep.mubr.f32.mxu0 0.0
      %5943 = vmatmul.mubr.f32.gmra.mrb[0].mxu0 %v5696
      %v5944 = vpop.f32.mrb[0].mxu0
      %v5945 = vadd.f32 0.0, %v5944
      %v5946 = vpop.f32.mrb[0].mxu0
      %5947 = vmatprep.mubr.f32.mxu0 0.0
      %5948 = vmatmul.mubr.f32.gmra.mrb[0].mxu0 %v5699
      %v5949 = vpop.f32.mrb[0].mxu0
      %v5950 = vadd.f32 0.0, %v5949
      %v5951 = vpop.f32.mrb[0].mxu0
      %5952 = vmatprep.mubr.f32.mxu0 0.0
      %5953 = vmatmul.mubr.f32.gmra.mrb[0].mxu0 %v5702
      %v5954 = vpop.f32.mrb[0].mxu0
      %v5955 = vadd.f32 0.0, %v5954
      %v5956 = vpop.f32.mrb[0].mxu0
      %5957 = vmatprep.mubr.f32.mxu0 0.0
      %5958 = vmatmul.mubr.f32.gmra.mrb[0].mxu0 %v5705
      %v5959 = vpop.f32.mrb[0].mxu0
      %v5960 = vadd.f32 0.0, %v5959
      %v5961 = vpop.f32.mrb[0].mxu0
      %5962 = vmatprep.mubr.f32.mxu0 0.0
      %5963 = vmatmul.mubr.f32.gmra.mrb[0].mxu0 %v5708
      %v5964 = vpop.f32.mrb[0].mxu0
      %v5965 = vadd.f32 0.0, %v5964
      %v5966 = vpop.f32.mrb[0].mxu0
      %5967 = vmatprep.mubr.f32.mxu0 0.0
      %5968 = vmatmul.mubr.f32.gmra.mrb[0].mxu0 %v5711
      %v5969 = vpop.f32.mrb[0].mxu0
      %v5970 = vadd.f32 0.0, %v5969
      %v5971 = vpop.f32.mrb[0].mxu0
      %5972 = vmatprep.mubr.f32.mxu0 0.0
      %5973 = vmatmul.mubr.f32.gmra.mrb[0].mxu0 %v5714
      %v5974 = vpop.f32.mrb[0].mxu0
      %v5975 = vadd.f32 0.0, %v5974
      %v5976 = vpop.f32.mrb[0].mxu0
      %5977 = vmatprep.mubr.f32.mxu0 0.0
      %5978 = vmatmul.mubr.f32.gmra.mrb[0].mxu0 %v5717
      %v5979 = vpop.f32.mrb[0].mxu0
      %v5980 = vadd.f32 0.0, %v5979
      %v5981 = vpop.f32.mrb[0].mxu0
      %5982 = vmatprep.mubr.f32.mxu0 0.0
      %5983 = vmatmul.mubr.f32.gmra.mrb[0].mxu0 %v5720
      %v5984 = vpop.f32.mrb[0].mxu0
      %v5985 = vadd.f32 0.0, %v5984
      %v5986 = vpop.f32.mrb[0].mxu0
      %5987 = vmatprep.mubr.f32.mxu0 0.0
      %5988 = vmatmul.mubr.f32.gmra.mrb[0].mxu0 %v5723
      %v5989 = vpop.f32.mrb[0].mxu0
      %v5990 = vadd.f32 0.0, %v5989
      %v5991 = vpop.f32.mrb[0].mxu0
      %5992 = vmatprep.mubr.f32.mxu0 0.0
      %5993 = vmatmul.mubr.f32.gmra.mrb[0].mxu0 %v5726
      %v5994 = vpop.f32.mrb[0].mxu0
      %v5995 = vadd.f32 0.0, %v5994
      %v5996 = vpop.f32.mrb[0].mxu0
      %5997 = vdwg.mxu0
      %v5998 = vadd.f32 %v5514, %v5795
      %v5999 = vadd.f32 %v5515, %v5800
      %v6000 = vadd.f32 %v5516, %v5805
      %v6001 = vadd.f32 %v5517, %v5810
      %v6002 = vadd.f32 %v5518, %v5815
      %v6003 = vadd.f32 %v5519, %v5820
      %v6004 = vadd.f32 %v5520, %v5825
      %v6005 = vadd.f32 %v5521, %v5830
      %v6006 = vadd.f32 %v5522, %v5835
      %v6007 = vadd.f32 %v5523, %v5840
      %v6008 = vadd.f32 %v5524, %v5845
      %v6009 = vadd.f32 %v5525, %v5850
      %v6010 = vadd.f32 %v5526, %v5855
      %v6011 = vadd.f32 %v5527, %v5860
      %v6012 = vadd.f32 %v5528, %v5865
      %v6013 = vadd.f32 %v5529, %v5870
      %v6014 = vadd.f32 %v5530, %v5875
      %v6015 = vadd.f32 %v5531, %v5880
      %v6016 = vadd.f32 %v5532, %v5885
      %v6017 = vadd.f32 %v5533, %v5890
      %v6018 = vadd.f32 %v5534, %v5895
      %v6019 = vadd.f32 %v5535, %v5900
      %v6020 = vadd.f32 %v5536, %v5905
      %v6021 = vadd.f32 %v5537, %v5910
      %v6022 = vadd.f32 %v5538, %v5915
      %v6023 = vadd.f32 %v5539, %v5920
      %v6024 = vadd.f32 %v5540, %v5925
      %v6025 = vadd.f32 %v5541, %v5930
      %v6026 = vadd.f32 %v5542, %v5935
      %v6027 = vadd.f32 %v5543, %v5940
      %v6028 = vadd.f32 %v5544, %v5945
      %v6029 = vadd.f32 %v5545, %v5950
      %v6030 = vadd.f32 %v5546, %v5955
      %v6031 = vadd.f32 %v5547, %v5960
      %v6032 = vadd.f32 %v5548, %v5965
      %v6033 = vadd.f32 %v5549, %v5970
      %v6034 = vadd.f32 %v5550, %v5975
      %v6035 = vadd.f32 %v5551, %v5980
      %v6036 = vadd.f32 %v5552, %v5985
      %v6037 = vadd.f32 %v5553, %v5990
      %v6038 = vadd.f32 %v5554, %v5995
      %v6039 = vld [vmem:[#allocation3 + $0x26] sm:$0xff]
      %v6040 = vld [vmem:[#allocation3 + $0x2e] sm:$0xff]
      %v6041 = vld [vmem:[#allocation3 + $0x36] sm:$0xff]
      %v6042 = vld [vmem:[#allocation3 + $0x3e] sm:$0xff]
      %v6043 = vld [vmem:[#allocation3 + $0x46] sm:$0xff]
      %v6044 = vld [vmem:[#allocation3 + $0x4e] sm:$0xff]
      %v6045 = vld [vmem:[#allocation3 + $0x56] sm:$0xff]
      %v6046 = vld [vmem:[#allocation3 + $0x5e] sm:$0xff]
      %v6047 = vld [vmem:[#allocation3 + $0x66] sm:$0xff]
      %v6048 = vld [vmem:[#allocation3 + $0x6e] sm:$0xff]
      %v6049 = vld [vmem:[#allocation3 + $0x76] sm:$0xff]
      %v6050 = vld [vmem:[#allocation3 + $0x7e] sm:$0xff]
      %v6051 = vld [vmem:[#allocation3 + $0x86] sm:$0xff]
      %v6052 = vld [vmem:[#allocation3 + $0x8e] sm:$0xff]
      %v6053 = vld [vmem:[#allocation3 + $0x96] sm:$0xff]
      %v6054 = vld [vmem:[#allocation3 + $0x9e] sm:$0xff]
      %v6055 = vld [vmem:[#allocation3 + $0xa6] sm:$0xff]
      %v6056 = vld [vmem:[#allocation3 + $0xae] sm:$0xff]
      %v6057 = vld [vmem:[#allocation3 + $0xb6] sm:$0xff]
      %v6058 = vld [vmem:[#allocation3 + $0xbe] sm:$0xff]
      %v6059 = vld [vmem:[#allocation3 + $0xc6] sm:$0xff]
      %v6060 = vld [vmem:[#allocation3 + $0xce] sm:$0xff]
      %v6061 = vld [vmem:[#allocation3 + $0xd6] sm:$0xff]
      %v6062 = vld [vmem:[#allocation3 + $0xde] sm:$0xff]
      %v6063 = vld [vmem:[#allocation3 + $0xe6] sm:$0xff]
      %v6064 = vld [vmem:[#allocation3 + $0xee] sm:$0xff]
      %v6065 = vld [vmem:[#allocation3 + $0xf6] sm:$0xff]
      %v6066 = vld [vmem:[#allocation3 + $0xfe] sm:$0xff]
      %v6067 = vld [vmem:[#allocation3 + $0x106] sm:$0xff]
      %v6068 = vld [vmem:[#allocation3 + $0x10e] sm:$0xff]
      %v6069 = vld [vmem:[#allocation3 + $0x116] sm:$0xff]
      %v6070 = vld [vmem:[#allocation3 + $0x11e] sm:$0xff]
      %v6071 = vld [vmem:[#allocation3 + $0x126] sm:$0xff]
      %v6072 = vld [vmem:[#allocation3 + $0x12e] sm:$0xff]
      %v6073 = vld [vmem:[#allocation3 + $0x136] sm:$0xff]
      %v6074 = vld [vmem:[#allocation3 + $0x13e] sm:$0xff]
      %v6075 = vld [vmem:[#allocation3 + $0x146] sm:$0xff]
      %v6076 = vld [vmem:[#allocation3 + $0x14e] sm:$0xff]
      %v6077 = vld [vmem:[#allocation3 + $0x156] sm:$0xff]
      %v6078 = vld [vmem:[#allocation3 + $0x15e] sm:$0xff]
      %v6079 = vld [vmem:[#allocation3 + $0x166] sm:$0xf]
      %s6080 = scalar_lea.vmem %s9, 512
      %v6081 = vld [vmem:[%s6080] sm:$0xff]
      %v6082 = vld [vmem:[%s6080 + $0x8] sm:$0xff]
      %v6083 = vld [vmem:[%s6080 + $0x10] sm:$0xff]
      %v6084 = vld [vmem:[%s6080 + $0x18] sm:$0xff]
      %v6085 = vld [vmem:[%s6080 + $0x20] sm:$0xff]
      %v6086 = vld [vmem:[%s6080 + $0x28] sm:$0xff]
      %v6087 = vld [vmem:[%s6080 + $0x30] sm:$0xff]
      %v6088 = vld [vmem:[%s6080 + $0x38] sm:$0xff]
      %v6090 = vsel %vm787, %v6039, 0
      %v6093 = vsel %vm787, %v6040, 0
      %v6096 = vsel %vm787, %v6041, 0
      %v6099 = vsel %vm787, %v6042, 0
      %v6102 = vsel %vm787, %v6043, 0
      %v6105 = vsel %vm787, %v6044, 0
      %v6108 = vsel %vm787, %v6045, 0
      %v6111 = vsel %vm787, %v6046, 0
      %v6114 = vsel %vm787, %v6047, 0
      %v6117 = vsel %vm787, %v6048, 0
      %v6120 = vsel %vm787, %v6049, 0
      %v6123 = vsel %vm787, %v6050, 0
      %v6126 = vsel %vm787, %v6051, 0
      %v6129 = vsel %vm787, %v6052, 0
      %v6132 = vsel %vm787, %v6053, 0
      %v6135 = vsel %vm787, %v6054, 0
      %v6138 = vsel %vm787, %v6055, 0
      %v6141 = vsel %vm787, %v6056, 0
      %v6144 = vsel %vm787, %v6057, 0
      %v6147 = vsel %vm787, %v6058, 0
      %v6150 = vsel %vm787, %v6059, 0
      %v6153 = vsel %vm787, %v6060, 0
      %v6156 = vsel %vm787, %v6061, 0
      %v6159 = vsel %vm787, %v6062, 0
      %v6162 = vsel %vm787, %v6063, 0
      %v6165 = vsel %vm787, %v6064, 0
      %v6168 = vsel %vm787, %v6065, 0
      %v6171 = vsel %vm787, %v6066, 0
      %v6174 = vsel %vm787, %v6067, 0
      %v6177 = vsel %vm787, %v6068, 0
      %v6180 = vsel %vm787, %v6069, 0
      %v6183 = vsel %vm787, %v6070, 0
      %v6186 = vsel %vm787, %v6071, 0
      %v6189 = vsel %vm787, %v6072, 0
      %v6192 = vsel %vm787, %v6073, 0
      %v6195 = vsel %vm787, %v6074, 0
      %v6198 = vsel %vm787, %v6075, 0
      %v6201 = vsel %vm787, %v6076, 0
      %v6204 = vsel %vm787, %v6077, 0
      %v6207 = vsel %vm787, %v6078, 0
      %v6210 = vsel %vm787, %v6079, 0
      %6212 = vmatprep.subr.mxu0 0.0
      %6213 = vmatpush1.msra.mxu0 %v6081
      %6214 = vmatprep.subr.mxu0 0.0
      %6215 = vmatpush1.msra.mxu0 %v6082
      %6216 = vmatprep.subr.mxu0 0.0
      %6217 = vmatpush1.msra.mxu0 %v6083
      %6218 = vmatprep.subr.mxu0 0.0
      %6219 = vmatpush1.msra.mxu0 %v6084
      %6220 = vmatprep.subr.mxu0 0.0
      %6221 = vmatpush1.msra.mxu0 %v6085
      %6222 = vmatprep.subr.mxu0 0.0
      %6223 = vmatpush1.msra.mxu0 %v6086
      %6224 = vmatprep.subr.mxu0 0.0
      %6225 = vmatpush1.msra.mxu0 %v6087
      %6226 = vmatprep.subr.mxu0 0.0
      %6227 = vmatpush1.msra.mxu0 %v6088
      %6228 = vmatprep.subr.mxu0 0.0
      %6229 = vmatpush1.msra.mxu0 0.0
      %6230 = vmatprep.subr.mxu0 0.0
      %6231 = vmatpush1.msra.mxu0 0.0
      %6232 = vmatprep.subr.mxu0 0.0
      %6233 = vmatpush1.msra.mxu0 0.0
      %6234 = vmatprep.subr.mxu0 0.0
      %6235 = vmatpush1.msra.mxu0 0.0
      %6236 = vmatprep.subr.mxu0 0.0
      %6237 = vmatpush1.msra.mxu0 0.0
      %6238 = vmatprep.subr.mxu0 0.0
      %6239 = vmatpush1.msra.mxu0 0.0
      %6240 = vmatprep.subr.mxu0 0.0
      %6241 = vmatpush1.msra.mxu0 0.0
      %6242 = vmatprep.subr.mxu0 0.0
      %6243 = vmatpush1.msra.mxu0 0.0
      %6244 = vmatprep.subr.mxu0 0.0
      %6245 = vmatpush1.msra.mxu0 0.0
      %6246 = vmatprep.subr.mxu0 0.0
      %6247 = vmatpush1.msra.mxu0 0.0
      %6248 = vmatprep.subr.mxu0 0.0
      %6249 = vmatpush1.msra.mxu0 0.0
      %6250 = vmatprep.subr.mxu0 0.0
      %6251 = vmatpush1.msra.mxu0 0.0
      %6252 = vmatprep.subr.mxu0 0.0
      %6253 = vmatpush1.msra.mxu0 0.0
      %6254 = vmatprep.subr.mxu0 0.0
      %6255 = vmatpush1.msra.mxu0 0.0
      %6256 = vmatprep.subr.mxu0 0.0
      %6257 = vmatpush1.msra.mxu0 0.0
      %6258 = vmatprep.subr.mxu0 0.0
      %6259 = vmatpush1.msra.mxu0 0.0
      %6260 = vmatprep.subr.mxu0 0.0
      %6261 = vmatpush1.msra.mxu0 0.0
      %6262 = vmatprep.subr.mxu0 0.0
      %6263 = vmatpush1.msra.mxu0 0.0
      %6264 = vmatprep.subr.mxu0 0.0
      %6265 = vmatpush1.msra.mxu0 0.0
      %6266 = vmatprep.subr.mxu0 0.0
      %6267 = vmatpush1.msra.mxu0 0.0
      %6268 = vmatprep.subr.mxu0 0.0
      %6269 = vmatpush1.msra.mxu0 0.0
      %6270 = vmatprep.subr.mxu0 0.0
      %6271 = vmatpush1.msra.mxu0 0.0
      %6272 = vmatprep.subr.mxu0 0.0
      %6273 = vmatpush1.msra.mxu0 0.0
      %6274 = vmatprep.subr.mxu0 0.0
      %6275 = vmatpush1.msra.mxu0 0.0
      %6276 = vmatprep.mubr.f32.mxu0 0.0
      %6277 = vmatmul.mubr.f32.gmra.mrb[0].mxu0 %v6090
      %v6278 = vpop.f32.mrb[0].mxu0
      %v6279 = vadd.f32 0.0, %v6278
      %v6280 = vpop.f32.mrb[0].mxu0
      %6281 = vmatprep.mubr.f32.mxu0 0.0
      %6282 = vmatmul.mubr.f32.gmra.mrb[0].mxu0 %v6093
      %v6283 = vpop.f32.mrb[0].mxu0
      %v6284 = vadd.f32 0.0, %v6283
      %v6285 = vpop.f32.mrb[0].mxu0
      %6286 = vmatprep.mubr.f32.mxu0 0.0
      %6287 = vmatmul.mubr.f32.gmra.mrb[0].mxu0 %v6096
      %v6288 = vpop.f32.mrb[0].mxu0
      %v6289 = vadd.f32 0.0, %v6288
      %v6290 = vpop.f32.mrb[0].mxu0
      %6291 = vmatprep.mubr.f32.mxu0 0.0
      %6292 = vmatmul.mubr.f32.gmra.mrb[0].mxu0 %v6099
      %v6293 = vpop.f32.mrb[0].mxu0
      %v6294 = vadd.f32 0.0, %v6293
      %v6295 = vpop.f32.mrb[0].mxu0
      %6296 = vmatprep.mubr.f32.mxu0 0.0
      %6297 = vmatmul.mubr.f32.gmra.mrb[0].mxu0 %v6102
      %v6298 = vpop.f32.mrb[0].mxu0
      %v6299 = vadd.f32 0.0, %v6298
      %v6300 = vpop.f32.mrb[0].mxu0
      %6301 = vmatprep.mubr.f32.mxu0 0.0
      %6302 = vmatmul.mubr.f32.gmra.mrb[0].mxu0 %v6105
      %v6303 = vpop.f32.mrb[0].mxu0
      %v6304 = vadd.f32 0.0, %v6303
      %v6305 = vpop.f32.mrb[0].mxu0
      %6306 = vmatprep.mubr.f32.mxu0 0.0
      %6307 = vmatmul.mubr.f32.gmra.mrb[0].mxu0 %v6108
      %v6308 = vpop.f32.mrb[0].mxu0
      %v6309 = vadd.f32 0.0, %v6308
      %v6310 = vpop.f32.mrb[0].mxu0
      %6311 = vmatprep.mubr.f32.mxu0 0.0
      %6312 = vmatmul.mubr.f32.gmra.mrb[0].mxu0 %v6111
      %v6313 = vpop.f32.mrb[0].mxu0
      %v6314 = vadd.f32 0.0, %v6313
      %v6315 = vpop.f32.mrb[0].mxu0
      %6316 = vmatprep.mubr.f32.mxu0 0.0
      %6317 = vmatmul.mubr.f32.gmra.mrb[0].mxu0 %v6114
      %v6318 = vpop.f32.mrb[0].mxu0
      %v6319 = vadd.f32 0.0, %v6318
      %v6320 = vpop.f32.mrb[0].mxu0
      %6321 = vmatprep.mubr.f32.mxu0 0.0
      %6322 = vmatmul.mubr.f32.gmra.mrb[0].mxu0 %v6117
      %v6323 = vpop.f32.mrb[0].mxu0
      %v6324 = vadd.f32 0.0, %v6323
      %v6325 = vpop.f32.mrb[0].mxu0
      %6326 = vmatprep.mubr.f32.mxu0 0.0
      %6327 = vmatmul.mubr.f32.gmra.mrb[0].mxu0 %v6120
      %v6328 = vpop.f32.mrb[0].mxu0
      %v6329 = vadd.f32 0.0, %v6328
      %v6330 = vpop.f32.mrb[0].mxu0
      %6331 = vmatprep.mubr.f32.mxu0 0.0
      %6332 = vmatmul.mubr.f32.gmra.mrb[0].mxu0 %v6123
      %v6333 = vpop.f32.mrb[0].mxu0
      %v6334 = vadd.f32 0.0, %v6333
      %v6335 = vpop.f32.mrb[0].mxu0
      %6336 = vmatprep.mubr.f32.mxu0 0.0
      %6337 = vmatmul.mubr.f32.gmra.mrb[0].mxu0 %v6126
      %v6338 = vpop.f32.mrb[0].mxu0
      %v6339 = vadd.f32 0.0, %v6338
      %v6340 = vpop.f32.mrb[0].mxu0
      %6341 = vmatprep.mubr.f32.mxu0 0.0
      %6342 = vmatmul.mubr.f32.gmra.mrb[0].mxu0 %v6129
      %v6343 = vpop.f32.mrb[0].mxu0
      %v6344 = vadd.f32 0.0, %v6343
      %v6345 = vpop.f32.mrb[0].mxu0
      %6346 = vmatprep.mubr.f32.mxu0 0.0
      %6347 = vmatmul.mubr.f32.gmra.mrb[0].mxu0 %v6132
      %v6348 = vpop.f32.mrb[0].mxu0
      %v6349 = vadd.f32 0.0, %v6348
      %v6350 = vpop.f32.mrb[0].mxu0
      %6351 = vmatprep.mubr.f32.mxu0 0.0
      %6352 = vmatmul.mubr.f32.gmra.mrb[0].mxu0 %v6135
      %v6353 = vpop.f32.mrb[0].mxu0
      %v6354 = vadd.f32 0.0, %v6353
      %v6355 = vpop.f32.mrb[0].mxu0
      %6356 = vmatprep.mubr.f32.mxu0 0.0
      %6357 = vmatmul.mubr.f32.gmra.mrb[0].mxu0 %v6138
      %v6358 = vpop.f32.mrb[0].mxu0
      %v6359 = vadd.f32 0.0, %v6358
      %v6360 = vpop.f32.mrb[0].mxu0
      %6361 = vmatprep.mubr.f32.mxu0 0.0
      %6362 = vmatmul.mubr.f32.gmra.mrb[0].mxu0 %v6141
      %v6363 = vpop.f32.mrb[0].mxu0
      %v6364 = vadd.f32 0.0, %v6363
      %v6365 = vpop.f32.mrb[0].mxu0
      %6366 = vmatprep.mubr.f32.mxu0 0.0
      %6367 = vmatmul.mubr.f32.gmra.mrb[0].mxu0 %v6144
      %v6368 = vpop.f32.mrb[0].mxu0
      %v6369 = vadd.f32 0.0, %v6368
      %v6370 = vpop.f32.mrb[0].mxu0
      %6371 = vmatprep.mubr.f32.mxu0 0.0
      %6372 = vmatmul.mubr.f32.gmra.mrb[0].mxu0 %v6147
      %v6373 = vpop.f32.mrb[0].mxu0
      %v6374 = vadd.f32 0.0, %v6373
      %v6375 = vpop.f32.mrb[0].mxu0
      %6376 = vmatprep.mubr.f32.mxu0 0.0
      %6377 = vmatmul.mubr.f32.gmra.mrb[0].mxu0 %v6150
      %v6378 = vpop.f32.mrb[0].mxu0
      %v6379 = vadd.f32 0.0, %v6378
      %v6380 = vpop.f32.mrb[0].mxu0
      %6381 = vmatprep.mubr.f32.mxu0 0.0
      %6382 = vmatmul.mubr.f32.gmra.mrb[0].mxu0 %v6153
      %v6383 = vpop.f32.mrb[0].mxu0
      %v6384 = vadd.f32 0.0, %v6383
      %v6385 = vpop.f32.mrb[0].mxu0
      %6386 = vmatprep.mubr.f32.mxu0 0.0
      %6387 = vmatmul.mubr.f32.gmra.mrb[0].mxu0 %v6156
      %v6388 = vpop.f32.mrb[0].mxu0
      %v6389 = vadd.f32 0.0, %v6388
      %v6390 = vpop.f32.mrb[0].mxu0
      %6391 = vmatprep.mubr.f32.mxu0 0.0
      %6392 = vmatmul.mubr.f32.gmra.mrb[0].mxu0 %v6159
      %v6393 = vpop.f32.mrb[0].mxu0
      %v6394 = vadd.f32 0.0, %v6393
      %v6395 = vpop.f32.mrb[0].mxu0
      %6396 = vmatprep.mubr.f32.mxu0 0.0
      %6397 = vmatmul.mubr.f32.gmra.mrb[0].mxu0 %v6162
      %v6398 = vpop.f32.mrb[0].mxu0
      %v6399 = vadd.f32 0.0, %v6398
      %v6400 = vpop.f32.mrb[0].mxu0
      %6401 = vmatprep.mubr.f32.mxu0 0.0
      %6402 = vmatmul.mubr.f32.gmra.mrb[0].mxu0 %v6165
      %v6403 = vpop.f32.mrb[0].mxu0
      %v6404 = vadd.f32 0.0, %v6403
      %v6405 = vpop.f32.mrb[0].mxu0
      %6406 = vmatprep.mubr.f32.mxu0 0.0
      %6407 = vmatmul.mubr.f32.gmra.mrb[0].mxu0 %v6168
      %v6408 = vpop.f32.mrb[0].mxu0
      %v6409 = vadd.f32 0.0, %v6408
      %v6410 = vpop.f32.mrb[0].mxu0
      %6411 = vmatprep.mubr.f32.mxu0 0.0
      %6412 = vmatmul.mubr.f32.gmra.mrb[0].mxu0 %v6171
      %v6413 = vpop.f32.mrb[0].mxu0
      %v6414 = vadd.f32 0.0, %v6413
      %v6415 = vpop.f32.mrb[0].mxu0
      %6416 = vmatprep.mubr.f32.mxu0 0.0
      %6417 = vmatmul.mubr.f32.gmra.mrb[0].mxu0 %v6174
      %v6418 = vpop.f32.mrb[0].mxu0
      %v6419 = vadd.f32 0.0, %v6418
      %v6420 = vpop.f32.mrb[0].mxu0
      %6421 = vmatprep.mubr.f32.mxu0 0.0
      %6422 = vmatmul.mubr.f32.gmra.mrb[0].mxu0 %v6177
      %v6423 = vpop.f32.mrb[0].mxu0
      %v6424 = vadd.f32 0.0, %v6423
      %v6425 = vpop.f32.mrb[0].mxu0
      %6426 = vmatprep.mubr.f32.mxu0 0.0
      %6427 = vmatmul.mubr.f32.gmra.mrb[0].mxu0 %v6180
      %v6428 = vpop.f32.mrb[0].mxu0
      %v6429 = vadd.f32 0.0, %v6428
      %v6430 = vpop.f32.mrb[0].mxu0
      %6431 = vmatprep.mubr.f32.mxu0 0.0
      %6432 = vmatmul.mubr.f32.gmra.mrb[0].mxu0 %v6183
      %v6433 = vpop.f32.mrb[0].mxu0
      %v6434 = vadd.f32 0.0, %v6433
      %v6435 = vpop.f32.mrb[0].mxu0
      %6436 = vmatprep.mubr.f32.mxu0 0.0
      %6437 = vmatmul.mubr.f32.gmra.mrb[0].mxu0 %v6186
      %v6438 = vpop.f32.mrb[0].mxu0
      %v6439 = vadd.f32 0.0, %v6438
      %v6440 = vpop.f32.mrb[0].mxu0
      %6441 = vmatprep.mubr.f32.mxu0 0.0
      %6442 = vmatmul.mubr.f32.gmra.mrb[0].mxu0 %v6189
      %v6443 = vpop.f32.mrb[0].mxu0
      %v6444 = vadd.f32 0.0, %v6443
      %v6445 = vpop.f32.mrb[0].mxu0
      %6446 = vmatprep.mubr.f32.mxu0 0.0
      %6447 = vmatmul.mubr.f32.gmra.mrb[0].mxu0 %v6192
      %v6448 = vpop.f32.mrb[0].mxu0
      %v6449 = vadd.f32 0.0, %v6448
      %v6450 = vpop.f32.mrb[0].mxu0
      %6451 = vmatprep.mubr.f32.mxu0 0.0
      %6452 = vmatmul.mubr.f32.gmra.mrb[0].mxu0 %v6195
      %v6453 = vpop.f32.mrb[0].mxu0
      %v6454 = vadd.f32 0.0, %v6453
      %v6455 = vpop.f32.mrb[0].mxu0
      %6456 = vmatprep.mubr.f32.mxu0 0.0
      %6457 = vmatmul.mubr.f32.gmra.mrb[0].mxu0 %v6198
      %v6458 = vpop.f32.mrb[0].mxu0
      %v6459 = vadd.f32 0.0, %v6458
      %v6460 = vpop.f32.mrb[0].mxu0
      %6461 = vmatprep.mubr.f32.mxu0 0.0
      %6462 = vmatmul.mubr.f32.gmra.mrb[0].mxu0 %v6201
      %v6463 = vpop.f32.mrb[0].mxu0
      %v6464 = vadd.f32 0.0, %v6463
      %v6465 = vpop.f32.mrb[0].mxu0
      %6466 = vmatprep.mubr.f32.mxu0 0.0
      %6467 = vmatmul.mubr.f32.gmra.mrb[0].mxu0 %v6204
      %v6468 = vpop.f32.mrb[0].mxu0
      %v6469 = vadd.f32 0.0, %v6468
      %v6470 = vpop.f32.mrb[0].mxu0
      %6471 = vmatprep.mubr.f32.mxu0 0.0
      %6472 = vmatmul.mubr.f32.gmra.mrb[0].mxu0 %v6207
      %v6473 = vpop.f32.mrb[0].mxu0
      %v6474 = vadd.f32 0.0, %v6473
      %v6475 = vpop.f32.mrb[0].mxu0
      %6476 = vmatprep.mubr.f32.mxu0 0.0
      %6477 = vmatmul.mubr.f32.gmra.mrb[0].mxu0 %v6210
      %v6478 = vpop.f32.mrb[0].mxu0
      %v6479 = vadd.f32 0.0, %v6478
      %v6480 = vpop.f32.mrb[0].mxu0
      %6481 = vdwg.mxu0
      %v6482 = vadd.f32 %v5998, %v6279
      %v6483 = vadd.f32 %v5999, %v6284
      %v6484 = vadd.f32 %v6000, %v6289
      %v6485 = vadd.f32 %v6001, %v6294
      %v6486 = vadd.f32 %v6002, %v6299
      %v6487 = vadd.f32 %v6003, %v6304
      %v6488 = vadd.f32 %v6004, %v6309
      %v6489 = vadd.f32 %v6005, %v6314
      %v6490 = vadd.f32 %v6006, %v6319
      %v6491 = vadd.f32 %v6007, %v6324
      %v6492 = vadd.f32 %v6008, %v6329
      %v6493 = vadd.f32 %v6009, %v6334
      %v6494 = vadd.f32 %v6010, %v6339
      %v6495 = vadd.f32 %v6011, %v6344
      %v6496 = vadd.f32 %v6012, %v6349
      %v6497 = vadd.f32 %v6013, %v6354
      %v6498 = vadd.f32 %v6014, %v6359
      %v6499 = vadd.f32 %v6015, %v6364
      %v6500 = vadd.f32 %v6016, %v6369
      %v6501 = vadd.f32 %v6017, %v6374
      %v6502 = vadd.f32 %v6018, %v6379
      %v6503 = vadd.f32 %v6019, %v6384
      %v6504 = vadd.f32 %v6020, %v6389
      %v6505 = vadd.f32 %v6021, %v6394
      %v6506 = vadd.f32 %v6022, %v6399
      %v6507 = vadd.f32 %v6023, %v6404
      %v6508 = vadd.f32 %v6024, %v6409
      %v6509 = vadd.f32 %v6025, %v6414
      %v6510 = vadd.f32 %v6026, %v6419
      %v6511 = vadd.f32 %v6027, %v6424
      %v6512 = vadd.f32 %v6028, %v6429
      %v6513 = vadd.f32 %v6029, %v6434
      %v6514 = vadd.f32 %v6030, %v6439
      %v6515 = vadd.f32 %v6031, %v6444
      %v6516 = vadd.f32 %v6032, %v6449
      %v6517 = vadd.f32 %v6033, %v6454
      %v6518 = vadd.f32 %v6034, %v6459
      %v6519 = vadd.f32 %v6035, %v6464
      %v6520 = vadd.f32 %v6036, %v6469
      %v6521 = vadd.f32 %v6037, %v6474
      %v6522 = vadd.f32 %v6038, %v6479
      %v6523 = vmax.f32 %v6482, 0.0
      %v6524 = vmax.f32 %v6483, 0.0
      %v6525 = vmax.f32 %v6484, 0.0
      %v6526 = vmax.f32 %v6485, 0.0
      %v6527 = vmax.f32 %v6486, 0.0
      %v6528 = vmax.f32 %v6487, 0.0
      %v6529 = vmax.f32 %v6488, 0.0
      %v6530 = vmax.f32 %v6489, 0.0
      %v6531 = vmax.f32 %v6490, 0.0
      %v6532 = vmax.f32 %v6491, 0.0
      %v6533 = vmax.f32 %v6492, 0.0
      %v6534 = vmax.f32 %v6493, 0.0
      %v6535 = vmax.f32 %v6494, 0.0
      %v6536 = vmax.f32 %v6495, 0.0
      %v6537 = vmax.f32 %v6496, 0.0
      %v6538 = vmax.f32 %v6497, 0.0
      %v6539 = vmax.f32 %v6498, 0.0
      %v6540 = vmax.f32 %v6499, 0.0
      %v6541 = vmax.f32 %v6500, 0.0
      %v6542 = vmax.f32 %v6501, 0.0
      %v6543 = vmax.f32 %v6502, 0.0
      %v6544 = vmax.f32 %v6503, 0.0
      %v6545 = vmax.f32 %v6504, 0.0
      %v6546 = vmax.f32 %v6505, 0.0
      %v6547 = vmax.f32 %v6506, 0.0
      %v6548 = vmax.f32 %v6507, 0.0
      %v6549 = vmax.f32 %v6508, 0.0
      %v6550 = vmax.f32 %v6509, 0.0
      %v6551 = vmax.f32 %v6510, 0.0
      %v6552 = vmax.f32 %v6511, 0.0
      %v6553 = vmax.f32 %v6512, 0.0
      %v6554 = vmax.f32 %v6513, 0.0
      %v6555 = vmax.f32 %v6514, 0.0
      %v6556 = vmax.f32 %v6515, 0.0
      %v6557 = vmax.f32 %v6516, 0.0
      %v6558 = vmax.f32 %v6517, 0.0
      %v6559 = vmax.f32 %v6518, 0.0
      %v6560 = vmax.f32 %v6519, 0.0
      %v6561 = vmax.f32 %v6520, 0.0
      %v6562 = vmax.f32 %v6521, 0.0
      %v6563 = vmax.f32 %v6522, 0.0
      %v6564 = vld [vmem:[%s11] sm:$0xff]
      %v6565 = vld [vmem:[%s11 + $0x8] sm:$0xff]
      %v6566 = vld [vmem:[%s11 + $0x10] sm:$0xff]
      %v6567 = vld [vmem:[%s11 + $0x18] sm:$0xff]
      %v6568 = vld [vmem:[%s11 + $0x20] sm:$0xff]
      %v6569 = vld [vmem:[%s11 + $0x28] sm:$0xff]
      %v6570 = vld [vmem:[%s11 + $0x30] sm:$0xff]
      %v6571 = vld [vmem:[%s11 + $0x38] sm:$0xff]
      %v6572 = vld [vmem:[%s12] sm:$0x1]
      %v6574 = vlaneseq
      %v6575 = vshrl.u32 %v6574, 7
      %v6576 = vsub.s32 0, %v6575
      %v6577 = vrot.slane %v6572, %v6576
      %v6580 = vsel %vm787, %v6523, 0
      %v6583 = vsel %vm787, %v6524, 0
      %v6586 = vsel %vm787, %v6525, 0
      %v6589 = vsel %vm787, %v6526, 0
      %v6592 = vsel %vm787, %v6527, 0
      %v6595 = vsel %vm787, %v6528, 0
      %v6598 = vsel %vm787, %v6529, 0
      %v6601 = vsel %vm787, %v6530, 0
      %v6604 = vsel %vm787, %v6531, 0
      %v6607 = vsel %vm787, %v6532, 0
      %v6610 = vsel %vm787, %v6533, 0
      %v6613 = vsel %vm787, %v6534, 0
      %v6616 = vsel %vm787, %v6535, 0
      %v6619 = vsel %vm787, %v6536, 0
      %v6622 = vsel %vm787, %v6537, 0
      %v6625 = vsel %vm787, %v6538, 0
      %v6628 = vsel %vm787, %v6539, 0
      %v6631 = vsel %vm787, %v6540, 0
      %v6634 = vsel %vm787, %v6541, 0
      %v6637 = vsel %vm787, %v6542, 0
      %v6640 = vsel %vm787, %v6543, 0
      %v6643 = vsel %vm787, %v6544, 0
      %v6646 = vsel %vm787, %v6545, 0
      %v6649 = vsel %vm787, %v6546, 0
      %v6652 = vsel %vm787, %v6547, 0
      %v6655 = vsel %vm787, %v6548, 0
      %v6658 = vsel %vm787, %v6549, 0
      %v6661 = vsel %vm787, %v6550, 0
      %v6664 = vsel %vm787, %v6551, 0
      %v6667 = vsel %vm787, %v6552, 0
      %v6670 = vsel %vm787, %v6553, 0
      %v6673 = vsel %vm787, %v6554, 0
      %v6676 = vsel %vm787, %v6555, 0
      %v6679 = vsel %vm787, %v6556, 0
      %v6682 = vsel %vm787, %v6557, 0
      %v6685 = vsel %vm787, %v6558, 0
      %v6688 = vsel %vm787, %v6559, 0
      %v6691 = vsel %vm787, %v6560, 0
      %v6694 = vsel %vm787, %v6561, 0
      %v6697 = vsel %vm787, %v6562, 0
      %v6700 = vsel %vm787, %v6563, 0
      %6702 = vmatprep.subr.mxu0 0.0
      %6703 = vmatpush1.msra.mxu0 %v6564
      %6704 = vmatprep.subr.mxu0 0.0
      %6705 = vmatpush1.msra.mxu0 %v6565
      %6706 = vmatprep.subr.mxu0 0.0
      %6707 = vmatpush1.msra.mxu0 %v6566
      %6708 = vmatprep.subr.mxu0 0.0
      %6709 = vmatpush1.msra.mxu0 %v6567
      %6710 = vmatprep.subr.mxu0 0.0
      %6711 = vmatpush1.msra.mxu0 %v6568
      %6712 = vmatprep.subr.mxu0 0.0
      %6713 = vmatpush1.msra.mxu0 %v6569
      %6714 = vmatprep.subr.mxu0 0.0
      %6715 = vmatpush1.msra.mxu0 %v6570
      %6716 = vmatprep.subr.mxu0 0.0
      %6717 = vmatpush1.msra.mxu0 %v6571
      %6718 = vmatprep.subr.mxu0 0.0
      %6719 = vmatpush1.msra.mxu0 0.0
      %6720 = vmatprep.subr.mxu0 0.0
      %6721 = vmatpush1.msra.mxu0 0.0
      %6722 = vmatprep.subr.mxu0 0.0
      %6723 = vmatpush1.msra.mxu0 0.0
      %6724 = vmatprep.subr.mxu0 0.0
      %6725 = vmatpush1.msra.mxu0 0.0
      %6726 = vmatprep.subr.mxu0 0.0
      %6727 = vmatpush1.msra.mxu0 0.0
      %6728 = vmatprep.subr.mxu0 0.0
      %6729 = vmatpush1.msra.mxu0 0.0
      %6730 = vmatprep.subr.mxu0 0.0
      %6731 = vmatpush1.msra.mxu0 0.0
      %6732 = vmatprep.subr.mxu0 0.0
      %6733 = vmatpush1.msra.mxu0 0.0
      %6734 = vmatprep.subr.mxu0 0.0
      %6735 = vmatpush1.msra.mxu0 0.0
      %6736 = vmatprep.subr.mxu0 0.0
      %6737 = vmatpush1.msra.mxu0 0.0
      %6738 = vmatprep.subr.mxu0 0.0
      %6739 = vmatpush1.msra.mxu0 0.0
      %6740 = vmatprep.subr.mxu0 0.0
      %6741 = vmatpush1.msra.mxu0 0.0
      %6742 = vmatprep.subr.mxu0 0.0
      %6743 = vmatpush1.msra.mxu0 0.0
      %6744 = vmatprep.subr.mxu0 0.0
      %6745 = vmatpush1.msra.mxu0 0.0
      %6746 = vmatprep.subr.mxu0 0.0
      %6747 = vmatpush1.msra.mxu0 0.0
      %6748 = vmatprep.subr.mxu0 0.0
      %6749 = vmatpush1.msra.mxu0 0.0
      %6750 = vmatprep.subr.mxu0 0.0
      %6751 = vmatpush1.msra.mxu0 0.0
      %6752 = vmatprep.subr.mxu0 0.0
      %6753 = vmatpush1.msra.mxu0 0.0
      %6754 = vmatprep.subr.mxu0 0.0
      %6755 = vmatpush1.msra.mxu0 0.0
      %6756 = vmatprep.subr.mxu0 0.0
      %6757 = vmatpush1.msra.mxu0 0.0
      %6758 = vmatprep.subr.mxu0 0.0
      %6759 = vmatpush1.msra.mxu0 0.0
      %6760 = vmatprep.subr.mxu0 0.0
      %6761 = vmatpush1.msra.mxu0 0.0
      %6762 = vmatprep.subr.mxu0 0.0
      %6763 = vmatpush1.msra.mxu0 0.0
      %6764 = vmatprep.subr.mxu0 0.0
      %6765 = vmatpush1.msra.mxu0 0.0
      %6766 = vmatprep.mubr.f32.mxu0 0.0
      %6767 = vmatmul.mubr.f32.gmra.mrb[0].mxu0 %v6580
      %v6768 = vpop.f32.mrb[0].mxu0
      %v6769 = vadd.f32 %v6577, %v6768
      %v6770 = vpop.f32.mrb[0].mxu0
      %6771 = vmatprep.mubr.f32.mxu0 0.0
      %6772 = vmatmul.mubr.f32.gmra.mrb[0].mxu0 %v6583
      %v6773 = vpop.f32.mrb[0].mxu0
      %v6774 = vadd.f32 %v6577, %v6773
      %v6775 = vpop.f32.mrb[0].mxu0
      %6776 = vmatprep.mubr.f32.mxu0 0.0
      %6777 = vmatmul.mubr.f32.gmra.mrb[0].mxu0 %v6586
      %v6778 = vpop.f32.mrb[0].mxu0
      %v6779 = vadd.f32 %v6577, %v6778
      %v6780 = vpop.f32.mrb[0].mxu0
      %6781 = vmatprep.mubr.f32.mxu0 0.0
      %6782 = vmatmul.mubr.f32.gmra.mrb[0].mxu0 %v6589
      %v6783 = vpop.f32.mrb[0].mxu0
      %v6784 = vadd.f32 %v6577, %v6783
      %v6785 = vpop.f32.mrb[0].mxu0
      %6786 = vmatprep.mubr.f32.mxu0 0.0
      %6787 = vmatmul.mubr.f32.gmra.mrb[0].mxu0 %v6592
      %v6788 = vpop.f32.mrb[0].mxu0
      %v6789 = vadd.f32 %v6577, %v6788
      %v6790 = vpop.f32.mrb[0].mxu0
      %6791 = vmatprep.mubr.f32.mxu0 0.0
      %6792 = vmatmul.mubr.f32.gmra.mrb[0].mxu0 %v6595
      %v6793 = vpop.f32.mrb[0].mxu0
      %v6794 = vadd.f32 %v6577, %v6793
      %v6795 = vpop.f32.mrb[0].mxu0
      %6796 = vmatprep.mubr.f32.mxu0 0.0
      %6797 = vmatmul.mubr.f32.gmra.mrb[0].mxu0 %v6598
      %v6798 = vpop.f32.mrb[0].mxu0
      %v6799 = vadd.f32 %v6577, %v6798
      %v6800 = vpop.f32.mrb[0].mxu0
      %6801 = vmatprep.mubr.f32.mxu0 0.0
      %6802 = vmatmul.mubr.f32.gmra.mrb[0].mxu0 %v6601
      %v6803 = vpop.f32.mrb[0].mxu0
      %v6804 = vadd.f32 %v6577, %v6803
      %v6805 = vpop.f32.mrb[0].mxu0
      %6806 = vmatprep.mubr.f32.mxu0 0.0
      %6807 = vmatmul.mubr.f32.gmra.mrb[0].mxu0 %v6604
      %v6808 = vpop.f32.mrb[0].mxu0
      %v6809 = vadd.f32 %v6577, %v6808
      %v6810 = vpop.f32.mrb[0].mxu0
      %6811 = vmatprep.mubr.f32.mxu0 0.0
      %6812 = vmatmul.mubr.f32.gmra.mrb[0].mxu0 %v6607
      %v6813 = vpop.f32.mrb[0].mxu0
      %v6814 = vadd.f32 %v6577, %v6813
      %v6815 = vpop.f32.mrb[0].mxu0
      %6816 = vmatprep.mubr.f32.mxu0 0.0
      %6817 = vmatmul.mubr.f32.gmra.mrb[0].mxu0 %v6610
      %v6818 = vpop.f32.mrb[0].mxu0
      %v6819 = vadd.f32 %v6577, %v6818
      %v6820 = vpop.f32.mrb[0].mxu0
      %6821 = vmatprep.mubr.f32.mxu0 0.0
      %6822 = vmatmul.mubr.f32.gmra.mrb[0].mxu0 %v6613
      %v6823 = vpop.f32.mrb[0].mxu0
      %v6824 = vadd.f32 %v6577, %v6823
      %v6825 = vpop.f32.mrb[0].mxu0
      %6826 = vmatprep.mubr.f32.mxu0 0.0
      %6827 = vmatmul.mubr.f32.gmra.mrb[0].mxu0 %v6616
      %v6828 = vpop.f32.mrb[0].mxu0
      %v6829 = vadd.f32 %v6577, %v6828
      %v6830 = vpop.f32.mrb[0].mxu0
      %6831 = vmatprep.mubr.f32.mxu0 0.0
      %6832 = vmatmul.mubr.f32.gmra.mrb[0].mxu0 %v6619
      %v6833 = vpop.f32.mrb[0].mxu0
      %v6834 = vadd.f32 %v6577, %v6833
      %v6835 = vpop.f32.mrb[0].mxu0
      %6836 = vmatprep.mubr.f32.mxu0 0.0
      %6837 = vmatmul.mubr.f32.gmra.mrb[0].mxu0 %v6622
      %v6838 = vpop.f32.mrb[0].mxu0
      %v6839 = vadd.f32 %v6577, %v6838
      %v6840 = vpop.f32.mrb[0].mxu0
      %6841 = vmatprep.mubr.f32.mxu0 0.0
      %6842 = vmatmul.mubr.f32.gmra.mrb[0].mxu0 %v6625
      %v6843 = vpop.f32.mrb[0].mxu0
      %v6844 = vadd.f32 %v6577, %v6843
      %v6845 = vpop.f32.mrb[0].mxu0
      %6846 = vmatprep.mubr.f32.mxu0 0.0
      %6847 = vmatmul.mubr.f32.gmra.mrb[0].mxu0 %v6628
      %v6848 = vpop.f32.mrb[0].mxu0
      %v6849 = vadd.f32 %v6577, %v6848
      %v6850 = vpop.f32.mrb[0].mxu0
      %6851 = vmatprep.mubr.f32.mxu0 0.0
      %6852 = vmatmul.mubr.f32.gmra.mrb[0].mxu0 %v6631
      %v6853 = vpop.f32.mrb[0].mxu0
      %v6854 = vadd.f32 %v6577, %v6853
      %v6855 = vpop.f32.mrb[0].mxu0
      %6856 = vmatprep.mubr.f32.mxu0 0.0
      %6857 = vmatmul.mubr.f32.gmra.mrb[0].mxu0 %v6634
      %v6858 = vpop.f32.mrb[0].mxu0
      %v6859 = vadd.f32 %v6577, %v6858
      %v6860 = vpop.f32.mrb[0].mxu0
      %6861 = vmatprep.mubr.f32.mxu0 0.0
      %6862 = vmatmul.mubr.f32.gmra.mrb[0].mxu0 %v6637
      %v6863 = vpop.f32.mrb[0].mxu0
      %v6864 = vadd.f32 %v6577, %v6863
      %v6865 = vpop.f32.mrb[0].mxu0
      %6866 = vmatprep.mubr.f32.mxu0 0.0
      %6867 = vmatmul.mubr.f32.gmra.mrb[0].mxu0 %v6640
      %v6868 = vpop.f32.mrb[0].mxu0
      %v6869 = vadd.f32 %v6577, %v6868
      %v6870 = vpop.f32.mrb[0].mxu0
      %6871 = vmatprep.mubr.f32.mxu0 0.0
      %6872 = vmatmul.mubr.f32.gmra.mrb[0].mxu0 %v6643
      %v6873 = vpop.f32.mrb[0].mxu0
      %v6874 = vadd.f32 %v6577, %v6873
      %v6875 = vpop.f32.mrb[0].mxu0
      %6876 = vmatprep.mubr.f32.mxu0 0.0
      %6877 = vmatmul.mubr.f32.gmra.mrb[0].mxu0 %v6646
      %v6878 = vpop.f32.mrb[0].mxu0
      %v6879 = vadd.f32 %v6577, %v6878
      %v6880 = vpop.f32.mrb[0].mxu0
      %6881 = vmatprep.mubr.f32.mxu0 0.0
      %6882 = vmatmul.mubr.f32.gmra.mrb[0].mxu0 %v6649
      %v6883 = vpop.f32.mrb[0].mxu0
      %v6884 = vadd.f32 %v6577, %v6883
      %v6885 = vpop.f32.mrb[0].mxu0
      %6886 = vmatprep.mubr.f32.mxu0 0.0
      %6887 = vmatmul.mubr.f32.gmra.mrb[0].mxu0 %v6652
      %v6888 = vpop.f32.mrb[0].mxu0
      %v6889 = vadd.f32 %v6577, %v6888
      %v6890 = vpop.f32.mrb[0].mxu0
      %6891 = vmatprep.mubr.f32.mxu0 0.0
      %6892 = vmatmul.mubr.f32.gmra.mrb[0].mxu0 %v6655
      %v6893 = vpop.f32.mrb[0].mxu0
      %v6894 = vadd.f32 %v6577, %v6893
      %v6895 = vpop.f32.mrb[0].mxu0
      %6896 = vmatprep.mubr.f32.mxu0 0.0
      %6897 = vmatmul.mubr.f32.gmra.mrb[0].mxu0 %v6658
      %v6898 = vpop.f32.mrb[0].mxu0
      %v6899 = vadd.f32 %v6577, %v6898
      %v6900 = vpop.f32.mrb[0].mxu0
      %6901 = vmatprep.mubr.f32.mxu0 0.0
      %6902 = vmatmul.mubr.f32.gmra.mrb[0].mxu0 %v6661
      %v6903 = vpop.f32.mrb[0].mxu0
      %v6904 = vadd.f32 %v6577, %v6903
      %v6905 = vpop.f32.mrb[0].mxu0
      %6906 = vmatprep.mubr.f32.mxu0 0.0
      %6907 = vmatmul.mubr.f32.gmra.mrb[0].mxu0 %v6664
      %v6908 = vpop.f32.mrb[0].mxu0
      %v6909 = vadd.f32 %v6577, %v6908
      %v6910 = vpop.f32.mrb[0].mxu0
      %6911 = vmatprep.mubr.f32.mxu0 0.0
      %6912 = vmatmul.mubr.f32.gmra.mrb[0].mxu0 %v6667
      %v6913 = vpop.f32.mrb[0].mxu0
      %v6914 = vadd.f32 %v6577, %v6913
      %v6915 = vpop.f32.mrb[0].mxu0
      %6916 = vmatprep.mubr.f32.mxu0 0.0
      %6917 = vmatmul.mubr.f32.gmra.mrb[0].mxu0 %v6670
      %v6918 = vpop.f32.mrb[0].mxu0
      %v6919 = vadd.f32 %v6577, %v6918
      %v6920 = vpop.f32.mrb[0].mxu0
      %6921 = vmatprep.mubr.f32.mxu0 0.0
      %6922 = vmatmul.mubr.f32.gmra.mrb[0].mxu0 %v6673
      %v6923 = vpop.f32.mrb[0].mxu0
      %v6924 = vadd.f32 %v6577, %v6923
      %v6925 = vpop.f32.mrb[0].mxu0
      %6926 = vmatprep.mubr.f32.mxu0 0.0
      %6927 = vmatmul.mubr.f32.gmra.mrb[0].mxu0 %v6676
      %v6928 = vpop.f32.mrb[0].mxu0
      %v6929 = vadd.f32 %v6577, %v6928
      %v6930 = vpop.f32.mrb[0].mxu0
      %6931 = vmatprep.mubr.f32.mxu0 0.0
      %6932 = vmatmul.mubr.f32.gmra.mrb[0].mxu0 %v6679
      %v6933 = vpop.f32.mrb[0].mxu0
      %v6934 = vadd.f32 %v6577, %v6933
      %v6935 = vpop.f32.mrb[0].mxu0
      %6936 = vmatprep.mubr.f32.mxu0 0.0
      %6937 = vmatmul.mubr.f32.gmra.mrb[0].mxu0 %v6682
      %v6938 = vpop.f32.mrb[0].mxu0
      %v6939 = vadd.f32 %v6577, %v6938
      %v6940 = vpop.f32.mrb[0].mxu0
      %6941 = vmatprep.mubr.f32.mxu0 0.0
      %6942 = vmatmul.mubr.f32.gmra.mrb[0].mxu0 %v6685
      %v6943 = vpop.f32.mrb[0].mxu0
      %v6944 = vadd.f32 %v6577, %v6943
      %v6945 = vpop.f32.mrb[0].mxu0
      %6946 = vmatprep.mubr.f32.mxu0 0.0
      %6947 = vmatmul.mubr.f32.gmra.mrb[0].mxu0 %v6688
      %v6948 = vpop.f32.mrb[0].mxu0
      %v6949 = vadd.f32 %v6577, %v6948
      %v6950 = vpop.f32.mrb[0].mxu0
      %6951 = vmatprep.mubr.f32.mxu0 0.0
      %6952 = vmatmul.mubr.f32.gmra.mrb[0].mxu0 %v6691
      %v6953 = vpop.f32.mrb[0].mxu0
      %v6954 = vadd.f32 %v6577, %v6953
      %v6955 = vpop.f32.mrb[0].mxu0
      %6956 = vmatprep.mubr.f32.mxu0 0.0
      %6957 = vmatmul.mubr.f32.gmra.mrb[0].mxu0 %v6694
      %v6958 = vpop.f32.mrb[0].mxu0
      %v6959 = vadd.f32 %v6577, %v6958
      %v6960 = vpop.f32.mrb[0].mxu0
      %6961 = vmatprep.mubr.f32.mxu0 0.0
      %6962 = vmatmul.mubr.f32.gmra.mrb[0].mxu0 %v6697
      %v6963 = vpop.f32.mrb[0].mxu0
      %v6964 = vadd.f32 %v6577, %v6963
      %v6965 = vpop.f32.mrb[0].mxu0
      %6966 = vmatprep.mubr.f32.mxu0 0.0
      %6967 = vmatmul.mubr.f32.gmra.mrb[0].mxu0 %v6700
      %v6968 = vpop.f32.mrb[0].mxu0
      %v6969 = vadd.f32 %v6577, %v6968
      %v6970 = vpop.f32.mrb[0].mxu0
      %6971 = vdwg.mxu0
      %v6972 = vmax.f32 %v6769, 0.0
      %v6973 = vmax.f32 %v6774, 0.0
      %v6974 = vmax.f32 %v6779, 0.0
      %v6975 = vmax.f32 %v6784, 0.0
      %v6976 = vmax.f32 %v6789, 0.0
      %v6977 = vmax.f32 %v6794, 0.0
      %v6978 = vmax.f32 %v6799, 0.0
      %v6979 = vmax.f32 %v6804, 0.0
      %v6980 = vmax.f32 %v6809, 0.0
      %v6981 = vmax.f32 %v6814, 0.0
      %v6982 = vmax.f32 %v6819, 0.0
      %v6983 = vmax.f32 %v6824, 0.0
      %v6984 = vmax.f32 %v6829, 0.0
      %v6985 = vmax.f32 %v6834, 0.0
      %v6986 = vmax.f32 %v6839, 0.0
      %v6987 = vmax.f32 %v6844, 0.0
      %v6988 = vmax.f32 %v6849, 0.0
      %v6989 = vmax.f32 %v6854, 0.0
      %v6990 = vmax.f32 %v6859, 0.0
      %v6991 = vmax.f32 %v6864, 0.0
      %v6992 = vmax.f32 %v6869, 0.0
      %v6993 = vmax.f32 %v6874, 0.0
      %v6994 = vmax.f32 %v6879, 0.0
      %v6995 = vmax.f32 %v6884, 0.0
      %v6996 = vmax.f32 %v6889, 0.0
      %v6997 = vmax.f32 %v6894, 0.0
      %v6998 = vmax.f32 %v6899, 0.0
      %v6999 = vmax.f32 %v6904, 0.0
      %v7000 = vmax.f32 %v6909, 0.0
      %v7001 = vmax.f32 %v6914, 0.0
      %v7002 = vmax.f32 %v6919, 0.0
      %v7003 = vmax.f32 %v6924, 0.0
      %v7004 = vmax.f32 %v6929, 0.0
      %v7005 = vmax.f32 %v6934, 0.0
      %v7006 = vmax.f32 %v6939, 0.0
      %v7007 = vmax.f32 %v6944, 0.0
      %v7008 = vmax.f32 %v6949, 0.0
      %v7009 = vmax.f32 %v6954, 0.0
      %v7010 = vmax.f32 %v6959, 0.0
      %v7011 = vmax.f32 %v6964, 0.0
      %v7012 = vmax.f32 %v6969, 0.0
      %7013 = vst.msk [vmem:[%s440] sm:$0xff] %vm787, %v6972
      %7014 = vst.msk [vmem:[%s440 + $0x8] sm:$0xff] %vm787, %v6973
      %7015 = vst.msk [vmem:[%s440 + $0x10] sm:$0xff] %vm787, %v6974
      %7016 = vst.msk [vmem:[%s440 + $0x18] sm:$0xff] %vm787, %v6975
      %7017 = vst.msk [vmem:[%s440 + $0x20] sm:$0xff] %vm787, %v6976
      %7018 = vst.msk [vmem:[%s440 + $0x28] sm:$0xff] %vm787, %v6977
      %7019 = vst.msk [vmem:[%s440 + $0x30] sm:$0xff] %vm787, %v6978
      %7020 = vst.msk [vmem:[%s440 + $0x38] sm:$0xff] %vm787, %v6979
      %7021 = vst.msk [vmem:[%s440 + $0x40] sm:$0xff] %vm787, %v6980
      %7022 = vst.msk [vmem:[%s440 + $0x48] sm:$0xff] %vm787, %v6981
      %7023 = vst.msk [vmem:[%s440 + $0x50] sm:$0xff] %vm787, %v6982
      %7024 = vst.msk [vmem:[%s440 + $0x58] sm:$0xff] %vm787, %v6983
      %7025 = vst.msk [vmem:[%s440 + $0x60] sm:$0xff] %vm787, %v6984
      %7026 = vst.msk [vmem:[%s440 + $0x68] sm:$0xff] %vm787, %v6985
      %7027 = vst.msk [vmem:[%s440 + $0x70] sm:$0xff] %vm787, %v6986
      %7028 = vst.msk [vmem:[%s440 + $0x78] sm:$0xff] %vm787, %v6987
      %7029 = vst.msk [vmem:[%s440 + $0x80] sm:$0xff] %vm787, %v6988
      %7030 = vst.msk [vmem:[%s440 + $0x88] sm:$0xff] %vm787, %v6989
      %7031 = vst.msk [vmem:[%s440 + $0x90] sm:$0xff] %vm787, %v6990
      %7032 = vst.msk [vmem:[%s440 + $0x98] sm:$0xff] %vm787, %v6991
      %7033 = vst.msk [vmem:[%s440 + $0xa0] sm:$0xff] %vm787, %v6992
      %7034 = vst.msk [vmem:[%s440 + $0xa8] sm:$0xff] %vm787, %v6993
      %7035 = vst.msk [vmem:[%s440 + $0xb0] sm:$0xff] %vm787, %v6994
      %7036 = vst.msk [vmem:[%s440 + $0xb8] sm:$0xff] %vm787, %v6995
      %7037 = vst.msk [vmem:[%s440 + $0xc0] sm:$0xff] %vm787, %v6996
      %7038 = vst.msk [vmem:[%s440 + $0xc8] sm:$0xff] %vm787, %v6997
      %7039 = vst.msk [vmem:[%s440 + $0xd0] sm:$0xff] %vm787, %v6998
      %7040 = vst.msk [vmem:[%s440 + $0xd8] sm:$0xff] %vm787, %v6999
      %7041 = vst.msk [vmem:[%s440 + $0xe0] sm:$0xff] %vm787, %v7000
      %7042 = vst.msk [vmem:[%s440 + $0xe8] sm:$0xff] %vm787, %v7001
      %7043 = vst.msk [vmem:[%s440 + $0xf0] sm:$0xff] %vm787, %v7002
      %7044 = vst.msk [vmem:[%s440 + $0xf8] sm:$0xff] %vm787, %v7003
      %7045 = vst.msk [vmem:[%s440 + $0x100] sm:$0xff] %vm787, %v7004
      %7046 = vst.msk [vmem:[%s440 + $0x108] sm:$0xff] %vm787, %v7005
      %7047 = vst.msk [vmem:[%s440 + $0x110] sm:$0xff] %vm787, %v7006
      %7048 = vst.msk [vmem:[%s440 + $0x118] sm:$0xff] %vm787, %v7007
      %7049 = vst.msk [vmem:[%s440 + $0x120] sm:$0xff] %vm787, %v7008
      %7050 = vst.msk [vmem:[%s440 + $0x128] sm:$0xff] %vm787, %v7009
      %7051 = vst.msk [vmem:[%s440 + $0x130] sm:$0xff] %vm787, %v7010
      %7052 = vst.msk [vmem:[%s440 + $0x138] sm:$0xff] %vm787, %v7011
      %7053 = vst.msk [vmem:[%s440 + $0x140] sm:$0xf] %vm1116, %v7012
      %p7054 = scmp.lt.s32.totalorder %s24, 1
      %s7055 = scalar_select %p7054, %s24, 1
      %s7056 = smul.addr %s7055, 41
      %s7057 = smul.addr %s7056, 8
      %s7058 = scalar_lea.vmem %s13, %s7057
      // Predicated region
      $region73: #{_lambda_.1} parent=71 // pred_check
        %p7059 = pneg %p320
      $region74: #{_lambda_.1} parent=71 // pred_check_branch
        %7061 = sbr.rel (%p7059) target = $region76
      $region75: #{_lambda_.1} parent=71 // pred_region
        _
      $region76: #{_lambda_.1} parent=71 // pred_fallthru
        _
    $region72: #{_lambda_.1} parent=5 // pred_fallthru
      _
    %p7062 = scmp.le.s32.totalorder 2, %s19
    // Predicated region
    $region77: #{_lambda_.1} parent=5 // pred_check
      %p7063 = pneg %p7062
    $region78: #{_lambda_.1} parent=5 // pred_check_branch
      %7065 = sbr.rel (%p7063) target = $region80
    $region79: #{_lambda_.1} parent=5 // pred_region
      %s7066 = ssub.s32 %s19, 2
      // Predicated region
      $region81: #{_lambda_.1} parent=79 // pred_check
        %p7067 = pneg %p326
      $region82: #{_lambda_.1} parent=79 // pred_check_branch
        %7069 = sbr.rel (%p7067) target = $region84
      $region83: #{_lambda_.1} parent=79 // pred_region
        %p7070 = scmp.lt.s32.totalorder %s25, 1
        %s7071 = scalar_select %p7070, %s25, 1
        %s7072 = smul.addr %s7071, 41
        %s7073 = smul.addr %s7072, 8
        %s7074 = scalar_lea.vmem %s13, %s7073
      $region84: #{_lambda_.1} parent=79 // pred_fallthru
        _
    $region80: #{_lambda_.1} parent=5 // pred_fallthru
      _
  $region6: #{_lambda_.1} parent=0 // loop_footer
    %s23 = sadd.s32 1, %s19
  $region7: #{_lambda_.1} parent=0 // loop_footer_branch
    %18 = sbr.rel target = $region3
  $region8: #{_lambda_.1} parent=0 // loop_exit
    _

</llo_original>
